<compile_context>
chip_gen: v5e
topology: v5e:2x2
jax: 0.10.0
libtpu: 0.0.40
codegen_flags: <defaults>
</compile_context>

<pallas_src>
import jax
import jax.numpy as jnp
from jax.experimental import pallas as pl
from jax.experimental.pallas import tpu as pltpu


# Static network geometry for this script (3x3 "same" convs, 2x2 pools).
H1 = W1 = 16
H2, W2 = H1 // 2, W1 // 2            # 8, 8
H3, W3 = H2 // 2, W2 // 2            # 4, 4
C1, C2, C3 = 16, 32, 64
C3_PAD = 128                         # pad conv3 out-channels to a full 128-lane vreg
B_TILE = 8                           # images processed per grid step


# --------------------------------------------------------------------------
# Fused Pallas kernel: B images per grid step.
# --------------------------------------------------------------------------
def _make_fused_kernel(B):

    def kernel(x_ref, w1_ref, b1_ref, w2_ref, b2_ref, w3_ref, b3_ref, o_ref,
               pad1_ref, pad2_ref, col2_ref, pad3_ref, col3_ref):
        f32 = jnp.float32

        # Re-zero only the 1-pixel border of the persistent pad scratches
        # (interior is fully overwritten below; doing it per step keeps it
        # correct under a cross-TensorCore split of the parallel grid axis).
        def zero_border_3d(pad_ref, Hp, Wp):
            pad_ref[:, 0:1, :] = jnp.zeros((B, 1, Wp), f32)
            pad_ref[:, Hp - 1:Hp, :] = jnp.zeros((B, 1, Wp), f32)
            pad_ref[:, :, 0:1] = jnp.zeros((B, Hp, 1), f32)
            pad_ref[:, :, Wp - 1:Wp] = jnp.zeros((B, Hp, 1), f32)

        def zero_border_4d(pad_ref, Hp, Wp, C):
            pad_ref[:, 0:1, :, :] = jnp.zeros((B, 1, Wp, C), f32)
            pad_ref[:, Hp - 1:Hp, :, :] = jnp.zeros((B, 1, Wp, C), f32)
            pad_ref[:, :, 0:1, :] = jnp.zeros((B, Hp, 1, C), f32)
            pad_ref[:, :, Wp - 1:Wp, :] = jnp.zeros((B, Hp, 1, C), f32)

        def maxpool2x2(a, Hin, Win, C):
            # a: rows flattened row-major over (b, y, x), channels last.
            a = a.reshape(B * Hin // 2, 2, Win // 2, 2, C)
            a = jnp.max(a, axis=3)              # pool over x-window
            return jnp.max(a, axis=1)           # pool over y-window -> (B*Ho, Wo, C)

        # ---------------- conv1 (Cin=1): 9 shifted VPU FMAs ----------------
        zero_border_3d(pad1_ref, H1 + 2, W1 + 2)
        pad1_ref[:, 1:H1 + 1, 1:W1 + 1] = x_ref[...]       # (B,16,16) interior
        xp1 = pad1_ref[...]                                 # (B, 18, 18)
        w1v = w1_ref[...]                                   # (9, 16)
        a1 = jnp.zeros((B * H1, W1, C1), f32)
        for t in range(9):                                  # static unroll
            dy, dx = divmod(t, 3)
            patch = xp1[:, dy:dy + H1, dx:dx + W1].reshape(B * H1, W1)
            # (B*16,16,1) * (1,16) -> (B*16,16,16): per-channel scalar weight FMA
            a1 = a1 + patch[:, :, None] * w1v[t:t + 1, :]
        a1 = jnp.maximum(a1 + b1_ref[...], 0.0)             # relu, (B*16,16,16)
        p1 = maxpool2x2(a1, H1, W1, C1)                     # (B*8, 8, 16)

        # ---------------- conv2: im2col + one MXU matmul --------------------
        zero_border_4d(pad2_ref, H2 + 2, W2 + 2, C1)
        pad2_ref[:, 1:H2 + 1, 1:W2 + 1, :] = p1.reshape(B, H2, W2, C1)
        xp2 = pad2_ref[...]                                 # (B, 10, 10, 16)
        for t in range(9):
            dy, dx = divmod(t, 3)
            col2_ref[:, t * C1:(t + 1) * C1] = (
                xp2[:, dy:dy + H2, dx:dx + W2, :].reshape(B * H2 * W2, C1))
        a2 = jnp.dot(col2_ref[...], w2_ref[...],
                     preferred_element_type=f32)            # (B*64,144)x(144,32)
        a2 = jnp.maximum(a2 + b2_ref[...], 0.0)
        p2 = maxpool2x2(a2, H2, W2, C2)                     # (B*4, 4, 32)

        # ---------------- conv3: im2col + one MXU matmul --------------------
        zero_border_4d(pad3_ref, H3 + 2, W3 + 2, C2)
        pad3_ref[:, 1:H3 + 1, 1:W3 + 1, :] = p2.reshape(B, H3, W3, C2)
        xp3 = pad3_ref[...]                                 # (B, 6, 6, 32)
        for t in range(9):
            dy, dx = divmod(t, 3)
            col3_ref[:, t * C2:(t + 1) * C2] = (
                xp3[:, dy:dy + H3, dx:dx + W3, :].reshape(B * H3 * W3, C2))
        a3 = jnp.dot(col3_ref[...], w3_ref[...],
                     preferred_element_type=f32)            # (B*16,288)x(288,128)
        o_ref[...] = jnp.maximum(a3 + b3_ref[...], 0.0)     # lane-dense 128-wide store

    return kernel


# --------------------------------------------------------------------------
# Wrapper
# --------------------------------------------------------------------------
@jax.jit
def simple_feature_net(x, params):
    """x: (N, 16, 16, 1) f32 NHWC -> (N, 4, 4, 64) f32 NHWC."""
    N = x.shape[0]
    assert x.shape[1:] == (H1, W1, 1), x.shape

    B = min(B_TILE, N)
    n_steps = -(-N // B)
    Np = n_steps * B

    x3d = x.reshape(N, H1, W1)                              # squeeze Cin=1: lane = W
    if Np != N:
        x3d = jnp.pad(x3d, ((0, Np - N), (0, 0), (0, 0)))   # pad batch tile

    # Weight prep (tiny, one-off): HWIO -> im2col (9*Cin, Cout); conv3 padded
    # 64 -> 128 out-channels so the kernel's output store is full-lane.
    w1 = params["w1"].reshape(9, C1)                        # (3,3,1,16)  -> (9,16)
    w2 = params["w2"].reshape(9 * C1, C2)                   # (3,3,16,32) -> (144,32)
    w3 = jnp.pad(params["w3"].reshape(9 * C2, C3),
                 ((0, 0), (0, C3_PAD - C3)))                # (288,64) -> (288,128)
    b1 = params["b1"].reshape(1, C1)
    b2 = params["b2"].reshape(1, C2)
    b3 = jnp.pad(params["b3"], (0, C3_PAD - C3)).reshape(1, C3_PAD)

    out2d = pl.pallas_call(
        _make_fused_kernel(B),
        out_shape=jax.ShapeDtypeStruct((Np * H3 * W3, C3_PAD), jnp.float32),
        grid=(n_steps,),
        in_specs=[
            pl.BlockSpec((B, H1, W1), lambda n: (n, 0, 0)),
            pl.BlockSpec((9, C1), lambda n: (0, 0)),
            pl.BlockSpec((1, C1), lambda n: (0, 0)),
            pl.BlockSpec((9 * C1, C2), lambda n: (0, 0)),
            pl.BlockSpec((1, C2), lambda n: (0, 0)),
            pl.BlockSpec((9 * C2, C3_PAD), lambda n: (0, 0)),
            pl.BlockSpec((1, C3_PAD), lambda n: (0, 0)),
        ],
        out_specs=pl.BlockSpec((B * H3 * W3, C3_PAD), lambda n: (n, 0)),
        scratch_shapes=[
            pltpu.VMEM((B, H1 + 2, W1 + 2), jnp.float32),         # conv1 pad buf
            pltpu.VMEM((B, H2 + 2, W2 + 2, C1), jnp.float32),     # conv2 pad buf
            pltpu.VMEM((B * H2 * W2, 9 * C1), jnp.float32),       # conv2 im2col
            pltpu.VMEM((B, H3 + 2, W3 + 2, C2), jnp.float32),     # conv3 pad buf
            pltpu.VMEM((B * H3 * W3, 9 * C2), jnp.float32),       # conv3 im2col
        ],
        compiler_params=pltpu.CompilerParams(
            dimension_semantics=("parallel",)),
    )(x3d, w1, b1, w2, b2, w3, b3)

    # TODO(synk): drop this slice if the consumer can read the padded
    # (..., 128)-channel layout directly (it costs one extra output copy).
    return out2d[:N * H3 * W3, :C3].reshape(N, H3, W3, C3)


# --------------------------------------------------------------------------
# Params + pure-JAX reference
# --------------------------------------------------------------------------
def init_params(key):
    """Deterministic synthetic weights (shapes from the nn.Module __init__)."""
    ks = jax.random.split(key, 6)

    def conv_init(kw, kb, kh, cin, cout):
        fan_in = cin * kh * kh
        scale = 1.0 / jnp.sqrt(jnp.float32(fan_in))
        w = jax.random.uniform(kw, (kh, kh, cin, cout), jnp.float32,
                               -scale, scale)
        b = jax.random.uniform(kb, (cout,), jnp.float32, -scale, scale)
        return w, b

    w1, b1 = conv_init(ks[0], ks[1], 3, 1, C1)
    w2, b2 = conv_init(ks[2], ks[3], 3, C1, C2)
    w3, b3 = conv_init(ks[4], ks[5], 3, C2, C3)
    return dict(w1=w1, b1=b1, w2=w2, b2=b2, w3=w3, b3=b3)


def _ref_forward(x, params):
    def conv(x, w, b):
        y = jax.lax.conv_general_dilated(
            x, w, window_strides=(1, 1), padding="SAME",
            dimension_numbers=("NHWC", "HWIO", "NHWC"))
        return jax.nn.relu(y + b)

    def pool(x):
        return jax.lax.reduce_window(x, -jnp.inf, jax.lax.max,
                                     (1, 2, 2, 1), (1, 2, 2, 1), "VALID")

    x = pool(conv(x, params["w1"], params["b1"]))
    x = pool(conv(x, params["w2"], params["b2"]))
    x = conv(x, params["w3"], params["b3"])
    return x


if __name__ == "__main__":
    key = jax.random.PRNGKey(0)
    kx, kp = jax.random.split(key)

    # PyTorch input would be (N=2, C=1, H=16, W=16); kernel layout is NHWC.
    x = jax.random.normal(kx, (2, H1, W1, 1), jnp.float32)
    params = init_params(kp)

    out = jax.block_until_ready(simple_feature_net(x, params))

    assert out.shape == (2, H3, W3, C3), out.shape
    ref = _ref_forward(x, params)
    assert jnp.allclose(out, ref, rtol=1e-4, atol=1e-4), (
        float(jnp.max(jnp.abs(out - ref))))

    print("KERNEL_OK")
</pallas_src>

<mosaic_0001>
module attributes {stable_mosaic.version = 11 : i64} {
  func.func @kernel(%arg0: i32, %arg1: memref<2x16x16xf32, #tpu.memory_space<vmem>>, %arg2: memref<9x16xf32, #tpu.memory_space<vmem>>, %arg3: memref<1x16xf32, #tpu.memory_space<vmem>>, %arg4: memref<144x32xf32, #tpu.memory_space<vmem>>, %arg5: memref<1x32xf32, #tpu.memory_space<vmem>>, %arg6: memref<288x128xf32, #tpu.memory_space<vmem>>, %arg7: memref<1x128xf32, #tpu.memory_space<vmem>>, %arg8: memref<32x128xf32, #tpu.memory_space<vmem>>, %arg9: memref<2x18x18xf32, #tpu.memory_space<vmem>>, %arg10: memref<2x10x10x16xf32, #tpu.memory_space<vmem>>, %arg11: memref<128x144xf32, #tpu.memory_space<vmem>>, %arg12: memref<2x6x6x32xf32, #tpu.memory_space<vmem>>, %arg13: memref<32x288xf32, #tpu.memory_space<vmem>>) attributes {dimension_semantics = [#tpu.dimension_semantics<parallel>], iteration_bounds = array<i64: 1>, scalar_prefetch = 0 : i64, scratch_operands = 5 : i64, tpu.core_type = #tpu.core_type<tc>, window_params = [{transform_indices = @transform_0, window_bounds = array<i64: 2, 16, 16>}, {pipeline_mode = #tpu.pipeline_mode<synchronous>, transform_indices = @transform_1, window_bounds = array<i64: 9, 16>}, {pipeline_mode = #tpu.pipeline_mode<synchronous>, transform_indices = @transform_2, window_bounds = array<i64: 1, 16>}, {pipeline_mode = #tpu.pipeline_mode<synchronous>, transform_indices = @transform_3, window_bounds = array<i64: 144, 32>}, {pipeline_mode = #tpu.pipeline_mode<synchronous>, transform_indices = @transform_4, window_bounds = array<i64: 1, 32>}, {pipeline_mode = #tpu.pipeline_mode<synchronous>, transform_indices = @transform_5, window_bounds = array<i64: 288, 128>}, {pipeline_mode = #tpu.pipeline_mode<synchronous>, transform_indices = @transform_6, window_bounds = array<i64: 1, 128>}, {transform_indices = @transform_7, window_bounds = array<i64: 32, 128>}]} {
    %cst = arith.constant 0.000000e+00 : f32
    %0 = vector.broadcast %cst : f32 to vector<2x1x18xf32>
    %c0 = arith.constant 0 : index
    %c0_0 = arith.constant 0 : index
    %c0_1 = arith.constant 0 : index
    %1 = vector.load %arg9[%c0, %c0_0, %c0_1] : memref<2x18x18xf32, #tpu.memory_space<vmem>>, vector<2x1x18xf32>
    tpu.vector_store %arg9[%c0, %c0_0, %c0_1], %0 {strides = array<i32>} : memref<2x18x18xf32, #tpu.memory_space<vmem>>, vector<2x1x18xf32>,
    %cst_2 = arith.constant 0.000000e+00 : f32
    %2 = vector.broadcast %cst_2 : f32 to vector<2x1x18xf32>
    %c0_3 = arith.constant 0 : index
    %c17 = arith.constant 17 : index
    %c0_4 = arith.constant 0 : index
    %3 = vector.load %arg9[%c0_3, %c17, %c0_4] : memref<2x18x18xf32, #tpu.memory_space<vmem>>, vector<2x1x18xf32>
    tpu.vector_store %arg9[%c0_3, %c17, %c0_4], %2 {strides = array<i32>} : memref<2x18x18xf32, #tpu.memory_space<vmem>>, vector<2x1x18xf32>,
    %cst_5 = arith.constant 0.000000e+00 : f32
    %4 = vector.broadcast %cst_5 : f32 to vector<2x18x1xf32>
    %c0_6 = arith.constant 0 : index
    %c0_7 = arith.constant 0 : index
    %c0_8 = arith.constant 0 : index
    %5 = vector.load %arg9[%c0_6, %c0_7, %c0_8] : memref<2x18x18xf32, #tpu.memory_space<vmem>>, vector<2x18x1xf32>
    tpu.vector_store %arg9[%c0_6, %c0_7, %c0_8], %4 {strides = array<i32>} : memref<2x18x18xf32, #tpu.memory_space<vmem>>, vector<2x18x1xf32>,
    %cst_9 = arith.constant 0.000000e+00 : f32
    %6 = vector.broadcast %cst_9 : f32 to vector<2x18x1xf32>
    %c0_10 = arith.constant 0 : index
    %c0_11 = arith.constant 0 : index
    %c17_12 = arith.constant 17 : index
    %7 = vector.load %arg9[%c0_10, %c0_11, %c17_12] : memref<2x18x18xf32, #tpu.memory_space<vmem>>, vector<2x18x1xf32>
    tpu.vector_store %arg9[%c0_10, %c0_11, %c17_12], %6 {strides = array<i32>} : memref<2x18x18xf32, #tpu.memory_space<vmem>>, vector<2x18x1xf32>,
    %c0_13 = arith.constant 0 : index
    %c0_14 = arith.constant 0 : index
    %c0_15 = arith.constant 0 : index
    %8 = vector.load %arg1[%c0_13, %c0_14, %c0_15] : memref<2x16x16xf32, #tpu.memory_space<vmem>>, vector<2x16x16xf32>
    %c0_16 = arith.constant 0 : index
    %c1 = arith.constant 1 : index
    %c1_17 = arith.constant 1 : index
    %9 = vector.load %arg9[%c0_16, %c1, %c1_17] : memref<2x18x18xf32, #tpu.memory_space<vmem>>, vector<2x16x16xf32>
    tpu.vector_store %arg9[%c0_16, %c1, %c1_17], %8 {strides = array<i32>} : memref<2x18x18xf32, #tpu.memory_space<vmem>>, vector<2x16x16xf32>,
    %c0_18 = arith.constant 0 : index
    %c0_19 = arith.constant 0 : index
    %c0_20 = arith.constant 0 : index
    %10 = vector.load %arg9[%c0_18, %c0_19, %c0_20] : memref<2x18x18xf32, #tpu.memory_space<vmem>>, vector<2x18x18xf32>
    %c0_21 = arith.constant 0 : index
    %c0_22 = arith.constant 0 : index
    %11 = vector.load %arg2[%c0_21, %c0_22] : memref<9x16xf32, #tpu.memory_space<vmem>>, vector<9x16xf32>
    %cst_23 = arith.constant 0.000000e+00 : f32
    %12 = vector.broadcast %cst_23 : f32 to vector<32x16x16xf32>
    %13 = vector.extract_strided_slice %10 {offsets = [0, 0, 0], sizes = [2, 16, 16], strides = [1, 1, 1]} : vector<2x18x18xf32> to vector<2x16x16xf32>
    %14 = vector.shape_cast %13 : vector<2x16x16xf32> to vector<32x16xf32>
    %15 = vector.shape_cast %14 : vector<32x16xf32> to vector<32x16x1xf32>
    %16 = vector.extract_strided_slice %11 {offsets = [0, 0], sizes = [1, 16], strides = [1, 1]} : vector<9x16xf32> to vector<1x16xf32>
    %17 = vector.shape_cast %16 : vector<1x16xf32> to vector<1x1x16xf32>
    %18 = vector.broadcast %15 : vector<32x16x1xf32> to vector<32x16x16xf32>
    %19 = vector.broadcast %17 : vector<1x1x16xf32> to vector<32x16x16xf32>
    %20 = arith.mulf %18, %19 : vector<32x16x16xf32>
    %21 = arith.addf %12, %20 : vector<32x16x16xf32>
    %22 = vector.extract_strided_slice %10 {offsets = [0, 0, 1], sizes = [2, 16, 16], strides = [1, 1, 1]} : vector<2x18x18xf32> to vector<2x16x16xf32>
    %23 = vector.shape_cast %22 : vector<2x16x16xf32> to vector<32x16xf32>
    %24 = vector.shape_cast %23 : vector<32x16xf32> to vector<32x16x1xf32>
    %25 = vector.extract_strided_slice %11 {offsets = [1, 0], sizes = [1, 16], strides = [1, 1]} : vector<9x16xf32> to vector<1x16xf32>
    %26 = vector.shape_cast %25 : vector<1x16xf32> to vector<1x1x16xf32>
    %27 = vector.broadcast %24 : vector<32x16x1xf32> to vector<32x16x16xf32>
    %28 = vector.broadcast %26 : vector<1x1x16xf32> to vector<32x16x16xf32>
    %29 = arith.mulf %27, %28 : vector<32x16x16xf32>
    %30 = arith.addf %21, %29 : vector<32x16x16xf32>
    %31 = vector.extract_strided_slice %10 {offsets = [0, 0, 2], sizes = [2, 16, 16], strides = [1, 1, 1]} : vector<2x18x18xf32> to vector<2x16x16xf32>
    %32 = vector.shape_cast %31 : vector<2x16x16xf32> to vector<32x16xf32>
    %33 = vector.shape_cast %32 : vector<32x16xf32> to vector<32x16x1xf32>
    %34 = vector.extract_strided_slice %11 {offsets = [2, 0], sizes = [1, 16], strides = [1, 1]} : vector<9x16xf32> to vector<1x16xf32>
    %35 = vector.shape_cast %34 : vector<1x16xf32> to vector<1x1x16xf32>
    %36 = vector.broadcast %33 : vector<32x16x1xf32> to vector<32x16x16xf32>
    %37 = vector.broadcast %35 : vector<1x1x16xf32> to vector<32x16x16xf32>
    %38 = arith.mulf %36, %37 : vector<32x16x16xf32>
    %39 = arith.addf %30, %38 : vector<32x16x16xf32>
    %40 = vector.extract_strided_slice %10 {offsets = [0, 1, 0], sizes = [2, 16, 16], strides = [1, 1, 1]} : vector<2x18x18xf32> to vector<2x16x16xf32>
    %41 = vector.shape_cast %40 : vector<2x16x16xf32> to vector<32x16xf32>
    %42 = vector.shape_cast %41 : vector<32x16xf32> to vector<32x16x1xf32>
    %43 = vector.extract_strided_slice %11 {offsets = [3, 0], sizes = [1, 16], strides = [1, 1]} : vector<9x16xf32> to vector<1x16xf32>
    %44 = vector.shape_cast %43 : vector<1x16xf32> to vector<1x1x16xf32>
    %45 = vector.broadcast %42 : vector<32x16x1xf32> to vector<32x16x16xf32>
    %46 = vector.broadcast %44 : vector<1x1x16xf32> to vector<32x16x16xf32>
    %47 = arith.mulf %45, %46 : vector<32x16x16xf32>
    %48 = arith.addf %39, %47 : vector<32x16x16xf32>
    %49 = vector.extract_strided_slice %10 {offsets = [0, 1, 1], sizes = [2, 16, 16], strides = [1, 1, 1]} : vector<2x18x18xf32> to vector<2x16x16xf32>
    %50 = vector.shape_cast %49 : vector<2x16x16xf32> to vector<32x16xf32>
    %51 = vector.shape_cast %50 : vector<32x16xf32> to vector<32x16x1xf32>
    %52 = vector.extract_strided_slice %11 {offsets = [4, 0], sizes = [1, 16], strides = [1, 1]} : vector<9x16xf32> to vector<1x16xf32>
    %53 = vector.shape_cast %52 : vector<1x16xf32> to vector<1x1x16xf32>
    %54 = vector.broadcast %51 : vector<32x16x1xf32> to vector<32x16x16xf32>
    %55 = vector.broadcast %53 : vector<1x1x16xf32> to vector<32x16x16xf32>
    %56 = arith.mulf %54, %55 : vector<32x16x16xf32>
    %57 = arith.addf %48, %56 : vector<32x16x16xf32>
    %58 = vector.extract_strided_slice %10 {offsets = [0, 1, 2], sizes = [2, 16, 16], strides = [1, 1, 1]} : vector<2x18x18xf32> to vector<2x16x16xf32>
    %59 = vector.shape_cast %58 : vector<2x16x16xf32> to vector<32x16xf32>
    %60 = vector.shape_cast %59 : vector<32x16xf32> to vector<32x16x1xf32>
    %61 = vector.extract_strided_slice %11 {offsets = [5, 0], sizes = [1, 16], strides = [1, 1]} : vector<9x16xf32> to vector<1x16xf32>
    %62 = vector.shape_cast %61 : vector<1x16xf32> to vector<1x1x16xf32>
    %63 = vector.broadcast %60 : vector<32x16x1xf32> to vector<32x16x16xf32>
    %64 = vector.broadcast %62 : vector<1x1x16xf32> to vector<32x16x16xf32>
    %65 = arith.mulf %63, %64 : vector<32x16x16xf32>
    %66 = arith.addf %57, %65 : vector<32x16x16xf32>
    %67 = vector.extract_strided_slice %10 {offsets = [0, 2, 0], sizes = [2, 16, 16], strides = [1, 1, 1]} : vector<2x18x18xf32> to vector<2x16x16xf32>
    %68 = vector.shape_cast %67 : vector<2x16x16xf32> to vector<32x16xf32>
    %69 = vector.shape_cast %68 : vector<32x16xf32> to vector<32x16x1xf32>
    %70 = vector.extract_strided_slice %11 {offsets = [6, 0], sizes = [1, 16], strides = [1, 1]} : vector<9x16xf32> to vector<1x16xf32>
    %71 = vector.shape_cast %70 : vector<1x16xf32> to vector<1x1x16xf32>
    %72 = vector.broadcast %69 : vector<32x16x1xf32> to vector<32x16x16xf32>
    %73 = vector.broadcast %71 : vector<1x1x16xf32> to vector<32x16x16xf32>
    %74 = arith.mulf %72, %73 : vector<32x16x16xf32>
    %75 = arith.addf %66, %74 : vector<32x16x16xf32>
    %76 = vector.extract_strided_slice %10 {offsets = [0, 2, 1], sizes = [2, 16, 16], strides = [1, 1, 1]} : vector<2x18x18xf32> to vector<2x16x16xf32>
    %77 = vector.shape_cast %76 : vector<2x16x16xf32> to vector<32x16xf32>
    %78 = vector.shape_cast %77 : vector<32x16xf32> to vector<32x16x1xf32>
    %79 = vector.extract_strided_slice %11 {offsets = [7, 0], sizes = [1, 16], strides = [1, 1]} : vector<9x16xf32> to vector<1x16xf32>
    %80 = vector.shape_cast %79 : vector<1x16xf32> to vector<1x1x16xf32>
    %81 = vector.broadcast %78 : vector<32x16x1xf32> to vector<32x16x16xf32>
    %82 = vector.broadcast %80 : vector<1x1x16xf32> to vector<32x16x16xf32>
    %83 = arith.mulf %81, %82 : vector<32x16x16xf32>
    %84 = arith.addf %75, %83 : vector<32x16x16xf32>
    %85 = vector.extract_strided_slice %10 {offsets = [0, 2, 2], sizes = [2, 16, 16], strides = [1, 1, 1]} : vector<2x18x18xf32> to vector<2x16x16xf32>
    %86 = vector.shape_cast %85 : vector<2x16x16xf32> to vector<32x16xf32>
    %87 = vector.shape_cast %86 : vector<32x16xf32> to vector<32x16x1xf32>
    %88 = vector.extract_strided_slice %11 {offsets = [8, 0], sizes = [1, 16], strides = [1, 1]} : vector<9x16xf32> to vector<1x16xf32>
    %89 = vector.shape_cast %88 : vector<1x16xf32> to vector<1x1x16xf32>
    %90 = vector.broadcast %87 : vector<32x16x1xf32> to vector<32x16x16xf32>
    %91 = vector.broadcast %89 : vector<1x1x16xf32> to vector<32x16x16xf32>
    %92 = arith.mulf %90, %91 : vector<32x16x16xf32>
    %93 = arith.addf %84, %92 : vector<32x16x16xf32>
    %c0_24 = arith.constant 0 : index
    %c0_25 = arith.constant 0 : index
    %94 = vector.load %arg3[%c0_24, %c0_25] : memref<1x16xf32, #tpu.memory_space<vmem>>, vector<1x16xf32>
    %95 = vector.shape_cast %94 : vector<1x16xf32> to vector<1x1x16xf32>
    %96 = vector.broadcast %95 : vector<1x1x16xf32> to vector<32x16x16xf32>
    %97 = arith.addf %93, %96 : vector<32x16x16xf32>
    %cst_26 = arith.constant 0.000000e+00 : f32
    %98 = vector.broadcast %cst_26 : f32 to vector<32x16x16xf32>
    %99 = arith.maximumf %97, %98 : vector<32x16x16xf32>
    %100 = vector.shape_cast %99 : vector<32x16x16xf32> to vector<16x2x8x2x16xf32>
    %cst_27 = arith.constant dense<0xFF800000> : vector<16x2x8x16xf32>
    %101 = vector.multi_reduction <maximumf>, %100, %cst_27 [3] : vector<16x2x8x2x16xf32> to vector<16x2x8x16xf32>
    %cst_28 = arith.constant dense<0xFF800000> : vector<16x8x16xf32>
    %102 = vector.multi_reduction <maximumf>, %101, %cst_28 [1] : vector<16x2x8x16xf32> to vector<16x8x16xf32>
    %cst_29 = arith.constant 0.000000e+00 : f32
    %103 = vector.broadcast %cst_29 : f32 to vector<2x1x10x16xf32>
    %c0_30 = arith.constant 0 : index
    %c0_31 = arith.constant 0 : index
    %c0_32 = arith.constant 0 : index
    %c0_33 = arith.constant 0 : index
    %104 = vector.load %arg10[%c0_30, %c0_31, %c0_32, %c0_33] : memref<2x10x10x16xf32, #tpu.memory_space<vmem>>, vector<2x1x10x16xf32>
    tpu.vector_store %arg10[%c0_30, %c0_31, %c0_32, %c0_33], %103 {strides = array<i32>} : memref<2x10x10x16xf32, #tpu.memory_space<vmem>>, vector<2x1x10x16xf32>,
    %cst_34 = arith.constant 0.000000e+00 : f32
    %105 = vector.broadcast %cst_34 : f32 to vector<2x1x10x16xf32>
    %c0_35 = arith.constant 0 : index
    %c9 = arith.constant 9 : index
    %c0_36 = arith.constant 0 : index
    %c0_37 = arith.constant 0 : index
    %106 = vector.load %arg10[%c0_35, %c9, %c0_36, %c0_37] : memref<2x10x10x16xf32, #tpu.memory_space<vmem>>, vector<2x1x10x16xf32>
    tpu.vector_store %arg10[%c0_35, %c9, %c0_36, %c0_37], %105 {strides = array<i32>} : memref<2x10x10x16xf32, #tpu.memory_space<vmem>>, vector<2x1x10x16xf32>,
    %cst_38 = arith.constant 0.000000e+00 : f32
    %107 = vector.broadcast %cst_38 : f32 to vector<2x10x1x16xf32>
    %c0_39 = arith.constant 0 : index
    %c0_40 = arith.constant 0 : index
    %c0_41 = arith.constant 0 : index
    %c0_42 = arith.constant 0 : index
    %108 = vector.load %arg10[%c0_39, %c0_40, %c0_41, %c0_42] : memref<2x10x10x16xf32, #tpu.memory_space<vmem>>, vector<2x10x1x16xf32>
    tpu.vector_store %arg10[%c0_39, %c0_40, %c0_41, %c0_42], %107 {strides = array<i32>} : memref<2x10x10x16xf32, #tpu.memory_space<vmem>>, vector<2x10x1x16xf32>,
    %cst_43 = arith.constant 0.000000e+00 : f32
    %109 = vector.broadcast %cst_43 : f32 to vector<2x10x1x16xf32>
    %c0_44 = arith.constant 0 : index
    %c0_45 = arith.constant 0 : index
    %c9_46 = arith.constant 9 : index
    %c0_47 = arith.constant 0 : index
    %110 = vector.load %arg10[%c0_44, %c0_45, %c9_46, %c0_47] : memref<2x10x10x16xf32, #tpu.memory_space<vmem>>, vector<2x10x1x16xf32>
    tpu.vector_store %arg10[%c0_44, %c0_45, %c9_46, %c0_47], %109 {strides = array<i32>} : memref<2x10x10x16xf32, #tpu.memory_space<vmem>>, vector<2x10x1x16xf32>,
    %111 = vector.shape_cast %102 : vector<16x8x16xf32> to vector<2x8x8x16xf32>
    %c0_48 = arith.constant 0 : index
    %c1_49 = arith.constant 1 : index
    %c1_50 = arith.constant 1 : index
    %c0_51 = arith.constant 0 : index
    %112 = vector.load %arg10[%c0_48, %c1_49, %c1_50, %c0_51] : memref<2x10x10x16xf32, #tpu.memory_space<vmem>>, vector<2x8x8x16xf32>
    tpu.vector_store %arg10[%c0_48, %c1_49, %c1_50, %c0_51], %111 {strides = array<i32>} : memref<2x10x10x16xf32, #tpu.memory_space<vmem>>, vector<2x8x8x16xf32>,
    %c0_52 = arith.constant 0 : index
    %c0_53 = arith.constant 0 : index
    %c0_54 = arith.constant 0 : index
    %c0_55 = arith.constant 0 : index
    %113 = vector.load %arg10[%c0_52, %c0_53, %c0_54, %c0_55] : memref<2x10x10x16xf32, #tpu.memory_space<vmem>>, vector<2x10x10x16xf32>
    %114 = vector.extract_strided_slice %113 {offsets = [0, 0, 0, 0], sizes = [2, 8, 8, 16], strides = [1, 1, 1, 1]} : vector<2x10x10x16xf32> to vector<2x8x8x16xf32>
    %115 = vector.shape_cast %114 : vector<2x8x8x16xf32> to vector<128x16xf32>
    %c0_56 = arith.constant 0 : index
    %c0_57 = arith.constant 0 : index
    %116 = vector.load %arg11[%c0_56, %c0_57] : memref<128x144xf32, #tpu.memory_space<vmem>>, vector<128x16xf32>
    tpu.vector_store %arg11[%c0_56, %c0_57], %115 {strides = array<i32>} : memref<128x144xf32, #tpu.memory_space<vmem>>, vector<128x16xf32>,
    %117 = vector.extract_strided_slice %113 {offsets = [0, 0, 1, 0], sizes = [2, 8, 8, 16], strides = [1, 1, 1, 1]} : vector<2x10x10x16xf32> to vector<2x8x8x16xf32>
    %118 = vector.shape_cast %117 : vector<2x8x8x16xf32> to vector<128x16xf32>
    %c0_58 = arith.constant 0 : index
    %c16 = arith.constant 16 : index
    %119 = vector.load %arg11[%c0_58, %c16] : memref<128x144xf32, #tpu.memory_space<vmem>>, vector<128x16xf32>
    tpu.vector_store %arg11[%c0_58, %c16], %118 {strides = array<i32>} : memref<128x144xf32, #tpu.memory_space<vmem>>, vector<128x16xf32>,
    %120 = vector.extract_strided_slice %113 {offsets = [0, 0, 2, 0], sizes = [2, 8, 8, 16], strides = [1, 1, 1, 1]} : vector<2x10x10x16xf32> to vector<2x8x8x16xf32>
    %121 = vector.shape_cast %120 : vector<2x8x8x16xf32> to vector<128x16xf32>
    %c0_59 = arith.constant 0 : index
    %c32 = arith.constant 32 : index
    %122 = vector.load %arg11[%c0_59, %c32] : memref<128x144xf32, #tpu.memory_space<vmem>>, vector<128x16xf32>
    tpu.vector_store %arg11[%c0_59, %c32], %121 {strides = array<i32>} : memref<128x144xf32, #tpu.memory_space<vmem>>, vector<128x16xf32>,
    %123 = vector.extract_strided_slice %113 {offsets = [0, 1, 0, 0], sizes = [2, 8, 8, 16], strides = [1, 1, 1, 1]} : vector<2x10x10x16xf32> to vector<2x8x8x16xf32>
    %124 = vector.shape_cast %123 : vector<2x8x8x16xf32> to vector<128x16xf32>
    %c0_60 = arith.constant 0 : index
    %c48 = arith.constant 48 : index
    %125 = vector.load %arg11[%c0_60, %c48] : memref<128x144xf32, #tpu.memory_space<vmem>>, vector<128x16xf32>
    tpu.vector_store %arg11[%c0_60, %c48], %124 {strides = array<i32>} : memref<128x144xf32, #tpu.memory_space<vmem>>, vector<128x16xf32>,
    %126 = vector.extract_strided_slice %113 {offsets = [0, 1, 1, 0], sizes = [2, 8, 8, 16], strides = [1, 1, 1, 1]} : vector<2x10x10x16xf32> to vector<2x8x8x16xf32>
    %127 = vector.shape_cast %126 : vector<2x8x8x16xf32> to vector<128x16xf32>
    %c0_61 = arith.constant 0 : index
    %c64 = arith.constant 64 : index
    %128 = vector.load %arg11[%c0_61, %c64] : memref<128x144xf32, #tpu.memory_space<vmem>>, vector<128x16xf32>
    tpu.vector_store %arg11[%c0_61, %c64], %127 {strides = array<i32>} : memref<128x144xf32, #tpu.memory_space<vmem>>, vector<128x16xf32>,
    %129 = vector.extract_strided_slice %113 {offsets = [0, 1, 2, 0], sizes = [2, 8, 8, 16], strides = [1, 1, 1, 1]} : vector<2x10x10x16xf32> to vector<2x8x8x16xf32>
    %130 = vector.shape_cast %129 : vector<2x8x8x16xf32> to vector<128x16xf32>
    %c0_62 = arith.constant 0 : index
    %c80 = arith.constant 80 : index
    %131 = vector.load %arg11[%c0_62, %c80] : memref<128x144xf32, #tpu.memory_space<vmem>>, vector<128x16xf32>
    tpu.vector_store %arg11[%c0_62, %c80], %130 {strides = array<i32>} : memref<128x144xf32, #tpu.memory_space<vmem>>, vector<128x16xf32>,
    %132 = vector.extract_strided_slice %113 {offsets = [0, 2, 0, 0], sizes = [2, 8, 8, 16], strides = [1, 1, 1, 1]} : vector<2x10x10x16xf32> to vector<2x8x8x16xf32>
    %133 = vector.shape_cast %132 : vector<2x8x8x16xf32> to vector<128x16xf32>
    %c0_63 = arith.constant 0 : index
    %c96 = arith.constant 96 : index
    %134 = vector.load %arg11[%c0_63, %c96] : memref<128x144xf32, #tpu.memory_space<vmem>>, vector<128x16xf32>
    tpu.vector_store %arg11[%c0_63, %c96], %133 {strides = array<i32>} : memref<128x144xf32, #tpu.memory_space<vmem>>, vector<128x16xf32>,
    %135 = vector.extract_strided_slice %113 {offsets = [0, 2, 1, 0], sizes = [2, 8, 8, 16], strides = [1, 1, 1, 1]} : vector<2x10x10x16xf32> to vector<2x8x8x16xf32>
    %136 = vector.shape_cast %135 : vector<2x8x8x16xf32> to vector<128x16xf32>
    %c0_64 = arith.constant 0 : index
    %c112 = arith.constant 112 : index
    %137 = vector.load %arg11[%c0_64, %c112] : memref<128x144xf32, #tpu.memory_space<vmem>>, vector<128x16xf32>
    tpu.vector_store %arg11[%c0_64, %c112], %136 {strides = array<i32>} : memref<128x144xf32, #tpu.memory_space<vmem>>, vector<128x16xf32>,
    %138 = vector.extract_strided_slice %113 {offsets = [0, 2, 2, 0], sizes = [2, 8, 8, 16], strides = [1, 1, 1, 1]} : vector<2x10x10x16xf32> to vector<2x8x8x16xf32>
    %139 = vector.shape_cast %138 : vector<2x8x8x16xf32> to vector<128x16xf32>
    %c0_65 = arith.constant 0 : index
    %c128 = arith.constant 128 : index
    %140 = vector.load %arg11[%c0_65, %c128] : memref<128x144xf32, #tpu.memory_space<vmem>>, vector<128x16xf32>
    tpu.vector_store %arg11[%c0_65, %c128], %139 {strides = array<i32>} : memref<128x144xf32, #tpu.memory_space<vmem>>, vector<128x16xf32>,
    %c0_66 = arith.constant 0 : index
    %c0_67 = arith.constant 0 : index
    %141 = vector.load %arg11[%c0_66, %c0_67] : memref<128x144xf32, #tpu.memory_space<vmem>>, vector<128x144xf32>
    %c0_68 = arith.constant 0 : index
    %c0_69 = arith.constant 0 : index
    %142 = vector.load %arg4[%c0_68, %c0_69] : memref<144x32xf32, #tpu.memory_space<vmem>>, vector<144x32xf32>
    %cst_70 = arith.constant dense<0.000000e+00> : vector<128x32xf32>
    %143 = tpu.matmul %141, %142, %cst_70 {dimension_numbers = #tpu.dot_dimension_numbers<[1], [0], [0], [1], [0, 0, 1, 1], [], []>} : vector<128x144xf32>, vector<144x32xf32>, vector<128x32xf32> -> vector<128x32xf32>
    %c0_71 = arith.constant 0 : index
    %c0_72 = arith.constant 0 : index
    %144 = vector.load %arg5[%c0_71, %c0_72] : memref<1x32xf32, #tpu.memory_space<vmem>>, vector<1x32xf32>
    %145 = vector.broadcast %144 : vector<1x32xf32> to vector<128x32xf32>
    %146 = arith.addf %143, %145 : vector<128x32xf32>
    %cst_73 = arith.constant 0.000000e+00 : f32
    %147 = vector.broadcast %cst_73 : f32 to vector<128x32xf32>
    %148 = arith.maximumf %146, %147 : vector<128x32xf32>
    %149 = vector.shape_cast %148 : vector<128x32xf32> to vector<8x2x4x2x32xf32>
    %cst_74 = arith.constant dense<0xFF800000> : vector<8x2x4x32xf32>
    %150 = vector.multi_reduction <maximumf>, %149, %cst_74 [3] : vector<8x2x4x2x32xf32> to vector<8x2x4x32xf32>
    %cst_75 = arith.constant dense<0xFF800000> : vector<8x4x32xf32>
    %151 = vector.multi_reduction <maximumf>, %150, %cst_75 [1] : vector<8x2x4x32xf32> to vector<8x4x32xf32>
    %cst_76 = arith.constant 0.000000e+00 : f32
    %152 = vector.broadcast %cst_76 : f32 to vector<2x1x6x32xf32>
    %c0_77 = arith.constant 0 : index
    %c0_78 = arith.constant 0 : index
    %c0_79 = arith.constant 0 : index
    %c0_80 = arith.constant 0 : index
    %153 = vector.load %arg12[%c0_77, %c0_78, %c0_79, %c0_80] : memref<2x6x6x32xf32, #tpu.memory_space<vmem>>, vector<2x1x6x32xf32>
    tpu.vector_store %arg12[%c0_77, %c0_78, %c0_79, %c0_80], %152 {strides = array<i32>} : memref<2x6x6x32xf32, #tpu.memory_space<vmem>>, vector<2x1x6x32xf32>,
    %cst_81 = arith.constant 0.000000e+00 : f32
    %154 = vector.broadcast %cst_81 : f32 to vector<2x1x6x32xf32>
    %c0_82 = arith.constant 0 : index
    %c5 = arith.constant 5 : index
    %c0_83 = arith.constant 0 : index
    %c0_84 = arith.constant 0 : index
    %155 = vector.load %arg12[%c0_82, %c5, %c0_83, %c0_84] : memref<2x6x6x32xf32, #tpu.memory_space<vmem>>, vector<2x1x6x32xf32>
    tpu.vector_store %arg12[%c0_82, %c5, %c0_83, %c0_84], %154 {strides = array<i32>} : memref<2x6x6x32xf32, #tpu.memory_space<vmem>>, vector<2x1x6x32xf32>,
    %cst_85 = arith.constant 0.000000e+00 : f32
    %156 = vector.broadcast %cst_85 : f32 to vector<2x6x1x32xf32>
    %c0_86 = arith.constant 0 : index
    %c0_87 = arith.constant 0 : index
    %c0_88 = arith.constant 0 : index
    %c0_89 = arith.constant 0 : index
    %157 = vector.load %arg12[%c0_86, %c0_87, %c0_88, %c0_89] : memref<2x6x6x32xf32, #tpu.memory_space<vmem>>, vector<2x6x1x32xf32>
    tpu.vector_store %arg12[%c0_86, %c0_87, %c0_88, %c0_89], %156 {strides = array<i32>} : memref<2x6x6x32xf32, #tpu.memory_space<vmem>>, vector<2x6x1x32xf32>,
    %cst_90 = arith.constant 0.000000e+00 : f32
    %158 = vector.broadcast %cst_90 : f32 to vector<2x6x1x32xf32>
    %c0_91 = arith.constant 0 : index
    %c0_92 = arith.constant 0 : index
    %c5_93 = arith.constant 5 : index
    %c0_94 = arith.constant 0 : index
    %159 = vector.load %arg12[%c0_91, %c0_92, %c5_93, %c0_94] : memref<2x6x6x32xf32, #tpu.memory_space<vmem>>, vector<2x6x1x32xf32>
    tpu.vector_store %arg12[%c0_91, %c0_92, %c5_93, %c0_94], %158 {strides = array<i32>} : memref<2x6x6x32xf32, #tpu.memory_space<vmem>>, vector<2x6x1x32xf32>,
    %160 = vector.shape_cast %151 : vector<8x4x32xf32> to vector<2x4x4x32xf32>
    %c0_95 = arith.constant 0 : index
    %c1_96 = arith.constant 1 : index
    %c1_97 = arith.constant 1 : index
    %c0_98 = arith.constant 0 : index
    %161 = vector.load %arg12[%c0_95, %c1_96, %c1_97, %c0_98] : memref<2x6x6x32xf32, #tpu.memory_space<vmem>>, vector<2x4x4x32xf32>
    tpu.vector_store %arg12[%c0_95, %c1_96, %c1_97, %c0_98], %160 {strides = array<i32>} : memref<2x6x6x32xf32, #tpu.memory_space<vmem>>, vector<2x4x4x32xf32>,
    %c0_99 = arith.constant 0 : index
    %c0_100 = arith.constant 0 : index
    %c0_101 = arith.constant 0 : index
    %c0_102 = arith.constant 0 : index
    %162 = vector.load %arg12[%c0_99, %c0_100, %c0_101, %c0_102] : memref<2x6x6x32xf32, #tpu.memory_space<vmem>>, vector<2x6x6x32xf32>
    %163 = vector.extract_strided_slice %162 {offsets = [0, 0, 0, 0], sizes = [2, 4, 4, 32], strides = [1, 1, 1, 1]} : vector<2x6x6x32xf32> to vector<2x4x4x32xf32>
    %164 = vector.shape_cast %163 : vector<2x4x4x32xf32> to vector<32x32xf32>
    %c0_103 = arith.constant 0 : index
    %c0_104 = arith.constant 0 : index
    %165 = vector.load %arg13[%c0_103, %c0_104] : memref<32x288xf32, #tpu.memory_space<vmem>>, vector<32x32xf32>
    tpu.vector_store %arg13[%c0_103, %c0_104], %164 {strides = array<i32>} : memref<32x288xf32, #tpu.memory_space<vmem>>, vector<32x32xf32>,
    %166 = vector.extract_strided_slice %162 {offsets = [0, 0, 1, 0], sizes = [2, 4, 4, 32], strides = [1, 1, 1, 1]} : vector<2x6x6x32xf32> to vector<2x4x4x32xf32>
    %167 = vector.shape_cast %166 : vector<2x4x4x32xf32> to vector<32x32xf32>
    %c0_105 = arith.constant 0 : index
    %c32_106 = arith.constant 32 : index
    %168 = vector.load %arg13[%c0_105, %c32_106] : memref<32x288xf32, #tpu.memory_space<vmem>>, vector<32x32xf32>
    tpu.vector_store %arg13[%c0_105, %c32_106], %167 {strides = array<i32>} : memref<32x288xf32, #tpu.memory_space<vmem>>, vector<32x32xf32>,
    %169 = vector.extract_strided_slice %162 {offsets = [0, 0, 2, 0], sizes = [2, 4, 4, 32], strides = [1, 1, 1, 1]} : vector<2x6x6x32xf32> to vector<2x4x4x32xf32>
    %170 = vector.shape_cast %169 : vector<2x4x4x32xf32> to vector<32x32xf32>
    %c0_107 = arith.constant 0 : index
    %c64_108 = arith.constant 64 : index
    %171 = vector.load %arg13[%c0_107, %c64_108] : memref<32x288xf32, #tpu.memory_space<vmem>>, vector<32x32xf32>
    tpu.vector_store %arg13[%c0_107, %c64_108], %170 {strides = array<i32>} : memref<32x288xf32, #tpu.memory_space<vmem>>, vector<32x32xf32>,
    %172 = vector.extract_strided_slice %162 {offsets = [0, 1, 0, 0], sizes = [2, 4, 4, 32], strides = [1, 1, 1, 1]} : vector<2x6x6x32xf32> to vector<2x4x4x32xf32>
    %173 = vector.shape_cast %172 : vector<2x4x4x32xf32> to vector<32x32xf32>
    %c0_109 = arith.constant 0 : index
    %c96_110 = arith.constant 96 : index
    %174 = vector.load %arg13[%c0_109, %c96_110] : memref<32x288xf32, #tpu.memory_space<vmem>>, vector<32x32xf32>
    tpu.vector_store %arg13[%c0_109, %c96_110], %173 {strides = array<i32>} : memref<32x288xf32, #tpu.memory_space<vmem>>, vector<32x32xf32>,
    %175 = vector.extract_strided_slice %162 {offsets = [0, 1, 1, 0], sizes = [2, 4, 4, 32], strides = [1, 1, 1, 1]} : vector<2x6x6x32xf32> to vector<2x4x4x32xf32>
    %176 = vector.shape_cast %175 : vector<2x4x4x32xf32> to vector<32x32xf32>
    %c0_111 = arith.constant 0 : index
    %c128_112 = arith.constant 128 : index
    %177 = vector.load %arg13[%c0_111, %c128_112] : memref<32x288xf32, #tpu.memory_space<vmem>>, vector<32x32xf32>
    tpu.vector_store %arg13[%c0_111, %c128_112], %176 {strides = array<i32>} : memref<32x288xf32, #tpu.memory_space<vmem>>, vector<32x32xf32>,
    %178 = vector.extract_strided_slice %162 {offsets = [0, 1, 2, 0], sizes = [2, 4, 4, 32], strides = [1, 1, 1, 1]} : vector<2x6x6x32xf32> to vector<2x4x4x32xf32>
    %179 = vector.shape_cast %178 : vector<2x4x4x32xf32> to vector<32x32xf32>
    %c0_113 = arith.constant 0 : index
    %c160 = arith.constant 160 : index
    %180 = vector.load %arg13[%c0_113, %c160] : memref<32x288xf32, #tpu.memory_space<vmem>>, vector<32x32xf32>
    tpu.vector_store %arg13[%c0_113, %c160], %179 {strides = array<i32>} : memref<32x288xf32, #tpu.memory_space<vmem>>, vector<32x32xf32>,
    %181 = vector.extract_strided_slice %162 {offsets = [0, 2, 0, 0], sizes = [2, 4, 4, 32], strides = [1, 1, 1, 1]} : vector<2x6x6x32xf32> to vector<2x4x4x32xf32>
    %182 = vector.shape_cast %181 : vector<2x4x4x32xf32> to vector<32x32xf32>
    %c0_114 = arith.constant 0 : index
    %c192 = arith.constant 192 : index
    %183 = vector.load %arg13[%c0_114, %c192] : memref<32x288xf32, #tpu.memory_space<vmem>>, vector<32x32xf32>
    tpu.vector_store %arg13[%c0_114, %c192], %182 {strides = array<i32>} : memref<32x288xf32, #tpu.memory_space<vmem>>, vector<32x32xf32>,
    %184 = vector.extract_strided_slice %162 {offsets = [0, 2, 1, 0], sizes = [2, 4, 4, 32], strides = [1, 1, 1, 1]} : vector<2x6x6x32xf32> to vector<2x4x4x32xf32>
    %185 = vector.shape_cast %184 : vector<2x4x4x32xf32> to vector<32x32xf32>
    %c0_115 = arith.constant 0 : index
    %c224 = arith.constant 224 : index
    %186 = vector.load %arg13[%c0_115, %c224] : memref<32x288xf32, #tpu.memory_space<vmem>>, vector<32x32xf32>
    tpu.vector_store %arg13[%c0_115, %c224], %185 {strides = array<i32>} : memref<32x288xf32, #tpu.memory_space<vmem>>, vector<32x32xf32>,
    %187 = vector.extract_strided_slice %162 {offsets = [0, 2, 2, 0], sizes = [2, 4, 4, 32], strides = [1, 1, 1, 1]} : vector<2x6x6x32xf32> to vector<2x4x4x32xf32>
    %188 = vector.shape_cast %187 : vector<2x4x4x32xf32> to vector<32x32xf32>
    %c0_116 = arith.constant 0 : index
    %c256 = arith.constant 256 : index
    %189 = vector.load %arg13[%c0_116, %c256] : memref<32x288xf32, #tpu.memory_space<vmem>>, vector<32x32xf32>
    tpu.vector_store %arg13[%c0_116, %c256], %188 {strides = array<i32>} : memref<32x288xf32, #tpu.memory_space<vmem>>, vector<32x32xf32>,
    %c0_117 = arith.constant 0 : index
    %c0_118 = arith.constant 0 : index
    %190 = vector.load %arg13[%c0_117, %c0_118] : memref<32x288xf32, #tpu.memory_space<vmem>>, vector<32x288xf32>
    %c0_119 = arith.constant 0 : index
    %c0_120 = arith.constant 0 : index
    %191 = vector.load %arg6[%c0_119, %c0_120] : memref<288x128xf32, #tpu.memory_space<vmem>>, vector<288x128xf32>
    %cst_121 = arith.constant dense<0.000000e+00> : vector<32x128xf32>
    %192 = tpu.matmul %190, %191, %cst_121 {dimension_numbers = #tpu.dot_dimension_numbers<[1], [0], [0], [1], [0, 0, 1, 1], [], []>} : vector<32x288xf32>, vector<288x128xf32>, vector<32x128xf32> -> vector<32x128xf32>
    %c0_122 = arith.constant 0 : index
    %c0_123 = arith.constant 0 : index
    %193 = vector.load %arg7[%c0_122, %c0_123] : memref<1x128xf32, #tpu.memory_space<vmem>>, vector<1x128xf32>
    %194 = vector.broadcast %193 : vector<1x128xf32> to vector<32x128xf32>
    %195 = arith.addf %192, %194 : vector<32x128xf32>
    %cst_124 = arith.constant 0.000000e+00 : f32
    %196 = vector.broadcast %cst_124 : f32 to vector<32x128xf32>
    %197 = arith.maximumf %195, %196 : vector<32x128xf32>
    %c0_125 = arith.constant 0 : index
    %c0_126 = arith.constant 0 : index
    %198 = vector.load %arg8[%c0_125, %c0_126] : memref<32x128xf32, #tpu.memory_space<vmem>>, vector<32x128xf32>
    tpu.vector_store %arg8[%c0_125, %c0_126], %197 {strides = array<i32>} : memref<32x128xf32, #tpu.memory_space<vmem>>, vector<32x128xf32>,
    return
  }
  func.func @transform_0(%arg0: i32) -> (i32, i32, i32) {
    %c0_i32 = arith.constant 0 : i32
    %c0_i32_0 = arith.constant 0 : i32
    %c0_i32_1 = arith.constant 0 : i32
    return %arg0, %c0_i32, %c0_i32_0 : i32, i32, i32
  }
  func.func @transform_1(%arg0: i32) -> (i32, i32) {
    %c0_i32 = arith.constant 0 : i32
    %c0_i32_0 = arith.constant 0 : i32
    %c0_i32_1 = arith.constant 0 : i32
    return %c0_i32, %c0_i32_0 : i32, i32
  }
  func.func @transform_2(%arg0: i32) -> (i32, i32) {
    %c0_i32 = arith.constant 0 : i32
    %c0_i32_0 = arith.constant 0 : i32
    %c0_i32_1 = arith.constant 0 : i32
    return %c0_i32, %c0_i32_0 : i32, i32
  }
  func.func @transform_3(%arg0: i32) -> (i32, i32) {
    %c0_i32 = arith.constant 0 : i32
    %c0_i32_0 = arith.constant 0 : i32
    %c0_i32_1 = arith.constant 0 : i32
    return %c0_i32, %c0_i32_0 : i32, i32
  }
  func.func @transform_4(%arg0: i32) -> (i32, i32) {
    %c0_i32 = arith.constant 0 : i32
    %c0_i32_0 = arith.constant 0 : i32
    %c0_i32_1 = arith.constant 0 : i32
    return %c0_i32, %c0_i32_0 : i32, i32
  }
  func.func @transform_5(%arg0: i32) -> (i32, i32) {
    %c0_i32 = arith.constant 0 : i32
    %c0_i32_0 = arith.constant 0 : i32
    %c0_i32_1 = arith.constant 0 : i32
    return %c0_i32, %c0_i32_0 : i32, i32
  }
  func.func @transform_6(%arg0: i32) -> (i32, i32) {
    %c0_i32 = arith.constant 0 : i32
    %c0_i32_0 = arith.constant 0 : i32
    %c0_i32_1 = arith.constant 0 : i32
    return %c0_i32, %c0_i32_0 : i32, i32
  }
  func.func @transform_7(%arg0: i32) -> (i32, i32) {
    %c0_i32 = arith.constant 0 : i32
    %c0_i32_0 = arith.constant 0 : i32
    return %arg0, %c0_i32 : i32, i32
  }
}

</mosaic_0001>

<llo_original>
// kernel: simple_feature_net.1
$region0: #{simple_feature_net.1}
  #allocation0 [shape = 'u32[]', space=smem, size = 0x4, offset = 0x4, fixed_abs, tag = 'smem constant byte address 0x4 - core index']
  #allocation1 [shape = 'u32[72,128]{1,0:T(1,128)}', space=vmem, size = 0x9000, scoped, tag = 'internal scratch']
  #allocation2 [shape = 'f32[2,18,18]{2,1,0:T(8,128)}', space=vmem, size = 0x6000, scoped, tag = 'scratch operand']
  #allocation3 [shape = 'f32[2,10,10,16]{3,2,1,0:T(8,128)}', space=vmem, size = 0x28000, scoped, tag = 'scratch operand']
  #allocation4 [shape = 'f32[128,144]{1,0:T(8,128)}', space=vmem, size = 0x20000, scoped, tag = 'scratch operand']
  #allocation5 [shape = 'f32[2,6,6,32]{3,2,1,0:T(8,128)}', space=vmem, size = 0xc000, scoped, tag = 'scratch operand']
  #allocation6 [shape = 'f32[32,288]{1,0:T(8,128)}', space=vmem, size = 0xc000, scoped, tag = 'scratch operand']
  %s0 = inlined_call_operand.vmem [shape: f32[2,16,16], index: 0, kind: input, shape index: {}]
  %s1 = inlined_call_operand.vmem [shape: f32[9,16], index: 1, kind: input, shape index: {}]
  %s2 = inlined_call_operand.vmem [shape: f32[1,16], index: 2, kind: input, shape index: {}]
  %s3 = inlined_call_operand.vmem [shape: f32[144,32], index: 3, kind: input, shape index: {}]
  %s4 = inlined_call_operand.vmem [shape: f32[1,32], index: 4, kind: input, shape index: {}]
  %s5 = inlined_call_operand.vmem [shape: f32[288,128], index: 5, kind: input, shape index: {}]
  %s6 = inlined_call_operand.vmem [shape: f32[1,128], index: 6, kind: input, shape index: {}]
  %s7 = inlined_call_operand.hbm [shape: f32[32,128], index: 7, kind: output, shape index: {}]
  %s8 = sld [smem:[#allocation0]]
  $region38: #{simple_feature_net.1} parent=0
    _
  %s10 = ssub.s32 1, %s8
  %s11 = scalar_select 0, %s10, %s8
  $region1: #{simple_feature_net.1} parent=0
    #allocation7 [shape = 'u8[16384]{0}', space=vmem, size = 0x4000, scoped, tag = 'output window, operand 0, single buffered']
    #allocation8 [shape = 's32[1]{0}', space=sflag, size = 0x4, scoped, tag = 'scoped memory for simple_feature_net.1']
    %12 = vsyncpa [#allocation8], 0
    // Predicated region
    $region2: #{simple_feature_net.1} parent=1 // pred_check
      _
    $region3: #{simple_feature_net.1} parent=1 // pred_check_branch
      %14 = sbr.rel (0) target = $region5
    $region4: #{simple_feature_net.1} parent=1 // pred_region
      _
    $region5: #{simple_feature_net.1} parent=1 // pred_fallthru
      _
    // Predicated region
    $region6: #{simple_feature_net.1} parent=1 // pred_check
      _
    $region7: #{simple_feature_net.1} parent=1 // pred_check_branch
      %16 = sbr.rel (0) target = $region9
    $region8: #{simple_feature_net.1} parent=1 // pred_region
      _
    $region9: #{simple_feature_net.1} parent=1 // pred_fallthru
      _
    // Predicated region
    $region10: #{simple_feature_net.1} parent=1 // pred_check
      _
    $region11: #{simple_feature_net.1} parent=1 // pred_check_branch
      %18 = sbr.rel (0) target = $region13
    $region12: #{simple_feature_net.1} parent=1 // pred_region
      _
    $region13: #{simple_feature_net.1} parent=1 // pred_fallthru
      _
    // Predicated region
    $region14: #{simple_feature_net.1} parent=1 // pred_check
      _
    $region15: #{simple_feature_net.1} parent=1 // pred_check_branch
      %20 = sbr.rel (0) target = $region17
    $region16: #{simple_feature_net.1} parent=1 // pred_region
      _
    $region17: #{simple_feature_net.1} parent=1 // pred_fallthru
      _
    // Predicated region
    $region18: #{simple_feature_net.1} parent=1 // pred_check
      _
    $region19: #{simple_feature_net.1} parent=1 // pred_check_branch
      %22 = sbr.rel (0) target = $region21
    $region20: #{simple_feature_net.1} parent=1 // pred_region
      _
    $region21: #{simple_feature_net.1} parent=1 // pred_fallthru
      _
    // Predicated region
    $region22: #{simple_feature_net.1} parent=1 // pred_check
      _
    $region23: #{simple_feature_net.1} parent=1 // pred_check_branch
      %24 = sbr.rel (0) target = $region25
    $region24: #{simple_feature_net.1} parent=1 // pred_region
      _
    $region25: #{simple_feature_net.1} parent=1 // pred_fallthru
      _
    // Predicated region
    $region26: #{simple_feature_net.1} parent=1 // pred_check
      _
    $region27: #{simple_feature_net.1} parent=1 // pred_check_branch
      %26 = sbr.rel (0) target = $region29
    $region28: #{simple_feature_net.1} parent=1 // pred_region
      _
    $region29: #{simple_feature_net.1} parent=1 // pred_fallthru
      _
    %vm27 = vcmask 139264
    %28 = vst.msk [vmem:[#allocation2] sm:$0x1] %vm27, 0.0
    %29 = vst.msk [vmem:[#allocation2 + $0x18] sm:$0x1] %vm27, 0.0
    %30 = vst.msk [vmem:[#allocation2 + $0x11] sm:$0x1] %vm27, 0.0
    %31 = vst.msk [vmem:[#allocation2 + $0x29] sm:$0x1] %vm27, 0.0
    %vm32 = vcmask 7168
    %33 = vst.msk [vmem:[#allocation2] sm:$0xff] %vm32, 0.0
    %34 = vst.msk [vmem:[#allocation2 + $0x8] sm:$0xff] %vm32, 0.0
    %vm35 = vcmask 1024
    %36 = vst.msk [vmem:[#allocation2 + $0x10] sm:$0x3] %vm35, 0.0
    %37 = vst.msk [vmem:[#allocation2 + $0x18] sm:$0xff] %vm32, 0.0
    %38 = vst.msk [vmem:[#allocation2 + $0x20] sm:$0xff] %vm32, 0.0
    %39 = vst.msk [vmem:[#allocation2 + $0x28] sm:$0x3] %vm35, 0.0
    %vm40 = vcmask 146568
    %41 = vst.msk [vmem:[#allocation2] sm:$0xff] %vm40, 0.0
    %42 = vst.msk [vmem:[#allocation2 + $0x8] sm:$0xff] %vm40, 0.0
    %vm43 = vcmask 140424
    %44 = vst.msk [vmem:[#allocation2 + $0x10] sm:$0x3] %vm43, 0.0
    %45 = vst.msk [vmem:[#allocation2 + $0x18] sm:$0xff] %vm40, 0.0
    %46 = vst.msk [vmem:[#allocation2 + $0x20] sm:$0xff] %vm40, 0.0
    %47 = vst.msk [vmem:[#allocation2 + $0x28] sm:$0x3] %vm43, 0.0
    %v48 = vld [vmem:[%s0] sm:$0xff]
    %v49 = vld [vmem:[%s0 + $0x8] sm:$0xff]
    %v50 = vld [vmem:[%s0 + $0x10] sm:$0xff]
    %v51 = vld [vmem:[%s0 + $0x18] sm:$0xff]
    %56 = vrot.lane.b32.xlu0 %v48, 1
    %v57 = vpop.permute.xlu0 %56
    %58 = vrot.lane.b32.xlu0 %v49, 1
    %v59 = vpop.permute.xlu0 %58
    %60 = vrot.lane.b32.xlu0 %v50, 1
    %v61 = vpop.permute.xlu0 %60
    %62 = vrot.lane.b32.xlu0 %v51, 1
    %v63 = vpop.permute.xlu0 %62
    %vm68 = vcmask 138248
    %69 = vst.msk [vmem:[#allocation2 + $0x1] sm:$0xff] %vm68, %v57
    %70 = vst.msk [vmem:[#allocation2 + $0x9] sm:$0xff] %vm68, %v59
    %71 = vst.msk [vmem:[#allocation2 + $0x19] sm:$0xff] %vm68, %v61
    %72 = vst.msk [vmem:[#allocation2 + $0x21] sm:$0xff] %vm68, %v63
    %v73 = vld [vmem:[#allocation2] sm:$0xff]
    %v74 = vld [vmem:[#allocation2 + $0x8] sm:$0xff]
    %v75 = vld [vmem:[#allocation2 + $0x10] sm:$0x3]
    %v76 = vld [vmem:[#allocation2 + $0x18] sm:$0xff]
    %v77 = vld [vmem:[#allocation2 + $0x20] sm:$0xff]
    %v78 = vld [vmem:[#allocation2 + $0x28] sm:$0x3]
    %v79 = vld [vmem:[%s1] sm:$0xff]
    %v80 = vld [vmem:[%s1 + $0x8] sm:$0x1]
    %v81 = vperm.slane %v73, 0
    %v82 = vlaneseq
    %v83 = vshrl.u32 %v82, 7
    %85 = vset.pattern.permute.xlu0 %v83
    %86 = vperm.xlu0 %85, %v81
    %v87 = vpop.permute.xlu0 %86
    %v88 = vlaneseq
    %v89 = vshrl.u32 %v88, 7
    %v90 = vadd.s32 %v89, 8
    %91 = vset.pattern.permute.xlu0 %v90
    %92 = vperm.xlu0 %91, %v81
    %v93 = vpop.permute.xlu0 %92
    %v94 = vperm.slane %v73, 1
    %v95 = vlaneseq
    %v96 = vshrl.u32 %v95, 7
    %98 = vset.pattern.permute.xlu0 %v96
    %99 = vperm.xlu0 %98, %v94
    %v100 = vpop.permute.xlu0 %99
    %v101 = vlaneseq
    %v102 = vshrl.u32 %v101, 7
    %v103 = vadd.s32 %v102, 8
    %104 = vset.pattern.permute.xlu0 %v103
    %105 = vperm.xlu0 %104, %v94
    %v106 = vpop.permute.xlu0 %105
    %v107 = vperm.slane %v73, 2
    %v108 = vlaneseq
    %v109 = vshrl.u32 %v108, 7
    %111 = vset.pattern.permute.xlu0 %v109
    %112 = vperm.xlu0 %111, %v107
    %v113 = vpop.permute.xlu0 %112
    %v114 = vlaneseq
    %v115 = vshrl.u32 %v114, 7
    %v116 = vadd.s32 %v115, 8
    %117 = vset.pattern.permute.xlu0 %v116
    %118 = vperm.xlu0 %117, %v107
    %v119 = vpop.permute.xlu0 %118
    %v120 = vperm.slane %v73, 3
    %v121 = vlaneseq
    %v122 = vshrl.u32 %v121, 7
    %124 = vset.pattern.permute.xlu0 %v122
    %125 = vperm.xlu0 %124, %v120
    %v126 = vpop.permute.xlu0 %125
    %v127 = vlaneseq
    %v128 = vshrl.u32 %v127, 7
    %v129 = vadd.s32 %v128, 8
    %130 = vset.pattern.permute.xlu0 %v129
    %131 = vperm.xlu0 %130, %v120
    %v132 = vpop.permute.xlu0 %131
    %v133 = vperm.slane %v73, 4
    %v134 = vlaneseq
    %v135 = vshrl.u32 %v134, 7
    %137 = vset.pattern.permute.xlu0 %v135
    %138 = vperm.xlu0 %137, %v133
    %v139 = vpop.permute.xlu0 %138
    %v140 = vlaneseq
    %v141 = vshrl.u32 %v140, 7
    %v142 = vadd.s32 %v141, 8
    %143 = vset.pattern.permute.xlu0 %v142
    %144 = vperm.xlu0 %143, %v133
    %v145 = vpop.permute.xlu0 %144
    %v146 = vperm.slane %v73, 5
    %v147 = vlaneseq
    %v148 = vshrl.u32 %v147, 7
    %150 = vset.pattern.permute.xlu0 %v148
    %151 = vperm.xlu0 %150, %v146
    %v152 = vpop.permute.xlu0 %151
    %v153 = vlaneseq
    %v154 = vshrl.u32 %v153, 7
    %v155 = vadd.s32 %v154, 8
    %156 = vset.pattern.permute.xlu0 %v155
    %157 = vperm.xlu0 %156, %v146
    %v158 = vpop.permute.xlu0 %157
    %v159 = vperm.slane %v73, 6
    %v160 = vlaneseq
    %v161 = vshrl.u32 %v160, 7
    %163 = vset.pattern.permute.xlu0 %v161
    %164 = vperm.xlu0 %163, %v159
    %v165 = vpop.permute.xlu0 %164
    %v166 = vlaneseq
    %v167 = vshrl.u32 %v166, 7
    %v168 = vadd.s32 %v167, 8
    %169 = vset.pattern.permute.xlu0 %v168
    %170 = vperm.xlu0 %169, %v159
    %v171 = vpop.permute.xlu0 %170
    %v172 = vperm.slane %v73, 7
    %v173 = vlaneseq
    %v174 = vshrl.u32 %v173, 7
    %176 = vset.pattern.permute.xlu0 %v174
    %177 = vperm.xlu0 %176, %v172
    %v178 = vpop.permute.xlu0 %177
    %v179 = vlaneseq
    %v180 = vshrl.u32 %v179, 7
    %v181 = vadd.s32 %v180, 8
    %182 = vset.pattern.permute.xlu0 %v181
    %183 = vperm.xlu0 %182, %v172
    %v184 = vpop.permute.xlu0 %183
    %v185 = vperm.slane %v74, 0
    %v186 = vlaneseq
    %v187 = vshrl.u32 %v186, 7
    %189 = vset.pattern.permute.xlu0 %v187
    %190 = vperm.xlu0 %189, %v185
    %v191 = vpop.permute.xlu0 %190
    %v192 = vlaneseq
    %v193 = vshrl.u32 %v192, 7
    %v194 = vadd.s32 %v193, 8
    %195 = vset.pattern.permute.xlu0 %v194
    %196 = vperm.xlu0 %195, %v185
    %v197 = vpop.permute.xlu0 %196
    %v198 = vperm.slane %v74, 1
    %v199 = vlaneseq
    %v200 = vshrl.u32 %v199, 7
    %202 = vset.pattern.permute.xlu0 %v200
    %203 = vperm.xlu0 %202, %v198
    %v204 = vpop.permute.xlu0 %203
    %v205 = vlaneseq
    %v206 = vshrl.u32 %v205, 7
    %v207 = vadd.s32 %v206, 8
    %208 = vset.pattern.permute.xlu0 %v207
    %209 = vperm.xlu0 %208, %v198
    %v210 = vpop.permute.xlu0 %209
    %v211 = vperm.slane %v74, 2
    %v212 = vlaneseq
    %v213 = vshrl.u32 %v212, 7
    %215 = vset.pattern.permute.xlu0 %v213
    %216 = vperm.xlu0 %215, %v211
    %v217 = vpop.permute.xlu0 %216
    %v218 = vlaneseq
    %v219 = vshrl.u32 %v218, 7
    %v220 = vadd.s32 %v219, 8
    %221 = vset.pattern.permute.xlu0 %v220
    %222 = vperm.xlu0 %221, %v211
    %v223 = vpop.permute.xlu0 %222
    %v224 = vperm.slane %v74, 3
    %v225 = vlaneseq
    %v226 = vshrl.u32 %v225, 7
    %228 = vset.pattern.permute.xlu0 %v226
    %229 = vperm.xlu0 %228, %v224
    %v230 = vpop.permute.xlu0 %229
    %v231 = vlaneseq
    %v232 = vshrl.u32 %v231, 7
    %v233 = vadd.s32 %v232, 8
    %234 = vset.pattern.permute.xlu0 %v233
    %235 = vperm.xlu0 %234, %v224
    %v236 = vpop.permute.xlu0 %235
    %v237 = vperm.slane %v74, 4
    %v238 = vlaneseq
    %v239 = vshrl.u32 %v238, 7
    %241 = vset.pattern.permute.xlu0 %v239
    %242 = vperm.xlu0 %241, %v237
    %v243 = vpop.permute.xlu0 %242
    %v244 = vlaneseq
    %v245 = vshrl.u32 %v244, 7
    %v246 = vadd.s32 %v245, 8
    %247 = vset.pattern.permute.xlu0 %v246
    %248 = vperm.xlu0 %247, %v237
    %v249 = vpop.permute.xlu0 %248
    %v250 = vperm.slane %v74, 5
    %v251 = vlaneseq
    %v252 = vshrl.u32 %v251, 7
    %254 = vset.pattern.permute.xlu0 %v252
    %255 = vperm.xlu0 %254, %v250
    %v256 = vpop.permute.xlu0 %255
    %v257 = vlaneseq
    %v258 = vshrl.u32 %v257, 7
    %v259 = vadd.s32 %v258, 8
    %260 = vset.pattern.permute.xlu0 %v259
    %261 = vperm.xlu0 %260, %v250
    %v262 = vpop.permute.xlu0 %261
    %v263 = vperm.slane %v74, 6
    %v264 = vlaneseq
    %v265 = vshrl.u32 %v264, 7
    %267 = vset.pattern.permute.xlu0 %v265
    %268 = vperm.xlu0 %267, %v263
    %v269 = vpop.permute.xlu0 %268
    %v270 = vlaneseq
    %v271 = vshrl.u32 %v270, 7
    %v272 = vadd.s32 %v271, 8
    %273 = vset.pattern.permute.xlu0 %v272
    %274 = vperm.xlu0 %273, %v263
    %v275 = vpop.permute.xlu0 %274
    %v276 = vperm.slane %v74, 7
    %v277 = vlaneseq
    %v278 = vshrl.u32 %v277, 7
    %280 = vset.pattern.permute.xlu0 %v278
    %281 = vperm.xlu0 %280, %v276
    %v282 = vpop.permute.xlu0 %281
    %v283 = vlaneseq
    %v284 = vshrl.u32 %v283, 7
    %v285 = vadd.s32 %v284, 8
    %286 = vset.pattern.permute.xlu0 %v285
    %287 = vperm.xlu0 %286, %v276
    %v288 = vpop.permute.xlu0 %287
    %v289 = vperm.slane %v76, 0
    %v290 = vlaneseq
    %v291 = vshrl.u32 %v290, 7
    %293 = vset.pattern.permute.xlu0 %v291
    %294 = vperm.xlu0 %293, %v289
    %v295 = vpop.permute.xlu0 %294
    %v296 = vlaneseq
    %v297 = vshrl.u32 %v296, 7
    %v298 = vadd.s32 %v297, 8
    %299 = vset.pattern.permute.xlu0 %v298
    %300 = vperm.xlu0 %299, %v289
    %v301 = vpop.permute.xlu0 %300
    %v302 = vperm.slane %v76, 1
    %v303 = vlaneseq
    %v304 = vshrl.u32 %v303, 7
    %306 = vset.pattern.permute.xlu0 %v304
    %307 = vperm.xlu0 %306, %v302
    %v308 = vpop.permute.xlu0 %307
    %v309 = vlaneseq
    %v310 = vshrl.u32 %v309, 7
    %v311 = vadd.s32 %v310, 8
    %312 = vset.pattern.permute.xlu0 %v311
    %313 = vperm.xlu0 %312, %v302
    %v314 = vpop.permute.xlu0 %313
    %v315 = vperm.slane %v76, 2
    %v316 = vlaneseq
    %v317 = vshrl.u32 %v316, 7
    %319 = vset.pattern.permute.xlu0 %v317
    %320 = vperm.xlu0 %319, %v315
    %v321 = vpop.permute.xlu0 %320
    %v322 = vlaneseq
    %v323 = vshrl.u32 %v322, 7
    %v324 = vadd.s32 %v323, 8
    %325 = vset.pattern.permute.xlu0 %v324
    %326 = vperm.xlu0 %325, %v315
    %v327 = vpop.permute.xlu0 %326
    %v328 = vperm.slane %v76, 3
    %v329 = vlaneseq
    %v330 = vshrl.u32 %v329, 7
    %332 = vset.pattern.permute.xlu0 %v330
    %333 = vperm.xlu0 %332, %v328
    %v334 = vpop.permute.xlu0 %333
    %v335 = vlaneseq
    %v336 = vshrl.u32 %v335, 7
    %v337 = vadd.s32 %v336, 8
    %338 = vset.pattern.permute.xlu0 %v337
    %339 = vperm.xlu0 %338, %v328
    %v340 = vpop.permute.xlu0 %339
    %v341 = vperm.slane %v76, 4
    %v342 = vlaneseq
    %v343 = vshrl.u32 %v342, 7
    %345 = vset.pattern.permute.xlu0 %v343
    %346 = vperm.xlu0 %345, %v341
    %v347 = vpop.permute.xlu0 %346
    %v348 = vlaneseq
    %v349 = vshrl.u32 %v348, 7
    %v350 = vadd.s32 %v349, 8
    %351 = vset.pattern.permute.xlu0 %v350
    %352 = vperm.xlu0 %351, %v341
    %v353 = vpop.permute.xlu0 %352
    %v354 = vperm.slane %v76, 5
    %v355 = vlaneseq
    %v356 = vshrl.u32 %v355, 7
    %358 = vset.pattern.permute.xlu0 %v356
    %359 = vperm.xlu0 %358, %v354
    %v360 = vpop.permute.xlu0 %359
    %v361 = vlaneseq
    %v362 = vshrl.u32 %v361, 7
    %v363 = vadd.s32 %v362, 8
    %364 = vset.pattern.permute.xlu0 %v363
    %365 = vperm.xlu0 %364, %v354
    %v366 = vpop.permute.xlu0 %365
    %v367 = vperm.slane %v76, 6
    %v368 = vlaneseq
    %v369 = vshrl.u32 %v368, 7
    %371 = vset.pattern.permute.xlu0 %v369
    %372 = vperm.xlu0 %371, %v367
    %v373 = vpop.permute.xlu0 %372
    %v374 = vlaneseq
    %v375 = vshrl.u32 %v374, 7
    %v376 = vadd.s32 %v375, 8
    %377 = vset.pattern.permute.xlu0 %v376
    %378 = vperm.xlu0 %377, %v367
    %v379 = vpop.permute.xlu0 %378
    %v380 = vperm.slane %v76, 7
    %v381 = vlaneseq
    %v382 = vshrl.u32 %v381, 7
    %384 = vset.pattern.permute.xlu0 %v382
    %385 = vperm.xlu0 %384, %v380
    %v386 = vpop.permute.xlu0 %385
    %v387 = vlaneseq
    %v388 = vshrl.u32 %v387, 7
    %v389 = vadd.s32 %v388, 8
    %390 = vset.pattern.permute.xlu0 %v389
    %391 = vperm.xlu0 %390, %v380
    %v392 = vpop.permute.xlu0 %391
    %v393 = vperm.slane %v77, 0
    %v394 = vlaneseq
    %v395 = vshrl.u32 %v394, 7
    %397 = vset.pattern.permute.xlu0 %v395
    %398 = vperm.xlu0 %397, %v393
    %v399 = vpop.permute.xlu0 %398
    %v400 = vlaneseq
    %v401 = vshrl.u32 %v400, 7
    %v402 = vadd.s32 %v401, 8
    %403 = vset.pattern.permute.xlu0 %v402
    %404 = vperm.xlu0 %403, %v393
    %v405 = vpop.permute.xlu0 %404
    %v406 = vperm.slane %v77, 1
    %v407 = vlaneseq
    %v408 = vshrl.u32 %v407, 7
    %410 = vset.pattern.permute.xlu0 %v408
    %411 = vperm.xlu0 %410, %v406
    %v412 = vpop.permute.xlu0 %411
    %v413 = vlaneseq
    %v414 = vshrl.u32 %v413, 7
    %v415 = vadd.s32 %v414, 8
    %416 = vset.pattern.permute.xlu0 %v415
    %417 = vperm.xlu0 %416, %v406
    %v418 = vpop.permute.xlu0 %417
    %v419 = vperm.slane %v77, 2
    %v420 = vlaneseq
    %v421 = vshrl.u32 %v420, 7
    %423 = vset.pattern.permute.xlu0 %v421
    %424 = vperm.xlu0 %423, %v419
    %v425 = vpop.permute.xlu0 %424
    %v426 = vlaneseq
    %v427 = vshrl.u32 %v426, 7
    %v428 = vadd.s32 %v427, 8
    %429 = vset.pattern.permute.xlu0 %v428
    %430 = vperm.xlu0 %429, %v419
    %v431 = vpop.permute.xlu0 %430
    %v432 = vperm.slane %v77, 3
    %v433 = vlaneseq
    %v434 = vshrl.u32 %v433, 7
    %436 = vset.pattern.permute.xlu0 %v434
    %437 = vperm.xlu0 %436, %v432
    %v438 = vpop.permute.xlu0 %437
    %v439 = vlaneseq
    %v440 = vshrl.u32 %v439, 7
    %v441 = vadd.s32 %v440, 8
    %442 = vset.pattern.permute.xlu0 %v441
    %443 = vperm.xlu0 %442, %v432
    %v444 = vpop.permute.xlu0 %443
    %v445 = vperm.slane %v77, 4
    %v446 = vlaneseq
    %v447 = vshrl.u32 %v446, 7
    %449 = vset.pattern.permute.xlu0 %v447
    %450 = vperm.xlu0 %449, %v445
    %v451 = vpop.permute.xlu0 %450
    %v452 = vlaneseq
    %v453 = vshrl.u32 %v452, 7
    %v454 = vadd.s32 %v453, 8
    %455 = vset.pattern.permute.xlu0 %v454
    %456 = vperm.xlu0 %455, %v445
    %v457 = vpop.permute.xlu0 %456
    %v458 = vperm.slane %v77, 5
    %v459 = vlaneseq
    %v460 = vshrl.u32 %v459, 7
    %462 = vset.pattern.permute.xlu0 %v460
    %463 = vperm.xlu0 %462, %v458
    %v464 = vpop.permute.xlu0 %463
    %v465 = vlaneseq
    %v466 = vshrl.u32 %v465, 7
    %v467 = vadd.s32 %v466, 8
    %468 = vset.pattern.permute.xlu0 %v467
    %469 = vperm.xlu0 %468, %v458
    %v470 = vpop.permute.xlu0 %469
    %v471 = vperm.slane %v77, 6
    %v472 = vlaneseq
    %v473 = vshrl.u32 %v472, 7
    %475 = vset.pattern.permute.xlu0 %v473
    %476 = vperm.xlu0 %475, %v471
    %v477 = vpop.permute.xlu0 %476
    %v478 = vlaneseq
    %v479 = vshrl.u32 %v478, 7
    %v480 = vadd.s32 %v479, 8
    %481 = vset.pattern.permute.xlu0 %v480
    %482 = vperm.xlu0 %481, %v471
    %v483 = vpop.permute.xlu0 %482
    %v484 = vperm.slane %v77, 7
    %v485 = vlaneseq
    %v486 = vshrl.u32 %v485, 7
    %488 = vset.pattern.permute.xlu0 %v486
    %489 = vperm.xlu0 %488, %v484
    %v490 = vpop.permute.xlu0 %489
    %v491 = vlaneseq
    %v492 = vshrl.u32 %v491, 7
    %v493 = vadd.s32 %v492, 8
    %494 = vset.pattern.permute.xlu0 %v493
    %495 = vperm.xlu0 %494, %v484
    %v496 = vpop.permute.xlu0 %495
    %v497 = vperm.slane %v79, 0
    %v498 = vmul.f32 %v87, %v497
    %v499 = vmul.f32 %v93, %v497
    %v500 = vmul.f32 %v100, %v497
    %v501 = vmul.f32 %v106, %v497
    %v502 = vmul.f32 %v113, %v497
    %v503 = vmul.f32 %v119, %v497
    %v504 = vmul.f32 %v126, %v497
    %v505 = vmul.f32 %v132, %v497
    %v506 = vmul.f32 %v139, %v497
    %v507 = vmul.f32 %v145, %v497
    %v508 = vmul.f32 %v152, %v497
    %v509 = vmul.f32 %v158, %v497
    %v510 = vmul.f32 %v165, %v497
    %v511 = vmul.f32 %v171, %v497
    %v512 = vmul.f32 %v178, %v497
    %v513 = vmul.f32 %v184, %v497
    %v514 = vmul.f32 %v191, %v497
    %v515 = vmul.f32 %v197, %v497
    %v516 = vmul.f32 %v204, %v497
    %v517 = vmul.f32 %v210, %v497
    %v518 = vmul.f32 %v217, %v497
    %v519 = vmul.f32 %v223, %v497
    %v520 = vmul.f32 %v230, %v497
    %v521 = vmul.f32 %v236, %v497
    %v522 = vmul.f32 %v243, %v497
    %v523 = vmul.f32 %v249, %v497
    %v524 = vmul.f32 %v256, %v497
    %v525 = vmul.f32 %v262, %v497
    %v526 = vmul.f32 %v269, %v497
    %v527 = vmul.f32 %v275, %v497
    %v528 = vmul.f32 %v282, %v497
    %v529 = vmul.f32 %v288, %v497
    %v530 = vmul.f32 %v295, %v497
    %v531 = vmul.f32 %v301, %v497
    %v532 = vmul.f32 %v308, %v497
    %v533 = vmul.f32 %v314, %v497
    %v534 = vmul.f32 %v321, %v497
    %v535 = vmul.f32 %v327, %v497
    %v536 = vmul.f32 %v334, %v497
    %v537 = vmul.f32 %v340, %v497
    %v538 = vmul.f32 %v347, %v497
    %v539 = vmul.f32 %v353, %v497
    %v540 = vmul.f32 %v360, %v497
    %v541 = vmul.f32 %v366, %v497
    %v542 = vmul.f32 %v373, %v497
    %v543 = vmul.f32 %v379, %v497
    %v544 = vmul.f32 %v386, %v497
    %v545 = vmul.f32 %v392, %v497
    %v546 = vmul.f32 %v399, %v497
    %v547 = vmul.f32 %v405, %v497
    %v548 = vmul.f32 %v412, %v497
    %v549 = vmul.f32 %v418, %v497
    %v550 = vmul.f32 %v425, %v497
    %v551 = vmul.f32 %v431, %v497
    %v552 = vmul.f32 %v438, %v497
    %v553 = vmul.f32 %v444, %v497
    %v554 = vmul.f32 %v451, %v497
    %v555 = vmul.f32 %v457, %v497
    %v556 = vmul.f32 %v464, %v497
    %v557 = vmul.f32 %v470, %v497
    %v558 = vmul.f32 %v477, %v497
    %v559 = vmul.f32 %v483, %v497
    %v560 = vmul.f32 %v490, %v497
    %v561 = vmul.f32 %v496, %v497
    %v562 = vadd.f32 %v498, 0.0
    %v563 = vadd.f32 %v499, 0.0
    %v564 = vadd.f32 %v500, 0.0
    %v565 = vadd.f32 %v501, 0.0
    %v566 = vadd.f32 %v502, 0.0
    %v567 = vadd.f32 %v503, 0.0
    %v568 = vadd.f32 %v504, 0.0
    %v569 = vadd.f32 %v505, 0.0
    %v570 = vadd.f32 %v506, 0.0
    %v571 = vadd.f32 %v507, 0.0
    %v572 = vadd.f32 %v508, 0.0
    %v573 = vadd.f32 %v509, 0.0
    %v574 = vadd.f32 %v510, 0.0
    %v575 = vadd.f32 %v511, 0.0
    %v576 = vadd.f32 %v512, 0.0
    %v577 = vadd.f32 %v513, 0.0
    %v578 = vadd.f32 %v514, 0.0
    %v579 = vadd.f32 %v515, 0.0
    %v580 = vadd.f32 %v516, 0.0
    %v581 = vadd.f32 %v517, 0.0
    %v582 = vadd.f32 %v518, 0.0
    %v583 = vadd.f32 %v519, 0.0
    %v584 = vadd.f32 %v520, 0.0
    %v585 = vadd.f32 %v521, 0.0
    %v586 = vadd.f32 %v522, 0.0
    %v587 = vadd.f32 %v523, 0.0
    %v588 = vadd.f32 %v524, 0.0
    %v589 = vadd.f32 %v525, 0.0
    %v590 = vadd.f32 %v526, 0.0
    %v591 = vadd.f32 %v527, 0.0
    %v592 = vadd.f32 %v528, 0.0
    %v593 = vadd.f32 %v529, 0.0
    %v594 = vadd.f32 %v530, 0.0
    %v595 = vadd.f32 %v531, 0.0
    %v596 = vadd.f32 %v532, 0.0
    %v597 = vadd.f32 %v533, 0.0
    %v598 = vadd.f32 %v534, 0.0
    %v599 = vadd.f32 %v535, 0.0
    %v600 = vadd.f32 %v536, 0.0
    %v601 = vadd.f32 %v537, 0.0
    %v602 = vadd.f32 %v538, 0.0
    %v603 = vadd.f32 %v539, 0.0
    %v604 = vadd.f32 %v540, 0.0
    %v605 = vadd.f32 %v541, 0.0
    %v606 = vadd.f32 %v542, 0.0
    %v607 = vadd.f32 %v543, 0.0
    %v608 = vadd.f32 %v544, 0.0
    %v609 = vadd.f32 %v545, 0.0
    %v610 = vadd.f32 %v546, 0.0
    %v611 = vadd.f32 %v547, 0.0
    %v612 = vadd.f32 %v548, 0.0
    %v613 = vadd.f32 %v549, 0.0
    %v614 = vadd.f32 %v550, 0.0
    %v615 = vadd.f32 %v551, 0.0
    %v616 = vadd.f32 %v552, 0.0
    %v617 = vadd.f32 %v553, 0.0
    %v618 = vadd.f32 %v554, 0.0
    %v619 = vadd.f32 %v555, 0.0
    %v620 = vadd.f32 %v556, 0.0
    %v621 = vadd.f32 %v557, 0.0
    %v622 = vadd.f32 %v558, 0.0
    %v623 = vadd.f32 %v559, 0.0
    %v624 = vadd.f32 %v560, 0.0
    %v625 = vadd.f32 %v561, 0.0
    %v626 = vlaneseq
    %v627 = vshrl.u32 %v626, 7
    %v628 = vadd.s32 %v627, 1
    %629 = vset.pattern.permute.xlu0 %v628
    %630 = vperm.xlu0 %629, %v81
    %v631 = vpop.permute.xlu0 %630
    %v632 = vlaneseq
    %v633 = vshrl.u32 %v632, 7
    %v634 = vadd.s32 %v633, 9
    %635 = vset.pattern.permute.xlu0 %v634
    %636 = vperm.xlu0 %635, %v81
    %v637 = vpop.permute.xlu0 %636
    %v638 = vlaneseq
    %v639 = vshrl.u32 %v638, 7
    %v640 = vadd.s32 %v639, 1
    %641 = vset.pattern.permute.xlu0 %v640
    %642 = vperm.xlu0 %641, %v94
    %v643 = vpop.permute.xlu0 %642
    %v644 = vlaneseq
    %v645 = vshrl.u32 %v644, 7
    %v646 = vadd.s32 %v645, 9
    %647 = vset.pattern.permute.xlu0 %v646
    %648 = vperm.xlu0 %647, %v94
    %v649 = vpop.permute.xlu0 %648
    %v650 = vlaneseq
    %v651 = vshrl.u32 %v650, 7
    %v652 = vadd.s32 %v651, 1
    %653 = vset.pattern.permute.xlu0 %v652
    %654 = vperm.xlu0 %653, %v107
    %v655 = vpop.permute.xlu0 %654
    %v656 = vlaneseq
    %v657 = vshrl.u32 %v656, 7
    %v658 = vadd.s32 %v657, 9
    %659 = vset.pattern.permute.xlu0 %v658
    %660 = vperm.xlu0 %659, %v107
    %v661 = vpop.permute.xlu0 %660
    %v662 = vlaneseq
    %v663 = vshrl.u32 %v662, 7
    %v664 = vadd.s32 %v663, 1
    %665 = vset.pattern.permute.xlu0 %v664
    %666 = vperm.xlu0 %665, %v120
    %v667 = vpop.permute.xlu0 %666
    %v668 = vlaneseq
    %v669 = vshrl.u32 %v668, 7
    %v670 = vadd.s32 %v669, 9
    %671 = vset.pattern.permute.xlu0 %v670
    %672 = vperm.xlu0 %671, %v120
    %v673 = vpop.permute.xlu0 %672
    %v674 = vlaneseq
    %v675 = vshrl.u32 %v674, 7
    %v676 = vadd.s32 %v675, 1
    %677 = vset.pattern.permute.xlu0 %v676
    %678 = vperm.xlu0 %677, %v133
    %v679 = vpop.permute.xlu0 %678
    %v680 = vlaneseq
    %v681 = vshrl.u32 %v680, 7
    %v682 = vadd.s32 %v681, 9
    %683 = vset.pattern.permute.xlu0 %v682
    %684 = vperm.xlu0 %683, %v133
    %v685 = vpop.permute.xlu0 %684
    %v686 = vlaneseq
    %v687 = vshrl.u32 %v686, 7
    %v688 = vadd.s32 %v687, 1
    %689 = vset.pattern.permute.xlu0 %v688
    %690 = vperm.xlu0 %689, %v146
    %v691 = vpop.permute.xlu0 %690
    %v692 = vlaneseq
    %v693 = vshrl.u32 %v692, 7
    %v694 = vadd.s32 %v693, 9
    %695 = vset.pattern.permute.xlu0 %v694
    %696 = vperm.xlu0 %695, %v146
    %v697 = vpop.permute.xlu0 %696
    %v698 = vlaneseq
    %v699 = vshrl.u32 %v698, 7
    %v700 = vadd.s32 %v699, 1
    %701 = vset.pattern.permute.xlu0 %v700
    %702 = vperm.xlu0 %701, %v159
    %v703 = vpop.permute.xlu0 %702
    %v704 = vlaneseq
    %v705 = vshrl.u32 %v704, 7
    %v706 = vadd.s32 %v705, 9
    %707 = vset.pattern.permute.xlu0 %v706
    %708 = vperm.xlu0 %707, %v159
    %v709 = vpop.permute.xlu0 %708
    %v710 = vlaneseq
    %v711 = vshrl.u32 %v710, 7
    %v712 = vadd.s32 %v711, 1
    %713 = vset.pattern.permute.xlu0 %v712
    %714 = vperm.xlu0 %713, %v172
    %v715 = vpop.permute.xlu0 %714
    %v716 = vlaneseq
    %v717 = vshrl.u32 %v716, 7
    %v718 = vadd.s32 %v717, 9
    %719 = vset.pattern.permute.xlu0 %v718
    %720 = vperm.xlu0 %719, %v172
    %v721 = vpop.permute.xlu0 %720
    %v722 = vlaneseq
    %v723 = vshrl.u32 %v722, 7
    %v724 = vadd.s32 %v723, 1
    %725 = vset.pattern.permute.xlu0 %v724
    %726 = vperm.xlu0 %725, %v185
    %v727 = vpop.permute.xlu0 %726
    %v728 = vlaneseq
    %v729 = vshrl.u32 %v728, 7
    %v730 = vadd.s32 %v729, 9
    %731 = vset.pattern.permute.xlu0 %v730
    %732 = vperm.xlu0 %731, %v185
    %v733 = vpop.permute.xlu0 %732
    %v734 = vlaneseq
    %v735 = vshrl.u32 %v734, 7
    %v736 = vadd.s32 %v735, 1
    %737 = vset.pattern.permute.xlu0 %v736
    %738 = vperm.xlu0 %737, %v198
    %v739 = vpop.permute.xlu0 %738
    %v740 = vlaneseq
    %v741 = vshrl.u32 %v740, 7
    %v742 = vadd.s32 %v741, 9
    %743 = vset.pattern.permute.xlu0 %v742
    %744 = vperm.xlu0 %743, %v198
    %v745 = vpop.permute.xlu0 %744
    %v746 = vlaneseq
    %v747 = vshrl.u32 %v746, 7
    %v748 = vadd.s32 %v747, 1
    %749 = vset.pattern.permute.xlu0 %v748
    %750 = vperm.xlu0 %749, %v211
    %v751 = vpop.permute.xlu0 %750
    %v752 = vlaneseq
    %v753 = vshrl.u32 %v752, 7
    %v754 = vadd.s32 %v753, 9
    %755 = vset.pattern.permute.xlu0 %v754
    %756 = vperm.xlu0 %755, %v211
    %v757 = vpop.permute.xlu0 %756
    %v758 = vlaneseq
    %v759 = vshrl.u32 %v758, 7
    %v760 = vadd.s32 %v759, 1
    %761 = vset.pattern.permute.xlu0 %v760
    %762 = vperm.xlu0 %761, %v224
    %v763 = vpop.permute.xlu0 %762
    %v764 = vlaneseq
    %v765 = vshrl.u32 %v764, 7
    %v766 = vadd.s32 %v765, 9
    %767 = vset.pattern.permute.xlu0 %v766
    %768 = vperm.xlu0 %767, %v224
    %v769 = vpop.permute.xlu0 %768
    %v770 = vlaneseq
    %v771 = vshrl.u32 %v770, 7
    %v772 = vadd.s32 %v771, 1
    %773 = vset.pattern.permute.xlu0 %v772
    %774 = vperm.xlu0 %773, %v237
    %v775 = vpop.permute.xlu0 %774
    %v776 = vlaneseq
    %v777 = vshrl.u32 %v776, 7
    %v778 = vadd.s32 %v777, 9
    %779 = vset.pattern.permute.xlu0 %v778
    %780 = vperm.xlu0 %779, %v237
    %v781 = vpop.permute.xlu0 %780
    %v782 = vlaneseq
    %v783 = vshrl.u32 %v782, 7
    %v784 = vadd.s32 %v783, 1
    %785 = vset.pattern.permute.xlu0 %v784
    %786 = vperm.xlu0 %785, %v250
    %v787 = vpop.permute.xlu0 %786
    %v788 = vlaneseq
    %v789 = vshrl.u32 %v788, 7
    %v790 = vadd.s32 %v789, 9
    %791 = vset.pattern.permute.xlu0 %v790
    %792 = vperm.xlu0 %791, %v250
    %v793 = vpop.permute.xlu0 %792
    %v794 = vlaneseq
    %v795 = vshrl.u32 %v794, 7
    %v796 = vadd.s32 %v795, 1
    %797 = vset.pattern.permute.xlu0 %v796
    %798 = vperm.xlu0 %797, %v263
    %v799 = vpop.permute.xlu0 %798
    %v800 = vlaneseq
    %v801 = vshrl.u32 %v800, 7
    %v802 = vadd.s32 %v801, 9
    %803 = vset.pattern.permute.xlu0 %v802
    %804 = vperm.xlu0 %803, %v263
    %v805 = vpop.permute.xlu0 %804
    %v806 = vlaneseq
    %v807 = vshrl.u32 %v806, 7
    %v808 = vadd.s32 %v807, 1
    %809 = vset.pattern.permute.xlu0 %v808
    %810 = vperm.xlu0 %809, %v276
    %v811 = vpop.permute.xlu0 %810
    %v812 = vlaneseq
    %v813 = vshrl.u32 %v812, 7
    %v814 = vadd.s32 %v813, 9
    %815 = vset.pattern.permute.xlu0 %v814
    %816 = vperm.xlu0 %815, %v276
    %v817 = vpop.permute.xlu0 %816
    %v818 = vlaneseq
    %v819 = vshrl.u32 %v818, 7
    %v820 = vadd.s32 %v819, 1
    %821 = vset.pattern.permute.xlu0 %v820
    %822 = vperm.xlu0 %821, %v289
    %v823 = vpop.permute.xlu0 %822
    %v824 = vlaneseq
    %v825 = vshrl.u32 %v824, 7
    %v826 = vadd.s32 %v825, 9
    %827 = vset.pattern.permute.xlu0 %v826
    %828 = vperm.xlu0 %827, %v289
    %v829 = vpop.permute.xlu0 %828
    %v830 = vlaneseq
    %v831 = vshrl.u32 %v830, 7
    %v832 = vadd.s32 %v831, 1
    %833 = vset.pattern.permute.xlu0 %v832
    %834 = vperm.xlu0 %833, %v302
    %v835 = vpop.permute.xlu0 %834
    %v836 = vlaneseq
    %v837 = vshrl.u32 %v836, 7
    %v838 = vadd.s32 %v837, 9
    %839 = vset.pattern.permute.xlu0 %v838
    %840 = vperm.xlu0 %839, %v302
    %v841 = vpop.permute.xlu0 %840
    %v842 = vlaneseq
    %v843 = vshrl.u32 %v842, 7
    %v844 = vadd.s32 %v843, 1
    %845 = vset.pattern.permute.xlu0 %v844
    %846 = vperm.xlu0 %845, %v315
    %v847 = vpop.permute.xlu0 %846
    %v848 = vlaneseq
    %v849 = vshrl.u32 %v848, 7
    %v850 = vadd.s32 %v849, 9
    %851 = vset.pattern.permute.xlu0 %v850
    %852 = vperm.xlu0 %851, %v315
    %v853 = vpop.permute.xlu0 %852
    %v854 = vlaneseq
    %v855 = vshrl.u32 %v854, 7
    %v856 = vadd.s32 %v855, 1
    %857 = vset.pattern.permute.xlu0 %v856
    %858 = vperm.xlu0 %857, %v328
    %v859 = vpop.permute.xlu0 %858
    %v860 = vlaneseq
    %v861 = vshrl.u32 %v860, 7
    %v862 = vadd.s32 %v861, 9
    %863 = vset.pattern.permute.xlu0 %v862
    %864 = vperm.xlu0 %863, %v328
    %v865 = vpop.permute.xlu0 %864
    %v866 = vlaneseq
    %v867 = vshrl.u32 %v866, 7
    %v868 = vadd.s32 %v867, 1
    %869 = vset.pattern.permute.xlu0 %v868
    %870 = vperm.xlu0 %869, %v341
    %v871 = vpop.permute.xlu0 %870
    %v872 = vlaneseq
    %v873 = vshrl.u32 %v872, 7
    %v874 = vadd.s32 %v873, 9
    %875 = vset.pattern.permute.xlu0 %v874
    %876 = vperm.xlu0 %875, %v341
    %v877 = vpop.permute.xlu0 %876
    %v878 = vlaneseq
    %v879 = vshrl.u32 %v878, 7
    %v880 = vadd.s32 %v879, 1
    %881 = vset.pattern.permute.xlu0 %v880
    %882 = vperm.xlu0 %881, %v354
    %v883 = vpop.permute.xlu0 %882
    %v884 = vlaneseq
    %v885 = vshrl.u32 %v884, 7
    %v886 = vadd.s32 %v885, 9
    %887 = vset.pattern.permute.xlu0 %v886
    %888 = vperm.xlu0 %887, %v354
    %v889 = vpop.permute.xlu0 %888
    %v890 = vlaneseq
    %v891 = vshrl.u32 %v890, 7
    %v892 = vadd.s32 %v891, 1
    %893 = vset.pattern.permute.xlu0 %v892
    %894 = vperm.xlu0 %893, %v367
    %v895 = vpop.permute.xlu0 %894
    %v896 = vlaneseq
    %v897 = vshrl.u32 %v896, 7
    %v898 = vadd.s32 %v897, 9
    %899 = vset.pattern.permute.xlu0 %v898
    %900 = vperm.xlu0 %899, %v367
    %v901 = vpop.permute.xlu0 %900
    %v902 = vlaneseq
    %v903 = vshrl.u32 %v902, 7
    %v904 = vadd.s32 %v903, 1
    %905 = vset.pattern.permute.xlu0 %v904
    %906 = vperm.xlu0 %905, %v380
    %v907 = vpop.permute.xlu0 %906
    %v908 = vlaneseq
    %v909 = vshrl.u32 %v908, 7
    %v910 = vadd.s32 %v909, 9
    %911 = vset.pattern.permute.xlu0 %v910
    %912 = vperm.xlu0 %911, %v380
    %v913 = vpop.permute.xlu0 %912
    %v914 = vlaneseq
    %v915 = vshrl.u32 %v914, 7
    %v916 = vadd.s32 %v915, 1
    %917 = vset.pattern.permute.xlu0 %v916
    %918 = vperm.xlu0 %917, %v393
    %v919 = vpop.permute.xlu0 %918
    %v920 = vlaneseq
    %v921 = vshrl.u32 %v920, 7
    %v922 = vadd.s32 %v921, 9
    %923 = vset.pattern.permute.xlu0 %v922
    %924 = vperm.xlu0 %923, %v393
    %v925 = vpop.permute.xlu0 %924
    %v926 = vlaneseq
    %v927 = vshrl.u32 %v926, 7
    %v928 = vadd.s32 %v927, 1
    %929 = vset.pattern.permute.xlu0 %v928
    %930 = vperm.xlu0 %929, %v406
    %v931 = vpop.permute.xlu0 %930
    %v932 = vlaneseq
    %v933 = vshrl.u32 %v932, 7
    %v934 = vadd.s32 %v933, 9
    %935 = vset.pattern.permute.xlu0 %v934
    %936 = vperm.xlu0 %935, %v406
    %v937 = vpop.permute.xlu0 %936
    %v938 = vlaneseq
    %v939 = vshrl.u32 %v938, 7
    %v940 = vadd.s32 %v939, 1
    %941 = vset.pattern.permute.xlu0 %v940
    %942 = vperm.xlu0 %941, %v419
    %v943 = vpop.permute.xlu0 %942
    %v944 = vlaneseq
    %v945 = vshrl.u32 %v944, 7
    %v946 = vadd.s32 %v945, 9
    %947 = vset.pattern.permute.xlu0 %v946
    %948 = vperm.xlu0 %947, %v419
    %v949 = vpop.permute.xlu0 %948
    %v950 = vlaneseq
    %v951 = vshrl.u32 %v950, 7
    %v952 = vadd.s32 %v951, 1
    %953 = vset.pattern.permute.xlu0 %v952
    %954 = vperm.xlu0 %953, %v432
    %v955 = vpop.permute.xlu0 %954
    %v956 = vlaneseq
    %v957 = vshrl.u32 %v956, 7
    %v958 = vadd.s32 %v957, 9
    %959 = vset.pattern.permute.xlu0 %v958
    %960 = vperm.xlu0 %959, %v432
    %v961 = vpop.permute.xlu0 %960
    %v962 = vlaneseq
    %v963 = vshrl.u32 %v962, 7
    %v964 = vadd.s32 %v963, 1
    %965 = vset.pattern.permute.xlu0 %v964
    %966 = vperm.xlu0 %965, %v445
    %v967 = vpop.permute.xlu0 %966
    %v968 = vlaneseq
    %v969 = vshrl.u32 %v968, 7
    %v970 = vadd.s32 %v969, 9
    %971 = vset.pattern.permute.xlu0 %v970
    %972 = vperm.xlu0 %971, %v445
    %v973 = vpop.permute.xlu0 %972
    %v974 = vlaneseq
    %v975 = vshrl.u32 %v974, 7
    %v976 = vadd.s32 %v975, 1
    %977 = vset.pattern.permute.xlu0 %v976
    %978 = vperm.xlu0 %977, %v458
    %v979 = vpop.permute.xlu0 %978
    %v980 = vlaneseq
    %v981 = vshrl.u32 %v980, 7
    %v982 = vadd.s32 %v981, 9
    %983 = vset.pattern.permute.xlu0 %v982
    %984 = vperm.xlu0 %983, %v458
    %v985 = vpop.permute.xlu0 %984
    %v986 = vlaneseq
    %v987 = vshrl.u32 %v986, 7
    %v988 = vadd.s32 %v987, 1
    %989 = vset.pattern.permute.xlu0 %v988
    %990 = vperm.xlu0 %989, %v471
    %v991 = vpop.permute.xlu0 %990
    %v992 = vlaneseq
    %v993 = vshrl.u32 %v992, 7
    %v994 = vadd.s32 %v993, 9
    %995 = vset.pattern.permute.xlu0 %v994
    %996 = vperm.xlu0 %995, %v471
    %v997 = vpop.permute.xlu0 %996
    %v998 = vlaneseq
    %v999 = vshrl.u32 %v998, 7
    %v1000 = vadd.s32 %v999, 1
    %1001 = vset.pattern.permute.xlu0 %v1000
    %1002 = vperm.xlu0 %1001, %v484
    %v1003 = vpop.permute.xlu0 %1002
    %v1004 = vlaneseq
    %v1005 = vshrl.u32 %v1004, 7
    %v1006 = vadd.s32 %v1005, 9
    %1007 = vset.pattern.permute.xlu0 %v1006
    %1008 = vperm.xlu0 %1007, %v484
    %v1009 = vpop.permute.xlu0 %1008
    %v1010 = vperm.slane %v79, 1
    %v1011 = vmul.f32 %v631, %v1010
    %v1012 = vmul.f32 %v637, %v1010
    %v1013 = vmul.f32 %v643, %v1010
    %v1014 = vmul.f32 %v649, %v1010
    %v1015 = vmul.f32 %v655, %v1010
    %v1016 = vmul.f32 %v661, %v1010
    %v1017 = vmul.f32 %v667, %v1010
    %v1018 = vmul.f32 %v673, %v1010
    %v1019 = vmul.f32 %v679, %v1010
    %v1020 = vmul.f32 %v685, %v1010
    %v1021 = vmul.f32 %v691, %v1010
    %v1022 = vmul.f32 %v697, %v1010
    %v1023 = vmul.f32 %v703, %v1010
    %v1024 = vmul.f32 %v709, %v1010
    %v1025 = vmul.f32 %v715, %v1010
    %v1026 = vmul.f32 %v721, %v1010
    %v1027 = vmul.f32 %v727, %v1010
    %v1028 = vmul.f32 %v733, %v1010
    %v1029 = vmul.f32 %v739, %v1010
    %v1030 = vmul.f32 %v745, %v1010
    %v1031 = vmul.f32 %v751, %v1010
    %v1032 = vmul.f32 %v757, %v1010
    %v1033 = vmul.f32 %v763, %v1010
    %v1034 = vmul.f32 %v769, %v1010
    %v1035 = vmul.f32 %v775, %v1010
    %v1036 = vmul.f32 %v781, %v1010
    %v1037 = vmul.f32 %v787, %v1010
    %v1038 = vmul.f32 %v793, %v1010
    %v1039 = vmul.f32 %v799, %v1010
    %v1040 = vmul.f32 %v805, %v1010
    %v1041 = vmul.f32 %v811, %v1010
    %v1042 = vmul.f32 %v817, %v1010
    %v1043 = vmul.f32 %v823, %v1010
    %v1044 = vmul.f32 %v829, %v1010
    %v1045 = vmul.f32 %v835, %v1010
    %v1046 = vmul.f32 %v841, %v1010
    %v1047 = vmul.f32 %v847, %v1010
    %v1048 = vmul.f32 %v853, %v1010
    %v1049 = vmul.f32 %v859, %v1010
    %v1050 = vmul.f32 %v865, %v1010
    %v1051 = vmul.f32 %v871, %v1010
    %v1052 = vmul.f32 %v877, %v1010
    %v1053 = vmul.f32 %v883, %v1010
    %v1054 = vmul.f32 %v889, %v1010
    %v1055 = vmul.f32 %v895, %v1010
    %v1056 = vmul.f32 %v901, %v1010
    %v1057 = vmul.f32 %v907, %v1010
    %v1058 = vmul.f32 %v913, %v1010
    %v1059 = vmul.f32 %v919, %v1010
    %v1060 = vmul.f32 %v925, %v1010
    %v1061 = vmul.f32 %v931, %v1010
    %v1062 = vmul.f32 %v937, %v1010
    %v1063 = vmul.f32 %v943, %v1010
    %v1064 = vmul.f32 %v949, %v1010
    %v1065 = vmul.f32 %v955, %v1010
    %v1066 = vmul.f32 %v961, %v1010
    %v1067 = vmul.f32 %v967, %v1010
    %v1068 = vmul.f32 %v973, %v1010
    %v1069 = vmul.f32 %v979, %v1010
    %v1070 = vmul.f32 %v985, %v1010
    %v1071 = vmul.f32 %v991, %v1010
    %v1072 = vmul.f32 %v997, %v1010
    %v1073 = vmul.f32 %v1003, %v1010
    %v1074 = vmul.f32 %v1009, %v1010
    %v1075 = vadd.f32 %v562, %v1011
    %v1076 = vadd.f32 %v563, %v1012
    %v1077 = vadd.f32 %v564, %v1013
    %v1078 = vadd.f32 %v565, %v1014
    %v1079 = vadd.f32 %v566, %v1015
    %v1080 = vadd.f32 %v567, %v1016
    %v1081 = vadd.f32 %v568, %v1017
    %v1082 = vadd.f32 %v569, %v1018
    %v1083 = vadd.f32 %v570, %v1019
    %v1084 = vadd.f32 %v571, %v1020
    %v1085 = vadd.f32 %v572, %v1021
    %v1086 = vadd.f32 %v573, %v1022
    %v1087 = vadd.f32 %v574, %v1023
    %v1088 = vadd.f32 %v575, %v1024
    %v1089 = vadd.f32 %v576, %v1025
    %v1090 = vadd.f32 %v577, %v1026
    %v1091 = vadd.f32 %v578, %v1027
    %v1092 = vadd.f32 %v579, %v1028
    %v1093 = vadd.f32 %v580, %v1029
    %v1094 = vadd.f32 %v581, %v1030
    %v1095 = vadd.f32 %v582, %v1031
    %v1096 = vadd.f32 %v583, %v1032
    %v1097 = vadd.f32 %v584, %v1033
    %v1098 = vadd.f32 %v585, %v1034
    %v1099 = vadd.f32 %v586, %v1035
    %v1100 = vadd.f32 %v587, %v1036
    %v1101 = vadd.f32 %v588, %v1037
    %v1102 = vadd.f32 %v589, %v1038
    %v1103 = vadd.f32 %v590, %v1039
    %v1104 = vadd.f32 %v591, %v1040
    %v1105 = vadd.f32 %v592, %v1041
    %v1106 = vadd.f32 %v593, %v1042
    %v1107 = vadd.f32 %v594, %v1043
    %v1108 = vadd.f32 %v595, %v1044
    %v1109 = vadd.f32 %v596, %v1045
    %v1110 = vadd.f32 %v597, %v1046
    %v1111 = vadd.f32 %v598, %v1047
    %v1112 = vadd.f32 %v599, %v1048
    %v1113 = vadd.f32 %v600, %v1049
    %v1114 = vadd.f32 %v601, %v1050
    %v1115 = vadd.f32 %v602, %v1051
    %v1116 = vadd.f32 %v603, %v1052
    %v1117 = vadd.f32 %v604, %v1053
    %v1118 = vadd.f32 %v605, %v1054
    %v1119 = vadd.f32 %v606, %v1055
    %v1120 = vadd.f32 %v607, %v1056
    %v1121 = vadd.f32 %v608, %v1057
    %v1122 = vadd.f32 %v609, %v1058
    %v1123 = vadd.f32 %v610, %v1059
    %v1124 = vadd.f32 %v611, %v1060
    %v1125 = vadd.f32 %v612, %v1061
    %v1126 = vadd.f32 %v613, %v1062
    %v1127 = vadd.f32 %v614, %v1063
    %v1128 = vadd.f32 %v615, %v1064
    %v1129 = vadd.f32 %v616, %v1065
    %v1130 = vadd.f32 %v617, %v1066
    %v1131 = vadd.f32 %v618, %v1067
    %v1132 = vadd.f32 %v619, %v1068
    %v1133 = vadd.f32 %v620, %v1069
    %v1134 = vadd.f32 %v621, %v1070
    %v1135 = vadd.f32 %v622, %v1071
    %v1136 = vadd.f32 %v623, %v1072
    %v1137 = vadd.f32 %v624, %v1073
    %v1138 = vadd.f32 %v625, %v1074
    %v1139 = vlaneseq
    %v1140 = vshrl.u32 %v1139, 7
    %v1141 = vadd.s32 %v1140, 2
    %1142 = vset.pattern.permute.xlu0 %v1141
    %1143 = vperm.xlu0 %1142, %v81
    %v1144 = vpop.permute.xlu0 %1143
    %v1145 = vlaneseq
    %v1146 = vshrl.u32 %v1145, 7
    %v1147 = vadd.s32 %v1146, 10
    %1148 = vset.pattern.permute.xlu0 %v1147
    %1149 = vperm.xlu0 %1148, %v81
    %v1150 = vpop.permute.xlu0 %1149
    %v1151 = vlaneseq
    %v1152 = vshrl.u32 %v1151, 7
    %v1153 = vadd.s32 %v1152, 2
    %1154 = vset.pattern.permute.xlu0 %v1153
    %1155 = vperm.xlu0 %1154, %v94
    %v1156 = vpop.permute.xlu0 %1155
    %v1157 = vlaneseq
    %v1158 = vshrl.u32 %v1157, 7
    %v1159 = vadd.s32 %v1158, 10
    %1160 = vset.pattern.permute.xlu0 %v1159
    %1161 = vperm.xlu0 %1160, %v94
    %v1162 = vpop.permute.xlu0 %1161
    %v1163 = vlaneseq
    %v1164 = vshrl.u32 %v1163, 7
    %v1165 = vadd.s32 %v1164, 2
    %1166 = vset.pattern.permute.xlu0 %v1165
    %1167 = vperm.xlu0 %1166, %v107
    %v1168 = vpop.permute.xlu0 %1167
    %v1169 = vlaneseq
    %v1170 = vshrl.u32 %v1169, 7
    %v1171 = vadd.s32 %v1170, 10
    %1172 = vset.pattern.permute.xlu0 %v1171
    %1173 = vperm.xlu0 %1172, %v107
    %v1174 = vpop.permute.xlu0 %1173
    %v1175 = vlaneseq
    %v1176 = vshrl.u32 %v1175, 7
    %v1177 = vadd.s32 %v1176, 2
    %1178 = vset.pattern.permute.xlu0 %v1177
    %1179 = vperm.xlu0 %1178, %v120
    %v1180 = vpop.permute.xlu0 %1179
    %v1181 = vlaneseq
    %v1182 = vshrl.u32 %v1181, 7
    %v1183 = vadd.s32 %v1182, 10
    %1184 = vset.pattern.permute.xlu0 %v1183
    %1185 = vperm.xlu0 %1184, %v120
    %v1186 = vpop.permute.xlu0 %1185
    %v1187 = vlaneseq
    %v1188 = vshrl.u32 %v1187, 7
    %v1189 = vadd.s32 %v1188, 2
    %1190 = vset.pattern.permute.xlu0 %v1189
    %1191 = vperm.xlu0 %1190, %v133
    %v1192 = vpop.permute.xlu0 %1191
    %v1193 = vlaneseq
    %v1194 = vshrl.u32 %v1193, 7
    %v1195 = vadd.s32 %v1194, 10
    %1196 = vset.pattern.permute.xlu0 %v1195
    %1197 = vperm.xlu0 %1196, %v133
    %v1198 = vpop.permute.xlu0 %1197
    %v1199 = vlaneseq
    %v1200 = vshrl.u32 %v1199, 7
    %v1201 = vadd.s32 %v1200, 2
    %1202 = vset.pattern.permute.xlu0 %v1201
    %1203 = vperm.xlu0 %1202, %v146
    %v1204 = vpop.permute.xlu0 %1203
    %v1205 = vlaneseq
    %v1206 = vshrl.u32 %v1205, 7
    %v1207 = vadd.s32 %v1206, 10
    %1208 = vset.pattern.permute.xlu0 %v1207
    %1209 = vperm.xlu0 %1208, %v146
    %v1210 = vpop.permute.xlu0 %1209
    %v1211 = vlaneseq
    %v1212 = vshrl.u32 %v1211, 7
    %v1213 = vadd.s32 %v1212, 2
    %1214 = vset.pattern.permute.xlu0 %v1213
    %1215 = vperm.xlu0 %1214, %v159
    %v1216 = vpop.permute.xlu0 %1215
    %v1217 = vlaneseq
    %v1218 = vshrl.u32 %v1217, 7
    %v1219 = vadd.s32 %v1218, 10
    %1220 = vset.pattern.permute.xlu0 %v1219
    %1221 = vperm.xlu0 %1220, %v159
    %v1222 = vpop.permute.xlu0 %1221
    %v1223 = vlaneseq
    %v1224 = vshrl.u32 %v1223, 7
    %v1225 = vadd.s32 %v1224, 2
    %1226 = vset.pattern.permute.xlu0 %v1225
    %1227 = vperm.xlu0 %1226, %v172
    %v1228 = vpop.permute.xlu0 %1227
    %v1229 = vlaneseq
    %v1230 = vshrl.u32 %v1229, 7
    %v1231 = vadd.s32 %v1230, 10
    %1232 = vset.pattern.permute.xlu0 %v1231
    %1233 = vperm.xlu0 %1232, %v172
    %v1234 = vpop.permute.xlu0 %1233
    %v1235 = vlaneseq
    %v1236 = vshrl.u32 %v1235, 7
    %v1237 = vadd.s32 %v1236, 2
    %1238 = vset.pattern.permute.xlu0 %v1237
    %1239 = vperm.xlu0 %1238, %v185
    %v1240 = vpop.permute.xlu0 %1239
    %v1241 = vlaneseq
    %v1242 = vshrl.u32 %v1241, 7
    %v1243 = vadd.s32 %v1242, 10
    %1244 = vset.pattern.permute.xlu0 %v1243
    %1245 = vperm.xlu0 %1244, %v185
    %v1246 = vpop.permute.xlu0 %1245
    %v1247 = vlaneseq
    %v1248 = vshrl.u32 %v1247, 7
    %v1249 = vadd.s32 %v1248, 2
    %1250 = vset.pattern.permute.xlu0 %v1249
    %1251 = vperm.xlu0 %1250, %v198
    %v1252 = vpop.permute.xlu0 %1251
    %v1253 = vlaneseq
    %v1254 = vshrl.u32 %v1253, 7
    %v1255 = vadd.s32 %v1254, 10
    %1256 = vset.pattern.permute.xlu0 %v1255
    %1257 = vperm.xlu0 %1256, %v198
    %v1258 = vpop.permute.xlu0 %1257
    %v1259 = vlaneseq
    %v1260 = vshrl.u32 %v1259, 7
    %v1261 = vadd.s32 %v1260, 2
    %1262 = vset.pattern.permute.xlu0 %v1261
    %1263 = vperm.xlu0 %1262, %v211
    %v1264 = vpop.permute.xlu0 %1263
    %v1265 = vlaneseq
    %v1266 = vshrl.u32 %v1265, 7
    %v1267 = vadd.s32 %v1266, 10
    %1268 = vset.pattern.permute.xlu0 %v1267
    %1269 = vperm.xlu0 %1268, %v211
    %v1270 = vpop.permute.xlu0 %1269
    %v1271 = vlaneseq
    %v1272 = vshrl.u32 %v1271, 7
    %v1273 = vadd.s32 %v1272, 2
    %1274 = vset.pattern.permute.xlu0 %v1273
    %1275 = vperm.xlu0 %1274, %v224
    %v1276 = vpop.permute.xlu0 %1275
    %v1277 = vlaneseq
    %v1278 = vshrl.u32 %v1277, 7
    %v1279 = vadd.s32 %v1278, 10
    %1280 = vset.pattern.permute.xlu0 %v1279
    %1281 = vperm.xlu0 %1280, %v224
    %v1282 = vpop.permute.xlu0 %1281
    %v1283 = vlaneseq
    %v1284 = vshrl.u32 %v1283, 7
    %v1285 = vadd.s32 %v1284, 2
    %1286 = vset.pattern.permute.xlu0 %v1285
    %1287 = vperm.xlu0 %1286, %v237
    %v1288 = vpop.permute.xlu0 %1287
    %v1289 = vlaneseq
    %v1290 = vshrl.u32 %v1289, 7
    %v1291 = vadd.s32 %v1290, 10
    %1292 = vset.pattern.permute.xlu0 %v1291
    %1293 = vperm.xlu0 %1292, %v237
    %v1294 = vpop.permute.xlu0 %1293
    %v1295 = vlaneseq
    %v1296 = vshrl.u32 %v1295, 7
    %v1297 = vadd.s32 %v1296, 2
    %1298 = vset.pattern.permute.xlu0 %v1297
    %1299 = vperm.xlu0 %1298, %v250
    %v1300 = vpop.permute.xlu0 %1299
    %v1301 = vlaneseq
    %v1302 = vshrl.u32 %v1301, 7
    %v1303 = vadd.s32 %v1302, 10
    %1304 = vset.pattern.permute.xlu0 %v1303
    %1305 = vperm.xlu0 %1304, %v250
    %v1306 = vpop.permute.xlu0 %1305
    %v1307 = vlaneseq
    %v1308 = vshrl.u32 %v1307, 7
    %v1309 = vadd.s32 %v1308, 2
    %1310 = vset.pattern.permute.xlu0 %v1309
    %1311 = vperm.xlu0 %1310, %v263
    %v1312 = vpop.permute.xlu0 %1311
    %v1313 = vlaneseq
    %v1314 = vshrl.u32 %v1313, 7
    %v1315 = vadd.s32 %v1314, 10
    %1316 = vset.pattern.permute.xlu0 %v1315
    %1317 = vperm.xlu0 %1316, %v263
    %v1318 = vpop.permute.xlu0 %1317
    %v1319 = vlaneseq
    %v1320 = vshrl.u32 %v1319, 7
    %v1321 = vadd.s32 %v1320, 2
    %1322 = vset.pattern.permute.xlu0 %v1321
    %1323 = vperm.xlu0 %1322, %v276
    %v1324 = vpop.permute.xlu0 %1323
    %v1325 = vlaneseq
    %v1326 = vshrl.u32 %v1325, 7
    %v1327 = vadd.s32 %v1326, 10
    %1328 = vset.pattern.permute.xlu0 %v1327
    %1329 = vperm.xlu0 %1328, %v276
    %v1330 = vpop.permute.xlu0 %1329
    %v1331 = vlaneseq
    %v1332 = vshrl.u32 %v1331, 7
    %v1333 = vadd.s32 %v1332, 2
    %1334 = vset.pattern.permute.xlu0 %v1333
    %1335 = vperm.xlu0 %1334, %v289
    %v1336 = vpop.permute.xlu0 %1335
    %v1337 = vlaneseq
    %v1338 = vshrl.u32 %v1337, 7
    %v1339 = vadd.s32 %v1338, 10
    %1340 = vset.pattern.permute.xlu0 %v1339
    %1341 = vperm.xlu0 %1340, %v289
    %v1342 = vpop.permute.xlu0 %1341
    %v1343 = vlaneseq
    %v1344 = vshrl.u32 %v1343, 7
    %v1345 = vadd.s32 %v1344, 2
    %1346 = vset.pattern.permute.xlu0 %v1345
    %1347 = vperm.xlu0 %1346, %v302
    %v1348 = vpop.permute.xlu0 %1347
    %v1349 = vlaneseq
    %v1350 = vshrl.u32 %v1349, 7
    %v1351 = vadd.s32 %v1350, 10
    %1352 = vset.pattern.permute.xlu0 %v1351
    %1353 = vperm.xlu0 %1352, %v302
    %v1354 = vpop.permute.xlu0 %1353
    %v1355 = vlaneseq
    %v1356 = vshrl.u32 %v1355, 7
    %v1357 = vadd.s32 %v1356, 2
    %1358 = vset.pattern.permute.xlu0 %v1357
    %1359 = vperm.xlu0 %1358, %v315
    %v1360 = vpop.permute.xlu0 %1359
    %v1361 = vlaneseq
    %v1362 = vshrl.u32 %v1361, 7
    %v1363 = vadd.s32 %v1362, 10
    %1364 = vset.pattern.permute.xlu0 %v1363
    %1365 = vperm.xlu0 %1364, %v315
    %v1366 = vpop.permute.xlu0 %1365
    %v1367 = vlaneseq
    %v1368 = vshrl.u32 %v1367, 7
    %v1369 = vadd.s32 %v1368, 2
    %1370 = vset.pattern.permute.xlu0 %v1369
    %1371 = vperm.xlu0 %1370, %v328
    %v1372 = vpop.permute.xlu0 %1371
    %v1373 = vlaneseq
    %v1374 = vshrl.u32 %v1373, 7
    %v1375 = vadd.s32 %v1374, 10
    %1376 = vset.pattern.permute.xlu0 %v1375
    %1377 = vperm.xlu0 %1376, %v328
    %v1378 = vpop.permute.xlu0 %1377
    %v1379 = vlaneseq
    %v1380 = vshrl.u32 %v1379, 7
    %v1381 = vadd.s32 %v1380, 2
    %1382 = vset.pattern.permute.xlu0 %v1381
    %1383 = vperm.xlu0 %1382, %v341
    %v1384 = vpop.permute.xlu0 %1383
    %v1385 = vlaneseq
    %v1386 = vshrl.u32 %v1385, 7
    %v1387 = vadd.s32 %v1386, 10
    %1388 = vset.pattern.permute.xlu0 %v1387
    %1389 = vperm.xlu0 %1388, %v341
    %v1390 = vpop.permute.xlu0 %1389
    %v1391 = vlaneseq
    %v1392 = vshrl.u32 %v1391, 7
    %v1393 = vadd.s32 %v1392, 2
    %1394 = vset.pattern.permute.xlu0 %v1393
    %1395 = vperm.xlu0 %1394, %v354
    %v1396 = vpop.permute.xlu0 %1395
    %v1397 = vlaneseq
    %v1398 = vshrl.u32 %v1397, 7
    %v1399 = vadd.s32 %v1398, 10
    %1400 = vset.pattern.permute.xlu0 %v1399
    %1401 = vperm.xlu0 %1400, %v354
    %v1402 = vpop.permute.xlu0 %1401
    %v1403 = vlaneseq
    %v1404 = vshrl.u32 %v1403, 7
    %v1405 = vadd.s32 %v1404, 2
    %1406 = vset.pattern.permute.xlu0 %v1405
    %1407 = vperm.xlu0 %1406, %v367
    %v1408 = vpop.permute.xlu0 %1407
    %v1409 = vlaneseq
    %v1410 = vshrl.u32 %v1409, 7
    %v1411 = vadd.s32 %v1410, 10
    %1412 = vset.pattern.permute.xlu0 %v1411
    %1413 = vperm.xlu0 %1412, %v367
    %v1414 = vpop.permute.xlu0 %1413
    %v1415 = vlaneseq
    %v1416 = vshrl.u32 %v1415, 7
    %v1417 = vadd.s32 %v1416, 2
    %1418 = vset.pattern.permute.xlu0 %v1417
    %1419 = vperm.xlu0 %1418, %v380
    %v1420 = vpop.permute.xlu0 %1419
    %v1421 = vlaneseq
    %v1422 = vshrl.u32 %v1421, 7
    %v1423 = vadd.s32 %v1422, 10
    %1424 = vset.pattern.permute.xlu0 %v1423
    %1425 = vperm.xlu0 %1424, %v380
    %v1426 = vpop.permute.xlu0 %1425
    %v1427 = vlaneseq
    %v1428 = vshrl.u32 %v1427, 7
    %v1429 = vadd.s32 %v1428, 2
    %1430 = vset.pattern.permute.xlu0 %v1429
    %1431 = vperm.xlu0 %1430, %v393
    %v1432 = vpop.permute.xlu0 %1431
    %v1433 = vlaneseq
    %v1434 = vshrl.u32 %v1433, 7
    %v1435 = vadd.s32 %v1434, 10
    %1436 = vset.pattern.permute.xlu0 %v1435
    %1437 = vperm.xlu0 %1436, %v393
    %v1438 = vpop.permute.xlu0 %1437
    %v1439 = vlaneseq
    %v1440 = vshrl.u32 %v1439, 7
    %v1441 = vadd.s32 %v1440, 2
    %1442 = vset.pattern.permute.xlu0 %v1441
    %1443 = vperm.xlu0 %1442, %v406
    %v1444 = vpop.permute.xlu0 %1443
    %v1445 = vlaneseq
    %v1446 = vshrl.u32 %v1445, 7
    %v1447 = vadd.s32 %v1446, 10
    %1448 = vset.pattern.permute.xlu0 %v1447
    %1449 = vperm.xlu0 %1448, %v406
    %v1450 = vpop.permute.xlu0 %1449
    %v1451 = vlaneseq
    %v1452 = vshrl.u32 %v1451, 7
    %v1453 = vadd.s32 %v1452, 2
    %1454 = vset.pattern.permute.xlu0 %v1453
    %1455 = vperm.xlu0 %1454, %v419
    %v1456 = vpop.permute.xlu0 %1455
    %v1457 = vlaneseq
    %v1458 = vshrl.u32 %v1457, 7
    %v1459 = vadd.s32 %v1458, 10
    %1460 = vset.pattern.permute.xlu0 %v1459
    %1461 = vperm.xlu0 %1460, %v419
    %v1462 = vpop.permute.xlu0 %1461
    %v1463 = vlaneseq
    %v1464 = vshrl.u32 %v1463, 7
    %v1465 = vadd.s32 %v1464, 2
    %1466 = vset.pattern.permute.xlu0 %v1465
    %1467 = vperm.xlu0 %1466, %v432
    %v1468 = vpop.permute.xlu0 %1467
    %v1469 = vlaneseq
    %v1470 = vshrl.u32 %v1469, 7
    %v1471 = vadd.s32 %v1470, 10
    %1472 = vset.pattern.permute.xlu0 %v1471
    %1473 = vperm.xlu0 %1472, %v432
    %v1474 = vpop.permute.xlu0 %1473
    %v1475 = vlaneseq
    %v1476 = vshrl.u32 %v1475, 7
    %v1477 = vadd.s32 %v1476, 2
    %1478 = vset.pattern.permute.xlu0 %v1477
    %1479 = vperm.xlu0 %1478, %v445
    %v1480 = vpop.permute.xlu0 %1479
    %v1481 = vlaneseq
    %v1482 = vshrl.u32 %v1481, 7
    %v1483 = vadd.s32 %v1482, 10
    %1484 = vset.pattern.permute.xlu0 %v1483
    %1485 = vperm.xlu0 %1484, %v445
    %v1486 = vpop.permute.xlu0 %1485
    %v1487 = vlaneseq
    %v1488 = vshrl.u32 %v1487, 7
    %v1489 = vadd.s32 %v1488, 2
    %1490 = vset.pattern.permute.xlu0 %v1489
    %1491 = vperm.xlu0 %1490, %v458
    %v1492 = vpop.permute.xlu0 %1491
    %v1493 = vlaneseq
    %v1494 = vshrl.u32 %v1493, 7
    %v1495 = vadd.s32 %v1494, 10
    %1496 = vset.pattern.permute.xlu0 %v1495
    %1497 = vperm.xlu0 %1496, %v458
    %v1498 = vpop.permute.xlu0 %1497
    %v1499 = vlaneseq
    %v1500 = vshrl.u32 %v1499, 7
    %v1501 = vadd.s32 %v1500, 2
    %1502 = vset.pattern.permute.xlu0 %v1501
    %1503 = vperm.xlu0 %1502, %v471
    %v1504 = vpop.permute.xlu0 %1503
    %v1505 = vlaneseq
    %v1506 = vshrl.u32 %v1505, 7
    %v1507 = vadd.s32 %v1506, 10
    %1508 = vset.pattern.permute.xlu0 %v1507
    %1509 = vperm.xlu0 %1508, %v471
    %v1510 = vpop.permute.xlu0 %1509
    %v1511 = vlaneseq
    %v1512 = vshrl.u32 %v1511, 7
    %v1513 = vadd.s32 %v1512, 2
    %1514 = vset.pattern.permute.xlu0 %v1513
    %1515 = vperm.xlu0 %1514, %v484
    %v1516 = vpop.permute.xlu0 %1515
    %v1517 = vlaneseq
    %v1518 = vshrl.u32 %v1517, 7
    %v1519 = vadd.s32 %v1518, 10
    %1520 = vset.pattern.permute.xlu0 %v1519
    %1521 = vperm.xlu0 %1520, %v484
    %v1522 = vpop.permute.xlu0 %1521
    %v1523 = vperm.slane %v79, 2
    %v1524 = vmul.f32 %v1144, %v1523
    %v1525 = vmul.f32 %v1150, %v1523
    %v1526 = vmul.f32 %v1156, %v1523
    %v1527 = vmul.f32 %v1162, %v1523
    %v1528 = vmul.f32 %v1168, %v1523
    %v1529 = vmul.f32 %v1174, %v1523
    %v1530 = vmul.f32 %v1180, %v1523
    %v1531 = vmul.f32 %v1186, %v1523
    %v1532 = vmul.f32 %v1192, %v1523
    %v1533 = vmul.f32 %v1198, %v1523
    %v1534 = vmul.f32 %v1204, %v1523
    %v1535 = vmul.f32 %v1210, %v1523
    %v1536 = vmul.f32 %v1216, %v1523
    %v1537 = vmul.f32 %v1222, %v1523
    %v1538 = vmul.f32 %v1228, %v1523
    %v1539 = vmul.f32 %v1234, %v1523
    %v1540 = vmul.f32 %v1240, %v1523
    %v1541 = vmul.f32 %v1246, %v1523
    %v1542 = vmul.f32 %v1252, %v1523
    %v1543 = vmul.f32 %v1258, %v1523
    %v1544 = vmul.f32 %v1264, %v1523
    %v1545 = vmul.f32 %v1270, %v1523
    %v1546 = vmul.f32 %v1276, %v1523
    %v1547 = vmul.f32 %v1282, %v1523
    %v1548 = vmul.f32 %v1288, %v1523
    %v1549 = vmul.f32 %v1294, %v1523
    %v1550 = vmul.f32 %v1300, %v1523
    %v1551 = vmul.f32 %v1306, %v1523
    %v1552 = vmul.f32 %v1312, %v1523
    %v1553 = vmul.f32 %v1318, %v1523
    %v1554 = vmul.f32 %v1324, %v1523
    %v1555 = vmul.f32 %v1330, %v1523
    %v1556 = vmul.f32 %v1336, %v1523
    %v1557 = vmul.f32 %v1342, %v1523
    %v1558 = vmul.f32 %v1348, %v1523
    %v1559 = vmul.f32 %v1354, %v1523
    %v1560 = vmul.f32 %v1360, %v1523
    %v1561 = vmul.f32 %v1366, %v1523
    %v1562 = vmul.f32 %v1372, %v1523
    %v1563 = vmul.f32 %v1378, %v1523
    %v1564 = vmul.f32 %v1384, %v1523
    %v1565 = vmul.f32 %v1390, %v1523
    %v1566 = vmul.f32 %v1396, %v1523
    %v1567 = vmul.f32 %v1402, %v1523
    %v1568 = vmul.f32 %v1408, %v1523
    %v1569 = vmul.f32 %v1414, %v1523
    %v1570 = vmul.f32 %v1420, %v1523
    %v1571 = vmul.f32 %v1426, %v1523
    %v1572 = vmul.f32 %v1432, %v1523
    %v1573 = vmul.f32 %v1438, %v1523
    %v1574 = vmul.f32 %v1444, %v1523
    %v1575 = vmul.f32 %v1450, %v1523
    %v1576 = vmul.f32 %v1456, %v1523
    %v1577 = vmul.f32 %v1462, %v1523
    %v1578 = vmul.f32 %v1468, %v1523
    %v1579 = vmul.f32 %v1474, %v1523
    %v1580 = vmul.f32 %v1480, %v1523
    %v1581 = vmul.f32 %v1486, %v1523
    %v1582 = vmul.f32 %v1492, %v1523
    %v1583 = vmul.f32 %v1498, %v1523
    %v1584 = vmul.f32 %v1504, %v1523
    %v1585 = vmul.f32 %v1510, %v1523
    %v1586 = vmul.f32 %v1516, %v1523
    %v1587 = vmul.f32 %v1522, %v1523
    %v1588 = vadd.f32 %v1075, %v1524
    %v1589 = vadd.f32 %v1076, %v1525
    %v1590 = vadd.f32 %v1077, %v1526
    %v1591 = vadd.f32 %v1078, %v1527
    %v1592 = vadd.f32 %v1079, %v1528
    %v1593 = vadd.f32 %v1080, %v1529
    %v1594 = vadd.f32 %v1081, %v1530
    %v1595 = vadd.f32 %v1082, %v1531
    %v1596 = vadd.f32 %v1083, %v1532
    %v1597 = vadd.f32 %v1084, %v1533
    %v1598 = vadd.f32 %v1085, %v1534
    %v1599 = vadd.f32 %v1086, %v1535
    %v1600 = vadd.f32 %v1087, %v1536
    %v1601 = vadd.f32 %v1088, %v1537
    %v1602 = vadd.f32 %v1089, %v1538
    %v1603 = vadd.f32 %v1090, %v1539
    %v1604 = vadd.f32 %v1091, %v1540
    %v1605 = vadd.f32 %v1092, %v1541
    %v1606 = vadd.f32 %v1093, %v1542
    %v1607 = vadd.f32 %v1094, %v1543
    %v1608 = vadd.f32 %v1095, %v1544
    %v1609 = vadd.f32 %v1096, %v1545
    %v1610 = vadd.f32 %v1097, %v1546
    %v1611 = vadd.f32 %v1098, %v1547
    %v1612 = vadd.f32 %v1099, %v1548
    %v1613 = vadd.f32 %v1100, %v1549
    %v1614 = vadd.f32 %v1101, %v1550
    %v1615 = vadd.f32 %v1102, %v1551
    %v1616 = vadd.f32 %v1103, %v1552
    %v1617 = vadd.f32 %v1104, %v1553
    %v1618 = vadd.f32 %v1105, %v1554
    %v1619 = vadd.f32 %v1106, %v1555
    %v1620 = vadd.f32 %v1107, %v1556
    %v1621 = vadd.f32 %v1108, %v1557
    %v1622 = vadd.f32 %v1109, %v1558
    %v1623 = vadd.f32 %v1110, %v1559
    %v1624 = vadd.f32 %v1111, %v1560
    %v1625 = vadd.f32 %v1112, %v1561
    %v1626 = vadd.f32 %v1113, %v1562
    %v1627 = vadd.f32 %v1114, %v1563
    %v1628 = vadd.f32 %v1115, %v1564
    %v1629 = vadd.f32 %v1116, %v1565
    %v1630 = vadd.f32 %v1117, %v1566
    %v1631 = vadd.f32 %v1118, %v1567
    %v1632 = vadd.f32 %v1119, %v1568
    %v1633 = vadd.f32 %v1120, %v1569
    %v1634 = vadd.f32 %v1121, %v1570
    %v1635 = vadd.f32 %v1122, %v1571
    %v1636 = vadd.f32 %v1123, %v1572
    %v1637 = vadd.f32 %v1124, %v1573
    %v1638 = vadd.f32 %v1125, %v1574
    %v1639 = vadd.f32 %v1126, %v1575
    %v1640 = vadd.f32 %v1127, %v1576
    %v1641 = vadd.f32 %v1128, %v1577
    %v1642 = vadd.f32 %v1129, %v1578
    %v1643 = vadd.f32 %v1130, %v1579
    %v1644 = vadd.f32 %v1131, %v1580
    %v1645 = vadd.f32 %v1132, %v1581
    %v1646 = vadd.f32 %v1133, %v1582
    %v1647 = vadd.f32 %v1134, %v1583
    %v1648 = vadd.f32 %v1135, %v1584
    %v1649 = vadd.f32 %v1136, %v1585
    %v1650 = vadd.f32 %v1137, %v1586
    %v1651 = vadd.f32 %v1138, %v1587
    %v1652 = vperm.slane %v75, 0
    %v1653 = vlaneseq
    %v1654 = vshrl.u32 %v1653, 7
    %1656 = vset.pattern.permute.xlu0 %v1654
    %1657 = vperm.xlu0 %1656, %v1652
    %v1658 = vpop.permute.xlu0 %1657
    %v1659 = vlaneseq
    %v1660 = vshrl.u32 %v1659, 7
    %v1661 = vadd.s32 %v1660, 8
    %1662 = vset.pattern.permute.xlu0 %v1661
    %1663 = vperm.xlu0 %1662, %v1652
    %v1664 = vpop.permute.xlu0 %1663
    %v1665 = vperm.slane %v78, 0
    %v1666 = vlaneseq
    %v1667 = vshrl.u32 %v1666, 7
    %1669 = vset.pattern.permute.xlu0 %v1667
    %1670 = vperm.xlu0 %1669, %v1665
    %v1671 = vpop.permute.xlu0 %1670
    %v1672 = vlaneseq
    %v1673 = vshrl.u32 %v1672, 7
    %v1674 = vadd.s32 %v1673, 8
    %1675 = vset.pattern.permute.xlu0 %v1674
    %1676 = vperm.xlu0 %1675, %v1665
    %v1677 = vpop.permute.xlu0 %1676
    %v1678 = vperm.slane %v79, 3
    %v1679 = vmul.f32 %v100, %v1678
    %v1680 = vmul.f32 %v106, %v1678
    %v1681 = vmul.f32 %v113, %v1678
    %v1682 = vmul.f32 %v119, %v1678
    %v1683 = vmul.f32 %v126, %v1678
    %v1684 = vmul.f32 %v132, %v1678
    %v1685 = vmul.f32 %v139, %v1678
    %v1686 = vmul.f32 %v145, %v1678
    %v1687 = vmul.f32 %v152, %v1678
    %v1688 = vmul.f32 %v158, %v1678
    %v1689 = vmul.f32 %v165, %v1678
    %v1690 = vmul.f32 %v171, %v1678
    %v1691 = vmul.f32 %v178, %v1678
    %v1692 = vmul.f32 %v184, %v1678
    %v1693 = vmul.f32 %v191, %v1678
    %v1694 = vmul.f32 %v197, %v1678
    %v1695 = vmul.f32 %v204, %v1678
    %v1696 = vmul.f32 %v210, %v1678
    %v1697 = vmul.f32 %v217, %v1678
    %v1698 = vmul.f32 %v223, %v1678
    %v1699 = vmul.f32 %v230, %v1678
    %v1700 = vmul.f32 %v236, %v1678
    %v1701 = vmul.f32 %v243, %v1678
    %v1702 = vmul.f32 %v249, %v1678
    %v1703 = vmul.f32 %v256, %v1678
    %v1704 = vmul.f32 %v262, %v1678
    %v1705 = vmul.f32 %v269, %v1678
    %v1706 = vmul.f32 %v275, %v1678
    %v1707 = vmul.f32 %v282, %v1678
    %v1708 = vmul.f32 %v288, %v1678
    %v1709 = vmul.f32 %v1658, %v1678
    %v1710 = vmul.f32 %v1664, %v1678
    %v1711 = vmul.f32 %v308, %v1678
    %v1712 = vmul.f32 %v314, %v1678
    %v1713 = vmul.f32 %v321, %v1678
    %v1714 = vmul.f32 %v327, %v1678
    %v1715 = vmul.f32 %v334, %v1678
    %v1716 = vmul.f32 %v340, %v1678
    %v1717 = vmul.f32 %v347, %v1678
    %v1718 = vmul.f32 %v353, %v1678
    %v1719 = vmul.f32 %v360, %v1678
    %v1720 = vmul.f32 %v366, %v1678
    %v1721 = vmul.f32 %v373, %v1678
    %v1722 = vmul.f32 %v379, %v1678
    %v1723 = vmul.f32 %v386, %v1678
    %v1724 = vmul.f32 %v392, %v1678
    %v1725 = vmul.f32 %v399, %v1678
    %v1726 = vmul.f32 %v405, %v1678
    %v1727 = vmul.f32 %v412, %v1678
    %v1728 = vmul.f32 %v418, %v1678
    %v1729 = vmul.f32 %v425, %v1678
    %v1730 = vmul.f32 %v431, %v1678
    %v1731 = vmul.f32 %v438, %v1678
    %v1732 = vmul.f32 %v444, %v1678
    %v1733 = vmul.f32 %v451, %v1678
    %v1734 = vmul.f32 %v457, %v1678
    %v1735 = vmul.f32 %v464, %v1678
    %v1736 = vmul.f32 %v470, %v1678
    %v1737 = vmul.f32 %v477, %v1678
    %v1738 = vmul.f32 %v483, %v1678
    %v1739 = vmul.f32 %v490, %v1678
    %v1740 = vmul.f32 %v496, %v1678
    %v1741 = vmul.f32 %v1671, %v1678
    %v1742 = vmul.f32 %v1677, %v1678
    %v1743 = vadd.f32 %v1588, %v1679
    %v1744 = vadd.f32 %v1589, %v1680
    %v1745 = vadd.f32 %v1590, %v1681
    %v1746 = vadd.f32 %v1591, %v1682
    %v1747 = vadd.f32 %v1592, %v1683
    %v1748 = vadd.f32 %v1593, %v1684
    %v1749 = vadd.f32 %v1594, %v1685
    %v1750 = vadd.f32 %v1595, %v1686
    %v1751 = vadd.f32 %v1596, %v1687
    %v1752 = vadd.f32 %v1597, %v1688
    %v1753 = vadd.f32 %v1598, %v1689
    %v1754 = vadd.f32 %v1599, %v1690
    %v1755 = vadd.f32 %v1600, %v1691
    %v1756 = vadd.f32 %v1601, %v1692
    %v1757 = vadd.f32 %v1602, %v1693
    %v1758 = vadd.f32 %v1603, %v1694
    %v1759 = vadd.f32 %v1604, %v1695
    %v1760 = vadd.f32 %v1605, %v1696
    %v1761 = vadd.f32 %v1606, %v1697
    %v1762 = vadd.f32 %v1607, %v1698
    %v1763 = vadd.f32 %v1608, %v1699
    %v1764 = vadd.f32 %v1609, %v1700
    %v1765 = vadd.f32 %v1610, %v1701
    %v1766 = vadd.f32 %v1611, %v1702
    %v1767 = vadd.f32 %v1612, %v1703
    %v1768 = vadd.f32 %v1613, %v1704
    %v1769 = vadd.f32 %v1614, %v1705
    %v1770 = vadd.f32 %v1615, %v1706
    %v1771 = vadd.f32 %v1616, %v1707
    %v1772 = vadd.f32 %v1617, %v1708
    %v1773 = vadd.f32 %v1618, %v1709
    %v1774 = vadd.f32 %v1619, %v1710
    %v1775 = vadd.f32 %v1620, %v1711
    %v1776 = vadd.f32 %v1621, %v1712
    %v1777 = vadd.f32 %v1622, %v1713
    %v1778 = vadd.f32 %v1623, %v1714
    %v1779 = vadd.f32 %v1624, %v1715
    %v1780 = vadd.f32 %v1625, %v1716
    %v1781 = vadd.f32 %v1626, %v1717
    %v1782 = vadd.f32 %v1627, %v1718
    %v1783 = vadd.f32 %v1628, %v1719
    %v1784 = vadd.f32 %v1629, %v1720
    %v1785 = vadd.f32 %v1630, %v1721
    %v1786 = vadd.f32 %v1631, %v1722
    %v1787 = vadd.f32 %v1632, %v1723
    %v1788 = vadd.f32 %v1633, %v1724
    %v1789 = vadd.f32 %v1634, %v1725
    %v1790 = vadd.f32 %v1635, %v1726
    %v1791 = vadd.f32 %v1636, %v1727
    %v1792 = vadd.f32 %v1637, %v1728
    %v1793 = vadd.f32 %v1638, %v1729
    %v1794 = vadd.f32 %v1639, %v1730
    %v1795 = vadd.f32 %v1640, %v1731
    %v1796 = vadd.f32 %v1641, %v1732
    %v1797 = vadd.f32 %v1642, %v1733
    %v1798 = vadd.f32 %v1643, %v1734
    %v1799 = vadd.f32 %v1644, %v1735
    %v1800 = vadd.f32 %v1645, %v1736
    %v1801 = vadd.f32 %v1646, %v1737
    %v1802 = vadd.f32 %v1647, %v1738
    %v1803 = vadd.f32 %v1648, %v1739
    %v1804 = vadd.f32 %v1649, %v1740
    %v1805 = vadd.f32 %v1650, %v1741
    %v1806 = vadd.f32 %v1651, %v1742
    %v1807 = vlaneseq
    %v1808 = vshrl.u32 %v1807, 7
    %v1809 = vadd.s32 %v1808, 1
    %1810 = vset.pattern.permute.xlu0 %v1809
    %1811 = vperm.xlu0 %1810, %v1652
    %v1812 = vpop.permute.xlu0 %1811
    %v1813 = vlaneseq
    %v1814 = vshrl.u32 %v1813, 7
    %v1815 = vadd.s32 %v1814, 9
    %1816 = vset.pattern.permute.xlu0 %v1815
    %1817 = vperm.xlu0 %1816, %v1652
    %v1818 = vpop.permute.xlu0 %1817
    %v1819 = vlaneseq
    %v1820 = vshrl.u32 %v1819, 7
    %v1821 = vadd.s32 %v1820, 1
    %1822 = vset.pattern.permute.xlu0 %v1821
    %1823 = vperm.xlu0 %1822, %v1665
    %v1824 = vpop.permute.xlu0 %1823
    %v1825 = vlaneseq
    %v1826 = vshrl.u32 %v1825, 7
    %v1827 = vadd.s32 %v1826, 9
    %1828 = vset.pattern.permute.xlu0 %v1827
    %1829 = vperm.xlu0 %1828, %v1665
    %v1830 = vpop.permute.xlu0 %1829
    %v1831 = vperm.slane %v79, 4
    %v1832 = vmul.f32 %v643, %v1831
    %v1833 = vmul.f32 %v649, %v1831
    %v1834 = vmul.f32 %v655, %v1831
    %v1835 = vmul.f32 %v661, %v1831
    %v1836 = vmul.f32 %v667, %v1831
    %v1837 = vmul.f32 %v673, %v1831
    %v1838 = vmul.f32 %v679, %v1831
    %v1839 = vmul.f32 %v685, %v1831
    %v1840 = vmul.f32 %v691, %v1831
    %v1841 = vmul.f32 %v697, %v1831
    %v1842 = vmul.f32 %v703, %v1831
    %v1843 = vmul.f32 %v709, %v1831
    %v1844 = vmul.f32 %v715, %v1831
    %v1845 = vmul.f32 %v721, %v1831
    %v1846 = vmul.f32 %v727, %v1831
    %v1847 = vmul.f32 %v733, %v1831
    %v1848 = vmul.f32 %v739, %v1831
    %v1849 = vmul.f32 %v745, %v1831
    %v1850 = vmul.f32 %v751, %v1831
    %v1851 = vmul.f32 %v757, %v1831
    %v1852 = vmul.f32 %v763, %v1831
    %v1853 = vmul.f32 %v769, %v1831
    %v1854 = vmul.f32 %v775, %v1831
    %v1855 = vmul.f32 %v781, %v1831
    %v1856 = vmul.f32 %v787, %v1831
    %v1857 = vmul.f32 %v793, %v1831
    %v1858 = vmul.f32 %v799, %v1831
    %v1859 = vmul.f32 %v805, %v1831
    %v1860 = vmul.f32 %v811, %v1831
    %v1861 = vmul.f32 %v817, %v1831
    %v1862 = vmul.f32 %v1812, %v1831
    %v1863 = vmul.f32 %v1818, %v1831
    %v1864 = vmul.f32 %v835, %v1831
    %v1865 = vmul.f32 %v841, %v1831
    %v1866 = vmul.f32 %v847, %v1831
    %v1867 = vmul.f32 %v853, %v1831
    %v1868 = vmul.f32 %v859, %v1831
    %v1869 = vmul.f32 %v865, %v1831
    %v1870 = vmul.f32 %v871, %v1831
    %v1871 = vmul.f32 %v877, %v1831
    %v1872 = vmul.f32 %v883, %v1831
    %v1873 = vmul.f32 %v889, %v1831
    %v1874 = vmul.f32 %v895, %v1831
    %v1875 = vmul.f32 %v901, %v1831
    %v1876 = vmul.f32 %v907, %v1831
    %v1877 = vmul.f32 %v913, %v1831
    %v1878 = vmul.f32 %v919, %v1831
    %v1879 = vmul.f32 %v925, %v1831
    %v1880 = vmul.f32 %v931, %v1831
    %v1881 = vmul.f32 %v937, %v1831
    %v1882 = vmul.f32 %v943, %v1831
    %v1883 = vmul.f32 %v949, %v1831
    %v1884 = vmul.f32 %v955, %v1831
    %v1885 = vmul.f32 %v961, %v1831
    %v1886 = vmul.f32 %v967, %v1831
    %v1887 = vmul.f32 %v973, %v1831
    %v1888 = vmul.f32 %v979, %v1831
    %v1889 = vmul.f32 %v985, %v1831
    %v1890 = vmul.f32 %v991, %v1831
    %v1891 = vmul.f32 %v997, %v1831
    %v1892 = vmul.f32 %v1003, %v1831
    %v1893 = vmul.f32 %v1009, %v1831
    %v1894 = vmul.f32 %v1824, %v1831
    %v1895 = vmul.f32 %v1830, %v1831
    %v1896 = vadd.f32 %v1743, %v1832
    %v1897 = vadd.f32 %v1744, %v1833
    %v1898 = vadd.f32 %v1745, %v1834
    %v1899 = vadd.f32 %v1746, %v1835
    %v1900 = vadd.f32 %v1747, %v1836
    %v1901 = vadd.f32 %v1748, %v1837
    %v1902 = vadd.f32 %v1749, %v1838
    %v1903 = vadd.f32 %v1750, %v1839
    %v1904 = vadd.f32 %v1751, %v1840
    %v1905 = vadd.f32 %v1752, %v1841
    %v1906 = vadd.f32 %v1753, %v1842
    %v1907 = vadd.f32 %v1754, %v1843
    %v1908 = vadd.f32 %v1755, %v1844
    %v1909 = vadd.f32 %v1756, %v1845
    %v1910 = vadd.f32 %v1757, %v1846
    %v1911 = vadd.f32 %v1758, %v1847
    %v1912 = vadd.f32 %v1759, %v1848
    %v1913 = vadd.f32 %v1760, %v1849
    %v1914 = vadd.f32 %v1761, %v1850
    %v1915 = vadd.f32 %v1762, %v1851
    %v1916 = vadd.f32 %v1763, %v1852
    %v1917 = vadd.f32 %v1764, %v1853
    %v1918 = vadd.f32 %v1765, %v1854
    %v1919 = vadd.f32 %v1766, %v1855
    %v1920 = vadd.f32 %v1767, %v1856
    %v1921 = vadd.f32 %v1768, %v1857
    %v1922 = vadd.f32 %v1769, %v1858
    %v1923 = vadd.f32 %v1770, %v1859
    %v1924 = vadd.f32 %v1771, %v1860
    %v1925 = vadd.f32 %v1772, %v1861
    %v1926 = vadd.f32 %v1773, %v1862
    %v1927 = vadd.f32 %v1774, %v1863
    %v1928 = vadd.f32 %v1775, %v1864
    %v1929 = vadd.f32 %v1776, %v1865
    %v1930 = vadd.f32 %v1777, %v1866
    %v1931 = vadd.f32 %v1778, %v1867
    %v1932 = vadd.f32 %v1779, %v1868
    %v1933 = vadd.f32 %v1780, %v1869
    %v1934 = vadd.f32 %v1781, %v1870
    %v1935 = vadd.f32 %v1782, %v1871
    %v1936 = vadd.f32 %v1783, %v1872
    %v1937 = vadd.f32 %v1784, %v1873
    %v1938 = vadd.f32 %v1785, %v1874
    %v1939 = vadd.f32 %v1786, %v1875
    %v1940 = vadd.f32 %v1787, %v1876
    %v1941 = vadd.f32 %v1788, %v1877
    %v1942 = vadd.f32 %v1789, %v1878
    %v1943 = vadd.f32 %v1790, %v1879
    %v1944 = vadd.f32 %v1791, %v1880
    %v1945 = vadd.f32 %v1792, %v1881
    %v1946 = vadd.f32 %v1793, %v1882
    %v1947 = vadd.f32 %v1794, %v1883
    %v1948 = vadd.f32 %v1795, %v1884
    %v1949 = vadd.f32 %v1796, %v1885
    %v1950 = vadd.f32 %v1797, %v1886
    %v1951 = vadd.f32 %v1798, %v1887
    %v1952 = vadd.f32 %v1799, %v1888
    %v1953 = vadd.f32 %v1800, %v1889
    %v1954 = vadd.f32 %v1801, %v1890
    %v1955 = vadd.f32 %v1802, %v1891
    %v1956 = vadd.f32 %v1803, %v1892
    %v1957 = vadd.f32 %v1804, %v1893
    %v1958 = vadd.f32 %v1805, %v1894
    %v1959 = vadd.f32 %v1806, %v1895
    %v1960 = vlaneseq
    %v1961 = vshrl.u32 %v1960, 7
    %v1962 = vadd.s32 %v1961, 2
    %1963 = vset.pattern.permute.xlu0 %v1962
    %1964 = vperm.xlu0 %1963, %v1652
    %v1965 = vpop.permute.xlu0 %1964
    %v1966 = vlaneseq
    %v1967 = vshrl.u32 %v1966, 7
    %v1968 = vadd.s32 %v1967, 10
    %1969 = vset.pattern.permute.xlu0 %v1968
    %1970 = vperm.xlu0 %1969, %v1652
    %v1971 = vpop.permute.xlu0 %1970
    %v1972 = vlaneseq
    %v1973 = vshrl.u32 %v1972, 7
    %v1974 = vadd.s32 %v1973, 2
    %1975 = vset.pattern.permute.xlu0 %v1974
    %1976 = vperm.xlu0 %1975, %v1665
    %v1977 = vpop.permute.xlu0 %1976
    %v1978 = vlaneseq
    %v1979 = vshrl.u32 %v1978, 7
    %v1980 = vadd.s32 %v1979, 10
    %1981 = vset.pattern.permute.xlu0 %v1980
    %1982 = vperm.xlu0 %1981, %v1665
    %v1983 = vpop.permute.xlu0 %1982
    %v1984 = vperm.slane %v79, 5
    %v1985 = vmul.f32 %v1156, %v1984
    %v1986 = vmul.f32 %v1162, %v1984
    %v1987 = vmul.f32 %v1168, %v1984
    %v1988 = vmul.f32 %v1174, %v1984
    %v1989 = vmul.f32 %v1180, %v1984
    %v1990 = vmul.f32 %v1186, %v1984
    %v1991 = vmul.f32 %v1192, %v1984
    %v1992 = vmul.f32 %v1198, %v1984
    %v1993 = vmul.f32 %v1204, %v1984
    %v1994 = vmul.f32 %v1210, %v1984
    %v1995 = vmul.f32 %v1216, %v1984
    %v1996 = vmul.f32 %v1222, %v1984
    %v1997 = vmul.f32 %v1228, %v1984
    %v1998 = vmul.f32 %v1234, %v1984
    %v1999 = vmul.f32 %v1240, %v1984
    %v2000 = vmul.f32 %v1246, %v1984
    %v2001 = vmul.f32 %v1252, %v1984
    %v2002 = vmul.f32 %v1258, %v1984
    %v2003 = vmul.f32 %v1264, %v1984
    %v2004 = vmul.f32 %v1270, %v1984
    %v2005 = vmul.f32 %v1276, %v1984
    %v2006 = vmul.f32 %v1282, %v1984
    %v2007 = vmul.f32 %v1288, %v1984
    %v2008 = vmul.f32 %v1294, %v1984
    %v2009 = vmul.f32 %v1300, %v1984
    %v2010 = vmul.f32 %v1306, %v1984
    %v2011 = vmul.f32 %v1312, %v1984
    %v2012 = vmul.f32 %v1318, %v1984
    %v2013 = vmul.f32 %v1324, %v1984
    %v2014 = vmul.f32 %v1330, %v1984
    %v2015 = vmul.f32 %v1965, %v1984
    %v2016 = vmul.f32 %v1971, %v1984
    %v2017 = vmul.f32 %v1348, %v1984
    %v2018 = vmul.f32 %v1354, %v1984
    %v2019 = vmul.f32 %v1360, %v1984
    %v2020 = vmul.f32 %v1366, %v1984
    %v2021 = vmul.f32 %v1372, %v1984
    %v2022 = vmul.f32 %v1378, %v1984
    %v2023 = vmul.f32 %v1384, %v1984
    %v2024 = vmul.f32 %v1390, %v1984
    %v2025 = vmul.f32 %v1396, %v1984
    %v2026 = vmul.f32 %v1402, %v1984
    %v2027 = vmul.f32 %v1408, %v1984
    %v2028 = vmul.f32 %v1414, %v1984
    %v2029 = vmul.f32 %v1420, %v1984
    %v2030 = vmul.f32 %v1426, %v1984
    %v2031 = vmul.f32 %v1432, %v1984
    %v2032 = vmul.f32 %v1438, %v1984
    %v2033 = vmul.f32 %v1444, %v1984
    %v2034 = vmul.f32 %v1450, %v1984
    %v2035 = vmul.f32 %v1456, %v1984
    %v2036 = vmul.f32 %v1462, %v1984
    %v2037 = vmul.f32 %v1468, %v1984
    %v2038 = vmul.f32 %v1474, %v1984
    %v2039 = vmul.f32 %v1480, %v1984
    %v2040 = vmul.f32 %v1486, %v1984
    %v2041 = vmul.f32 %v1492, %v1984
    %v2042 = vmul.f32 %v1498, %v1984
    %v2043 = vmul.f32 %v1504, %v1984
    %v2044 = vmul.f32 %v1510, %v1984
    %v2045 = vmul.f32 %v1516, %v1984
    %v2046 = vmul.f32 %v1522, %v1984
    %v2047 = vmul.f32 %v1977, %v1984
    %v2048 = vmul.f32 %v1983, %v1984
    %v2049 = vadd.f32 %v1896, %v1985
    %v2050 = vadd.f32 %v1897, %v1986
    %v2051 = vadd.f32 %v1898, %v1987
    %v2052 = vadd.f32 %v1899, %v1988
    %v2053 = vadd.f32 %v1900, %v1989
    %v2054 = vadd.f32 %v1901, %v1990
    %v2055 = vadd.f32 %v1902, %v1991
    %v2056 = vadd.f32 %v1903, %v1992
    %v2057 = vadd.f32 %v1904, %v1993
    %v2058 = vadd.f32 %v1905, %v1994
    %v2059 = vadd.f32 %v1906, %v1995
    %v2060 = vadd.f32 %v1907, %v1996
    %v2061 = vadd.f32 %v1908, %v1997
    %v2062 = vadd.f32 %v1909, %v1998
    %v2063 = vadd.f32 %v1910, %v1999
    %v2064 = vadd.f32 %v1911, %v2000
    %v2065 = vadd.f32 %v1912, %v2001
    %v2066 = vadd.f32 %v1913, %v2002
    %v2067 = vadd.f32 %v1914, %v2003
    %v2068 = vadd.f32 %v1915, %v2004
    %v2069 = vadd.f32 %v1916, %v2005
    %v2070 = vadd.f32 %v1917, %v2006
    %v2071 = vadd.f32 %v1918, %v2007
    %v2072 = vadd.f32 %v1919, %v2008
    %v2073 = vadd.f32 %v1920, %v2009
    %v2074 = vadd.f32 %v1921, %v2010
    %v2075 = vadd.f32 %v1922, %v2011
    %v2076 = vadd.f32 %v1923, %v2012
    %v2077 = vadd.f32 %v1924, %v2013
    %v2078 = vadd.f32 %v1925, %v2014
    %v2079 = vadd.f32 %v1926, %v2015
    %v2080 = vadd.f32 %v1927, %v2016
    %v2081 = vadd.f32 %v1928, %v2017
    %v2082 = vadd.f32 %v1929, %v2018
    %v2083 = vadd.f32 %v1930, %v2019
    %v2084 = vadd.f32 %v1931, %v2020
    %v2085 = vadd.f32 %v1932, %v2021
    %v2086 = vadd.f32 %v1933, %v2022
    %v2087 = vadd.f32 %v1934, %v2023
    %v2088 = vadd.f32 %v1935, %v2024
    %v2089 = vadd.f32 %v1936, %v2025
    %v2090 = vadd.f32 %v1937, %v2026
    %v2091 = vadd.f32 %v1938, %v2027
    %v2092 = vadd.f32 %v1939, %v2028
    %v2093 = vadd.f32 %v1940, %v2029
    %v2094 = vadd.f32 %v1941, %v2030
    %v2095 = vadd.f32 %v1942, %v2031
    %v2096 = vadd.f32 %v1943, %v2032
    %v2097 = vadd.f32 %v1944, %v2033
    %v2098 = vadd.f32 %v1945, %v2034
    %v2099 = vadd.f32 %v1946, %v2035
    %v2100 = vadd.f32 %v1947, %v2036
    %v2101 = vadd.f32 %v1948, %v2037
    %v2102 = vadd.f32 %v1949, %v2038
    %v2103 = vadd.f32 %v1950, %v2039
    %v2104 = vadd.f32 %v1951, %v2040
    %v2105 = vadd.f32 %v1952, %v2041
    %v2106 = vadd.f32 %v1953, %v2042
    %v2107 = vadd.f32 %v1954, %v2043
    %v2108 = vadd.f32 %v1955, %v2044
    %v2109 = vadd.f32 %v1956, %v2045
    %v2110 = vadd.f32 %v1957, %v2046
    %v2111 = vadd.f32 %v1958, %v2047
    %v2112 = vadd.f32 %v1959, %v2048
    %v2113 = vperm.slane %v75, 1
    %v2114 = vlaneseq
    %v2115 = vshrl.u32 %v2114, 7
    %2117 = vset.pattern.permute.xlu0 %v2115
    %2118 = vperm.xlu0 %2117, %v2113
    %v2119 = vpop.permute.xlu0 %2118
    %v2120 = vlaneseq
    %v2121 = vshrl.u32 %v2120, 7
    %v2122 = vadd.s32 %v2121, 8
    %2123 = vset.pattern.permute.xlu0 %v2122
    %2124 = vperm.xlu0 %2123, %v2113
    %v2125 = vpop.permute.xlu0 %2124
    %v2126 = vperm.slane %v78, 1
    %v2127 = vlaneseq
    %v2128 = vshrl.u32 %v2127, 7
    %2130 = vset.pattern.permute.xlu0 %v2128
    %2131 = vperm.xlu0 %2130, %v2126
    %v2132 = vpop.permute.xlu0 %2131
    %v2133 = vlaneseq
    %v2134 = vshrl.u32 %v2133, 7
    %v2135 = vadd.s32 %v2134, 8
    %2136 = vset.pattern.permute.xlu0 %v2135
    %2137 = vperm.xlu0 %2136, %v2126
    %v2138 = vpop.permute.xlu0 %2137
    %v2139 = vperm.slane %v79, 6
    %v2140 = vmul.f32 %v113, %v2139
    %v2141 = vmul.f32 %v119, %v2139
    %v2142 = vmul.f32 %v126, %v2139
    %v2143 = vmul.f32 %v132, %v2139
    %v2144 = vmul.f32 %v139, %v2139
    %v2145 = vmul.f32 %v145, %v2139
    %v2146 = vmul.f32 %v152, %v2139
    %v2147 = vmul.f32 %v158, %v2139
    %v2148 = vmul.f32 %v165, %v2139
    %v2149 = vmul.f32 %v171, %v2139
    %v2150 = vmul.f32 %v178, %v2139
    %v2151 = vmul.f32 %v184, %v2139
    %v2152 = vmul.f32 %v191, %v2139
    %v2153 = vmul.f32 %v197, %v2139
    %v2154 = vmul.f32 %v204, %v2139
    %v2155 = vmul.f32 %v210, %v2139
    %v2156 = vmul.f32 %v217, %v2139
    %v2157 = vmul.f32 %v223, %v2139
    %v2158 = vmul.f32 %v230, %v2139
    %v2159 = vmul.f32 %v236, %v2139
    %v2160 = vmul.f32 %v243, %v2139
    %v2161 = vmul.f32 %v249, %v2139
    %v2162 = vmul.f32 %v256, %v2139
    %v2163 = vmul.f32 %v262, %v2139
    %v2164 = vmul.f32 %v269, %v2139
    %v2165 = vmul.f32 %v275, %v2139
    %v2166 = vmul.f32 %v282, %v2139
    %v2167 = vmul.f32 %v288, %v2139
    %v2168 = vmul.f32 %v1658, %v2139
    %v2169 = vmul.f32 %v1664, %v2139
    %v2170 = vmul.f32 %v2119, %v2139
    %v2171 = vmul.f32 %v2125, %v2139
    %v2172 = vmul.f32 %v321, %v2139
    %v2173 = vmul.f32 %v327, %v2139
    %v2174 = vmul.f32 %v334, %v2139
    %v2175 = vmul.f32 %v340, %v2139
    %v2176 = vmul.f32 %v347, %v2139
    %v2177 = vmul.f32 %v353, %v2139
    %v2178 = vmul.f32 %v360, %v2139
    %v2179 = vmul.f32 %v366, %v2139
    %v2180 = vmul.f32 %v373, %v2139
    %v2181 = vmul.f32 %v379, %v2139
    %v2182 = vmul.f32 %v386, %v2139
    %v2183 = vmul.f32 %v392, %v2139
    %v2184 = vmul.f32 %v399, %v2139
    %v2185 = vmul.f32 %v405, %v2139
    %v2186 = vmul.f32 %v412, %v2139
    %v2187 = vmul.f32 %v418, %v2139
    %v2188 = vmul.f32 %v425, %v2139
    %v2189 = vmul.f32 %v431, %v2139
    %v2190 = vmul.f32 %v438, %v2139
    %v2191 = vmul.f32 %v444, %v2139
    %v2192 = vmul.f32 %v451, %v2139
    %v2193 = vmul.f32 %v457, %v2139
    %v2194 = vmul.f32 %v464, %v2139
    %v2195 = vmul.f32 %v470, %v2139
    %v2196 = vmul.f32 %v477, %v2139
    %v2197 = vmul.f32 %v483, %v2139
    %v2198 = vmul.f32 %v490, %v2139
    %v2199 = vmul.f32 %v496, %v2139
    %v2200 = vmul.f32 %v1671, %v2139
    %v2201 = vmul.f32 %v1677, %v2139
    %v2202 = vmul.f32 %v2132, %v2139
    %v2203 = vmul.f32 %v2138, %v2139
    %v2204 = vadd.f32 %v2049, %v2140
    %v2205 = vadd.f32 %v2050, %v2141
    %v2206 = vadd.f32 %v2051, %v2142
    %v2207 = vadd.f32 %v2052, %v2143
    %v2208 = vadd.f32 %v2053, %v2144
    %v2209 = vadd.f32 %v2054, %v2145
    %v2210 = vadd.f32 %v2055, %v2146
    %v2211 = vadd.f32 %v2056, %v2147
    %v2212 = vadd.f32 %v2057, %v2148
    %v2213 = vadd.f32 %v2058, %v2149
    %v2214 = vadd.f32 %v2059, %v2150
    %v2215 = vadd.f32 %v2060, %v2151
    %v2216 = vadd.f32 %v2061, %v2152
    %v2217 = vadd.f32 %v2062, %v2153
    %v2218 = vadd.f32 %v2063, %v2154
    %v2219 = vadd.f32 %v2064, %v2155
    %v2220 = vadd.f32 %v2065, %v2156
    %v2221 = vadd.f32 %v2066, %v2157
    %v2222 = vadd.f32 %v2067, %v2158
    %v2223 = vadd.f32 %v2068, %v2159
    %v2224 = vadd.f32 %v2069, %v2160
    %v2225 = vadd.f32 %v2070, %v2161
    %v2226 = vadd.f32 %v2071, %v2162
    %v2227 = vadd.f32 %v2072, %v2163
    %v2228 = vadd.f32 %v2073, %v2164
    %v2229 = vadd.f32 %v2074, %v2165
    %v2230 = vadd.f32 %v2075, %v2166
    %v2231 = vadd.f32 %v2076, %v2167
    %v2232 = vadd.f32 %v2077, %v2168
    %v2233 = vadd.f32 %v2078, %v2169
    %v2234 = vadd.f32 %v2079, %v2170
    %v2235 = vadd.f32 %v2080, %v2171
    %v2236 = vadd.f32 %v2081, %v2172
    %v2237 = vadd.f32 %v2082, %v2173
    %v2238 = vadd.f32 %v2083, %v2174
    %v2239 = vadd.f32 %v2084, %v2175
    %v2240 = vadd.f32 %v2085, %v2176
    %v2241 = vadd.f32 %v2086, %v2177
    %v2242 = vadd.f32 %v2087, %v2178
    %v2243 = vadd.f32 %v2088, %v2179
    %v2244 = vadd.f32 %v2089, %v2180
    %v2245 = vadd.f32 %v2090, %v2181
    %v2246 = vadd.f32 %v2091, %v2182
    %v2247 = vadd.f32 %v2092, %v2183
    %v2248 = vadd.f32 %v2093, %v2184
    %v2249 = vadd.f32 %v2094, %v2185
    %v2250 = vadd.f32 %v2095, %v2186
    %v2251 = vadd.f32 %v2096, %v2187
    %v2252 = vadd.f32 %v2097, %v2188
    %v2253 = vadd.f32 %v2098, %v2189
    %v2254 = vadd.f32 %v2099, %v2190
    %v2255 = vadd.f32 %v2100, %v2191
    %v2256 = vadd.f32 %v2101, %v2192
    %v2257 = vadd.f32 %v2102, %v2193
    %v2258 = vadd.f32 %v2103, %v2194
    %v2259 = vadd.f32 %v2104, %v2195
    %v2260 = vadd.f32 %v2105, %v2196
    %v2261 = vadd.f32 %v2106, %v2197
    %v2262 = vadd.f32 %v2107, %v2198
    %v2263 = vadd.f32 %v2108, %v2199
    %v2264 = vadd.f32 %v2109, %v2200
    %v2265 = vadd.f32 %v2110, %v2201
    %v2266 = vadd.f32 %v2111, %v2202
    %v2267 = vadd.f32 %v2112, %v2203
    %v2268 = vlaneseq
    %v2269 = vshrl.u32 %v2268, 7
    %v2270 = vadd.s32 %v2269, 1
    %2271 = vset.pattern.permute.xlu0 %v2270
    %2272 = vperm.xlu0 %2271, %v2113
    %v2273 = vpop.permute.xlu0 %2272
    %v2274 = vlaneseq
    %v2275 = vshrl.u32 %v2274, 7
    %v2276 = vadd.s32 %v2275, 9
    %2277 = vset.pattern.permute.xlu0 %v2276
    %2278 = vperm.xlu0 %2277, %v2113
    %v2279 = vpop.permute.xlu0 %2278
    %v2280 = vlaneseq
    %v2281 = vshrl.u32 %v2280, 7
    %v2282 = vadd.s32 %v2281, 1
    %2283 = vset.pattern.permute.xlu0 %v2282
    %2284 = vperm.xlu0 %2283, %v2126
    %v2285 = vpop.permute.xlu0 %2284
    %v2286 = vlaneseq
    %v2287 = vshrl.u32 %v2286, 7
    %v2288 = vadd.s32 %v2287, 9
    %2289 = vset.pattern.permute.xlu0 %v2288
    %2290 = vperm.xlu0 %2289, %v2126
    %v2291 = vpop.permute.xlu0 %2290
    %v2292 = vperm.slane %v79, 7
    %v2293 = vmul.f32 %v655, %v2292
    %v2294 = vmul.f32 %v661, %v2292
    %v2295 = vmul.f32 %v667, %v2292
    %v2296 = vmul.f32 %v673, %v2292
    %v2297 = vmul.f32 %v679, %v2292
    %v2298 = vmul.f32 %v685, %v2292
    %v2299 = vmul.f32 %v691, %v2292
    %v2300 = vmul.f32 %v697, %v2292
    %v2301 = vmul.f32 %v703, %v2292
    %v2302 = vmul.f32 %v709, %v2292
    %v2303 = vmul.f32 %v715, %v2292
    %v2304 = vmul.f32 %v721, %v2292
    %v2305 = vmul.f32 %v727, %v2292
    %v2306 = vmul.f32 %v733, %v2292
    %v2307 = vmul.f32 %v739, %v2292
    %v2308 = vmul.f32 %v745, %v2292
    %v2309 = vmul.f32 %v751, %v2292
    %v2310 = vmul.f32 %v757, %v2292
    %v2311 = vmul.f32 %v763, %v2292
    %v2312 = vmul.f32 %v769, %v2292
    %v2313 = vmul.f32 %v775, %v2292
    %v2314 = vmul.f32 %v781, %v2292
    %v2315 = vmul.f32 %v787, %v2292
    %v2316 = vmul.f32 %v793, %v2292
    %v2317 = vmul.f32 %v799, %v2292
    %v2318 = vmul.f32 %v805, %v2292
    %v2319 = vmul.f32 %v811, %v2292
    %v2320 = vmul.f32 %v817, %v2292
    %v2321 = vmul.f32 %v1812, %v2292
    %v2322 = vmul.f32 %v1818, %v2292
    %v2323 = vmul.f32 %v2273, %v2292
    %v2324 = vmul.f32 %v2279, %v2292
    %v2325 = vmul.f32 %v847, %v2292
    %v2326 = vmul.f32 %v853, %v2292
    %v2327 = vmul.f32 %v859, %v2292
    %v2328 = vmul.f32 %v865, %v2292
    %v2329 = vmul.f32 %v871, %v2292
    %v2330 = vmul.f32 %v877, %v2292
    %v2331 = vmul.f32 %v883, %v2292
    %v2332 = vmul.f32 %v889, %v2292
    %v2333 = vmul.f32 %v895, %v2292
    %v2334 = vmul.f32 %v901, %v2292
    %v2335 = vmul.f32 %v907, %v2292
    %v2336 = vmul.f32 %v913, %v2292
    %v2337 = vmul.f32 %v919, %v2292
    %v2338 = vmul.f32 %v925, %v2292
    %v2339 = vmul.f32 %v931, %v2292
    %v2340 = vmul.f32 %v937, %v2292
    %v2341 = vmul.f32 %v943, %v2292
    %v2342 = vmul.f32 %v949, %v2292
    %v2343 = vmul.f32 %v955, %v2292
    %v2344 = vmul.f32 %v961, %v2292
    %v2345 = vmul.f32 %v967, %v2292
    %v2346 = vmul.f32 %v973, %v2292
    %v2347 = vmul.f32 %v979, %v2292
    %v2348 = vmul.f32 %v985, %v2292
    %v2349 = vmul.f32 %v991, %v2292
    %v2350 = vmul.f32 %v997, %v2292
    %v2351 = vmul.f32 %v1003, %v2292
    %v2352 = vmul.f32 %v1009, %v2292
    %v2353 = vmul.f32 %v1824, %v2292
    %v2354 = vmul.f32 %v1830, %v2292
    %v2355 = vmul.f32 %v2285, %v2292
    %v2356 = vmul.f32 %v2291, %v2292
    %v2357 = vadd.f32 %v2204, %v2293
    %v2358 = vadd.f32 %v2205, %v2294
    %v2359 = vadd.f32 %v2206, %v2295
    %v2360 = vadd.f32 %v2207, %v2296
    %v2361 = vadd.f32 %v2208, %v2297
    %v2362 = vadd.f32 %v2209, %v2298
    %v2363 = vadd.f32 %v2210, %v2299
    %v2364 = vadd.f32 %v2211, %v2300
    %v2365 = vadd.f32 %v2212, %v2301
    %v2366 = vadd.f32 %v2213, %v2302
    %v2367 = vadd.f32 %v2214, %v2303
    %v2368 = vadd.f32 %v2215, %v2304
    %v2369 = vadd.f32 %v2216, %v2305
    %v2370 = vadd.f32 %v2217, %v2306
    %v2371 = vadd.f32 %v2218, %v2307
    %v2372 = vadd.f32 %v2219, %v2308
    %v2373 = vadd.f32 %v2220, %v2309
    %v2374 = vadd.f32 %v2221, %v2310
    %v2375 = vadd.f32 %v2222, %v2311
    %v2376 = vadd.f32 %v2223, %v2312
    %v2377 = vadd.f32 %v2224, %v2313
    %v2378 = vadd.f32 %v2225, %v2314
    %v2379 = vadd.f32 %v2226, %v2315
    %v2380 = vadd.f32 %v2227, %v2316
    %v2381 = vadd.f32 %v2228, %v2317
    %v2382 = vadd.f32 %v2229, %v2318
    %v2383 = vadd.f32 %v2230, %v2319
    %v2384 = vadd.f32 %v2231, %v2320
    %v2385 = vadd.f32 %v2232, %v2321
    %v2386 = vadd.f32 %v2233, %v2322
    %v2387 = vadd.f32 %v2234, %v2323
    %v2388 = vadd.f32 %v2235, %v2324
    %v2389 = vadd.f32 %v2236, %v2325
    %v2390 = vadd.f32 %v2237, %v2326
    %v2391 = vadd.f32 %v2238, %v2327
    %v2392 = vadd.f32 %v2239, %v2328
    %v2393 = vadd.f32 %v2240, %v2329
    %v2394 = vadd.f32 %v2241, %v2330
    %v2395 = vadd.f32 %v2242, %v2331
    %v2396 = vadd.f32 %v2243, %v2332
    %v2397 = vadd.f32 %v2244, %v2333
    %v2398 = vadd.f32 %v2245, %v2334
    %v2399 = vadd.f32 %v2246, %v2335
    %v2400 = vadd.f32 %v2247, %v2336
    %v2401 = vadd.f32 %v2248, %v2337
    %v2402 = vadd.f32 %v2249, %v2338
    %v2403 = vadd.f32 %v2250, %v2339
    %v2404 = vadd.f32 %v2251, %v2340
    %v2405 = vadd.f32 %v2252, %v2341
    %v2406 = vadd.f32 %v2253, %v2342
    %v2407 = vadd.f32 %v2254, %v2343
    %v2408 = vadd.f32 %v2255, %v2344
    %v2409 = vadd.f32 %v2256, %v2345
    %v2410 = vadd.f32 %v2257, %v2346
    %v2411 = vadd.f32 %v2258, %v2347
    %v2412 = vadd.f32 %v2259, %v2348
    %v2413 = vadd.f32 %v2260, %v2349
    %v2414 = vadd.f32 %v2261, %v2350
    %v2415 = vadd.f32 %v2262, %v2351
    %v2416 = vadd.f32 %v2263, %v2352
    %v2417 = vadd.f32 %v2264, %v2353
    %v2418 = vadd.f32 %v2265, %v2354
    %v2419 = vadd.f32 %v2266, %v2355
    %v2420 = vadd.f32 %v2267, %v2356
    %v2421 = vlaneseq
    %v2422 = vshrl.u32 %v2421, 7
    %v2423 = vadd.s32 %v2422, 2
    %2424 = vset.pattern.permute.xlu0 %v2423
    %2425 = vperm.xlu0 %2424, %v2113
    %v2426 = vpop.permute.xlu0 %2425
    %v2427 = vlaneseq
    %v2428 = vshrl.u32 %v2427, 7
    %v2429 = vadd.s32 %v2428, 10
    %2430 = vset.pattern.permute.xlu0 %v2429
    %2431 = vperm.xlu0 %2430, %v2113
    %v2432 = vpop.permute.xlu0 %2431
    %v2433 = vlaneseq
    %v2434 = vshrl.u32 %v2433, 7
    %v2435 = vadd.s32 %v2434, 2
    %2436 = vset.pattern.permute.xlu0 %v2435
    %2437 = vperm.xlu0 %2436, %v2126
    %v2438 = vpop.permute.xlu0 %2437
    %v2439 = vlaneseq
    %v2440 = vshrl.u32 %v2439, 7
    %v2441 = vadd.s32 %v2440, 10
    %2442 = vset.pattern.permute.xlu0 %v2441
    %2443 = vperm.xlu0 %2442, %v2126
    %v2444 = vpop.permute.xlu0 %2443
    %v2445 = vperm.slane %v80, 0
    %v2446 = vmul.f32 %v1168, %v2445
    %v2447 = vmul.f32 %v1174, %v2445
    %v2448 = vmul.f32 %v1180, %v2445
    %v2449 = vmul.f32 %v1186, %v2445
    %v2450 = vmul.f32 %v1192, %v2445
    %v2451 = vmul.f32 %v1198, %v2445
    %v2452 = vmul.f32 %v1204, %v2445
    %v2453 = vmul.f32 %v1210, %v2445
    %v2454 = vmul.f32 %v1216, %v2445
    %v2455 = vmul.f32 %v1222, %v2445
    %v2456 = vmul.f32 %v1228, %v2445
    %v2457 = vmul.f32 %v1234, %v2445
    %v2458 = vmul.f32 %v1240, %v2445
    %v2459 = vmul.f32 %v1246, %v2445
    %v2460 = vmul.f32 %v1252, %v2445
    %v2461 = vmul.f32 %v1258, %v2445
    %v2462 = vmul.f32 %v1264, %v2445
    %v2463 = vmul.f32 %v1270, %v2445
    %v2464 = vmul.f32 %v1276, %v2445
    %v2465 = vmul.f32 %v1282, %v2445
    %v2466 = vmul.f32 %v1288, %v2445
    %v2467 = vmul.f32 %v1294, %v2445
    %v2468 = vmul.f32 %v1300, %v2445
    %v2469 = vmul.f32 %v1306, %v2445
    %v2470 = vmul.f32 %v1312, %v2445
    %v2471 = vmul.f32 %v1318, %v2445
    %v2472 = vmul.f32 %v1324, %v2445
    %v2473 = vmul.f32 %v1330, %v2445
    %v2474 = vmul.f32 %v1965, %v2445
    %v2475 = vmul.f32 %v1971, %v2445
    %v2476 = vmul.f32 %v2426, %v2445
    %v2477 = vmul.f32 %v2432, %v2445
    %v2478 = vmul.f32 %v1360, %v2445
    %v2479 = vmul.f32 %v1366, %v2445
    %v2480 = vmul.f32 %v1372, %v2445
    %v2481 = vmul.f32 %v1378, %v2445
    %v2482 = vmul.f32 %v1384, %v2445
    %v2483 = vmul.f32 %v1390, %v2445
    %v2484 = vmul.f32 %v1396, %v2445
    %v2485 = vmul.f32 %v1402, %v2445
    %v2486 = vmul.f32 %v1408, %v2445
    %v2487 = vmul.f32 %v1414, %v2445
    %v2488 = vmul.f32 %v1420, %v2445
    %v2489 = vmul.f32 %v1426, %v2445
    %v2490 = vmul.f32 %v1432, %v2445
    %v2491 = vmul.f32 %v1438, %v2445
    %v2492 = vmul.f32 %v1444, %v2445
    %v2493 = vmul.f32 %v1450, %v2445
    %v2494 = vmul.f32 %v1456, %v2445
    %v2495 = vmul.f32 %v1462, %v2445
    %v2496 = vmul.f32 %v1468, %v2445
    %v2497 = vmul.f32 %v1474, %v2445
    %v2498 = vmul.f32 %v1480, %v2445
    %v2499 = vmul.f32 %v1486, %v2445
    %v2500 = vmul.f32 %v1492, %v2445
    %v2501 = vmul.f32 %v1498, %v2445
    %v2502 = vmul.f32 %v1504, %v2445
    %v2503 = vmul.f32 %v1510, %v2445
    %v2504 = vmul.f32 %v1516, %v2445
    %v2505 = vmul.f32 %v1522, %v2445
    %v2506 = vmul.f32 %v1977, %v2445
    %v2507 = vmul.f32 %v1983, %v2445
    %v2508 = vmul.f32 %v2438, %v2445
    %v2509 = vmul.f32 %v2444, %v2445
    %v2510 = vadd.f32 %v2357, %v2446
    %v2511 = vadd.f32 %v2358, %v2447
    %v2512 = vadd.f32 %v2359, %v2448
    %v2513 = vadd.f32 %v2360, %v2449
    %v2514 = vadd.f32 %v2361, %v2450
    %v2515 = vadd.f32 %v2362, %v2451
    %v2516 = vadd.f32 %v2363, %v2452
    %v2517 = vadd.f32 %v2364, %v2453
    %v2518 = vadd.f32 %v2365, %v2454
    %v2519 = vadd.f32 %v2366, %v2455
    %v2520 = vadd.f32 %v2367, %v2456
    %v2521 = vadd.f32 %v2368, %v2457
    %v2522 = vadd.f32 %v2369, %v2458
    %v2523 = vadd.f32 %v2370, %v2459
    %v2524 = vadd.f32 %v2371, %v2460
    %v2525 = vadd.f32 %v2372, %v2461
    %v2526 = vadd.f32 %v2373, %v2462
    %v2527 = vadd.f32 %v2374, %v2463
    %v2528 = vadd.f32 %v2375, %v2464
    %v2529 = vadd.f32 %v2376, %v2465
    %v2530 = vadd.f32 %v2377, %v2466
    %v2531 = vadd.f32 %v2378, %v2467
    %v2532 = vadd.f32 %v2379, %v2468
    %v2533 = vadd.f32 %v2380, %v2469
    %v2534 = vadd.f32 %v2381, %v2470
    %v2535 = vadd.f32 %v2382, %v2471
    %v2536 = vadd.f32 %v2383, %v2472
    %v2537 = vadd.f32 %v2384, %v2473
    %v2538 = vadd.f32 %v2385, %v2474
    %v2539 = vadd.f32 %v2386, %v2475
    %v2540 = vadd.f32 %v2387, %v2476
    %v2541 = vadd.f32 %v2388, %v2477
    %v2542 = vadd.f32 %v2389, %v2478
    %v2543 = vadd.f32 %v2390, %v2479
    %v2544 = vadd.f32 %v2391, %v2480
    %v2545 = vadd.f32 %v2392, %v2481
    %v2546 = vadd.f32 %v2393, %v2482
    %v2547 = vadd.f32 %v2394, %v2483
    %v2548 = vadd.f32 %v2395, %v2484
    %v2549 = vadd.f32 %v2396, %v2485
    %v2550 = vadd.f32 %v2397, %v2486
    %v2551 = vadd.f32 %v2398, %v2487
    %v2552 = vadd.f32 %v2399, %v2488
    %v2553 = vadd.f32 %v2400, %v2489
    %v2554 = vadd.f32 %v2401, %v2490
    %v2555 = vadd.f32 %v2402, %v2491
    %v2556 = vadd.f32 %v2403, %v2492
    %v2557 = vadd.f32 %v2404, %v2493
    %v2558 = vadd.f32 %v2405, %v2494
    %v2559 = vadd.f32 %v2406, %v2495
    %v2560 = vadd.f32 %v2407, %v2496
    %v2561 = vadd.f32 %v2408, %v2497
    %v2562 = vadd.f32 %v2409, %v2498
    %v2563 = vadd.f32 %v2410, %v2499
    %v2564 = vadd.f32 %v2411, %v2500
    %v2565 = vadd.f32 %v2412, %v2501
    %v2566 = vadd.f32 %v2413, %v2502
    %v2567 = vadd.f32 %v2414, %v2503
    %v2568 = vadd.f32 %v2415, %v2504
    %v2569 = vadd.f32 %v2416, %v2505
    %v2570 = vadd.f32 %v2417, %v2506
    %v2571 = vadd.f32 %v2418, %v2507
    %v2572 = vadd.f32 %v2419, %v2508
    %v2573 = vadd.f32 %v2420, %v2509
    %v2574 = vld [vmem:[%s2] sm:$0x1]
    %v2576 = vperm.slane %v2574, 0
    %v2578 = vadd.f32 %v2510, %v2576
    %v2579 = vadd.f32 %v2511, %v2576
    %v2580 = vadd.f32 %v2512, %v2576
    %v2581 = vadd.f32 %v2513, %v2576
    %v2582 = vadd.f32 %v2514, %v2576
    %v2583 = vadd.f32 %v2515, %v2576
    %v2584 = vadd.f32 %v2516, %v2576
    %v2585 = vadd.f32 %v2517, %v2576
    %v2586 = vadd.f32 %v2518, %v2576
    %v2587 = vadd.f32 %v2519, %v2576
    %v2588 = vadd.f32 %v2520, %v2576
    %v2589 = vadd.f32 %v2521, %v2576
    %v2590 = vadd.f32 %v2522, %v2576
    %v2591 = vadd.f32 %v2523, %v2576
    %v2592 = vadd.f32 %v2524, %v2576
    %v2593 = vadd.f32 %v2525, %v2576
    %v2594 = vadd.f32 %v2526, %v2576
    %v2595 = vadd.f32 %v2527, %v2576
    %v2596 = vadd.f32 %v2528, %v2576
    %v2597 = vadd.f32 %v2529, %v2576
    %v2598 = vadd.f32 %v2530, %v2576
    %v2599 = vadd.f32 %v2531, %v2576
    %v2600 = vadd.f32 %v2532, %v2576
    %v2601 = vadd.f32 %v2533, %v2576
    %v2602 = vadd.f32 %v2534, %v2576
    %v2603 = vadd.f32 %v2535, %v2576
    %v2604 = vadd.f32 %v2536, %v2576
    %v2605 = vadd.f32 %v2537, %v2576
    %v2606 = vadd.f32 %v2538, %v2576
    %v2607 = vadd.f32 %v2539, %v2576
    %v2608 = vadd.f32 %v2540, %v2576
    %v2609 = vadd.f32 %v2541, %v2576
    %v2610 = vadd.f32 %v2542, %v2576
    %v2611 = vadd.f32 %v2543, %v2576
    %v2612 = vadd.f32 %v2544, %v2576
    %v2613 = vadd.f32 %v2545, %v2576
    %v2614 = vadd.f32 %v2546, %v2576
    %v2615 = vadd.f32 %v2547, %v2576
    %v2616 = vadd.f32 %v2548, %v2576
    %v2617 = vadd.f32 %v2549, %v2576
    %v2618 = vadd.f32 %v2550, %v2576
    %v2619 = vadd.f32 %v2551, %v2576
    %v2620 = vadd.f32 %v2552, %v2576
    %v2621 = vadd.f32 %v2553, %v2576
    %v2622 = vadd.f32 %v2554, %v2576
    %v2623 = vadd.f32 %v2555, %v2576
    %v2624 = vadd.f32 %v2556, %v2576
    %v2625 = vadd.f32 %v2557, %v2576
    %v2626 = vadd.f32 %v2558, %v2576
    %v2627 = vadd.f32 %v2559, %v2576
    %v2628 = vadd.f32 %v2560, %v2576
    %v2629 = vadd.f32 %v2561, %v2576
    %v2630 = vadd.f32 %v2562, %v2576
    %v2631 = vadd.f32 %v2563, %v2576
    %v2632 = vadd.f32 %v2564, %v2576
    %v2633 = vadd.f32 %v2565, %v2576
    %v2634 = vadd.f32 %v2566, %v2576
    %v2635 = vadd.f32 %v2567, %v2576
    %v2636 = vadd.f32 %v2568, %v2576
    %v2637 = vadd.f32 %v2569, %v2576
    %v2638 = vadd.f32 %v2570, %v2576
    %v2639 = vadd.f32 %v2571, %v2576
    %v2640 = vadd.f32 %v2572, %v2576
    %v2641 = vadd.f32 %v2573, %v2576
    %v2642 = vmax.f32 %v2578, 0.0
    %v2643 = vmax.f32 %v2579, 0.0
    %v2644 = vmax.f32 %v2580, 0.0
    %v2645 = vmax.f32 %v2581, 0.0
    %v2646 = vmax.f32 %v2582, 0.0
    %v2647 = vmax.f32 %v2583, 0.0
    %v2648 = vmax.f32 %v2584, 0.0
    %v2649 = vmax.f32 %v2585, 0.0
    %v2650 = vmax.f32 %v2586, 0.0
    %v2651 = vmax.f32 %v2587, 0.0
    %v2652 = vmax.f32 %v2588, 0.0
    %v2653 = vmax.f32 %v2589, 0.0
    %v2654 = vmax.f32 %v2590, 0.0
    %v2655 = vmax.f32 %v2591, 0.0
    %v2656 = vmax.f32 %v2592, 0.0
    %v2657 = vmax.f32 %v2593, 0.0
    %v2658 = vmax.f32 %v2594, 0.0
    %v2659 = vmax.f32 %v2595, 0.0
    %v2660 = vmax.f32 %v2596, 0.0
    %v2661 = vmax.f32 %v2597, 0.0
    %v2662 = vmax.f32 %v2598, 0.0
    %v2663 = vmax.f32 %v2599, 0.0
    %v2664 = vmax.f32 %v2600, 0.0
    %v2665 = vmax.f32 %v2601, 0.0
    %v2666 = vmax.f32 %v2602, 0.0
    %v2667 = vmax.f32 %v2603, 0.0
    %v2668 = vmax.f32 %v2604, 0.0
    %v2669 = vmax.f32 %v2605, 0.0
    %v2670 = vmax.f32 %v2606, 0.0
    %v2671 = vmax.f32 %v2607, 0.0
    %v2672 = vmax.f32 %v2608, 0.0
    %v2673 = vmax.f32 %v2609, 0.0
    %v2674 = vmax.f32 %v2610, 0.0
    %v2675 = vmax.f32 %v2611, 0.0
    %v2676 = vmax.f32 %v2612, 0.0
    %v2677 = vmax.f32 %v2613, 0.0
    %v2678 = vmax.f32 %v2614, 0.0
    %v2679 = vmax.f32 %v2615, 0.0
    %v2680 = vmax.f32 %v2616, 0.0
    %v2681 = vmax.f32 %v2617, 0.0
    %v2682 = vmax.f32 %v2618, 0.0
    %v2683 = vmax.f32 %v2619, 0.0
    %v2684 = vmax.f32 %v2620, 0.0
    %v2685 = vmax.f32 %v2621, 0.0
    %v2686 = vmax.f32 %v2622, 0.0
    %v2687 = vmax.f32 %v2623, 0.0
    %v2688 = vmax.f32 %v2624, 0.0
    %v2689 = vmax.f32 %v2625, 0.0
    %v2690 = vmax.f32 %v2626, 0.0
    %v2691 = vmax.f32 %v2627, 0.0
    %v2692 = vmax.f32 %v2628, 0.0
    %v2693 = vmax.f32 %v2629, 0.0
    %v2694 = vmax.f32 %v2630, 0.0
    %v2695 = vmax.f32 %v2631, 0.0
    %v2696 = vmax.f32 %v2632, 0.0
    %v2697 = vmax.f32 %v2633, 0.0
    %v2698 = vmax.f32 %v2634, 0.0
    %v2699 = vmax.f32 %v2635, 0.0
    %v2700 = vmax.f32 %v2636, 0.0
    %v2701 = vmax.f32 %v2637, 0.0
    %v2702 = vmax.f32 %v2638, 0.0
    %v2703 = vmax.f32 %v2639, 0.0
    %v2704 = vmax.f32 %v2640, 0.0
    %v2705 = vmax.f32 %v2641, 0.0
    %v2770 = vrot.slane %v2642, 2
    %v2771 = vrot.slane %v2642, 4
    %v2772 = vrot.slane %v2642, 6
    %v2773 = vrot.slane %v2643, 2
    %v2774 = vrot.slane %v2643, 4
    %v2775 = vrot.slane %v2643, 6
    %v2776 = vrot.slane %v2644, 2
    %v2777 = vrot.slane %v2644, 4
    %v2778 = vrot.slane %v2644, 6
    %v2779 = vrot.slane %v2645, 2
    %v2780 = vrot.slane %v2645, 4
    %v2781 = vrot.slane %v2645, 6
    %v2782 = vrot.slane %v2646, 2
    %v2783 = vrot.slane %v2646, 4
    %v2784 = vrot.slane %v2646, 6
    %v2785 = vrot.slane %v2647, 2
    %v2786 = vrot.slane %v2647, 4
    %v2787 = vrot.slane %v2647, 6
    %v2788 = vrot.slane %v2648, 2
    %v2789 = vrot.slane %v2648, 4
    %v2790 = vrot.slane %v2648, 6
    %v2791 = vrot.slane %v2649, 2
    %v2792 = vrot.slane %v2649, 4
    %v2793 = vrot.slane %v2649, 6
    %v2794 = vrot.slane %v2650, 2
    %v2795 = vrot.slane %v2650, 4
    %v2796 = vrot.slane %v2650, 6
    %v2797 = vrot.slane %v2651, 2
    %v2798 = vrot.slane %v2651, 4
    %v2799 = vrot.slane %v2651, 6
    %v2800 = vrot.slane %v2652, 2
    %v2801 = vrot.slane %v2652, 4
    %v2802 = vrot.slane %v2652, 6
    %v2803 = vrot.slane %v2653, 2
    %v2804 = vrot.slane %v2653, 4
    %v2805 = vrot.slane %v2653, 6
    %v2806 = vrot.slane %v2654, 2
    %v2807 = vrot.slane %v2654, 4
    %v2808 = vrot.slane %v2654, 6
    %v2809 = vrot.slane %v2655, 2
    %v2810 = vrot.slane %v2655, 4
    %v2811 = vrot.slane %v2655, 6
    %v2812 = vrot.slane %v2656, 2
    %v2813 = vrot.slane %v2656, 4
    %v2814 = vrot.slane %v2656, 6
    %v2815 = vrot.slane %v2657, 2
    %v2816 = vrot.slane %v2657, 4
    %v2817 = vrot.slane %v2657, 6
    %v2818 = vrot.slane %v2658, 2
    %v2819 = vrot.slane %v2658, 4
    %v2820 = vrot.slane %v2658, 6
    %v2821 = vrot.slane %v2659, 2
    %v2822 = vrot.slane %v2659, 4
    %v2823 = vrot.slane %v2659, 6
    %v2824 = vrot.slane %v2660, 2
    %v2825 = vrot.slane %v2660, 4
    %v2826 = vrot.slane %v2660, 6
    %v2827 = vrot.slane %v2661, 2
    %v2828 = vrot.slane %v2661, 4
    %v2829 = vrot.slane %v2661, 6
    %v2830 = vrot.slane %v2662, 2
    %v2831 = vrot.slane %v2662, 4
    %v2832 = vrot.slane %v2662, 6
    %v2833 = vrot.slane %v2663, 2
    %v2834 = vrot.slane %v2663, 4
    %v2835 = vrot.slane %v2663, 6
    %v2836 = vrot.slane %v2664, 2
    %v2837 = vrot.slane %v2664, 4
    %v2838 = vrot.slane %v2664, 6
    %v2839 = vrot.slane %v2665, 2
    %v2840 = vrot.slane %v2665, 4
    %v2841 = vrot.slane %v2665, 6
    %v2842 = vrot.slane %v2666, 2
    %v2843 = vrot.slane %v2666, 4
    %v2844 = vrot.slane %v2666, 6
    %v2845 = vrot.slane %v2667, 2
    %v2846 = vrot.slane %v2667, 4
    %v2847 = vrot.slane %v2667, 6
    %v2848 = vrot.slane %v2668, 2
    %v2849 = vrot.slane %v2668, 4
    %v2850 = vrot.slane %v2668, 6
    %v2851 = vrot.slane %v2669, 2
    %v2852 = vrot.slane %v2669, 4
    %v2853 = vrot.slane %v2669, 6
    %v2854 = vrot.slane %v2670, 2
    %v2855 = vrot.slane %v2670, 4
    %v2856 = vrot.slane %v2670, 6
    %v2857 = vrot.slane %v2671, 2
    %v2858 = vrot.slane %v2671, 4
    %v2859 = vrot.slane %v2671, 6
    %v2860 = vrot.slane %v2672, 2
    %v2861 = vrot.slane %v2672, 4
    %v2862 = vrot.slane %v2672, 6
    %v2863 = vrot.slane %v2673, 2
    %v2864 = vrot.slane %v2673, 4
    %v2865 = vrot.slane %v2673, 6
    %v2866 = vrot.slane %v2674, 2
    %v2867 = vrot.slane %v2674, 4
    %v2868 = vrot.slane %v2674, 6
    %v2869 = vrot.slane %v2675, 2
    %v2870 = vrot.slane %v2675, 4
    %v2871 = vrot.slane %v2675, 6
    %v2872 = vrot.slane %v2676, 2
    %v2873 = vrot.slane %v2676, 4
    %v2874 = vrot.slane %v2676, 6
    %v2875 = vrot.slane %v2677, 2
    %v2876 = vrot.slane %v2677, 4
    %v2877 = vrot.slane %v2677, 6
    %v2878 = vrot.slane %v2678, 2
    %v2879 = vrot.slane %v2678, 4
    %v2880 = vrot.slane %v2678, 6
    %v2881 = vrot.slane %v2679, 2
    %v2882 = vrot.slane %v2679, 4
    %v2883 = vrot.slane %v2679, 6
    %v2884 = vrot.slane %v2680, 2
    %v2885 = vrot.slane %v2680, 4
    %v2886 = vrot.slane %v2680, 6
    %v2887 = vrot.slane %v2681, 2
    %v2888 = vrot.slane %v2681, 4
    %v2889 = vrot.slane %v2681, 6
    %v2890 = vrot.slane %v2682, 2
    %v2891 = vrot.slane %v2682, 4
    %v2892 = vrot.slane %v2682, 6
    %v2893 = vrot.slane %v2683, 2
    %v2894 = vrot.slane %v2683, 4
    %v2895 = vrot.slane %v2683, 6
    %v2896 = vrot.slane %v2684, 2
    %v2897 = vrot.slane %v2684, 4
    %v2898 = vrot.slane %v2684, 6
    %v2899 = vrot.slane %v2685, 2
    %v2900 = vrot.slane %v2685, 4
    %v2901 = vrot.slane %v2685, 6
    %v2902 = vrot.slane %v2686, 2
    %v2903 = vrot.slane %v2686, 4
    %v2904 = vrot.slane %v2686, 6
    %v2905 = vrot.slane %v2687, 2
    %v2906 = vrot.slane %v2687, 4
    %v2907 = vrot.slane %v2687, 6
    %v2908 = vrot.slane %v2688, 2
    %v2909 = vrot.slane %v2688, 4
    %v2910 = vrot.slane %v2688, 6
    %v2911 = vrot.slane %v2689, 2
    %v2912 = vrot.slane %v2689, 4
    %v2913 = vrot.slane %v2689, 6
    %v2914 = vrot.slane %v2690, 2
    %v2915 = vrot.slane %v2690, 4
    %v2916 = vrot.slane %v2690, 6
    %v2917 = vrot.slane %v2691, 2
    %v2918 = vrot.slane %v2691, 4
    %v2919 = vrot.slane %v2691, 6
    %v2920 = vrot.slane %v2692, 2
    %v2921 = vrot.slane %v2692, 4
    %v2922 = vrot.slane %v2692, 6
    %v2923 = vrot.slane %v2693, 2
    %v2924 = vrot.slane %v2693, 4
    %v2925 = vrot.slane %v2693, 6
    %v2926 = vrot.slane %v2694, 2
    %v2927 = vrot.slane %v2694, 4
    %v2928 = vrot.slane %v2694, 6
    %v2929 = vrot.slane %v2695, 2
    %v2930 = vrot.slane %v2695, 4
    %v2931 = vrot.slane %v2695, 6
    %v2932 = vrot.slane %v2696, 2
    %v2933 = vrot.slane %v2696, 4
    %v2934 = vrot.slane %v2696, 6
    %v2935 = vrot.slane %v2697, 2
    %v2936 = vrot.slane %v2697, 4
    %v2937 = vrot.slane %v2697, 6
    %v2938 = vrot.slane %v2698, 2
    %v2939 = vrot.slane %v2698, 4
    %v2940 = vrot.slane %v2698, 6
    %v2941 = vrot.slane %v2699, 2
    %v2942 = vrot.slane %v2699, 4
    %v2943 = vrot.slane %v2699, 6
    %v2944 = vrot.slane %v2700, 2
    %v2945 = vrot.slane %v2700, 4
    %v2946 = vrot.slane %v2700, 6
    %v2947 = vrot.slane %v2701, 2
    %v2948 = vrot.slane %v2701, 4
    %v2949 = vrot.slane %v2701, 6
    %v2950 = vrot.slane %v2702, 2
    %v2951 = vrot.slane %v2702, 4
    %v2952 = vrot.slane %v2702, 6
    %v2953 = vrot.slane %v2703, 2
    %v2954 = vrot.slane %v2703, 4
    %v2955 = vrot.slane %v2703, 6
    %v2956 = vrot.slane %v2704, 2
    %v2957 = vrot.slane %v2704, 4
    %v2958 = vrot.slane %v2704, 6
    %v2959 = vrot.slane %v2705, 2
    %v2960 = vrot.slane %v2705, 4
    %v2961 = vrot.slane %v2705, 6
    %vm3154 = vcmask 123904
    %v3155 = vsel %vm3154, %v2642, -inf
    %v3156 = vrot.slane %v3155, 4
    %v3157 = vmax.f32 %v3155, %v3156
    %v3158 = vrot.slane %v3157, 2
    %v3159 = vmax.f32 %v3157, %v3158
    %v3160 = vrot.slane %v3159, 1
    %v3161 = vmax.f32 %v3159, %v3160
    %v3162 = vsel %vm3154, %v2770, -inf
    %v3163 = vrot.slane %v3162, 4
    %v3164 = vmax.f32 %v3162, %v3163
    %v3165 = vrot.slane %v3164, 2
    %v3166 = vmax.f32 %v3164, %v3165
    %v3167 = vrot.slane %v3166, 1
    %v3168 = vmax.f32 %v3166, %v3167
    %v3169 = vsel %vm3154, %v2771, -inf
    %v3170 = vrot.slane %v3169, 4
    %v3171 = vmax.f32 %v3169, %v3170
    %v3172 = vrot.slane %v3171, 2
    %v3173 = vmax.f32 %v3171, %v3172
    %v3174 = vrot.slane %v3173, 1
    %v3175 = vmax.f32 %v3173, %v3174
    %v3176 = vsel %vm3154, %v2772, -inf
    %v3177 = vrot.slane %v3176, 4
    %v3178 = vmax.f32 %v3176, %v3177
    %v3179 = vrot.slane %v3178, 2
    %v3180 = vmax.f32 %v3178, %v3179
    %v3181 = vrot.slane %v3180, 1
    %v3182 = vmax.f32 %v3180, %v3181
    %v3183 = vsel %vm3154, %v2643, -inf
    %v3184 = vrot.slane %v3183, 4
    %v3185 = vmax.f32 %v3183, %v3184
    %v3186 = vrot.slane %v3185, 2
    %v3187 = vmax.f32 %v3185, %v3186
    %v3188 = vrot.slane %v3187, 1
    %v3189 = vmax.f32 %v3187, %v3188
    %v3190 = vsel %vm3154, %v2773, -inf
    %v3191 = vrot.slane %v3190, 4
    %v3192 = vmax.f32 %v3190, %v3191
    %v3193 = vrot.slane %v3192, 2
    %v3194 = vmax.f32 %v3192, %v3193
    %v3195 = vrot.slane %v3194, 1
    %v3196 = vmax.f32 %v3194, %v3195
    %v3197 = vsel %vm3154, %v2774, -inf
    %v3198 = vrot.slane %v3197, 4
    %v3199 = vmax.f32 %v3197, %v3198
    %v3200 = vrot.slane %v3199, 2
    %v3201 = vmax.f32 %v3199, %v3200
    %v3202 = vrot.slane %v3201, 1
    %v3203 = vmax.f32 %v3201, %v3202
    %v3204 = vsel %vm3154, %v2775, -inf
    %v3205 = vrot.slane %v3204, 4
    %v3206 = vmax.f32 %v3204, %v3205
    %v3207 = vrot.slane %v3206, 2
    %v3208 = vmax.f32 %v3206, %v3207
    %v3209 = vrot.slane %v3208, 1
    %v3210 = vmax.f32 %v3208, %v3209
    %v3211 = vsel %vm3154, %v2644, -inf
    %v3212 = vrot.slane %v3211, 4
    %v3213 = vmax.f32 %v3211, %v3212
    %v3214 = vrot.slane %v3213, 2
    %v3215 = vmax.f32 %v3213, %v3214
    %v3216 = vrot.slane %v3215, 1
    %v3217 = vmax.f32 %v3215, %v3216
    %v3218 = vsel %vm3154, %v2776, -inf
    %v3219 = vrot.slane %v3218, 4
    %v3220 = vmax.f32 %v3218, %v3219
    %v3221 = vrot.slane %v3220, 2
    %v3222 = vmax.f32 %v3220, %v3221
    %v3223 = vrot.slane %v3222, 1
    %v3224 = vmax.f32 %v3222, %v3223
    %v3225 = vsel %vm3154, %v2777, -inf
    %v3226 = vrot.slane %v3225, 4
    %v3227 = vmax.f32 %v3225, %v3226
    %v3228 = vrot.slane %v3227, 2
    %v3229 = vmax.f32 %v3227, %v3228
    %v3230 = vrot.slane %v3229, 1
    %v3231 = vmax.f32 %v3229, %v3230
    %v3232 = vsel %vm3154, %v2778, -inf
    %v3233 = vrot.slane %v3232, 4
    %v3234 = vmax.f32 %v3232, %v3233
    %v3235 = vrot.slane %v3234, 2
    %v3236 = vmax.f32 %v3234, %v3235
    %v3237 = vrot.slane %v3236, 1
    %v3238 = vmax.f32 %v3236, %v3237
    %v3239 = vsel %vm3154, %v2645, -inf
    %v3240 = vrot.slane %v3239, 4
    %v3241 = vmax.f32 %v3239, %v3240
    %v3242 = vrot.slane %v3241, 2
    %v3243 = vmax.f32 %v3241, %v3242
    %v3244 = vrot.slane %v3243, 1
    %v3245 = vmax.f32 %v3243, %v3244
    %v3246 = vsel %vm3154, %v2779, -inf
    %v3247 = vrot.slane %v3246, 4
    %v3248 = vmax.f32 %v3246, %v3247
    %v3249 = vrot.slane %v3248, 2
    %v3250 = vmax.f32 %v3248, %v3249
    %v3251 = vrot.slane %v3250, 1
    %v3252 = vmax.f32 %v3250, %v3251
    %v3253 = vsel %vm3154, %v2780, -inf
    %v3254 = vrot.slane %v3253, 4
    %v3255 = vmax.f32 %v3253, %v3254
    %v3256 = vrot.slane %v3255, 2
    %v3257 = vmax.f32 %v3255, %v3256
    %v3258 = vrot.slane %v3257, 1
    %v3259 = vmax.f32 %v3257, %v3258
    %v3260 = vsel %vm3154, %v2781, -inf
    %v3261 = vrot.slane %v3260, 4
    %v3262 = vmax.f32 %v3260, %v3261
    %v3263 = vrot.slane %v3262, 2
    %v3264 = vmax.f32 %v3262, %v3263
    %v3265 = vrot.slane %v3264, 1
    %v3266 = vmax.f32 %v3264, %v3265
    %v3267 = vsel %vm3154, %v2646, -inf
    %v3268 = vrot.slane %v3267, 4
    %v3269 = vmax.f32 %v3267, %v3268
    %v3270 = vrot.slane %v3269, 2
    %v3271 = vmax.f32 %v3269, %v3270
    %v3272 = vrot.slane %v3271, 1
    %v3273 = vmax.f32 %v3271, %v3272
    %v3274 = vsel %vm3154, %v2782, -inf
    %v3275 = vrot.slane %v3274, 4
    %v3276 = vmax.f32 %v3274, %v3275
    %v3277 = vrot.slane %v3276, 2
    %v3278 = vmax.f32 %v3276, %v3277
    %v3279 = vrot.slane %v3278, 1
    %v3280 = vmax.f32 %v3278, %v3279
    %v3281 = vsel %vm3154, %v2783, -inf
    %v3282 = vrot.slane %v3281, 4
    %v3283 = vmax.f32 %v3281, %v3282
    %v3284 = vrot.slane %v3283, 2
    %v3285 = vmax.f32 %v3283, %v3284
    %v3286 = vrot.slane %v3285, 1
    %v3287 = vmax.f32 %v3285, %v3286
    %v3288 = vsel %vm3154, %v2784, -inf
    %v3289 = vrot.slane %v3288, 4
    %v3290 = vmax.f32 %v3288, %v3289
    %v3291 = vrot.slane %v3290, 2
    %v3292 = vmax.f32 %v3290, %v3291
    %v3293 = vrot.slane %v3292, 1
    %v3294 = vmax.f32 %v3292, %v3293
    %v3295 = vsel %vm3154, %v2647, -inf
    %v3296 = vrot.slane %v3295, 4
    %v3297 = vmax.f32 %v3295, %v3296
    %v3298 = vrot.slane %v3297, 2
    %v3299 = vmax.f32 %v3297, %v3298
    %v3300 = vrot.slane %v3299, 1
    %v3301 = vmax.f32 %v3299, %v3300
    %v3302 = vsel %vm3154, %v2785, -inf
    %v3303 = vrot.slane %v3302, 4
    %v3304 = vmax.f32 %v3302, %v3303
    %v3305 = vrot.slane %v3304, 2
    %v3306 = vmax.f32 %v3304, %v3305
    %v3307 = vrot.slane %v3306, 1
    %v3308 = vmax.f32 %v3306, %v3307
    %v3309 = vsel %vm3154, %v2786, -inf
    %v3310 = vrot.slane %v3309, 4
    %v3311 = vmax.f32 %v3309, %v3310
    %v3312 = vrot.slane %v3311, 2
    %v3313 = vmax.f32 %v3311, %v3312
    %v3314 = vrot.slane %v3313, 1
    %v3315 = vmax.f32 %v3313, %v3314
    %v3316 = vsel %vm3154, %v2787, -inf
    %v3317 = vrot.slane %v3316, 4
    %v3318 = vmax.f32 %v3316, %v3317
    %v3319 = vrot.slane %v3318, 2
    %v3320 = vmax.f32 %v3318, %v3319
    %v3321 = vrot.slane %v3320, 1
    %v3322 = vmax.f32 %v3320, %v3321
    %v3323 = vsel %vm3154, %v2648, -inf
    %v3324 = vrot.slane %v3323, 4
    %v3325 = vmax.f32 %v3323, %v3324
    %v3326 = vrot.slane %v3325, 2
    %v3327 = vmax.f32 %v3325, %v3326
    %v3328 = vrot.slane %v3327, 1
    %v3329 = vmax.f32 %v3327, %v3328
    %v3330 = vsel %vm3154, %v2788, -inf
    %v3331 = vrot.slane %v3330, 4
    %v3332 = vmax.f32 %v3330, %v3331
    %v3333 = vrot.slane %v3332, 2
    %v3334 = vmax.f32 %v3332, %v3333
    %v3335 = vrot.slane %v3334, 1
    %v3336 = vmax.f32 %v3334, %v3335
    %v3337 = vsel %vm3154, %v2789, -inf
    %v3338 = vrot.slane %v3337, 4
    %v3339 = vmax.f32 %v3337, %v3338
    %v3340 = vrot.slane %v3339, 2
    %v3341 = vmax.f32 %v3339, %v3340
    %v3342 = vrot.slane %v3341, 1
    %v3343 = vmax.f32 %v3341, %v3342
    %v3344 = vsel %vm3154, %v2790, -inf
    %v3345 = vrot.slane %v3344, 4
    %v3346 = vmax.f32 %v3344, %v3345
    %v3347 = vrot.slane %v3346, 2
    %v3348 = vmax.f32 %v3346, %v3347
    %v3349 = vrot.slane %v3348, 1
    %v3350 = vmax.f32 %v3348, %v3349
    %v3351 = vsel %vm3154, %v2649, -inf
    %v3352 = vrot.slane %v3351, 4
    %v3353 = vmax.f32 %v3351, %v3352
    %v3354 = vrot.slane %v3353, 2
    %v3355 = vmax.f32 %v3353, %v3354
    %v3356 = vrot.slane %v3355, 1
    %v3357 = vmax.f32 %v3355, %v3356
    %v3358 = vsel %vm3154, %v2791, -inf
    %v3359 = vrot.slane %v3358, 4
    %v3360 = vmax.f32 %v3358, %v3359
    %v3361 = vrot.slane %v3360, 2
    %v3362 = vmax.f32 %v3360, %v3361
    %v3363 = vrot.slane %v3362, 1
    %v3364 = vmax.f32 %v3362, %v3363
    %v3365 = vsel %vm3154, %v2792, -inf
    %v3366 = vrot.slane %v3365, 4
    %v3367 = vmax.f32 %v3365, %v3366
    %v3368 = vrot.slane %v3367, 2
    %v3369 = vmax.f32 %v3367, %v3368
    %v3370 = vrot.slane %v3369, 1
    %v3371 = vmax.f32 %v3369, %v3370
    %v3372 = vsel %vm3154, %v2793, -inf
    %v3373 = vrot.slane %v3372, 4
    %v3374 = vmax.f32 %v3372, %v3373
    %v3375 = vrot.slane %v3374, 2
    %v3376 = vmax.f32 %v3374, %v3375
    %v3377 = vrot.slane %v3376, 1
    %v3378 = vmax.f32 %v3376, %v3377
    %v3379 = vsel %vm3154, %v2650, -inf
    %v3380 = vrot.slane %v3379, 4
    %v3381 = vmax.f32 %v3379, %v3380
    %v3382 = vrot.slane %v3381, 2
    %v3383 = vmax.f32 %v3381, %v3382
    %v3384 = vrot.slane %v3383, 1
    %v3385 = vmax.f32 %v3383, %v3384
    %v3386 = vsel %vm3154, %v2794, -inf
    %v3387 = vrot.slane %v3386, 4
    %v3388 = vmax.f32 %v3386, %v3387
    %v3389 = vrot.slane %v3388, 2
    %v3390 = vmax.f32 %v3388, %v3389
    %v3391 = vrot.slane %v3390, 1
    %v3392 = vmax.f32 %v3390, %v3391
    %v3393 = vsel %vm3154, %v2795, -inf
    %v3394 = vrot.slane %v3393, 4
    %v3395 = vmax.f32 %v3393, %v3394
    %v3396 = vrot.slane %v3395, 2
    %v3397 = vmax.f32 %v3395, %v3396
    %v3398 = vrot.slane %v3397, 1
    %v3399 = vmax.f32 %v3397, %v3398
    %v3400 = vsel %vm3154, %v2796, -inf
    %v3401 = vrot.slane %v3400, 4
    %v3402 = vmax.f32 %v3400, %v3401
    %v3403 = vrot.slane %v3402, 2
    %v3404 = vmax.f32 %v3402, %v3403
    %v3405 = vrot.slane %v3404, 1
    %v3406 = vmax.f32 %v3404, %v3405
    %v3407 = vsel %vm3154, %v2651, -inf
    %v3408 = vrot.slane %v3407, 4
    %v3409 = vmax.f32 %v3407, %v3408
    %v3410 = vrot.slane %v3409, 2
    %v3411 = vmax.f32 %v3409, %v3410
    %v3412 = vrot.slane %v3411, 1
    %v3413 = vmax.f32 %v3411, %v3412
    %v3414 = vsel %vm3154, %v2797, -inf
    %v3415 = vrot.slane %v3414, 4
    %v3416 = vmax.f32 %v3414, %v3415
    %v3417 = vrot.slane %v3416, 2
    %v3418 = vmax.f32 %v3416, %v3417
    %v3419 = vrot.slane %v3418, 1
    %v3420 = vmax.f32 %v3418, %v3419
    %v3421 = vsel %vm3154, %v2798, -inf
    %v3422 = vrot.slane %v3421, 4
    %v3423 = vmax.f32 %v3421, %v3422
    %v3424 = vrot.slane %v3423, 2
    %v3425 = vmax.f32 %v3423, %v3424
    %v3426 = vrot.slane %v3425, 1
    %v3427 = vmax.f32 %v3425, %v3426
    %v3428 = vsel %vm3154, %v2799, -inf
    %v3429 = vrot.slane %v3428, 4
    %v3430 = vmax.f32 %v3428, %v3429
    %v3431 = vrot.slane %v3430, 2
    %v3432 = vmax.f32 %v3430, %v3431
    %v3433 = vrot.slane %v3432, 1
    %v3434 = vmax.f32 %v3432, %v3433
    %v3435 = vsel %vm3154, %v2652, -inf
    %v3436 = vrot.slane %v3435, 4
    %v3437 = vmax.f32 %v3435, %v3436
    %v3438 = vrot.slane %v3437, 2
    %v3439 = vmax.f32 %v3437, %v3438
    %v3440 = vrot.slane %v3439, 1
    %v3441 = vmax.f32 %v3439, %v3440
    %v3442 = vsel %vm3154, %v2800, -inf
    %v3443 = vrot.slane %v3442, 4
    %v3444 = vmax.f32 %v3442, %v3443
    %v3445 = vrot.slane %v3444, 2
    %v3446 = vmax.f32 %v3444, %v3445
    %v3447 = vrot.slane %v3446, 1
    %v3448 = vmax.f32 %v3446, %v3447
    %v3449 = vsel %vm3154, %v2801, -inf
    %v3450 = vrot.slane %v3449, 4
    %v3451 = vmax.f32 %v3449, %v3450
    %v3452 = vrot.slane %v3451, 2
    %v3453 = vmax.f32 %v3451, %v3452
    %v3454 = vrot.slane %v3453, 1
    %v3455 = vmax.f32 %v3453, %v3454
    %v3456 = vsel %vm3154, %v2802, -inf
    %v3457 = vrot.slane %v3456, 4
    %v3458 = vmax.f32 %v3456, %v3457
    %v3459 = vrot.slane %v3458, 2
    %v3460 = vmax.f32 %v3458, %v3459
    %v3461 = vrot.slane %v3460, 1
    %v3462 = vmax.f32 %v3460, %v3461
    %v3463 = vsel %vm3154, %v2653, -inf
    %v3464 = vrot.slane %v3463, 4
    %v3465 = vmax.f32 %v3463, %v3464
    %v3466 = vrot.slane %v3465, 2
    %v3467 = vmax.f32 %v3465, %v3466
    %v3468 = vrot.slane %v3467, 1
    %v3469 = vmax.f32 %v3467, %v3468
    %v3470 = vsel %vm3154, %v2803, -inf
    %v3471 = vrot.slane %v3470, 4
    %v3472 = vmax.f32 %v3470, %v3471
    %v3473 = vrot.slane %v3472, 2
    %v3474 = vmax.f32 %v3472, %v3473
    %v3475 = vrot.slane %v3474, 1
    %v3476 = vmax.f32 %v3474, %v3475
    %v3477 = vsel %vm3154, %v2804, -inf
    %v3478 = vrot.slane %v3477, 4
    %v3479 = vmax.f32 %v3477, %v3478
    %v3480 = vrot.slane %v3479, 2
    %v3481 = vmax.f32 %v3479, %v3480
    %v3482 = vrot.slane %v3481, 1
    %v3483 = vmax.f32 %v3481, %v3482
    %v3484 = vsel %vm3154, %v2805, -inf
    %v3485 = vrot.slane %v3484, 4
    %v3486 = vmax.f32 %v3484, %v3485
    %v3487 = vrot.slane %v3486, 2
    %v3488 = vmax.f32 %v3486, %v3487
    %v3489 = vrot.slane %v3488, 1
    %v3490 = vmax.f32 %v3488, %v3489
    %v3491 = vsel %vm3154, %v2654, -inf
    %v3492 = vrot.slane %v3491, 4
    %v3493 = vmax.f32 %v3491, %v3492
    %v3494 = vrot.slane %v3493, 2
    %v3495 = vmax.f32 %v3493, %v3494
    %v3496 = vrot.slane %v3495, 1
    %v3497 = vmax.f32 %v3495, %v3496
    %v3498 = vsel %vm3154, %v2806, -inf
    %v3499 = vrot.slane %v3498, 4
    %v3500 = vmax.f32 %v3498, %v3499
    %v3501 = vrot.slane %v3500, 2
    %v3502 = vmax.f32 %v3500, %v3501
    %v3503 = vrot.slane %v3502, 1
    %v3504 = vmax.f32 %v3502, %v3503
    %v3505 = vsel %vm3154, %v2807, -inf
    %v3506 = vrot.slane %v3505, 4
    %v3507 = vmax.f32 %v3505, %v3506
    %v3508 = vrot.slane %v3507, 2
    %v3509 = vmax.f32 %v3507, %v3508
    %v3510 = vrot.slane %v3509, 1
    %v3511 = vmax.f32 %v3509, %v3510
    %v3512 = vsel %vm3154, %v2808, -inf
    %v3513 = vrot.slane %v3512, 4
    %v3514 = vmax.f32 %v3512, %v3513
    %v3515 = vrot.slane %v3514, 2
    %v3516 = vmax.f32 %v3514, %v3515
    %v3517 = vrot.slane %v3516, 1
    %v3518 = vmax.f32 %v3516, %v3517
    %v3519 = vsel %vm3154, %v2655, -inf
    %v3520 = vrot.slane %v3519, 4
    %v3521 = vmax.f32 %v3519, %v3520
    %v3522 = vrot.slane %v3521, 2
    %v3523 = vmax.f32 %v3521, %v3522
    %v3524 = vrot.slane %v3523, 1
    %v3525 = vmax.f32 %v3523, %v3524
    %v3526 = vsel %vm3154, %v2809, -inf
    %v3527 = vrot.slane %v3526, 4
    %v3528 = vmax.f32 %v3526, %v3527
    %v3529 = vrot.slane %v3528, 2
    %v3530 = vmax.f32 %v3528, %v3529
    %v3531 = vrot.slane %v3530, 1
    %v3532 = vmax.f32 %v3530, %v3531
    %v3533 = vsel %vm3154, %v2810, -inf
    %v3534 = vrot.slane %v3533, 4
    %v3535 = vmax.f32 %v3533, %v3534
    %v3536 = vrot.slane %v3535, 2
    %v3537 = vmax.f32 %v3535, %v3536
    %v3538 = vrot.slane %v3537, 1
    %v3539 = vmax.f32 %v3537, %v3538
    %v3540 = vsel %vm3154, %v2811, -inf
    %v3541 = vrot.slane %v3540, 4
    %v3542 = vmax.f32 %v3540, %v3541
    %v3543 = vrot.slane %v3542, 2
    %v3544 = vmax.f32 %v3542, %v3543
    %v3545 = vrot.slane %v3544, 1
    %v3546 = vmax.f32 %v3544, %v3545
    %v3547 = vsel %vm3154, %v2656, -inf
    %v3548 = vrot.slane %v3547, 4
    %v3549 = vmax.f32 %v3547, %v3548
    %v3550 = vrot.slane %v3549, 2
    %v3551 = vmax.f32 %v3549, %v3550
    %v3552 = vrot.slane %v3551, 1
    %v3553 = vmax.f32 %v3551, %v3552
    %v3554 = vsel %vm3154, %v2812, -inf
    %v3555 = vrot.slane %v3554, 4
    %v3556 = vmax.f32 %v3554, %v3555
    %v3557 = vrot.slane %v3556, 2
    %v3558 = vmax.f32 %v3556, %v3557
    %v3559 = vrot.slane %v3558, 1
    %v3560 = vmax.f32 %v3558, %v3559
    %v3561 = vsel %vm3154, %v2813, -inf
    %v3562 = vrot.slane %v3561, 4
    %v3563 = vmax.f32 %v3561, %v3562
    %v3564 = vrot.slane %v3563, 2
    %v3565 = vmax.f32 %v3563, %v3564
    %v3566 = vrot.slane %v3565, 1
    %v3567 = vmax.f32 %v3565, %v3566
    %v3568 = vsel %vm3154, %v2814, -inf
    %v3569 = vrot.slane %v3568, 4
    %v3570 = vmax.f32 %v3568, %v3569
    %v3571 = vrot.slane %v3570, 2
    %v3572 = vmax.f32 %v3570, %v3571
    %v3573 = vrot.slane %v3572, 1
    %v3574 = vmax.f32 %v3572, %v3573
    %v3575 = vsel %vm3154, %v2657, -inf
    %v3576 = vrot.slane %v3575, 4
    %v3577 = vmax.f32 %v3575, %v3576
    %v3578 = vrot.slane %v3577, 2
    %v3579 = vmax.f32 %v3577, %v3578
    %v3580 = vrot.slane %v3579, 1
    %v3581 = vmax.f32 %v3579, %v3580
    %v3582 = vsel %vm3154, %v2815, -inf
    %v3583 = vrot.slane %v3582, 4
    %v3584 = vmax.f32 %v3582, %v3583
    %v3585 = vrot.slane %v3584, 2
    %v3586 = vmax.f32 %v3584, %v3585
    %v3587 = vrot.slane %v3586, 1
    %v3588 = vmax.f32 %v3586, %v3587
    %v3589 = vsel %vm3154, %v2816, -inf
    %v3590 = vrot.slane %v3589, 4
    %v3591 = vmax.f32 %v3589, %v3590
    %v3592 = vrot.slane %v3591, 2
    %v3593 = vmax.f32 %v3591, %v3592
    %v3594 = vrot.slane %v3593, 1
    %v3595 = vmax.f32 %v3593, %v3594
    %v3596 = vsel %vm3154, %v2817, -inf
    %v3597 = vrot.slane %v3596, 4
    %v3598 = vmax.f32 %v3596, %v3597
    %v3599 = vrot.slane %v3598, 2
    %v3600 = vmax.f32 %v3598, %v3599
    %v3601 = vrot.slane %v3600, 1
    %v3602 = vmax.f32 %v3600, %v3601
    %v3603 = vsel %vm3154, %v2658, -inf
    %v3604 = vrot.slane %v3603, 4
    %v3605 = vmax.f32 %v3603, %v3604
    %v3606 = vrot.slane %v3605, 2
    %v3607 = vmax.f32 %v3605, %v3606
    %v3608 = vrot.slane %v3607, 1
    %v3609 = vmax.f32 %v3607, %v3608
    %v3610 = vsel %vm3154, %v2818, -inf
    %v3611 = vrot.slane %v3610, 4
    %v3612 = vmax.f32 %v3610, %v3611
    %v3613 = vrot.slane %v3612, 2
    %v3614 = vmax.f32 %v3612, %v3613
    %v3615 = vrot.slane %v3614, 1
    %v3616 = vmax.f32 %v3614, %v3615
    %v3617 = vsel %vm3154, %v2819, -inf
    %v3618 = vrot.slane %v3617, 4
    %v3619 = vmax.f32 %v3617, %v3618
    %v3620 = vrot.slane %v3619, 2
    %v3621 = vmax.f32 %v3619, %v3620
    %v3622 = vrot.slane %v3621, 1
    %v3623 = vmax.f32 %v3621, %v3622
    %v3624 = vsel %vm3154, %v2820, -inf
    %v3625 = vrot.slane %v3624, 4
    %v3626 = vmax.f32 %v3624, %v3625
    %v3627 = vrot.slane %v3626, 2
    %v3628 = vmax.f32 %v3626, %v3627
    %v3629 = vrot.slane %v3628, 1
    %v3630 = vmax.f32 %v3628, %v3629
    %v3631 = vsel %vm3154, %v2659, -inf
    %v3632 = vrot.slane %v3631, 4
    %v3633 = vmax.f32 %v3631, %v3632
    %v3634 = vrot.slane %v3633, 2
    %v3635 = vmax.f32 %v3633, %v3634
    %v3636 = vrot.slane %v3635, 1
    %v3637 = vmax.f32 %v3635, %v3636
    %v3638 = vsel %vm3154, %v2821, -inf
    %v3639 = vrot.slane %v3638, 4
    %v3640 = vmax.f32 %v3638, %v3639
    %v3641 = vrot.slane %v3640, 2
    %v3642 = vmax.f32 %v3640, %v3641
    %v3643 = vrot.slane %v3642, 1
    %v3644 = vmax.f32 %v3642, %v3643
    %v3645 = vsel %vm3154, %v2822, -inf
    %v3646 = vrot.slane %v3645, 4
    %v3647 = vmax.f32 %v3645, %v3646
    %v3648 = vrot.slane %v3647, 2
    %v3649 = vmax.f32 %v3647, %v3648
    %v3650 = vrot.slane %v3649, 1
    %v3651 = vmax.f32 %v3649, %v3650
    %v3652 = vsel %vm3154, %v2823, -inf
    %v3653 = vrot.slane %v3652, 4
    %v3654 = vmax.f32 %v3652, %v3653
    %v3655 = vrot.slane %v3654, 2
    %v3656 = vmax.f32 %v3654, %v3655
    %v3657 = vrot.slane %v3656, 1
    %v3658 = vmax.f32 %v3656, %v3657
    %v3659 = vsel %vm3154, %v2660, -inf
    %v3660 = vrot.slane %v3659, 4
    %v3661 = vmax.f32 %v3659, %v3660
    %v3662 = vrot.slane %v3661, 2
    %v3663 = vmax.f32 %v3661, %v3662
    %v3664 = vrot.slane %v3663, 1
    %v3665 = vmax.f32 %v3663, %v3664
    %v3666 = vsel %vm3154, %v2824, -inf
    %v3667 = vrot.slane %v3666, 4
    %v3668 = vmax.f32 %v3666, %v3667
    %v3669 = vrot.slane %v3668, 2
    %v3670 = vmax.f32 %v3668, %v3669
    %v3671 = vrot.slane %v3670, 1
    %v3672 = vmax.f32 %v3670, %v3671
    %v3673 = vsel %vm3154, %v2825, -inf
    %v3674 = vrot.slane %v3673, 4
    %v3675 = vmax.f32 %v3673, %v3674
    %v3676 = vrot.slane %v3675, 2
    %v3677 = vmax.f32 %v3675, %v3676
    %v3678 = vrot.slane %v3677, 1
    %v3679 = vmax.f32 %v3677, %v3678
    %v3680 = vsel %vm3154, %v2826, -inf
    %v3681 = vrot.slane %v3680, 4
    %v3682 = vmax.f32 %v3680, %v3681
    %v3683 = vrot.slane %v3682, 2
    %v3684 = vmax.f32 %v3682, %v3683
    %v3685 = vrot.slane %v3684, 1
    %v3686 = vmax.f32 %v3684, %v3685
    %v3687 = vsel %vm3154, %v2661, -inf
    %v3688 = vrot.slane %v3687, 4
    %v3689 = vmax.f32 %v3687, %v3688
    %v3690 = vrot.slane %v3689, 2
    %v3691 = vmax.f32 %v3689, %v3690
    %v3692 = vrot.slane %v3691, 1
    %v3693 = vmax.f32 %v3691, %v3692
    %v3694 = vsel %vm3154, %v2827, -inf
    %v3695 = vrot.slane %v3694, 4
    %v3696 = vmax.f32 %v3694, %v3695
    %v3697 = vrot.slane %v3696, 2
    %v3698 = vmax.f32 %v3696, %v3697
    %v3699 = vrot.slane %v3698, 1
    %v3700 = vmax.f32 %v3698, %v3699
    %v3701 = vsel %vm3154, %v2828, -inf
    %v3702 = vrot.slane %v3701, 4
    %v3703 = vmax.f32 %v3701, %v3702
    %v3704 = vrot.slane %v3703, 2
    %v3705 = vmax.f32 %v3703, %v3704
    %v3706 = vrot.slane %v3705, 1
    %v3707 = vmax.f32 %v3705, %v3706
    %v3708 = vsel %vm3154, %v2829, -inf
    %v3709 = vrot.slane %v3708, 4
    %v3710 = vmax.f32 %v3708, %v3709
    %v3711 = vrot.slane %v3710, 2
    %v3712 = vmax.f32 %v3710, %v3711
    %v3713 = vrot.slane %v3712, 1
    %v3714 = vmax.f32 %v3712, %v3713
    %v3715 = vsel %vm3154, %v2662, -inf
    %v3716 = vrot.slane %v3715, 4
    %v3717 = vmax.f32 %v3715, %v3716
    %v3718 = vrot.slane %v3717, 2
    %v3719 = vmax.f32 %v3717, %v3718
    %v3720 = vrot.slane %v3719, 1
    %v3721 = vmax.f32 %v3719, %v3720
    %v3722 = vsel %vm3154, %v2830, -inf
    %v3723 = vrot.slane %v3722, 4
    %v3724 = vmax.f32 %v3722, %v3723
    %v3725 = vrot.slane %v3724, 2
    %v3726 = vmax.f32 %v3724, %v3725
    %v3727 = vrot.slane %v3726, 1
    %v3728 = vmax.f32 %v3726, %v3727
    %v3729 = vsel %vm3154, %v2831, -inf
    %v3730 = vrot.slane %v3729, 4
    %v3731 = vmax.f32 %v3729, %v3730
    %v3732 = vrot.slane %v3731, 2
    %v3733 = vmax.f32 %v3731, %v3732
    %v3734 = vrot.slane %v3733, 1
    %v3735 = vmax.f32 %v3733, %v3734
    %v3736 = vsel %vm3154, %v2832, -inf
    %v3737 = vrot.slane %v3736, 4
    %v3738 = vmax.f32 %v3736, %v3737
    %v3739 = vrot.slane %v3738, 2
    %v3740 = vmax.f32 %v3738, %v3739
    %v3741 = vrot.slane %v3740, 1
    %v3742 = vmax.f32 %v3740, %v3741
    %v3743 = vsel %vm3154, %v2663, -inf
    %v3744 = vrot.slane %v3743, 4
    %v3745 = vmax.f32 %v3743, %v3744
    %v3746 = vrot.slane %v3745, 2
    %v3747 = vmax.f32 %v3745, %v3746
    %v3748 = vrot.slane %v3747, 1
    %v3749 = vmax.f32 %v3747, %v3748
    %v3750 = vsel %vm3154, %v2833, -inf
    %v3751 = vrot.slane %v3750, 4
    %v3752 = vmax.f32 %v3750, %v3751
    %v3753 = vrot.slane %v3752, 2
    %v3754 = vmax.f32 %v3752, %v3753
    %v3755 = vrot.slane %v3754, 1
    %v3756 = vmax.f32 %v3754, %v3755
    %v3757 = vsel %vm3154, %v2834, -inf
    %v3758 = vrot.slane %v3757, 4
    %v3759 = vmax.f32 %v3757, %v3758
    %v3760 = vrot.slane %v3759, 2
    %v3761 = vmax.f32 %v3759, %v3760
    %v3762 = vrot.slane %v3761, 1
    %v3763 = vmax.f32 %v3761, %v3762
    %v3764 = vsel %vm3154, %v2835, -inf
    %v3765 = vrot.slane %v3764, 4
    %v3766 = vmax.f32 %v3764, %v3765
    %v3767 = vrot.slane %v3766, 2
    %v3768 = vmax.f32 %v3766, %v3767
    %v3769 = vrot.slane %v3768, 1
    %v3770 = vmax.f32 %v3768, %v3769
    %v3771 = vsel %vm3154, %v2664, -inf
    %v3772 = vrot.slane %v3771, 4
    %v3773 = vmax.f32 %v3771, %v3772
    %v3774 = vrot.slane %v3773, 2
    %v3775 = vmax.f32 %v3773, %v3774
    %v3776 = vrot.slane %v3775, 1
    %v3777 = vmax.f32 %v3775, %v3776
    %v3778 = vsel %vm3154, %v2836, -inf
    %v3779 = vrot.slane %v3778, 4
    %v3780 = vmax.f32 %v3778, %v3779
    %v3781 = vrot.slane %v3780, 2
    %v3782 = vmax.f32 %v3780, %v3781
    %v3783 = vrot.slane %v3782, 1
    %v3784 = vmax.f32 %v3782, %v3783
    %v3785 = vsel %vm3154, %v2837, -inf
    %v3786 = vrot.slane %v3785, 4
    %v3787 = vmax.f32 %v3785, %v3786
    %v3788 = vrot.slane %v3787, 2
    %v3789 = vmax.f32 %v3787, %v3788
    %v3790 = vrot.slane %v3789, 1
    %v3791 = vmax.f32 %v3789, %v3790
    %v3792 = vsel %vm3154, %v2838, -inf
    %v3793 = vrot.slane %v3792, 4
    %v3794 = vmax.f32 %v3792, %v3793
    %v3795 = vrot.slane %v3794, 2
    %v3796 = vmax.f32 %v3794, %v3795
    %v3797 = vrot.slane %v3796, 1
    %v3798 = vmax.f32 %v3796, %v3797
    %v3799 = vsel %vm3154, %v2665, -inf
    %v3800 = vrot.slane %v3799, 4
    %v3801 = vmax.f32 %v3799, %v3800
    %v3802 = vrot.slane %v3801, 2
    %v3803 = vmax.f32 %v3801, %v3802
    %v3804 = vrot.slane %v3803, 1
    %v3805 = vmax.f32 %v3803, %v3804
    %v3806 = vsel %vm3154, %v2839, -inf
    %v3807 = vrot.slane %v3806, 4
    %v3808 = vmax.f32 %v3806, %v3807
    %v3809 = vrot.slane %v3808, 2
    %v3810 = vmax.f32 %v3808, %v3809
    %v3811 = vrot.slane %v3810, 1
    %v3812 = vmax.f32 %v3810, %v3811
    %v3813 = vsel %vm3154, %v2840, -inf
    %v3814 = vrot.slane %v3813, 4
    %v3815 = vmax.f32 %v3813, %v3814
    %v3816 = vrot.slane %v3815, 2
    %v3817 = vmax.f32 %v3815, %v3816
    %v3818 = vrot.slane %v3817, 1
    %v3819 = vmax.f32 %v3817, %v3818
    %v3820 = vsel %vm3154, %v2841, -inf
    %v3821 = vrot.slane %v3820, 4
    %v3822 = vmax.f32 %v3820, %v3821
    %v3823 = vrot.slane %v3822, 2
    %v3824 = vmax.f32 %v3822, %v3823
    %v3825 = vrot.slane %v3824, 1
    %v3826 = vmax.f32 %v3824, %v3825
    %v3827 = vsel %vm3154, %v2666, -inf
    %v3828 = vrot.slane %v3827, 4
    %v3829 = vmax.f32 %v3827, %v3828
    %v3830 = vrot.slane %v3829, 2
    %v3831 = vmax.f32 %v3829, %v3830
    %v3832 = vrot.slane %v3831, 1
    %v3833 = vmax.f32 %v3831, %v3832
    %v3834 = vsel %vm3154, %v2842, -inf
    %v3835 = vrot.slane %v3834, 4
    %v3836 = vmax.f32 %v3834, %v3835
    %v3837 = vrot.slane %v3836, 2
    %v3838 = vmax.f32 %v3836, %v3837
    %v3839 = vrot.slane %v3838, 1
    %v3840 = vmax.f32 %v3838, %v3839
    %v3841 = vsel %vm3154, %v2843, -inf
    %v3842 = vrot.slane %v3841, 4
    %v3843 = vmax.f32 %v3841, %v3842
    %v3844 = vrot.slane %v3843, 2
    %v3845 = vmax.f32 %v3843, %v3844
    %v3846 = vrot.slane %v3845, 1
    %v3847 = vmax.f32 %v3845, %v3846
    %v3848 = vsel %vm3154, %v2844, -inf
    %v3849 = vrot.slane %v3848, 4
    %v3850 = vmax.f32 %v3848, %v3849
    %v3851 = vrot.slane %v3850, 2
    %v3852 = vmax.f32 %v3850, %v3851
    %v3853 = vrot.slane %v3852, 1
    %v3854 = vmax.f32 %v3852, %v3853
    %v3855 = vsel %vm3154, %v2667, -inf
    %v3856 = vrot.slane %v3855, 4
    %v3857 = vmax.f32 %v3855, %v3856
    %v3858 = vrot.slane %v3857, 2
    %v3859 = vmax.f32 %v3857, %v3858
    %v3860 = vrot.slane %v3859, 1
    %v3861 = vmax.f32 %v3859, %v3860
    %v3862 = vsel %vm3154, %v2845, -inf
    %v3863 = vrot.slane %v3862, 4
    %v3864 = vmax.f32 %v3862, %v3863
    %v3865 = vrot.slane %v3864, 2
    %v3866 = vmax.f32 %v3864, %v3865
    %v3867 = vrot.slane %v3866, 1
    %v3868 = vmax.f32 %v3866, %v3867
    %v3869 = vsel %vm3154, %v2846, -inf
    %v3870 = vrot.slane %v3869, 4
    %v3871 = vmax.f32 %v3869, %v3870
    %v3872 = vrot.slane %v3871, 2
    %v3873 = vmax.f32 %v3871, %v3872
    %v3874 = vrot.slane %v3873, 1
    %v3875 = vmax.f32 %v3873, %v3874
    %v3876 = vsel %vm3154, %v2847, -inf
    %v3877 = vrot.slane %v3876, 4
    %v3878 = vmax.f32 %v3876, %v3877
    %v3879 = vrot.slane %v3878, 2
    %v3880 = vmax.f32 %v3878, %v3879
    %v3881 = vrot.slane %v3880, 1
    %v3882 = vmax.f32 %v3880, %v3881
    %v3883 = vsel %vm3154, %v2668, -inf
    %v3884 = vrot.slane %v3883, 4
    %v3885 = vmax.f32 %v3883, %v3884
    %v3886 = vrot.slane %v3885, 2
    %v3887 = vmax.f32 %v3885, %v3886
    %v3888 = vrot.slane %v3887, 1
    %v3889 = vmax.f32 %v3887, %v3888
    %v3890 = vsel %vm3154, %v2848, -inf
    %v3891 = vrot.slane %v3890, 4
    %v3892 = vmax.f32 %v3890, %v3891
    %v3893 = vrot.slane %v3892, 2
    %v3894 = vmax.f32 %v3892, %v3893
    %v3895 = vrot.slane %v3894, 1
    %v3896 = vmax.f32 %v3894, %v3895
    %v3897 = vsel %vm3154, %v2849, -inf
    %v3898 = vrot.slane %v3897, 4
    %v3899 = vmax.f32 %v3897, %v3898
    %v3900 = vrot.slane %v3899, 2
    %v3901 = vmax.f32 %v3899, %v3900
    %v3902 = vrot.slane %v3901, 1
    %v3903 = vmax.f32 %v3901, %v3902
    %v3904 = vsel %vm3154, %v2850, -inf
    %v3905 = vrot.slane %v3904, 4
    %v3906 = vmax.f32 %v3904, %v3905
    %v3907 = vrot.slane %v3906, 2
    %v3908 = vmax.f32 %v3906, %v3907
    %v3909 = vrot.slane %v3908, 1
    %v3910 = vmax.f32 %v3908, %v3909
    %v3911 = vsel %vm3154, %v2669, -inf
    %v3912 = vrot.slane %v3911, 4
    %v3913 = vmax.f32 %v3911, %v3912
    %v3914 = vrot.slane %v3913, 2
    %v3915 = vmax.f32 %v3913, %v3914
    %v3916 = vrot.slane %v3915, 1
    %v3917 = vmax.f32 %v3915, %v3916
    %v3918 = vsel %vm3154, %v2851, -inf
    %v3919 = vrot.slane %v3918, 4
    %v3920 = vmax.f32 %v3918, %v3919
    %v3921 = vrot.slane %v3920, 2
    %v3922 = vmax.f32 %v3920, %v3921
    %v3923 = vrot.slane %v3922, 1
    %v3924 = vmax.f32 %v3922, %v3923
    %v3925 = vsel %vm3154, %v2852, -inf
    %v3926 = vrot.slane %v3925, 4
    %v3927 = vmax.f32 %v3925, %v3926
    %v3928 = vrot.slane %v3927, 2
    %v3929 = vmax.f32 %v3927, %v3928
    %v3930 = vrot.slane %v3929, 1
    %v3931 = vmax.f32 %v3929, %v3930
    %v3932 = vsel %vm3154, %v2853, -inf
    %v3933 = vrot.slane %v3932, 4
    %v3934 = vmax.f32 %v3932, %v3933
    %v3935 = vrot.slane %v3934, 2
    %v3936 = vmax.f32 %v3934, %v3935
    %v3937 = vrot.slane %v3936, 1
    %v3938 = vmax.f32 %v3936, %v3937
    %v3939 = vsel %vm3154, %v2670, -inf
    %v3940 = vrot.slane %v3939, 4
    %v3941 = vmax.f32 %v3939, %v3940
    %v3942 = vrot.slane %v3941, 2
    %v3943 = vmax.f32 %v3941, %v3942
    %v3944 = vrot.slane %v3943, 1
    %v3945 = vmax.f32 %v3943, %v3944
    %v3946 = vsel %vm3154, %v2854, -inf
    %v3947 = vrot.slane %v3946, 4
    %v3948 = vmax.f32 %v3946, %v3947
    %v3949 = vrot.slane %v3948, 2
    %v3950 = vmax.f32 %v3948, %v3949
    %v3951 = vrot.slane %v3950, 1
    %v3952 = vmax.f32 %v3950, %v3951
    %v3953 = vsel %vm3154, %v2855, -inf
    %v3954 = vrot.slane %v3953, 4
    %v3955 = vmax.f32 %v3953, %v3954
    %v3956 = vrot.slane %v3955, 2
    %v3957 = vmax.f32 %v3955, %v3956
    %v3958 = vrot.slane %v3957, 1
    %v3959 = vmax.f32 %v3957, %v3958
    %v3960 = vsel %vm3154, %v2856, -inf
    %v3961 = vrot.slane %v3960, 4
    %v3962 = vmax.f32 %v3960, %v3961
    %v3963 = vrot.slane %v3962, 2
    %v3964 = vmax.f32 %v3962, %v3963
    %v3965 = vrot.slane %v3964, 1
    %v3966 = vmax.f32 %v3964, %v3965
    %v3967 = vsel %vm3154, %v2671, -inf
    %v3968 = vrot.slane %v3967, 4
    %v3969 = vmax.f32 %v3967, %v3968
    %v3970 = vrot.slane %v3969, 2
    %v3971 = vmax.f32 %v3969, %v3970
    %v3972 = vrot.slane %v3971, 1
    %v3973 = vmax.f32 %v3971, %v3972
    %v3974 = vsel %vm3154, %v2857, -inf
    %v3975 = vrot.slane %v3974, 4
    %v3976 = vmax.f32 %v3974, %v3975
    %v3977 = vrot.slane %v3976, 2
    %v3978 = vmax.f32 %v3976, %v3977
    %v3979 = vrot.slane %v3978, 1
    %v3980 = vmax.f32 %v3978, %v3979
    %v3981 = vsel %vm3154, %v2858, -inf
    %v3982 = vrot.slane %v3981, 4
    %v3983 = vmax.f32 %v3981, %v3982
    %v3984 = vrot.slane %v3983, 2
    %v3985 = vmax.f32 %v3983, %v3984
    %v3986 = vrot.slane %v3985, 1
    %v3987 = vmax.f32 %v3985, %v3986
    %v3988 = vsel %vm3154, %v2859, -inf
    %v3989 = vrot.slane %v3988, 4
    %v3990 = vmax.f32 %v3988, %v3989
    %v3991 = vrot.slane %v3990, 2
    %v3992 = vmax.f32 %v3990, %v3991
    %v3993 = vrot.slane %v3992, 1
    %v3994 = vmax.f32 %v3992, %v3993
    %v3995 = vsel %vm3154, %v2672, -inf
    %v3996 = vrot.slane %v3995, 4
    %v3997 = vmax.f32 %v3995, %v3996
    %v3998 = vrot.slane %v3997, 2
    %v3999 = vmax.f32 %v3997, %v3998
    %v4000 = vrot.slane %v3999, 1
    %v4001 = vmax.f32 %v3999, %v4000
    %v4002 = vsel %vm3154, %v2860, -inf
    %v4003 = vrot.slane %v4002, 4
    %v4004 = vmax.f32 %v4002, %v4003
    %v4005 = vrot.slane %v4004, 2
    %v4006 = vmax.f32 %v4004, %v4005
    %v4007 = vrot.slane %v4006, 1
    %v4008 = vmax.f32 %v4006, %v4007
    %v4009 = vsel %vm3154, %v2861, -inf
    %v4010 = vrot.slane %v4009, 4
    %v4011 = vmax.f32 %v4009, %v4010
    %v4012 = vrot.slane %v4011, 2
    %v4013 = vmax.f32 %v4011, %v4012
    %v4014 = vrot.slane %v4013, 1
    %v4015 = vmax.f32 %v4013, %v4014
    %v4016 = vsel %vm3154, %v2862, -inf
    %v4017 = vrot.slane %v4016, 4
    %v4018 = vmax.f32 %v4016, %v4017
    %v4019 = vrot.slane %v4018, 2
    %v4020 = vmax.f32 %v4018, %v4019
    %v4021 = vrot.slane %v4020, 1
    %v4022 = vmax.f32 %v4020, %v4021
    %v4023 = vsel %vm3154, %v2673, -inf
    %v4024 = vrot.slane %v4023, 4
    %v4025 = vmax.f32 %v4023, %v4024
    %v4026 = vrot.slane %v4025, 2
    %v4027 = vmax.f32 %v4025, %v4026
    %v4028 = vrot.slane %v4027, 1
    %v4029 = vmax.f32 %v4027, %v4028
    %v4030 = vsel %vm3154, %v2863, -inf
    %v4031 = vrot.slane %v4030, 4
    %v4032 = vmax.f32 %v4030, %v4031
    %v4033 = vrot.slane %v4032, 2
    %v4034 = vmax.f32 %v4032, %v4033
    %v4035 = vrot.slane %v4034, 1
    %v4036 = vmax.f32 %v4034, %v4035
    %v4037 = vsel %vm3154, %v2864, -inf
    %v4038 = vrot.slane %v4037, 4
    %v4039 = vmax.f32 %v4037, %v4038
    %v4040 = vrot.slane %v4039, 2
    %v4041 = vmax.f32 %v4039, %v4040
    %v4042 = vrot.slane %v4041, 1
    %v4043 = vmax.f32 %v4041, %v4042
    %v4044 = vsel %vm3154, %v2865, -inf
    %v4045 = vrot.slane %v4044, 4
    %v4046 = vmax.f32 %v4044, %v4045
    %v4047 = vrot.slane %v4046, 2
    %v4048 = vmax.f32 %v4046, %v4047
    %v4049 = vrot.slane %v4048, 1
    %v4050 = vmax.f32 %v4048, %v4049
    %v4051 = vsel %vm3154, %v2674, -inf
    %v4052 = vrot.slane %v4051, 4
    %v4053 = vmax.f32 %v4051, %v4052
    %v4054 = vrot.slane %v4053, 2
    %v4055 = vmax.f32 %v4053, %v4054
    %v4056 = vrot.slane %v4055, 1
    %v4057 = vmax.f32 %v4055, %v4056
    %v4058 = vsel %vm3154, %v2866, -inf
    %v4059 = vrot.slane %v4058, 4
    %v4060 = vmax.f32 %v4058, %v4059
    %v4061 = vrot.slane %v4060, 2
    %v4062 = vmax.f32 %v4060, %v4061
    %v4063 = vrot.slane %v4062, 1
    %v4064 = vmax.f32 %v4062, %v4063
    %v4065 = vsel %vm3154, %v2867, -inf
    %v4066 = vrot.slane %v4065, 4
    %v4067 = vmax.f32 %v4065, %v4066
    %v4068 = vrot.slane %v4067, 2
    %v4069 = vmax.f32 %v4067, %v4068
    %v4070 = vrot.slane %v4069, 1
    %v4071 = vmax.f32 %v4069, %v4070
    %v4072 = vsel %vm3154, %v2868, -inf
    %v4073 = vrot.slane %v4072, 4
    %v4074 = vmax.f32 %v4072, %v4073
    %v4075 = vrot.slane %v4074, 2
    %v4076 = vmax.f32 %v4074, %v4075
    %v4077 = vrot.slane %v4076, 1
    %v4078 = vmax.f32 %v4076, %v4077
    %v4079 = vsel %vm3154, %v2675, -inf
    %v4080 = vrot.slane %v4079, 4
    %v4081 = vmax.f32 %v4079, %v4080
    %v4082 = vrot.slane %v4081, 2
    %v4083 = vmax.f32 %v4081, %v4082
    %v4084 = vrot.slane %v4083, 1
    %v4085 = vmax.f32 %v4083, %v4084
    %v4086 = vsel %vm3154, %v2869, -inf
    %v4087 = vrot.slane %v4086, 4
    %v4088 = vmax.f32 %v4086, %v4087
    %v4089 = vrot.slane %v4088, 2
    %v4090 = vmax.f32 %v4088, %v4089
    %v4091 = vrot.slane %v4090, 1
    %v4092 = vmax.f32 %v4090, %v4091
    %v4093 = vsel %vm3154, %v2870, -inf
    %v4094 = vrot.slane %v4093, 4
    %v4095 = vmax.f32 %v4093, %v4094
    %v4096 = vrot.slane %v4095, 2
    %v4097 = vmax.f32 %v4095, %v4096
    %v4098 = vrot.slane %v4097, 1
    %v4099 = vmax.f32 %v4097, %v4098
    %v4100 = vsel %vm3154, %v2871, -inf
    %v4101 = vrot.slane %v4100, 4
    %v4102 = vmax.f32 %v4100, %v4101
    %v4103 = vrot.slane %v4102, 2
    %v4104 = vmax.f32 %v4102, %v4103
    %v4105 = vrot.slane %v4104, 1
    %v4106 = vmax.f32 %v4104, %v4105
    %v4107 = vsel %vm3154, %v2676, -inf
    %v4108 = vrot.slane %v4107, 4
    %v4109 = vmax.f32 %v4107, %v4108
    %v4110 = vrot.slane %v4109, 2
    %v4111 = vmax.f32 %v4109, %v4110
    %v4112 = vrot.slane %v4111, 1
    %v4113 = vmax.f32 %v4111, %v4112
    %v4114 = vsel %vm3154, %v2872, -inf
    %v4115 = vrot.slane %v4114, 4
    %v4116 = vmax.f32 %v4114, %v4115
    %v4117 = vrot.slane %v4116, 2
    %v4118 = vmax.f32 %v4116, %v4117
    %v4119 = vrot.slane %v4118, 1
    %v4120 = vmax.f32 %v4118, %v4119
    %v4121 = vsel %vm3154, %v2873, -inf
    %v4122 = vrot.slane %v4121, 4
    %v4123 = vmax.f32 %v4121, %v4122
    %v4124 = vrot.slane %v4123, 2
    %v4125 = vmax.f32 %v4123, %v4124
    %v4126 = vrot.slane %v4125, 1
    %v4127 = vmax.f32 %v4125, %v4126
    %v4128 = vsel %vm3154, %v2874, -inf
    %v4129 = vrot.slane %v4128, 4
    %v4130 = vmax.f32 %v4128, %v4129
    %v4131 = vrot.slane %v4130, 2
    %v4132 = vmax.f32 %v4130, %v4131
    %v4133 = vrot.slane %v4132, 1
    %v4134 = vmax.f32 %v4132, %v4133
    %v4135 = vsel %vm3154, %v2677, -inf
    %v4136 = vrot.slane %v4135, 4
    %v4137 = vmax.f32 %v4135, %v4136
    %v4138 = vrot.slane %v4137, 2
    %v4139 = vmax.f32 %v4137, %v4138
    %v4140 = vrot.slane %v4139, 1
    %v4141 = vmax.f32 %v4139, %v4140
    %v4142 = vsel %vm3154, %v2875, -inf
    %v4143 = vrot.slane %v4142, 4
    %v4144 = vmax.f32 %v4142, %v4143
    %v4145 = vrot.slane %v4144, 2
    %v4146 = vmax.f32 %v4144, %v4145
    %v4147 = vrot.slane %v4146, 1
    %v4148 = vmax.f32 %v4146, %v4147
    %v4149 = vsel %vm3154, %v2876, -inf
    %v4150 = vrot.slane %v4149, 4
    %v4151 = vmax.f32 %v4149, %v4150
    %v4152 = vrot.slane %v4151, 2
    %v4153 = vmax.f32 %v4151, %v4152
    %v4154 = vrot.slane %v4153, 1
    %v4155 = vmax.f32 %v4153, %v4154
    %v4156 = vsel %vm3154, %v2877, -inf
    %v4157 = vrot.slane %v4156, 4
    %v4158 = vmax.f32 %v4156, %v4157
    %v4159 = vrot.slane %v4158, 2
    %v4160 = vmax.f32 %v4158, %v4159
    %v4161 = vrot.slane %v4160, 1
    %v4162 = vmax.f32 %v4160, %v4161
    %v4163 = vsel %vm3154, %v2678, -inf
    %v4164 = vrot.slane %v4163, 4
    %v4165 = vmax.f32 %v4163, %v4164
    %v4166 = vrot.slane %v4165, 2
    %v4167 = vmax.f32 %v4165, %v4166
    %v4168 = vrot.slane %v4167, 1
    %v4169 = vmax.f32 %v4167, %v4168
    %v4170 = vsel %vm3154, %v2878, -inf
    %v4171 = vrot.slane %v4170, 4
    %v4172 = vmax.f32 %v4170, %v4171
    %v4173 = vrot.slane %v4172, 2
    %v4174 = vmax.f32 %v4172, %v4173
    %v4175 = vrot.slane %v4174, 1
    %v4176 = vmax.f32 %v4174, %v4175
    %v4177 = vsel %vm3154, %v2879, -inf
    %v4178 = vrot.slane %v4177, 4
    %v4179 = vmax.f32 %v4177, %v4178
    %v4180 = vrot.slane %v4179, 2
    %v4181 = vmax.f32 %v4179, %v4180
    %v4182 = vrot.slane %v4181, 1
    %v4183 = vmax.f32 %v4181, %v4182
    %v4184 = vsel %vm3154, %v2880, -inf
    %v4185 = vrot.slane %v4184, 4
    %v4186 = vmax.f32 %v4184, %v4185
    %v4187 = vrot.slane %v4186, 2
    %v4188 = vmax.f32 %v4186, %v4187
    %v4189 = vrot.slane %v4188, 1
    %v4190 = vmax.f32 %v4188, %v4189
    %v4191 = vsel %vm3154, %v2679, -inf
    %v4192 = vrot.slane %v4191, 4
    %v4193 = vmax.f32 %v4191, %v4192
    %v4194 = vrot.slane %v4193, 2
    %v4195 = vmax.f32 %v4193, %v4194
    %v4196 = vrot.slane %v4195, 1
    %v4197 = vmax.f32 %v4195, %v4196
    %v4198 = vsel %vm3154, %v2881, -inf
    %v4199 = vrot.slane %v4198, 4
    %v4200 = vmax.f32 %v4198, %v4199
    %v4201 = vrot.slane %v4200, 2
    %v4202 = vmax.f32 %v4200, %v4201
    %v4203 = vrot.slane %v4202, 1
    %v4204 = vmax.f32 %v4202, %v4203
    %v4205 = vsel %vm3154, %v2882, -inf
    %v4206 = vrot.slane %v4205, 4
    %v4207 = vmax.f32 %v4205, %v4206
    %v4208 = vrot.slane %v4207, 2
    %v4209 = vmax.f32 %v4207, %v4208
    %v4210 = vrot.slane %v4209, 1
    %v4211 = vmax.f32 %v4209, %v4210
    %v4212 = vsel %vm3154, %v2883, -inf
    %v4213 = vrot.slane %v4212, 4
    %v4214 = vmax.f32 %v4212, %v4213
    %v4215 = vrot.slane %v4214, 2
    %v4216 = vmax.f32 %v4214, %v4215
    %v4217 = vrot.slane %v4216, 1
    %v4218 = vmax.f32 %v4216, %v4217
    %v4219 = vsel %vm3154, %v2680, -inf
    %v4220 = vrot.slane %v4219, 4
    %v4221 = vmax.f32 %v4219, %v4220
    %v4222 = vrot.slane %v4221, 2
    %v4223 = vmax.f32 %v4221, %v4222
    %v4224 = vrot.slane %v4223, 1
    %v4225 = vmax.f32 %v4223, %v4224
    %v4226 = vsel %vm3154, %v2884, -inf
    %v4227 = vrot.slane %v4226, 4
    %v4228 = vmax.f32 %v4226, %v4227
    %v4229 = vrot.slane %v4228, 2
    %v4230 = vmax.f32 %v4228, %v4229
    %v4231 = vrot.slane %v4230, 1
    %v4232 = vmax.f32 %v4230, %v4231
    %v4233 = vsel %vm3154, %v2885, -inf
    %v4234 = vrot.slane %v4233, 4
    %v4235 = vmax.f32 %v4233, %v4234
    %v4236 = vrot.slane %v4235, 2
    %v4237 = vmax.f32 %v4235, %v4236
    %v4238 = vrot.slane %v4237, 1
    %v4239 = vmax.f32 %v4237, %v4238
    %v4240 = vsel %vm3154, %v2886, -inf
    %v4241 = vrot.slane %v4240, 4
    %v4242 = vmax.f32 %v4240, %v4241
    %v4243 = vrot.slane %v4242, 2
    %v4244 = vmax.f32 %v4242, %v4243
    %v4245 = vrot.slane %v4244, 1
    %v4246 = vmax.f32 %v4244, %v4245
    %v4247 = vsel %vm3154, %v2681, -inf
    %v4248 = vrot.slane %v4247, 4
    %v4249 = vmax.f32 %v4247, %v4248
    %v4250 = vrot.slane %v4249, 2
    %v4251 = vmax.f32 %v4249, %v4250
    %v4252 = vrot.slane %v4251, 1
    %v4253 = vmax.f32 %v4251, %v4252
    %v4254 = vsel %vm3154, %v2887, -inf
    %v4255 = vrot.slane %v4254, 4
    %v4256 = vmax.f32 %v4254, %v4255
    %v4257 = vrot.slane %v4256, 2
    %v4258 = vmax.f32 %v4256, %v4257
    %v4259 = vrot.slane %v4258, 1
    %v4260 = vmax.f32 %v4258, %v4259
    %v4261 = vsel %vm3154, %v2888, -inf
    %v4262 = vrot.slane %v4261, 4
    %v4263 = vmax.f32 %v4261, %v4262
    %v4264 = vrot.slane %v4263, 2
    %v4265 = vmax.f32 %v4263, %v4264
    %v4266 = vrot.slane %v4265, 1
    %v4267 = vmax.f32 %v4265, %v4266
    %v4268 = vsel %vm3154, %v2889, -inf
    %v4269 = vrot.slane %v4268, 4
    %v4270 = vmax.f32 %v4268, %v4269
    %v4271 = vrot.slane %v4270, 2
    %v4272 = vmax.f32 %v4270, %v4271
    %v4273 = vrot.slane %v4272, 1
    %v4274 = vmax.f32 %v4272, %v4273
    %v4275 = vsel %vm3154, %v2682, -inf
    %v4276 = vrot.slane %v4275, 4
    %v4277 = vmax.f32 %v4275, %v4276
    %v4278 = vrot.slane %v4277, 2
    %v4279 = vmax.f32 %v4277, %v4278
    %v4280 = vrot.slane %v4279, 1
    %v4281 = vmax.f32 %v4279, %v4280
    %v4282 = vsel %vm3154, %v2890, -inf
    %v4283 = vrot.slane %v4282, 4
    %v4284 = vmax.f32 %v4282, %v4283
    %v4285 = vrot.slane %v4284, 2
    %v4286 = vmax.f32 %v4284, %v4285
    %v4287 = vrot.slane %v4286, 1
    %v4288 = vmax.f32 %v4286, %v4287
    %v4289 = vsel %vm3154, %v2891, -inf
    %v4290 = vrot.slane %v4289, 4
    %v4291 = vmax.f32 %v4289, %v4290
    %v4292 = vrot.slane %v4291, 2
    %v4293 = vmax.f32 %v4291, %v4292
    %v4294 = vrot.slane %v4293, 1
    %v4295 = vmax.f32 %v4293, %v4294
    %v4296 = vsel %vm3154, %v2892, -inf
    %v4297 = vrot.slane %v4296, 4
    %v4298 = vmax.f32 %v4296, %v4297
    %v4299 = vrot.slane %v4298, 2
    %v4300 = vmax.f32 %v4298, %v4299
    %v4301 = vrot.slane %v4300, 1
    %v4302 = vmax.f32 %v4300, %v4301
    %v4303 = vsel %vm3154, %v2683, -inf
    %v4304 = vrot.slane %v4303, 4
    %v4305 = vmax.f32 %v4303, %v4304
    %v4306 = vrot.slane %v4305, 2
    %v4307 = vmax.f32 %v4305, %v4306
    %v4308 = vrot.slane %v4307, 1
    %v4309 = vmax.f32 %v4307, %v4308
    %v4310 = vsel %vm3154, %v2893, -inf
    %v4311 = vrot.slane %v4310, 4
    %v4312 = vmax.f32 %v4310, %v4311
    %v4313 = vrot.slane %v4312, 2
    %v4314 = vmax.f32 %v4312, %v4313
    %v4315 = vrot.slane %v4314, 1
    %v4316 = vmax.f32 %v4314, %v4315
    %v4317 = vsel %vm3154, %v2894, -inf
    %v4318 = vrot.slane %v4317, 4
    %v4319 = vmax.f32 %v4317, %v4318
    %v4320 = vrot.slane %v4319, 2
    %v4321 = vmax.f32 %v4319, %v4320
    %v4322 = vrot.slane %v4321, 1
    %v4323 = vmax.f32 %v4321, %v4322
    %v4324 = vsel %vm3154, %v2895, -inf
    %v4325 = vrot.slane %v4324, 4
    %v4326 = vmax.f32 %v4324, %v4325
    %v4327 = vrot.slane %v4326, 2
    %v4328 = vmax.f32 %v4326, %v4327
    %v4329 = vrot.slane %v4328, 1
    %v4330 = vmax.f32 %v4328, %v4329
    %v4331 = vsel %vm3154, %v2684, -inf
    %v4332 = vrot.slane %v4331, 4
    %v4333 = vmax.f32 %v4331, %v4332
    %v4334 = vrot.slane %v4333, 2
    %v4335 = vmax.f32 %v4333, %v4334
    %v4336 = vrot.slane %v4335, 1
    %v4337 = vmax.f32 %v4335, %v4336
    %v4338 = vsel %vm3154, %v2896, -inf
    %v4339 = vrot.slane %v4338, 4
    %v4340 = vmax.f32 %v4338, %v4339
    %v4341 = vrot.slane %v4340, 2
    %v4342 = vmax.f32 %v4340, %v4341
    %v4343 = vrot.slane %v4342, 1
    %v4344 = vmax.f32 %v4342, %v4343
    %v4345 = vsel %vm3154, %v2897, -inf
    %v4346 = vrot.slane %v4345, 4
    %v4347 = vmax.f32 %v4345, %v4346
    %v4348 = vrot.slane %v4347, 2
    %v4349 = vmax.f32 %v4347, %v4348
    %v4350 = vrot.slane %v4349, 1
    %v4351 = vmax.f32 %v4349, %v4350
    %v4352 = vsel %vm3154, %v2898, -inf
    %v4353 = vrot.slane %v4352, 4
    %v4354 = vmax.f32 %v4352, %v4353
    %v4355 = vrot.slane %v4354, 2
    %v4356 = vmax.f32 %v4354, %v4355
    %v4357 = vrot.slane %v4356, 1
    %v4358 = vmax.f32 %v4356, %v4357
    %v4359 = vsel %vm3154, %v2685, -inf
    %v4360 = vrot.slane %v4359, 4
    %v4361 = vmax.f32 %v4359, %v4360
    %v4362 = vrot.slane %v4361, 2
    %v4363 = vmax.f32 %v4361, %v4362
    %v4364 = vrot.slane %v4363, 1
    %v4365 = vmax.f32 %v4363, %v4364
    %v4366 = vsel %vm3154, %v2899, -inf
    %v4367 = vrot.slane %v4366, 4
    %v4368 = vmax.f32 %v4366, %v4367
    %v4369 = vrot.slane %v4368, 2
    %v4370 = vmax.f32 %v4368, %v4369
    %v4371 = vrot.slane %v4370, 1
    %v4372 = vmax.f32 %v4370, %v4371
    %v4373 = vsel %vm3154, %v2900, -inf
    %v4374 = vrot.slane %v4373, 4
    %v4375 = vmax.f32 %v4373, %v4374
    %v4376 = vrot.slane %v4375, 2
    %v4377 = vmax.f32 %v4375, %v4376
    %v4378 = vrot.slane %v4377, 1
    %v4379 = vmax.f32 %v4377, %v4378
    %v4380 = vsel %vm3154, %v2901, -inf
    %v4381 = vrot.slane %v4380, 4
    %v4382 = vmax.f32 %v4380, %v4381
    %v4383 = vrot.slane %v4382, 2
    %v4384 = vmax.f32 %v4382, %v4383
    %v4385 = vrot.slane %v4384, 1
    %v4386 = vmax.f32 %v4384, %v4385
    %v4387 = vsel %vm3154, %v2686, -inf
    %v4388 = vrot.slane %v4387, 4
    %v4389 = vmax.f32 %v4387, %v4388
    %v4390 = vrot.slane %v4389, 2
    %v4391 = vmax.f32 %v4389, %v4390
    %v4392 = vrot.slane %v4391, 1
    %v4393 = vmax.f32 %v4391, %v4392
    %v4394 = vsel %vm3154, %v2902, -inf
    %v4395 = vrot.slane %v4394, 4
    %v4396 = vmax.f32 %v4394, %v4395
    %v4397 = vrot.slane %v4396, 2
    %v4398 = vmax.f32 %v4396, %v4397
    %v4399 = vrot.slane %v4398, 1
    %v4400 = vmax.f32 %v4398, %v4399
    %v4401 = vsel %vm3154, %v2903, -inf
    %v4402 = vrot.slane %v4401, 4
    %v4403 = vmax.f32 %v4401, %v4402
    %v4404 = vrot.slane %v4403, 2
    %v4405 = vmax.f32 %v4403, %v4404
    %v4406 = vrot.slane %v4405, 1
    %v4407 = vmax.f32 %v4405, %v4406
    %v4408 = vsel %vm3154, %v2904, -inf
    %v4409 = vrot.slane %v4408, 4
    %v4410 = vmax.f32 %v4408, %v4409
    %v4411 = vrot.slane %v4410, 2
    %v4412 = vmax.f32 %v4410, %v4411
    %v4413 = vrot.slane %v4412, 1
    %v4414 = vmax.f32 %v4412, %v4413
    %v4415 = vsel %vm3154, %v2687, -inf
    %v4416 = vrot.slane %v4415, 4
    %v4417 = vmax.f32 %v4415, %v4416
    %v4418 = vrot.slane %v4417, 2
    %v4419 = vmax.f32 %v4417, %v4418
    %v4420 = vrot.slane %v4419, 1
    %v4421 = vmax.f32 %v4419, %v4420
    %v4422 = vsel %vm3154, %v2905, -inf
    %v4423 = vrot.slane %v4422, 4
    %v4424 = vmax.f32 %v4422, %v4423
    %v4425 = vrot.slane %v4424, 2
    %v4426 = vmax.f32 %v4424, %v4425
    %v4427 = vrot.slane %v4426, 1
    %v4428 = vmax.f32 %v4426, %v4427
    %v4429 = vsel %vm3154, %v2906, -inf
    %v4430 = vrot.slane %v4429, 4
    %v4431 = vmax.f32 %v4429, %v4430
    %v4432 = vrot.slane %v4431, 2
    %v4433 = vmax.f32 %v4431, %v4432
    %v4434 = vrot.slane %v4433, 1
    %v4435 = vmax.f32 %v4433, %v4434
    %v4436 = vsel %vm3154, %v2907, -inf
    %v4437 = vrot.slane %v4436, 4
    %v4438 = vmax.f32 %v4436, %v4437
    %v4439 = vrot.slane %v4438, 2
    %v4440 = vmax.f32 %v4438, %v4439
    %v4441 = vrot.slane %v4440, 1
    %v4442 = vmax.f32 %v4440, %v4441
    %v4443 = vsel %vm3154, %v2688, -inf
    %v4444 = vrot.slane %v4443, 4
    %v4445 = vmax.f32 %v4443, %v4444
    %v4446 = vrot.slane %v4445, 2
    %v4447 = vmax.f32 %v4445, %v4446
    %v4448 = vrot.slane %v4447, 1
    %v4449 = vmax.f32 %v4447, %v4448
    %v4450 = vsel %vm3154, %v2908, -inf
    %v4451 = vrot.slane %v4450, 4
    %v4452 = vmax.f32 %v4450, %v4451
    %v4453 = vrot.slane %v4452, 2
    %v4454 = vmax.f32 %v4452, %v4453
    %v4455 = vrot.slane %v4454, 1
    %v4456 = vmax.f32 %v4454, %v4455
    %v4457 = vsel %vm3154, %v2909, -inf
    %v4458 = vrot.slane %v4457, 4
    %v4459 = vmax.f32 %v4457, %v4458
    %v4460 = vrot.slane %v4459, 2
    %v4461 = vmax.f32 %v4459, %v4460
    %v4462 = vrot.slane %v4461, 1
    %v4463 = vmax.f32 %v4461, %v4462
    %v4464 = vsel %vm3154, %v2910, -inf
    %v4465 = vrot.slane %v4464, 4
    %v4466 = vmax.f32 %v4464, %v4465
    %v4467 = vrot.slane %v4466, 2
    %v4468 = vmax.f32 %v4466, %v4467
    %v4469 = vrot.slane %v4468, 1
    %v4470 = vmax.f32 %v4468, %v4469
    %v4471 = vsel %vm3154, %v2689, -inf
    %v4472 = vrot.slane %v4471, 4
    %v4473 = vmax.f32 %v4471, %v4472
    %v4474 = vrot.slane %v4473, 2
    %v4475 = vmax.f32 %v4473, %v4474
    %v4476 = vrot.slane %v4475, 1
    %v4477 = vmax.f32 %v4475, %v4476
    %v4478 = vsel %vm3154, %v2911, -inf
    %v4479 = vrot.slane %v4478, 4
    %v4480 = vmax.f32 %v4478, %v4479
    %v4481 = vrot.slane %v4480, 2
    %v4482 = vmax.f32 %v4480, %v4481
    %v4483 = vrot.slane %v4482, 1
    %v4484 = vmax.f32 %v4482, %v4483
    %v4485 = vsel %vm3154, %v2912, -inf
    %v4486 = vrot.slane %v4485, 4
    %v4487 = vmax.f32 %v4485, %v4486
    %v4488 = vrot.slane %v4487, 2
    %v4489 = vmax.f32 %v4487, %v4488
    %v4490 = vrot.slane %v4489, 1
    %v4491 = vmax.f32 %v4489, %v4490
    %v4492 = vsel %vm3154, %v2913, -inf
    %v4493 = vrot.slane %v4492, 4
    %v4494 = vmax.f32 %v4492, %v4493
    %v4495 = vrot.slane %v4494, 2
    %v4496 = vmax.f32 %v4494, %v4495
    %v4497 = vrot.slane %v4496, 1
    %v4498 = vmax.f32 %v4496, %v4497
    %v4499 = vsel %vm3154, %v2690, -inf
    %v4500 = vrot.slane %v4499, 4
    %v4501 = vmax.f32 %v4499, %v4500
    %v4502 = vrot.slane %v4501, 2
    %v4503 = vmax.f32 %v4501, %v4502
    %v4504 = vrot.slane %v4503, 1
    %v4505 = vmax.f32 %v4503, %v4504
    %v4506 = vsel %vm3154, %v2914, -inf
    %v4507 = vrot.slane %v4506, 4
    %v4508 = vmax.f32 %v4506, %v4507
    %v4509 = vrot.slane %v4508, 2
    %v4510 = vmax.f32 %v4508, %v4509
    %v4511 = vrot.slane %v4510, 1
    %v4512 = vmax.f32 %v4510, %v4511
    %v4513 = vsel %vm3154, %v2915, -inf
    %v4514 = vrot.slane %v4513, 4
    %v4515 = vmax.f32 %v4513, %v4514
    %v4516 = vrot.slane %v4515, 2
    %v4517 = vmax.f32 %v4515, %v4516
    %v4518 = vrot.slane %v4517, 1
    %v4519 = vmax.f32 %v4517, %v4518
    %v4520 = vsel %vm3154, %v2916, -inf
    %v4521 = vrot.slane %v4520, 4
    %v4522 = vmax.f32 %v4520, %v4521
    %v4523 = vrot.slane %v4522, 2
    %v4524 = vmax.f32 %v4522, %v4523
    %v4525 = vrot.slane %v4524, 1
    %v4526 = vmax.f32 %v4524, %v4525
    %v4527 = vsel %vm3154, %v2691, -inf
    %v4528 = vrot.slane %v4527, 4
    %v4529 = vmax.f32 %v4527, %v4528
    %v4530 = vrot.slane %v4529, 2
    %v4531 = vmax.f32 %v4529, %v4530
    %v4532 = vrot.slane %v4531, 1
    %v4533 = vmax.f32 %v4531, %v4532
    %v4534 = vsel %vm3154, %v2917, -inf
    %v4535 = vrot.slane %v4534, 4
    %v4536 = vmax.f32 %v4534, %v4535
    %v4537 = vrot.slane %v4536, 2
    %v4538 = vmax.f32 %v4536, %v4537
    %v4539 = vrot.slane %v4538, 1
    %v4540 = vmax.f32 %v4538, %v4539
    %v4541 = vsel %vm3154, %v2918, -inf
    %v4542 = vrot.slane %v4541, 4
    %v4543 = vmax.f32 %v4541, %v4542
    %v4544 = vrot.slane %v4543, 2
    %v4545 = vmax.f32 %v4543, %v4544
    %v4546 = vrot.slane %v4545, 1
    %v4547 = vmax.f32 %v4545, %v4546
    %v4548 = vsel %vm3154, %v2919, -inf
    %v4549 = vrot.slane %v4548, 4
    %v4550 = vmax.f32 %v4548, %v4549
    %v4551 = vrot.slane %v4550, 2
    %v4552 = vmax.f32 %v4550, %v4551
    %v4553 = vrot.slane %v4552, 1
    %v4554 = vmax.f32 %v4552, %v4553
    %v4555 = vsel %vm3154, %v2692, -inf
    %v4556 = vrot.slane %v4555, 4
    %v4557 = vmax.f32 %v4555, %v4556
    %v4558 = vrot.slane %v4557, 2
    %v4559 = vmax.f32 %v4557, %v4558
    %v4560 = vrot.slane %v4559, 1
    %v4561 = vmax.f32 %v4559, %v4560
    %v4562 = vsel %vm3154, %v2920, -inf
    %v4563 = vrot.slane %v4562, 4
    %v4564 = vmax.f32 %v4562, %v4563
    %v4565 = vrot.slane %v4564, 2
    %v4566 = vmax.f32 %v4564, %v4565
    %v4567 = vrot.slane %v4566, 1
    %v4568 = vmax.f32 %v4566, %v4567
    %v4569 = vsel %vm3154, %v2921, -inf
    %v4570 = vrot.slane %v4569, 4
    %v4571 = vmax.f32 %v4569, %v4570
    %v4572 = vrot.slane %v4571, 2
    %v4573 = vmax.f32 %v4571, %v4572
    %v4574 = vrot.slane %v4573, 1
    %v4575 = vmax.f32 %v4573, %v4574
    %v4576 = vsel %vm3154, %v2922, -inf
    %v4577 = vrot.slane %v4576, 4
    %v4578 = vmax.f32 %v4576, %v4577
    %v4579 = vrot.slane %v4578, 2
    %v4580 = vmax.f32 %v4578, %v4579
    %v4581 = vrot.slane %v4580, 1
    %v4582 = vmax.f32 %v4580, %v4581
    %v4583 = vsel %vm3154, %v2693, -inf
    %v4584 = vrot.slane %v4583, 4
    %v4585 = vmax.f32 %v4583, %v4584
    %v4586 = vrot.slane %v4585, 2
    %v4587 = vmax.f32 %v4585, %v4586
    %v4588 = vrot.slane %v4587, 1
    %v4589 = vmax.f32 %v4587, %v4588
    %v4590 = vsel %vm3154, %v2923, -inf
    %v4591 = vrot.slane %v4590, 4
    %v4592 = vmax.f32 %v4590, %v4591
    %v4593 = vrot.slane %v4592, 2
    %v4594 = vmax.f32 %v4592, %v4593
    %v4595 = vrot.slane %v4594, 1
    %v4596 = vmax.f32 %v4594, %v4595
    %v4597 = vsel %vm3154, %v2924, -inf
    %v4598 = vrot.slane %v4597, 4
    %v4599 = vmax.f32 %v4597, %v4598
    %v4600 = vrot.slane %v4599, 2
    %v4601 = vmax.f32 %v4599, %v4600
    %v4602 = vrot.slane %v4601, 1
    %v4603 = vmax.f32 %v4601, %v4602
    %v4604 = vsel %vm3154, %v2925, -inf
    %v4605 = vrot.slane %v4604, 4
    %v4606 = vmax.f32 %v4604, %v4605
    %v4607 = vrot.slane %v4606, 2
    %v4608 = vmax.f32 %v4606, %v4607
    %v4609 = vrot.slane %v4608, 1
    %v4610 = vmax.f32 %v4608, %v4609
    %v4611 = vsel %vm3154, %v2694, -inf
    %v4612 = vrot.slane %v4611, 4
    %v4613 = vmax.f32 %v4611, %v4612
    %v4614 = vrot.slane %v4613, 2
    %v4615 = vmax.f32 %v4613, %v4614
    %v4616 = vrot.slane %v4615, 1
    %v4617 = vmax.f32 %v4615, %v4616
    %v4618 = vsel %vm3154, %v2926, -inf
    %v4619 = vrot.slane %v4618, 4
    %v4620 = vmax.f32 %v4618, %v4619
    %v4621 = vrot.slane %v4620, 2
    %v4622 = vmax.f32 %v4620, %v4621
    %v4623 = vrot.slane %v4622, 1
    %v4624 = vmax.f32 %v4622, %v4623
    %v4625 = vsel %vm3154, %v2927, -inf
    %v4626 = vrot.slane %v4625, 4
    %v4627 = vmax.f32 %v4625, %v4626
    %v4628 = vrot.slane %v4627, 2
    %v4629 = vmax.f32 %v4627, %v4628
    %v4630 = vrot.slane %v4629, 1
    %v4631 = vmax.f32 %v4629, %v4630
    %v4632 = vsel %vm3154, %v2928, -inf
    %v4633 = vrot.slane %v4632, 4
    %v4634 = vmax.f32 %v4632, %v4633
    %v4635 = vrot.slane %v4634, 2
    %v4636 = vmax.f32 %v4634, %v4635
    %v4637 = vrot.slane %v4636, 1
    %v4638 = vmax.f32 %v4636, %v4637
    %v4639 = vsel %vm3154, %v2695, -inf
    %v4640 = vrot.slane %v4639, 4
    %v4641 = vmax.f32 %v4639, %v4640
    %v4642 = vrot.slane %v4641, 2
    %v4643 = vmax.f32 %v4641, %v4642
    %v4644 = vrot.slane %v4643, 1
    %v4645 = vmax.f32 %v4643, %v4644
    %v4646 = vsel %vm3154, %v2929, -inf
    %v4647 = vrot.slane %v4646, 4
    %v4648 = vmax.f32 %v4646, %v4647
    %v4649 = vrot.slane %v4648, 2
    %v4650 = vmax.f32 %v4648, %v4649
    %v4651 = vrot.slane %v4650, 1
    %v4652 = vmax.f32 %v4650, %v4651
    %v4653 = vsel %vm3154, %v2930, -inf
    %v4654 = vrot.slane %v4653, 4
    %v4655 = vmax.f32 %v4653, %v4654
    %v4656 = vrot.slane %v4655, 2
    %v4657 = vmax.f32 %v4655, %v4656
    %v4658 = vrot.slane %v4657, 1
    %v4659 = vmax.f32 %v4657, %v4658
    %v4660 = vsel %vm3154, %v2931, -inf
    %v4661 = vrot.slane %v4660, 4
    %v4662 = vmax.f32 %v4660, %v4661
    %v4663 = vrot.slane %v4662, 2
    %v4664 = vmax.f32 %v4662, %v4663
    %v4665 = vrot.slane %v4664, 1
    %v4666 = vmax.f32 %v4664, %v4665
    %v4667 = vsel %vm3154, %v2696, -inf
    %v4668 = vrot.slane %v4667, 4
    %v4669 = vmax.f32 %v4667, %v4668
    %v4670 = vrot.slane %v4669, 2
    %v4671 = vmax.f32 %v4669, %v4670
    %v4672 = vrot.slane %v4671, 1
    %v4673 = vmax.f32 %v4671, %v4672
    %v4674 = vsel %vm3154, %v2932, -inf
    %v4675 = vrot.slane %v4674, 4
    %v4676 = vmax.f32 %v4674, %v4675
    %v4677 = vrot.slane %v4676, 2
    %v4678 = vmax.f32 %v4676, %v4677
    %v4679 = vrot.slane %v4678, 1
    %v4680 = vmax.f32 %v4678, %v4679
    %v4681 = vsel %vm3154, %v2933, -inf
    %v4682 = vrot.slane %v4681, 4
    %v4683 = vmax.f32 %v4681, %v4682
    %v4684 = vrot.slane %v4683, 2
    %v4685 = vmax.f32 %v4683, %v4684
    %v4686 = vrot.slane %v4685, 1
    %v4687 = vmax.f32 %v4685, %v4686
    %v4688 = vsel %vm3154, %v2934, -inf
    %v4689 = vrot.slane %v4688, 4
    %v4690 = vmax.f32 %v4688, %v4689
    %v4691 = vrot.slane %v4690, 2
    %v4692 = vmax.f32 %v4690, %v4691
    %v4693 = vrot.slane %v4692, 1
    %v4694 = vmax.f32 %v4692, %v4693
    %v4695 = vsel %vm3154, %v2697, -inf
    %v4696 = vrot.slane %v4695, 4
    %v4697 = vmax.f32 %v4695, %v4696
    %v4698 = vrot.slane %v4697, 2
    %v4699 = vmax.f32 %v4697, %v4698
    %v4700 = vrot.slane %v4699, 1
    %v4701 = vmax.f32 %v4699, %v4700
    %v4702 = vsel %vm3154, %v2935, -inf
    %v4703 = vrot.slane %v4702, 4
    %v4704 = vmax.f32 %v4702, %v4703
    %v4705 = vrot.slane %v4704, 2
    %v4706 = vmax.f32 %v4704, %v4705
    %v4707 = vrot.slane %v4706, 1
    %v4708 = vmax.f32 %v4706, %v4707
    %v4709 = vsel %vm3154, %v2936, -inf
    %v4710 = vrot.slane %v4709, 4
    %v4711 = vmax.f32 %v4709, %v4710
    %v4712 = vrot.slane %v4711, 2
    %v4713 = vmax.f32 %v4711, %v4712
    %v4714 = vrot.slane %v4713, 1
    %v4715 = vmax.f32 %v4713, %v4714
    %v4716 = vsel %vm3154, %v2937, -inf
    %v4717 = vrot.slane %v4716, 4
    %v4718 = vmax.f32 %v4716, %v4717
    %v4719 = vrot.slane %v4718, 2
    %v4720 = vmax.f32 %v4718, %v4719
    %v4721 = vrot.slane %v4720, 1
    %v4722 = vmax.f32 %v4720, %v4721
    %v4723 = vsel %vm3154, %v2698, -inf
    %v4724 = vrot.slane %v4723, 4
    %v4725 = vmax.f32 %v4723, %v4724
    %v4726 = vrot.slane %v4725, 2
    %v4727 = vmax.f32 %v4725, %v4726
    %v4728 = vrot.slane %v4727, 1
    %v4729 = vmax.f32 %v4727, %v4728
    %v4730 = vsel %vm3154, %v2938, -inf
    %v4731 = vrot.slane %v4730, 4
    %v4732 = vmax.f32 %v4730, %v4731
    %v4733 = vrot.slane %v4732, 2
    %v4734 = vmax.f32 %v4732, %v4733
    %v4735 = vrot.slane %v4734, 1
    %v4736 = vmax.f32 %v4734, %v4735
    %v4737 = vsel %vm3154, %v2939, -inf
    %v4738 = vrot.slane %v4737, 4
    %v4739 = vmax.f32 %v4737, %v4738
    %v4740 = vrot.slane %v4739, 2
    %v4741 = vmax.f32 %v4739, %v4740
    %v4742 = vrot.slane %v4741, 1
    %v4743 = vmax.f32 %v4741, %v4742
    %v4744 = vsel %vm3154, %v2940, -inf
    %v4745 = vrot.slane %v4744, 4
    %v4746 = vmax.f32 %v4744, %v4745
    %v4747 = vrot.slane %v4746, 2
    %v4748 = vmax.f32 %v4746, %v4747
    %v4749 = vrot.slane %v4748, 1
    %v4750 = vmax.f32 %v4748, %v4749
    %v4751 = vsel %vm3154, %v2699, -inf
    %v4752 = vrot.slane %v4751, 4
    %v4753 = vmax.f32 %v4751, %v4752
    %v4754 = vrot.slane %v4753, 2
    %v4755 = vmax.f32 %v4753, %v4754
    %v4756 = vrot.slane %v4755, 1
    %v4757 = vmax.f32 %v4755, %v4756
    %v4758 = vsel %vm3154, %v2941, -inf
    %v4759 = vrot.slane %v4758, 4
    %v4760 = vmax.f32 %v4758, %v4759
    %v4761 = vrot.slane %v4760, 2
    %v4762 = vmax.f32 %v4760, %v4761
    %v4763 = vrot.slane %v4762, 1
    %v4764 = vmax.f32 %v4762, %v4763
    %v4765 = vsel %vm3154, %v2942, -inf
    %v4766 = vrot.slane %v4765, 4
    %v4767 = vmax.f32 %v4765, %v4766
    %v4768 = vrot.slane %v4767, 2
    %v4769 = vmax.f32 %v4767, %v4768
    %v4770 = vrot.slane %v4769, 1
    %v4771 = vmax.f32 %v4769, %v4770
    %v4772 = vsel %vm3154, %v2943, -inf
    %v4773 = vrot.slane %v4772, 4
    %v4774 = vmax.f32 %v4772, %v4773
    %v4775 = vrot.slane %v4774, 2
    %v4776 = vmax.f32 %v4774, %v4775
    %v4777 = vrot.slane %v4776, 1
    %v4778 = vmax.f32 %v4776, %v4777
    %v4779 = vsel %vm3154, %v2700, -inf
    %v4780 = vrot.slane %v4779, 4
    %v4781 = vmax.f32 %v4779, %v4780
    %v4782 = vrot.slane %v4781, 2
    %v4783 = vmax.f32 %v4781, %v4782
    %v4784 = vrot.slane %v4783, 1
    %v4785 = vmax.f32 %v4783, %v4784
    %v4786 = vsel %vm3154, %v2944, -inf
    %v4787 = vrot.slane %v4786, 4
    %v4788 = vmax.f32 %v4786, %v4787
    %v4789 = vrot.slane %v4788, 2
    %v4790 = vmax.f32 %v4788, %v4789
    %v4791 = vrot.slane %v4790, 1
    %v4792 = vmax.f32 %v4790, %v4791
    %v4793 = vsel %vm3154, %v2945, -inf
    %v4794 = vrot.slane %v4793, 4
    %v4795 = vmax.f32 %v4793, %v4794
    %v4796 = vrot.slane %v4795, 2
    %v4797 = vmax.f32 %v4795, %v4796
    %v4798 = vrot.slane %v4797, 1
    %v4799 = vmax.f32 %v4797, %v4798
    %v4800 = vsel %vm3154, %v2946, -inf
    %v4801 = vrot.slane %v4800, 4
    %v4802 = vmax.f32 %v4800, %v4801
    %v4803 = vrot.slane %v4802, 2
    %v4804 = vmax.f32 %v4802, %v4803
    %v4805 = vrot.slane %v4804, 1
    %v4806 = vmax.f32 %v4804, %v4805
    %v4807 = vsel %vm3154, %v2701, -inf
    %v4808 = vrot.slane %v4807, 4
    %v4809 = vmax.f32 %v4807, %v4808
    %v4810 = vrot.slane %v4809, 2
    %v4811 = vmax.f32 %v4809, %v4810
    %v4812 = vrot.slane %v4811, 1
    %v4813 = vmax.f32 %v4811, %v4812
    %v4814 = vsel %vm3154, %v2947, -inf
    %v4815 = vrot.slane %v4814, 4
    %v4816 = vmax.f32 %v4814, %v4815
    %v4817 = vrot.slane %v4816, 2
    %v4818 = vmax.f32 %v4816, %v4817
    %v4819 = vrot.slane %v4818, 1
    %v4820 = vmax.f32 %v4818, %v4819
    %v4821 = vsel %vm3154, %v2948, -inf
    %v4822 = vrot.slane %v4821, 4
    %v4823 = vmax.f32 %v4821, %v4822
    %v4824 = vrot.slane %v4823, 2
    %v4825 = vmax.f32 %v4823, %v4824
    %v4826 = vrot.slane %v4825, 1
    %v4827 = vmax.f32 %v4825, %v4826
    %v4828 = vsel %vm3154, %v2949, -inf
    %v4829 = vrot.slane %v4828, 4
    %v4830 = vmax.f32 %v4828, %v4829
    %v4831 = vrot.slane %v4830, 2
    %v4832 = vmax.f32 %v4830, %v4831
    %v4833 = vrot.slane %v4832, 1
    %v4834 = vmax.f32 %v4832, %v4833
    %v4835 = vsel %vm3154, %v2702, -inf
    %v4836 = vrot.slane %v4835, 4
    %v4837 = vmax.f32 %v4835, %v4836
    %v4838 = vrot.slane %v4837, 2
    %v4839 = vmax.f32 %v4837, %v4838
    %v4840 = vrot.slane %v4839, 1
    %v4841 = vmax.f32 %v4839, %v4840
    %v4842 = vsel %vm3154, %v2950, -inf
    %v4843 = vrot.slane %v4842, 4
    %v4844 = vmax.f32 %v4842, %v4843
    %v4845 = vrot.slane %v4844, 2
    %v4846 = vmax.f32 %v4844, %v4845
    %v4847 = vrot.slane %v4846, 1
    %v4848 = vmax.f32 %v4846, %v4847
    %v4849 = vsel %vm3154, %v2951, -inf
    %v4850 = vrot.slane %v4849, 4
    %v4851 = vmax.f32 %v4849, %v4850
    %v4852 = vrot.slane %v4851, 2
    %v4853 = vmax.f32 %v4851, %v4852
    %v4854 = vrot.slane %v4853, 1
    %v4855 = vmax.f32 %v4853, %v4854
    %v4856 = vsel %vm3154, %v2952, -inf
    %v4857 = vrot.slane %v4856, 4
    %v4858 = vmax.f32 %v4856, %v4857
    %v4859 = vrot.slane %v4858, 2
    %v4860 = vmax.f32 %v4858, %v4859
    %v4861 = vrot.slane %v4860, 1
    %v4862 = vmax.f32 %v4860, %v4861
    %v4863 = vsel %vm3154, %v2703, -inf
    %v4864 = vrot.slane %v4863, 4
    %v4865 = vmax.f32 %v4863, %v4864
    %v4866 = vrot.slane %v4865, 2
    %v4867 = vmax.f32 %v4865, %v4866
    %v4868 = vrot.slane %v4867, 1
    %v4869 = vmax.f32 %v4867, %v4868
    %v4870 = vsel %vm3154, %v2953, -inf
    %v4871 = vrot.slane %v4870, 4
    %v4872 = vmax.f32 %v4870, %v4871
    %v4873 = vrot.slane %v4872, 2
    %v4874 = vmax.f32 %v4872, %v4873
    %v4875 = vrot.slane %v4874, 1
    %v4876 = vmax.f32 %v4874, %v4875
    %v4877 = vsel %vm3154, %v2954, -inf
    %v4878 = vrot.slane %v4877, 4
    %v4879 = vmax.f32 %v4877, %v4878
    %v4880 = vrot.slane %v4879, 2
    %v4881 = vmax.f32 %v4879, %v4880
    %v4882 = vrot.slane %v4881, 1
    %v4883 = vmax.f32 %v4881, %v4882
    %v4884 = vsel %vm3154, %v2955, -inf
    %v4885 = vrot.slane %v4884, 4
    %v4886 = vmax.f32 %v4884, %v4885
    %v4887 = vrot.slane %v4886, 2
    %v4888 = vmax.f32 %v4886, %v4887
    %v4889 = vrot.slane %v4888, 1
    %v4890 = vmax.f32 %v4888, %v4889
    %v4891 = vsel %vm3154, %v2704, -inf
    %v4892 = vrot.slane %v4891, 4
    %v4893 = vmax.f32 %v4891, %v4892
    %v4894 = vrot.slane %v4893, 2
    %v4895 = vmax.f32 %v4893, %v4894
    %v4896 = vrot.slane %v4895, 1
    %v4897 = vmax.f32 %v4895, %v4896
    %v4898 = vsel %vm3154, %v2956, -inf
    %v4899 = vrot.slane %v4898, 4
    %v4900 = vmax.f32 %v4898, %v4899
    %v4901 = vrot.slane %v4900, 2
    %v4902 = vmax.f32 %v4900, %v4901
    %v4903 = vrot.slane %v4902, 1
    %v4904 = vmax.f32 %v4902, %v4903
    %v4905 = vsel %vm3154, %v2957, -inf
    %v4906 = vrot.slane %v4905, 4
    %v4907 = vmax.f32 %v4905, %v4906
    %v4908 = vrot.slane %v4907, 2
    %v4909 = vmax.f32 %v4907, %v4908
    %v4910 = vrot.slane %v4909, 1
    %v4911 = vmax.f32 %v4909, %v4910
    %v4912 = vsel %vm3154, %v2958, -inf
    %v4913 = vrot.slane %v4912, 4
    %v4914 = vmax.f32 %v4912, %v4913
    %v4915 = vrot.slane %v4914, 2
    %v4916 = vmax.f32 %v4914, %v4915
    %v4917 = vrot.slane %v4916, 1
    %v4918 = vmax.f32 %v4916, %v4917
    %v4919 = vsel %vm3154, %v2705, -inf
    %v4920 = vrot.slane %v4919, 4
    %v4921 = vmax.f32 %v4919, %v4920
    %v4922 = vrot.slane %v4921, 2
    %v4923 = vmax.f32 %v4921, %v4922
    %v4924 = vrot.slane %v4923, 1
    %v4925 = vmax.f32 %v4923, %v4924
    %v4926 = vsel %vm3154, %v2959, -inf
    %v4927 = vrot.slane %v4926, 4
    %v4928 = vmax.f32 %v4926, %v4927
    %v4929 = vrot.slane %v4928, 2
    %v4930 = vmax.f32 %v4928, %v4929
    %v4931 = vrot.slane %v4930, 1
    %v4932 = vmax.f32 %v4930, %v4931
    %v4933 = vsel %vm3154, %v2960, -inf
    %v4934 = vrot.slane %v4933, 4
    %v4935 = vmax.f32 %v4933, %v4934
    %v4936 = vrot.slane %v4935, 2
    %v4937 = vmax.f32 %v4935, %v4936
    %v4938 = vrot.slane %v4937, 1
    %v4939 = vmax.f32 %v4937, %v4938
    %v4940 = vsel %vm3154, %v2961, -inf
    %v4941 = vrot.slane %v4940, 4
    %v4942 = vmax.f32 %v4940, %v4941
    %v4943 = vrot.slane %v4942, 2
    %v4944 = vmax.f32 %v4942, %v4943
    %v4945 = vrot.slane %v4944, 1
    %v4946 = vmax.f32 %v4944, %v4945
    %vm4947 = vcmask 130048
    %v4948 = vsel %vm4947, %v3161, -inf
    %v4949 = vsel %vm4947, %v3217, -inf
    %v4950 = vmax.f32 %v4948, %v4949
    %v4951 = vsel %vm4947, %v3168, -inf
    %v4952 = vsel %vm4947, %v3224, -inf
    %v4953 = vmax.f32 %v4951, %v4952
    %v4954 = vsel %vm4947, %v3175, -inf
    %v4955 = vsel %vm4947, %v3231, -inf
    %v4956 = vmax.f32 %v4954, %v4955
    %v4957 = vsel %vm4947, %v3182, -inf
    %v4958 = vsel %vm4947, %v3238, -inf
    %v4959 = vmax.f32 %v4957, %v4958
    %v4960 = vsel %vm4947, %v3189, -inf
    %v4961 = vsel %vm4947, %v3245, -inf
    %v4962 = vmax.f32 %v4960, %v4961
    %v4963 = vsel %vm4947, %v3196, -inf
    %v4964 = vsel %vm4947, %v3252, -inf
    %v4965 = vmax.f32 %v4963, %v4964
    %v4966 = vsel %vm4947, %v3203, -inf
    %v4967 = vsel %vm4947, %v3259, -inf
    %v4968 = vmax.f32 %v4966, %v4967
    %v4969 = vsel %vm4947, %v3210, -inf
    %v4970 = vsel %vm4947, %v3266, -inf
    %v4971 = vmax.f32 %v4969, %v4970
    %v4972 = vsel %vm4947, %v3273, -inf
    %v4973 = vsel %vm4947, %v3329, -inf
    %v4974 = vmax.f32 %v4972, %v4973
    %v4975 = vsel %vm4947, %v3280, -inf
    %v4976 = vsel %vm4947, %v3336, -inf
    %v4977 = vmax.f32 %v4975, %v4976
    %v4978 = vsel %vm4947, %v3287, -inf
    %v4979 = vsel %vm4947, %v3343, -inf
    %v4980 = vmax.f32 %v4978, %v4979
    %v4981 = vsel %vm4947, %v3294, -inf
    %v4982 = vsel %vm4947, %v3350, -inf
    %v4983 = vmax.f32 %v4981, %v4982
    %v4984 = vsel %vm4947, %v3301, -inf
    %v4985 = vsel %vm4947, %v3357, -inf
    %v4986 = vmax.f32 %v4984, %v4985
    %v4987 = vsel %vm4947, %v3308, -inf
    %v4988 = vsel %vm4947, %v3364, -inf
    %v4989 = vmax.f32 %v4987, %v4988
    %v4990 = vsel %vm4947, %v3315, -inf
    %v4991 = vsel %vm4947, %v3371, -inf
    %v4992 = vmax.f32 %v4990, %v4991
    %v4993 = vsel %vm4947, %v3322, -inf
    %v4994 = vsel %vm4947, %v3378, -inf
    %v4995 = vmax.f32 %v4993, %v4994
    %v4996 = vsel %vm4947, %v3385, -inf
    %v4997 = vsel %vm4947, %v3441, -inf
    %v4998 = vmax.f32 %v4996, %v4997
    %v4999 = vsel %vm4947, %v3392, -inf
    %v5000 = vsel %vm4947, %v3448, -inf
    %v5001 = vmax.f32 %v4999, %v5000
    %v5002 = vsel %vm4947, %v3399, -inf
    %v5003 = vsel %vm4947, %v3455, -inf
    %v5004 = vmax.f32 %v5002, %v5003
    %v5005 = vsel %vm4947, %v3406, -inf
    %v5006 = vsel %vm4947, %v3462, -inf
    %v5007 = vmax.f32 %v5005, %v5006
    %v5008 = vsel %vm4947, %v3413, -inf
    %v5009 = vsel %vm4947, %v3469, -inf
    %v5010 = vmax.f32 %v5008, %v5009
    %v5011 = vsel %vm4947, %v3420, -inf
    %v5012 = vsel %vm4947, %v3476, -inf
    %v5013 = vmax.f32 %v5011, %v5012
    %v5014 = vsel %vm4947, %v3427, -inf
    %v5015 = vsel %vm4947, %v3483, -inf
    %v5016 = vmax.f32 %v5014, %v5015
    %v5017 = vsel %vm4947, %v3434, -inf
    %v5018 = vsel %vm4947, %v3490, -inf
    %v5019 = vmax.f32 %v5017, %v5018
    %v5020 = vsel %vm4947, %v3497, -inf
    %v5021 = vsel %vm4947, %v3553, -inf
    %v5022 = vmax.f32 %v5020, %v5021
    %v5023 = vsel %vm4947, %v3504, -inf
    %v5024 = vsel %vm4947, %v3560, -inf
    %v5025 = vmax.f32 %v5023, %v5024
    %v5026 = vsel %vm4947, %v3511, -inf
    %v5027 = vsel %vm4947, %v3567, -inf
    %v5028 = vmax.f32 %v5026, %v5027
    %v5029 = vsel %vm4947, %v3518, -inf
    %v5030 = vsel %vm4947, %v3574, -inf
    %v5031 = vmax.f32 %v5029, %v5030
    %v5032 = vsel %vm4947, %v3525, -inf
    %v5033 = vsel %vm4947, %v3581, -inf
    %v5034 = vmax.f32 %v5032, %v5033
    %v5035 = vsel %vm4947, %v3532, -inf
    %v5036 = vsel %vm4947, %v3588, -inf
    %v5037 = vmax.f32 %v5035, %v5036
    %v5038 = vsel %vm4947, %v3539, -inf
    %v5039 = vsel %vm4947, %v3595, -inf
    %v5040 = vmax.f32 %v5038, %v5039
    %v5041 = vsel %vm4947, %v3546, -inf
    %v5042 = vsel %vm4947, %v3602, -inf
    %v5043 = vmax.f32 %v5041, %v5042
    %v5044 = vsel %vm4947, %v3609, -inf
    %v5045 = vsel %vm4947, %v3665, -inf
    %v5046 = vmax.f32 %v5044, %v5045
    %v5047 = vsel %vm4947, %v3616, -inf
    %v5048 = vsel %vm4947, %v3672, -inf
    %v5049 = vmax.f32 %v5047, %v5048
    %v5050 = vsel %vm4947, %v3623, -inf
    %v5051 = vsel %vm4947, %v3679, -inf
    %v5052 = vmax.f32 %v5050, %v5051
    %v5053 = vsel %vm4947, %v3630, -inf
    %v5054 = vsel %vm4947, %v3686, -inf
    %v5055 = vmax.f32 %v5053, %v5054
    %v5056 = vsel %vm4947, %v3637, -inf
    %v5057 = vsel %vm4947, %v3693, -inf
    %v5058 = vmax.f32 %v5056, %v5057
    %v5059 = vsel %vm4947, %v3644, -inf
    %v5060 = vsel %vm4947, %v3700, -inf
    %v5061 = vmax.f32 %v5059, %v5060
    %v5062 = vsel %vm4947, %v3651, -inf
    %v5063 = vsel %vm4947, %v3707, -inf
    %v5064 = vmax.f32 %v5062, %v5063
    %v5065 = vsel %vm4947, %v3658, -inf
    %v5066 = vsel %vm4947, %v3714, -inf
    %v5067 = vmax.f32 %v5065, %v5066
    %v5068 = vsel %vm4947, %v3721, -inf
    %v5069 = vsel %vm4947, %v3777, -inf
    %v5070 = vmax.f32 %v5068, %v5069
    %v5071 = vsel %vm4947, %v3728, -inf
    %v5072 = vsel %vm4947, %v3784, -inf
    %v5073 = vmax.f32 %v5071, %v5072
    %v5074 = vsel %vm4947, %v3735, -inf
    %v5075 = vsel %vm4947, %v3791, -inf
    %v5076 = vmax.f32 %v5074, %v5075
    %v5077 = vsel %vm4947, %v3742, -inf
    %v5078 = vsel %vm4947, %v3798, -inf
    %v5079 = vmax.f32 %v5077, %v5078
    %v5080 = vsel %vm4947, %v3749, -inf
    %v5081 = vsel %vm4947, %v3805, -inf
    %v5082 = vmax.f32 %v5080, %v5081
    %v5083 = vsel %vm4947, %v3756, -inf
    %v5084 = vsel %vm4947, %v3812, -inf
    %v5085 = vmax.f32 %v5083, %v5084
    %v5086 = vsel %vm4947, %v3763, -inf
    %v5087 = vsel %vm4947, %v3819, -inf
    %v5088 = vmax.f32 %v5086, %v5087
    %v5089 = vsel %vm4947, %v3770, -inf
    %v5090 = vsel %vm4947, %v3826, -inf
    %v5091 = vmax.f32 %v5089, %v5090
    %v5092 = vsel %vm4947, %v3833, -inf
    %v5093 = vsel %vm4947, %v3889, -inf
    %v5094 = vmax.f32 %v5092, %v5093
    %v5095 = vsel %vm4947, %v3840, -inf
    %v5096 = vsel %vm4947, %v3896, -inf
    %v5097 = vmax.f32 %v5095, %v5096
    %v5098 = vsel %vm4947, %v3847, -inf
    %v5099 = vsel %vm4947, %v3903, -inf
    %v5100 = vmax.f32 %v5098, %v5099
    %v5101 = vsel %vm4947, %v3854, -inf
    %v5102 = vsel %vm4947, %v3910, -inf
    %v5103 = vmax.f32 %v5101, %v5102
    %v5104 = vsel %vm4947, %v3861, -inf
    %v5105 = vsel %vm4947, %v3917, -inf
    %v5106 = vmax.f32 %v5104, %v5105
    %v5107 = vsel %vm4947, %v3868, -inf
    %v5108 = vsel %vm4947, %v3924, -inf
    %v5109 = vmax.f32 %v5107, %v5108
    %v5110 = vsel %vm4947, %v3875, -inf
    %v5111 = vsel %vm4947, %v3931, -inf
    %v5112 = vmax.f32 %v5110, %v5111
    %v5113 = vsel %vm4947, %v3882, -inf
    %v5114 = vsel %vm4947, %v3938, -inf
    %v5115 = vmax.f32 %v5113, %v5114
    %v5116 = vsel %vm4947, %v3945, -inf
    %v5117 = vsel %vm4947, %v4001, -inf
    %v5118 = vmax.f32 %v5116, %v5117
    %v5119 = vsel %vm4947, %v3952, -inf
    %v5120 = vsel %vm4947, %v4008, -inf
    %v5121 = vmax.f32 %v5119, %v5120
    %v5122 = vsel %vm4947, %v3959, -inf
    %v5123 = vsel %vm4947, %v4015, -inf
    %v5124 = vmax.f32 %v5122, %v5123
    %v5125 = vsel %vm4947, %v3966, -inf
    %v5126 = vsel %vm4947, %v4022, -inf
    %v5127 = vmax.f32 %v5125, %v5126
    %v5128 = vsel %vm4947, %v3973, -inf
    %v5129 = vsel %vm4947, %v4029, -inf
    %v5130 = vmax.f32 %v5128, %v5129
    %v5131 = vsel %vm4947, %v3980, -inf
    %v5132 = vsel %vm4947, %v4036, -inf
    %v5133 = vmax.f32 %v5131, %v5132
    %v5134 = vsel %vm4947, %v3987, -inf
    %v5135 = vsel %vm4947, %v4043, -inf
    %v5136 = vmax.f32 %v5134, %v5135
    %v5137 = vsel %vm4947, %v3994, -inf
    %v5138 = vsel %vm4947, %v4050, -inf
    %v5139 = vmax.f32 %v5137, %v5138
    %v5140 = vsel %vm4947, %v4057, -inf
    %v5141 = vsel %vm4947, %v4113, -inf
    %v5142 = vmax.f32 %v5140, %v5141
    %v5143 = vsel %vm4947, %v4064, -inf
    %v5144 = vsel %vm4947, %v4120, -inf
    %v5145 = vmax.f32 %v5143, %v5144
    %v5146 = vsel %vm4947, %v4071, -inf
    %v5147 = vsel %vm4947, %v4127, -inf
    %v5148 = vmax.f32 %v5146, %v5147
    %v5149 = vsel %vm4947, %v4078, -inf
    %v5150 = vsel %vm4947, %v4134, -inf
    %v5151 = vmax.f32 %v5149, %v5150
    %v5152 = vsel %vm4947, %v4085, -inf
    %v5153 = vsel %vm4947, %v4141, -inf
    %v5154 = vmax.f32 %v5152, %v5153
    %v5155 = vsel %vm4947, %v4092, -inf
    %v5156 = vsel %vm4947, %v4148, -inf
    %v5157 = vmax.f32 %v5155, %v5156
    %v5158 = vsel %vm4947, %v4099, -inf
    %v5159 = vsel %vm4947, %v4155, -inf
    %v5160 = vmax.f32 %v5158, %v5159
    %v5161 = vsel %vm4947, %v4106, -inf
    %v5162 = vsel %vm4947, %v4162, -inf
    %v5163 = vmax.f32 %v5161, %v5162
    %v5164 = vsel %vm4947, %v4169, -inf
    %v5165 = vsel %vm4947, %v4225, -inf
    %v5166 = vmax.f32 %v5164, %v5165
    %v5167 = vsel %vm4947, %v4176, -inf
    %v5168 = vsel %vm4947, %v4232, -inf
    %v5169 = vmax.f32 %v5167, %v5168
    %v5170 = vsel %vm4947, %v4183, -inf
    %v5171 = vsel %vm4947, %v4239, -inf
    %v5172 = vmax.f32 %v5170, %v5171
    %v5173 = vsel %vm4947, %v4190, -inf
    %v5174 = vsel %vm4947, %v4246, -inf
    %v5175 = vmax.f32 %v5173, %v5174
    %v5176 = vsel %vm4947, %v4197, -inf
    %v5177 = vsel %vm4947, %v4253, -inf
    %v5178 = vmax.f32 %v5176, %v5177
    %v5179 = vsel %vm4947, %v4204, -inf
    %v5180 = vsel %vm4947, %v4260, -inf
    %v5181 = vmax.f32 %v5179, %v5180
    %v5182 = vsel %vm4947, %v4211, -inf
    %v5183 = vsel %vm4947, %v4267, -inf
    %v5184 = vmax.f32 %v5182, %v5183
    %v5185 = vsel %vm4947, %v4218, -inf
    %v5186 = vsel %vm4947, %v4274, -inf
    %v5187 = vmax.f32 %v5185, %v5186
    %v5188 = vsel %vm4947, %v4281, -inf
    %v5189 = vsel %vm4947, %v4337, -inf
    %v5190 = vmax.f32 %v5188, %v5189
    %v5191 = vsel %vm4947, %v4288, -inf
    %v5192 = vsel %vm4947, %v4344, -inf
    %v5193 = vmax.f32 %v5191, %v5192
    %v5194 = vsel %vm4947, %v4295, -inf
    %v5195 = vsel %vm4947, %v4351, -inf
    %v5196 = vmax.f32 %v5194, %v5195
    %v5197 = vsel %vm4947, %v4302, -inf
    %v5198 = vsel %vm4947, %v4358, -inf
    %v5199 = vmax.f32 %v5197, %v5198
    %v5200 = vsel %vm4947, %v4309, -inf
    %v5201 = vsel %vm4947, %v4365, -inf
    %v5202 = vmax.f32 %v5200, %v5201
    %v5203 = vsel %vm4947, %v4316, -inf
    %v5204 = vsel %vm4947, %v4372, -inf
    %v5205 = vmax.f32 %v5203, %v5204
    %v5206 = vsel %vm4947, %v4323, -inf
    %v5207 = vsel %vm4947, %v4379, -inf
    %v5208 = vmax.f32 %v5206, %v5207
    %v5209 = vsel %vm4947, %v4330, -inf
    %v5210 = vsel %vm4947, %v4386, -inf
    %v5211 = vmax.f32 %v5209, %v5210
    %v5212 = vsel %vm4947, %v4393, -inf
    %v5213 = vsel %vm4947, %v4449, -inf
    %v5214 = vmax.f32 %v5212, %v5213
    %v5215 = vsel %vm4947, %v4400, -inf
    %v5216 = vsel %vm4947, %v4456, -inf
    %v5217 = vmax.f32 %v5215, %v5216
    %v5218 = vsel %vm4947, %v4407, -inf
    %v5219 = vsel %vm4947, %v4463, -inf
    %v5220 = vmax.f32 %v5218, %v5219
    %v5221 = vsel %vm4947, %v4414, -inf
    %v5222 = vsel %vm4947, %v4470, -inf
    %v5223 = vmax.f32 %v5221, %v5222
    %v5224 = vsel %vm4947, %v4421, -inf
    %v5225 = vsel %vm4947, %v4477, -inf
    %v5226 = vmax.f32 %v5224, %v5225
    %v5227 = vsel %vm4947, %v4428, -inf
    %v5228 = vsel %vm4947, %v4484, -inf
    %v5229 = vmax.f32 %v5227, %v5228
    %v5230 = vsel %vm4947, %v4435, -inf
    %v5231 = vsel %vm4947, %v4491, -inf
    %v5232 = vmax.f32 %v5230, %v5231
    %v5233 = vsel %vm4947, %v4442, -inf
    %v5234 = vsel %vm4947, %v4498, -inf
    %v5235 = vmax.f32 %v5233, %v5234
    %v5236 = vsel %vm4947, %v4505, -inf
    %v5237 = vsel %vm4947, %v4561, -inf
    %v5238 = vmax.f32 %v5236, %v5237
    %v5239 = vsel %vm4947, %v4512, -inf
    %v5240 = vsel %vm4947, %v4568, -inf
    %v5241 = vmax.f32 %v5239, %v5240
    %v5242 = vsel %vm4947, %v4519, -inf
    %v5243 = vsel %vm4947, %v4575, -inf
    %v5244 = vmax.f32 %v5242, %v5243
    %v5245 = vsel %vm4947, %v4526, -inf
    %v5246 = vsel %vm4947, %v4582, -inf
    %v5247 = vmax.f32 %v5245, %v5246
    %v5248 = vsel %vm4947, %v4533, -inf
    %v5249 = vsel %vm4947, %v4589, -inf
    %v5250 = vmax.f32 %v5248, %v5249
    %v5251 = vsel %vm4947, %v4540, -inf
    %v5252 = vsel %vm4947, %v4596, -inf
    %v5253 = vmax.f32 %v5251, %v5252
    %v5254 = vsel %vm4947, %v4547, -inf
    %v5255 = vsel %vm4947, %v4603, -inf
    %v5256 = vmax.f32 %v5254, %v5255
    %v5257 = vsel %vm4947, %v4554, -inf
    %v5258 = vsel %vm4947, %v4610, -inf
    %v5259 = vmax.f32 %v5257, %v5258
    %v5260 = vsel %vm4947, %v4617, -inf
    %v5261 = vsel %vm4947, %v4673, -inf
    %v5262 = vmax.f32 %v5260, %v5261
    %v5263 = vsel %vm4947, %v4624, -inf
    %v5264 = vsel %vm4947, %v4680, -inf
    %v5265 = vmax.f32 %v5263, %v5264
    %v5266 = vsel %vm4947, %v4631, -inf
    %v5267 = vsel %vm4947, %v4687, -inf
    %v5268 = vmax.f32 %v5266, %v5267
    %v5269 = vsel %vm4947, %v4638, -inf
    %v5270 = vsel %vm4947, %v4694, -inf
    %v5271 = vmax.f32 %v5269, %v5270
    %v5272 = vsel %vm4947, %v4645, -inf
    %v5273 = vsel %vm4947, %v4701, -inf
    %v5274 = vmax.f32 %v5272, %v5273
    %v5275 = vsel %vm4947, %v4652, -inf
    %v5276 = vsel %vm4947, %v4708, -inf
    %v5277 = vmax.f32 %v5275, %v5276
    %v5278 = vsel %vm4947, %v4659, -inf
    %v5279 = vsel %vm4947, %v4715, -inf
    %v5280 = vmax.f32 %v5278, %v5279
    %v5281 = vsel %vm4947, %v4666, -inf
    %v5282 = vsel %vm4947, %v4722, -inf
    %v5283 = vmax.f32 %v5281, %v5282
    %v5284 = vsel %vm4947, %v4729, -inf
    %v5285 = vsel %vm4947, %v4785, -inf
    %v5286 = vmax.f32 %v5284, %v5285
    %v5287 = vsel %vm4947, %v4736, -inf
    %v5288 = vsel %vm4947, %v4792, -inf
    %v5289 = vmax.f32 %v5287, %v5288
    %v5290 = vsel %vm4947, %v4743, -inf
    %v5291 = vsel %vm4947, %v4799, -inf
    %v5292 = vmax.f32 %v5290, %v5291
    %v5293 = vsel %vm4947, %v4750, -inf
    %v5294 = vsel %vm4947, %v4806, -inf
    %v5295 = vmax.f32 %v5293, %v5294
    %v5296 = vsel %vm4947, %v4757, -inf
    %v5297 = vsel %vm4947, %v4813, -inf
    %v5298 = vmax.f32 %v5296, %v5297
    %v5299 = vsel %vm4947, %v4764, -inf
    %v5300 = vsel %vm4947, %v4820, -inf
    %v5301 = vmax.f32 %v5299, %v5300
    %v5302 = vsel %vm4947, %v4771, -inf
    %v5303 = vsel %vm4947, %v4827, -inf
    %v5304 = vmax.f32 %v5302, %v5303
    %v5305 = vsel %vm4947, %v4778, -inf
    %v5306 = vsel %vm4947, %v4834, -inf
    %v5307 = vmax.f32 %v5305, %v5306
    %v5308 = vsel %vm4947, %v4841, -inf
    %v5309 = vsel %vm4947, %v4897, -inf
    %v5310 = vmax.f32 %v5308, %v5309
    %v5311 = vsel %vm4947, %v4848, -inf
    %v5312 = vsel %vm4947, %v4904, -inf
    %v5313 = vmax.f32 %v5311, %v5312
    %v5314 = vsel %vm4947, %v4855, -inf
    %v5315 = vsel %vm4947, %v4911, -inf
    %v5316 = vmax.f32 %v5314, %v5315
    %v5317 = vsel %vm4947, %v4862, -inf
    %v5318 = vsel %vm4947, %v4918, -inf
    %v5319 = vmax.f32 %v5317, %v5318
    %v5320 = vsel %vm4947, %v4869, -inf
    %v5321 = vsel %vm4947, %v4925, -inf
    %v5322 = vmax.f32 %v5320, %v5321
    %v5323 = vsel %vm4947, %v4876, -inf
    %v5324 = vsel %vm4947, %v4932, -inf
    %v5325 = vmax.f32 %v5323, %v5324
    %v5326 = vsel %vm4947, %v4883, -inf
    %v5327 = vsel %vm4947, %v4939, -inf
    %v5328 = vmax.f32 %v5326, %v5327
    %v5329 = vsel %vm4947, %v4890, -inf
    %v5330 = vsel %vm4947, %v4946, -inf
    %v5331 = vmax.f32 %v5329, %v5330
    %5332 = vst.msk [vmem:[#allocation3] sm:$0xff] %vm4947, 0.0
    %5333 = vst.msk [vmem:[#allocation3 + $0x8] sm:$0x3] %vm3154, 0.0
    %5334 = vst.msk [vmem:[#allocation3 + $0xa0] sm:$0xff] %vm4947, 0.0
    %5335 = vst.msk [vmem:[#allocation3 + $0xa8] sm:$0x3] %vm3154, 0.0
    %s5336 = scalar_lea.vmem [#allocation3], 144
    %5337 = vst.msk [vmem:[%s5336] sm:$0xff] %vm4947, 0.0
    %5338 = vst.msk [vmem:[%s5336 + $0x8] sm:$0x3] %vm3154, 0.0
    %5339 = vst.msk [vmem:[%s5336 + $0xa0] sm:$0xff] %vm4947, 0.0
    %5340 = vst.msk [vmem:[%s5336 + $0xa8] sm:$0x3] %vm3154, 0.0
    %vm5341 = vcmask 122880
    %5342 = vst.msk [vmem:[#allocation3] sm:$0x1] %vm5341, 0.0
    %5343 = vst.msk [vmem:[#allocation3 + $0x10] sm:$0x1] %vm5341, 0.0
    %5344 = vst.msk [vmem:[#allocation3 + $0x20] sm:$0x1] %vm5341, 0.0
    %5345 = vst.msk [vmem:[#allocation3 + $0x30] sm:$0x1] %vm5341, 0.0
    %5346 = vst.msk [vmem:[#allocation3 + $0x40] sm:$0x1] %vm5341, 0.0
    %5347 = vst.msk [vmem:[#allocation3 + $0x50] sm:$0x1] %vm5341, 0.0
    %5348 = vst.msk [vmem:[#allocation3 + $0x60] sm:$0x1] %vm5341, 0.0
    %5349 = vst.msk [vmem:[#allocation3 + $0x70] sm:$0x1] %vm5341, 0.0
    %5350 = vst.msk [vmem:[#allocation3 + $0x80] sm:$0x1] %vm5341, 0.0
    %5351 = vst.msk [vmem:[#allocation3 + $0x90] sm:$0x1] %vm5341, 0.0
    %5352 = vst.msk [vmem:[#allocation3 + $0xa0] sm:$0x1] %vm5341, 0.0
    %5353 = vst.msk [vmem:[#allocation3 + $0xb0] sm:$0x1] %vm5341, 0.0
    %5354 = vst.msk [vmem:[#allocation3 + $0xc0] sm:$0x1] %vm5341, 0.0
    %5355 = vst.msk [vmem:[#allocation3 + $0xd0] sm:$0x1] %vm5341, 0.0
    %5356 = vst.msk [vmem:[#allocation3 + $0xe0] sm:$0x1] %vm5341, 0.0
    %5357 = vst.msk [vmem:[#allocation3 + $0xf0] sm:$0x1] %vm5341, 0.0
    %5358 = vst.msk [vmem:[#allocation3 + $0x100] sm:$0x1] %vm5341, 0.0
    %5359 = vst.msk [vmem:[#allocation3 + $0x110] sm:$0x1] %vm5341, 0.0
    %5360 = vst.msk [vmem:[#allocation3 + $0x120] sm:$0x1] %vm5341, 0.0
    %5361 = vst.msk [vmem:[#allocation3 + $0x130] sm:$0x1] %vm5341, 0.0
    %5362 = vst.msk [vmem:[#allocation3 + $0x9] sm:$0x1] %vm5341, 0.0
    %5363 = vst.msk [vmem:[#allocation3 + $0x19] sm:$0x1] %vm5341, 0.0
    %5364 = vst.msk [vmem:[#allocation3 + $0x29] sm:$0x1] %vm5341, 0.0
    %5365 = vst.msk [vmem:[#allocation3 + $0x39] sm:$0x1] %vm5341, 0.0
    %5366 = vst.msk [vmem:[#allocation3 + $0x49] sm:$0x1] %vm5341, 0.0
    %5367 = vst.msk [vmem:[#allocation3 + $0x59] sm:$0x1] %vm5341, 0.0
    %5368 = vst.msk [vmem:[#allocation3 + $0x69] sm:$0x1] %vm5341, 0.0
    %5369 = vst.msk [vmem:[#allocation3 + $0x79] sm:$0x1] %vm5341, 0.0
    %5370 = vst.msk [vmem:[#allocation3 + $0x89] sm:$0x1] %vm5341, 0.0
    %5371 = vst.msk [vmem:[#allocation3 + $0x99] sm:$0x1] %vm5341, 0.0
    %5372 = vst.msk [vmem:[#allocation3 + $0xa9] sm:$0x1] %vm5341, 0.0
    %5373 = vst.msk [vmem:[#allocation3 + $0xb9] sm:$0x1] %vm5341, 0.0
    %5374 = vst.msk [vmem:[#allocation3 + $0xc9] sm:$0x1] %vm5341, 0.0
    %5375 = vst.msk [vmem:[#allocation3 + $0xd9] sm:$0x1] %vm5341, 0.0
    %5376 = vst.msk [vmem:[#allocation3 + $0xe9] sm:$0x1] %vm5341, 0.0
    %5377 = vst.msk [vmem:[#allocation3 + $0xf9] sm:$0x1] %vm5341, 0.0
    %5378 = vst.msk [vmem:[#allocation3 + $0x109] sm:$0x1] %vm5341, 0.0
    %5379 = vst.msk [vmem:[#allocation3 + $0x119] sm:$0x1] %vm5341, 0.0
    %5380 = vst.msk [vmem:[#allocation3 + $0x129] sm:$0x1] %vm5341, 0.0
    %5381 = vst.msk [vmem:[#allocation3 + $0x139] sm:$0x1] %vm5341, 0.0
    %vm5510 = vcmask 1041409
    %v5511 = vsel %vm5510, %v4953, %v4950
    %vm5512 = vcmask 1042434
    %v5513 = vsel %vm5512, %v4956, %v5511
    %vm5514 = vcmask 1043459
    %v5515 = vsel %vm5514, %v4959, %v5513
    %vm5516 = vcmask 1044484
    %v5517 = vsel %vm5516, %v4962, %v5515
    %vm5518 = vcmask 1045509
    %v5519 = vsel %vm5518, %v4965, %v5517
    %vm5520 = vcmask 1046534
    %v5521 = vsel %vm5520, %v4968, %v5519
    %vm5522 = vcmask 1047559
    %v5523 = vsel %vm5522, %v4971, %v5521
    %v5524 = vsel %vm5510, %v4977, %v4974
    %v5525 = vsel %vm5512, %v4980, %v5524
    %v5526 = vsel %vm5514, %v4983, %v5525
    %v5527 = vsel %vm5516, %v4986, %v5526
    %v5528 = vsel %vm5518, %v4989, %v5527
    %v5529 = vsel %vm5520, %v4992, %v5528
    %v5530 = vsel %vm5522, %v4995, %v5529
    %v5531 = vsel %vm5510, %v5001, %v4998
    %v5532 = vsel %vm5512, %v5004, %v5531
    %v5533 = vsel %vm5514, %v5007, %v5532
    %v5534 = vsel %vm5516, %v5010, %v5533
    %v5535 = vsel %vm5518, %v5013, %v5534
    %v5536 = vsel %vm5520, %v5016, %v5535
    %v5537 = vsel %vm5522, %v5019, %v5536
    %v5538 = vsel %vm5510, %v5025, %v5022
    %v5539 = vsel %vm5512, %v5028, %v5538
    %v5540 = vsel %vm5514, %v5031, %v5539
    %v5541 = vsel %vm5516, %v5034, %v5540
    %v5542 = vsel %vm5518, %v5037, %v5541
    %v5543 = vsel %vm5520, %v5040, %v5542
    %v5544 = vsel %vm5522, %v5043, %v5543
    %v5545 = vsel %vm5510, %v5049, %v5046
    %v5546 = vsel %vm5512, %v5052, %v5545
    %v5547 = vsel %vm5514, %v5055, %v5546
    %v5548 = vsel %vm5516, %v5058, %v5547
    %v5549 = vsel %vm5518, %v5061, %v5548
    %v5550 = vsel %vm5520, %v5064, %v5549
    %v5551 = vsel %vm5522, %v5067, %v5550
    %v5552 = vsel %vm5510, %v5073, %v5070
    %v5553 = vsel %vm5512, %v5076, %v5552
    %v5554 = vsel %vm5514, %v5079, %v5553
    %v5555 = vsel %vm5516, %v5082, %v5554
    %v5556 = vsel %vm5518, %v5085, %v5555
    %v5557 = vsel %vm5520, %v5088, %v5556
    %v5558 = vsel %vm5522, %v5091, %v5557
    %v5559 = vsel %vm5510, %v5097, %v5094
    %v5560 = vsel %vm5512, %v5100, %v5559
    %v5561 = vsel %vm5514, %v5103, %v5560
    %v5562 = vsel %vm5516, %v5106, %v5561
    %v5563 = vsel %vm5518, %v5109, %v5562
    %v5564 = vsel %vm5520, %v5112, %v5563
    %v5565 = vsel %vm5522, %v5115, %v5564
    %v5566 = vsel %vm5510, %v5121, %v5118
    %v5567 = vsel %vm5512, %v5124, %v5566
    %v5568 = vsel %vm5514, %v5127, %v5567
    %v5569 = vsel %vm5516, %v5130, %v5568
    %v5570 = vsel %vm5518, %v5133, %v5569
    %v5571 = vsel %vm5520, %v5136, %v5570
    %v5572 = vsel %vm5522, %v5139, %v5571
    %v5573 = vsel %vm5510, %v5145, %v5142
    %v5574 = vsel %vm5512, %v5148, %v5573
    %v5575 = vsel %vm5514, %v5151, %v5574
    %v5576 = vsel %vm5516, %v5154, %v5575
    %v5577 = vsel %vm5518, %v5157, %v5576
    %v5578 = vsel %vm5520, %v5160, %v5577
    %v5579 = vsel %vm5522, %v5163, %v5578
    %v5580 = vsel %vm5510, %v5169, %v5166
    %v5581 = vsel %vm5512, %v5172, %v5580
    %v5582 = vsel %vm5514, %v5175, %v5581
    %v5583 = vsel %vm5516, %v5178, %v5582
    %v5584 = vsel %vm5518, %v5181, %v5583
    %v5585 = vsel %vm5520, %v5184, %v5584
    %v5586 = vsel %vm5522, %v5187, %v5585
    %v5587 = vsel %vm5510, %v5193, %v5190
    %v5588 = vsel %vm5512, %v5196, %v5587
    %v5589 = vsel %vm5514, %v5199, %v5588
    %v5590 = vsel %vm5516, %v5202, %v5589
    %v5591 = vsel %vm5518, %v5205, %v5590
    %v5592 = vsel %vm5520, %v5208, %v5591
    %v5593 = vsel %vm5522, %v5211, %v5592
    %v5594 = vsel %vm5510, %v5217, %v5214
    %v5595 = vsel %vm5512, %v5220, %v5594
    %v5596 = vsel %vm5514, %v5223, %v5595
    %v5597 = vsel %vm5516, %v5226, %v5596
    %v5598 = vsel %vm5518, %v5229, %v5597
    %v5599 = vsel %vm5520, %v5232, %v5598
    %v5600 = vsel %vm5522, %v5235, %v5599
    %v5601 = vsel %vm5510, %v5241, %v5238
    %v5602 = vsel %vm5512, %v5244, %v5601
    %v5603 = vsel %vm5514, %v5247, %v5602
    %v5604 = vsel %vm5516, %v5250, %v5603
    %v5605 = vsel %vm5518, %v5253, %v5604
    %v5606 = vsel %vm5520, %v5256, %v5605
    %v5607 = vsel %vm5522, %v5259, %v5606
    %v5608 = vsel %vm5510, %v5265, %v5262
    %v5609 = vsel %vm5512, %v5268, %v5608
    %v5610 = vsel %vm5514, %v5271, %v5609
    %v5611 = vsel %vm5516, %v5274, %v5610
    %v5612 = vsel %vm5518, %v5277, %v5611
    %v5613 = vsel %vm5520, %v5280, %v5612
    %v5614 = vsel %vm5522, %v5283, %v5613
    %v5615 = vsel %vm5510, %v5289, %v5286
    %v5616 = vsel %vm5512, %v5292, %v5615
    %v5617 = vsel %vm5514, %v5295, %v5616
    %v5618 = vsel %vm5516, %v5298, %v5617
    %v5619 = vsel %vm5518, %v5301, %v5618
    %v5620 = vsel %vm5520, %v5304, %v5619
    %v5621 = vsel %vm5522, %v5307, %v5620
    %v5622 = vsel %vm5510, %v5313, %v5310
    %v5623 = vsel %vm5512, %v5316, %v5622
    %v5624 = vsel %vm5514, %v5319, %v5623
    %v5625 = vsel %vm5516, %v5322, %v5624
    %v5626 = vsel %vm5518, %v5325, %v5625
    %v5627 = vsel %vm5520, %v5328, %v5626
    %v5628 = vsel %vm5522, %v5331, %v5627
    %s5645 = scalar_lea.vmem [#allocation3], 16
    %5646 = vst.msk [vmem:[%s5645 + $0x1] sm:$0xff] %vm4947, %v5523
    %5647 = vst.msk [vmem:[%s5645 + $0x11] sm:$0xff] %vm4947, %v5530
    %5648 = vst.msk [vmem:[%s5645 + $0x21] sm:$0xff] %vm4947, %v5537
    %5649 = vst.msk [vmem:[%s5645 + $0x31] sm:$0xff] %vm4947, %v5544
    %5650 = vst.msk [vmem:[%s5645 + $0x41] sm:$0xff] %vm4947, %v5551
    %5651 = vst.msk [vmem:[%s5645 + $0x51] sm:$0xff] %vm4947, %v5558
    %5652 = vst.msk [vmem:[%s5645 + $0x61] sm:$0xff] %vm4947, %v5565
    %5653 = vst.msk [vmem:[%s5645 + $0x71] sm:$0xff] %vm4947, %v5572
    %5654 = vst.msk [vmem:[%s5645 + $0xa1] sm:$0xff] %vm4947, %v5579
    %5655 = vst.msk [vmem:[%s5645 + $0xb1] sm:$0xff] %vm4947, %v5586
    %5656 = vst.msk [vmem:[%s5645 + $0xc1] sm:$0xff] %vm4947, %v5593
    %5657 = vst.msk [vmem:[%s5645 + $0xd1] sm:$0xff] %vm4947, %v5600
    %5658 = vst.msk [vmem:[%s5645 + $0xe1] sm:$0xff] %vm4947, %v5607
    %5659 = vst.msk [vmem:[%s5645 + $0xf1] sm:$0xff] %vm4947, %v5614
    %5660 = vst.msk [vmem:[%s5645 + $0x101] sm:$0xff] %vm4947, %v5621
    %5661 = vst.msk [vmem:[%s5645 + $0x111] sm:$0xff] %vm4947, %v5628
    %v5662 = vld [vmem:[#allocation3] sm:$0xff]
    %v5663 = vld [vmem:[#allocation3 + $0x8] sm:$0x3]
    %v5664 = vld [vmem:[#allocation3 + $0x10] sm:$0xff]
    %v5665 = vld [vmem:[#allocation3 + $0x18] sm:$0x3]
    %v5666 = vld [vmem:[#allocation3 + $0x20] sm:$0xff]
    %v5667 = vld [vmem:[#allocation3 + $0x28] sm:$0x3]
    %v5668 = vld [vmem:[#allocation3 + $0x30] sm:$0xff]
    %v5669 = vld [vmem:[#allocation3 + $0x38] sm:$0x3]
    %v5670 = vld [vmem:[#allocation3 + $0x40] sm:$0xff]
    %v5671 = vld [vmem:[#allocation3 + $0x48] sm:$0x3]
    %v5672 = vld [vmem:[#allocation3 + $0x50] sm:$0xff]
    %v5673 = vld [vmem:[#allocation3 + $0x58] sm:$0x3]
    %v5674 = vld [vmem:[#allocation3 + $0x60] sm:$0xff]
    %v5675 = vld [vmem:[#allocation3 + $0x68] sm:$0x3]
    %v5676 = vld [vmem:[#allocation3 + $0x70] sm:$0xff]
    %v5677 = vld [vmem:[#allocation3 + $0x78] sm:$0x3]
    %v5678 = vld [vmem:[#allocation3 + $0x80] sm:$0xff]
    %v5679 = vld [vmem:[#allocation3 + $0x88] sm:$0x3]
    %v5680 = vld [vmem:[#allocation3 + $0x90] sm:$0xff]
    %v5681 = vld [vmem:[#allocation3 + $0x98] sm:$0x3]
    %v5682 = vld [vmem:[#allocation3 + $0xa0] sm:$0xff]
    %v5683 = vld [vmem:[#allocation3 + $0xa8] sm:$0x3]
    %v5684 = vld [vmem:[#allocation3 + $0xb0] sm:$0xff]
    %v5685 = vld [vmem:[#allocation3 + $0xb8] sm:$0x3]
    %v5686 = vld [vmem:[#allocation3 + $0xc0] sm:$0xff]
    %v5687 = vld [vmem:[#allocation3 + $0xc8] sm:$0x3]
    %v5688 = vld [vmem:[#allocation3 + $0xd0] sm:$0xff]
    %v5689 = vld [vmem:[#allocation3 + $0xd8] sm:$0x3]
    %v5690 = vld [vmem:[#allocation3 + $0xe0] sm:$0xff]
    %v5691 = vld [vmem:[#allocation3 + $0xe8] sm:$0x3]
    %v5692 = vld [vmem:[#allocation3 + $0xf0] sm:$0xff]
    %v5693 = vld [vmem:[#allocation3 + $0xf8] sm:$0x3]
    %v5694 = vld [vmem:[#allocation3 + $0x100] sm:$0xff]
    %v5695 = vld [vmem:[#allocation3 + $0x108] sm:$0x3]
    %v5696 = vld [vmem:[#allocation3 + $0x110] sm:$0xff]
    %v5697 = vld [vmem:[#allocation3 + $0x118] sm:$0x3]
    %v5698 = vld [vmem:[#allocation3 + $0x120] sm:$0xff]
    %v5699 = vld [vmem:[#allocation3 + $0x128] sm:$0x3]
    %v5700 = vld [vmem:[#allocation3 + $0x130] sm:$0xff]
    %v5701 = vld [vmem:[#allocation3 + $0x138] sm:$0x3]
    %5702 = vst.msk [vmem:[#allocation4] sm:$0xff] %vm4947, %v5662
    %5703 = vst.msk [vmem:[#allocation4 + $0x10] sm:$0xff] %vm4947, %v5664
    %5704 = vst.msk [vmem:[#allocation4 + $0x20] sm:$0xff] %vm4947, %v5666
    %5705 = vst.msk [vmem:[#allocation4 + $0x30] sm:$0xff] %vm4947, %v5668
    %5706 = vst.msk [vmem:[#allocation4 + $0x40] sm:$0xff] %vm4947, %v5670
    %5707 = vst.msk [vmem:[#allocation4 + $0x50] sm:$0xff] %vm4947, %v5672
    %5708 = vst.msk [vmem:[#allocation4 + $0x60] sm:$0xff] %vm4947, %v5674
    %5709 = vst.msk [vmem:[#allocation4 + $0x70] sm:$0xff] %vm4947, %v5676
    %5710 = vst.msk [vmem:[#allocation4 + $0x80] sm:$0xff] %vm4947, %v5682
    %5711 = vst.msk [vmem:[#allocation4 + $0x90] sm:$0xff] %vm4947, %v5684
    %5712 = vst.msk [vmem:[#allocation4 + $0xa0] sm:$0xff] %vm4947, %v5686
    %5713 = vst.msk [vmem:[#allocation4 + $0xb0] sm:$0xff] %vm4947, %v5688
    %5714 = vst.msk [vmem:[#allocation4 + $0xc0] sm:$0xff] %vm4947, %v5690
    %5715 = vst.msk [vmem:[#allocation4 + $0xd0] sm:$0xff] %vm4947, %v5692
    %5716 = vst.msk [vmem:[#allocation4 + $0xe0] sm:$0xff] %vm4947, %v5694
    %5717 = vst.msk [vmem:[#allocation4 + $0xf0] sm:$0xff] %vm4947, %v5696
    %vm5750 = vcmask 1046528
    %v5751 = vrot.slane %v5662, 1
    %v5752 = vrot.slane %v5663, 1
    %v5753 = vsel %vm5750, %v5751, %v5752
    %v5754 = vrot.slane %v5664, 1
    %v5755 = vrot.slane %v5665, 1
    %v5756 = vsel %vm5750, %v5754, %v5755
    %v5757 = vrot.slane %v5666, 1
    %v5758 = vrot.slane %v5667, 1
    %v5759 = vsel %vm5750, %v5757, %v5758
    %v5760 = vrot.slane %v5668, 1
    %v5761 = vrot.slane %v5669, 1
    %v5762 = vsel %vm5750, %v5760, %v5761
    %v5763 = vrot.slane %v5670, 1
    %v5764 = vrot.slane %v5671, 1
    %v5765 = vsel %vm5750, %v5763, %v5764
    %v5766 = vrot.slane %v5672, 1
    %v5767 = vrot.slane %v5673, 1
    %v5768 = vsel %vm5750, %v5766, %v5767
    %v5769 = vrot.slane %v5674, 1
    %v5770 = vrot.slane %v5675, 1
    %v5771 = vsel %vm5750, %v5769, %v5770
    %v5772 = vrot.slane %v5676, 1
    %v5773 = vrot.slane %v5677, 1
    %v5774 = vsel %vm5750, %v5772, %v5773
    %v5775 = vrot.slane %v5682, 1
    %v5776 = vrot.slane %v5683, 1
    %v5777 = vsel %vm5750, %v5775, %v5776
    %v5778 = vrot.slane %v5684, 1
    %v5779 = vrot.slane %v5685, 1
    %v5780 = vsel %vm5750, %v5778, %v5779
    %v5781 = vrot.slane %v5686, 1
    %v5782 = vrot.slane %v5687, 1
    %v5783 = vsel %vm5750, %v5781, %v5782
    %v5784 = vrot.slane %v5688, 1
    %v5785 = vrot.slane %v5689, 1
    %v5786 = vsel %vm5750, %v5784, %v5785
    %v5787 = vrot.slane %v5690, 1
    %v5788 = vrot.slane %v5691, 1
    %v5789 = vsel %vm5750, %v5787, %v5788
    %v5790 = vrot.slane %v5692, 1
    %v5791 = vrot.slane %v5693, 1
    %v5792 = vsel %vm5750, %v5790, %v5791
    %v5793 = vrot.slane %v5694, 1
    %v5794 = vrot.slane %v5695, 1
    %v5795 = vsel %vm5750, %v5793, %v5794
    %v5796 = vrot.slane %v5696, 1
    %v5797 = vrot.slane %v5697, 1
    %v5798 = vsel %vm5750, %v5796, %v5797
    %5799 = vrot.lane.b32.xlu0 %v5753, 16
    %v5800 = vpop.permute.xlu0 %5799
    %5801 = vrot.lane.b32.xlu0 %v5756, 16
    %v5802 = vpop.permute.xlu0 %5801
    %5803 = vrot.lane.b32.xlu0 %v5759, 16
    %v5804 = vpop.permute.xlu0 %5803
    %5805 = vrot.lane.b32.xlu0 %v5762, 16
    %v5806 = vpop.permute.xlu0 %5805
    %5807 = vrot.lane.b32.xlu0 %v5765, 16
    %v5808 = vpop.permute.xlu0 %5807
    %5809 = vrot.lane.b32.xlu0 %v5768, 16
    %v5810 = vpop.permute.xlu0 %5809
    %5811 = vrot.lane.b32.xlu0 %v5771, 16
    %v5812 = vpop.permute.xlu0 %5811
    %5813 = vrot.lane.b32.xlu0 %v5774, 16
    %v5814 = vpop.permute.xlu0 %5813
    %5815 = vrot.lane.b32.xlu0 %v5777, 16
    %v5816 = vpop.permute.xlu0 %5815
    %5817 = vrot.lane.b32.xlu0 %v5780, 16
    %v5818 = vpop.permute.xlu0 %5817
    %5819 = vrot.lane.b32.xlu0 %v5783, 16
    %v5820 = vpop.permute.xlu0 %5819
    %5821 = vrot.lane.b32.xlu0 %v5786, 16
    %v5822 = vpop.permute.xlu0 %5821
    %5823 = vrot.lane.b32.xlu0 %v5789, 16
    %v5824 = vpop.permute.xlu0 %5823
    %5825 = vrot.lane.b32.xlu0 %v5792, 16
    %v5826 = vpop.permute.xlu0 %5825
    %5827 = vrot.lane.b32.xlu0 %v5795, 16
    %v5828 = vpop.permute.xlu0 %5827
    %5829 = vrot.lane.b32.xlu0 %v5798, 16
    %v5830 = vpop.permute.xlu0 %5829
    %vm5847 = vcmask 261248
    %5848 = vst.msk [vmem:[#allocation4] sm:$0xff] %vm5847, %v5800
    %5849 = vst.msk [vmem:[#allocation4 + $0x10] sm:$0xff] %vm5847, %v5802
    %5850 = vst.msk [vmem:[#allocation4 + $0x20] sm:$0xff] %vm5847, %v5804
    %5851 = vst.msk [vmem:[#allocation4 + $0x30] sm:$0xff] %vm5847, %v5806
    %5852 = vst.msk [vmem:[#allocation4 + $0x40] sm:$0xff] %vm5847, %v5808
    %5853 = vst.msk [vmem:[#allocation4 + $0x50] sm:$0xff] %vm5847, %v5810
    %5854 = vst.msk [vmem:[#allocation4 + $0x60] sm:$0xff] %vm5847, %v5812
    %5855 = vst.msk [vmem:[#allocation4 + $0x70] sm:$0xff] %vm5847, %v5814
    %5856 = vst.msk [vmem:[#allocation4 + $0x80] sm:$0xff] %vm5847, %v5816
    %5857 = vst.msk [vmem:[#allocation4 + $0x90] sm:$0xff] %vm5847, %v5818
    %5858 = vst.msk [vmem:[#allocation4 + $0xa0] sm:$0xff] %vm5847, %v5820
    %5859 = vst.msk [vmem:[#allocation4 + $0xb0] sm:$0xff] %vm5847, %v5822
    %5860 = vst.msk [vmem:[#allocation4 + $0xc0] sm:$0xff] %vm5847, %v5824
    %5861 = vst.msk [vmem:[#allocation4 + $0xd0] sm:$0xff] %vm5847, %v5826
    %5862 = vst.msk [vmem:[#allocation4 + $0xe0] sm:$0xff] %vm5847, %v5828
    %5863 = vst.msk [vmem:[#allocation4 + $0xf0] sm:$0xff] %vm5847, %v5830
    %vm5864 = vcmask 1045504
    %v5865 = vrot.slane %v5662, 2
    %v5866 = vrot.slane %v5663, 2
    %v5867 = vsel %vm5864, %v5865, %v5866
    %v5868 = vrot.slane %v5664, 2
    %v5869 = vrot.slane %v5665, 2
    %v5870 = vsel %vm5864, %v5868, %v5869
    %v5871 = vrot.slane %v5666, 2
    %v5872 = vrot.slane %v5667, 2
    %v5873 = vsel %vm5864, %v5871, %v5872
    %v5874 = vrot.slane %v5668, 2
    %v5875 = vrot.slane %v5669, 2
    %v5876 = vsel %vm5864, %v5874, %v5875
    %v5877 = vrot.slane %v5670, 2
    %v5878 = vrot.slane %v5671, 2
    %v5879 = vsel %vm5864, %v5877, %v5878
    %v5880 = vrot.slane %v5672, 2
    %v5881 = vrot.slane %v5673, 2
    %v5882 = vsel %vm5864, %v5880, %v5881
    %v5883 = vrot.slane %v5674, 2
    %v5884 = vrot.slane %v5675, 2
    %v5885 = vsel %vm5864, %v5883, %v5884
    %v5886 = vrot.slane %v5676, 2
    %v5887 = vrot.slane %v5677, 2
    %v5888 = vsel %vm5864, %v5886, %v5887
    %v5889 = vrot.slane %v5682, 2
    %v5890 = vrot.slane %v5683, 2
    %v5891 = vsel %vm5864, %v5889, %v5890
    %v5892 = vrot.slane %v5684, 2
    %v5893 = vrot.slane %v5685, 2
    %v5894 = vsel %vm5864, %v5892, %v5893
    %v5895 = vrot.slane %v5686, 2
    %v5896 = vrot.slane %v5687, 2
    %v5897 = vsel %vm5864, %v5895, %v5896
    %v5898 = vrot.slane %v5688, 2
    %v5899 = vrot.slane %v5689, 2
    %v5900 = vsel %vm5864, %v5898, %v5899
    %v5901 = vrot.slane %v5690, 2
    %v5902 = vrot.slane %v5691, 2
    %v5903 = vsel %vm5864, %v5901, %v5902
    %v5904 = vrot.slane %v5692, 2
    %v5905 = vrot.slane %v5693, 2
    %v5906 = vsel %vm5864, %v5904, %v5905
    %v5907 = vrot.slane %v5694, 2
    %v5908 = vrot.slane %v5695, 2
    %v5909 = vsel %vm5864, %v5907, %v5908
    %v5910 = vrot.slane %v5696, 2
    %v5911 = vrot.slane %v5697, 2
    %v5912 = vsel %vm5864, %v5910, %v5911
    %5913 = vrot.lane.b32.xlu0 %v5867, 32
    %v5914 = vpop.permute.xlu0 %5913
    %5915 = vrot.lane.b32.xlu0 %v5870, 32
    %v5916 = vpop.permute.xlu0 %5915
    %5917 = vrot.lane.b32.xlu0 %v5873, 32
    %v5918 = vpop.permute.xlu0 %5917
    %5919 = vrot.lane.b32.xlu0 %v5876, 32
    %v5920 = vpop.permute.xlu0 %5919
    %5921 = vrot.lane.b32.xlu0 %v5879, 32
    %v5922 = vpop.permute.xlu0 %5921
    %5923 = vrot.lane.b32.xlu0 %v5882, 32
    %v5924 = vpop.permute.xlu0 %5923
    %5925 = vrot.lane.b32.xlu0 %v5885, 32
    %v5926 = vpop.permute.xlu0 %5925
    %5927 = vrot.lane.b32.xlu0 %v5888, 32
    %v5928 = vpop.permute.xlu0 %5927
    %5929 = vrot.lane.b32.xlu0 %v5891, 32
    %v5930 = vpop.permute.xlu0 %5929
    %5931 = vrot.lane.b32.xlu0 %v5894, 32
    %v5932 = vpop.permute.xlu0 %5931
    %5933 = vrot.lane.b32.xlu0 %v5897, 32
    %v5934 = vpop.permute.xlu0 %5933
    %5935 = vrot.lane.b32.xlu0 %v5900, 32
    %v5936 = vpop.permute.xlu0 %5935
    %5937 = vrot.lane.b32.xlu0 %v5903, 32
    %v5938 = vpop.permute.xlu0 %5937
    %5939 = vrot.lane.b32.xlu0 %v5906, 32
    %v5940 = vpop.permute.xlu0 %5939
    %5941 = vrot.lane.b32.xlu0 %v5909, 32
    %v5942 = vpop.permute.xlu0 %5941
    %5943 = vrot.lane.b32.xlu0 %v5912, 32
    %v5944 = vpop.permute.xlu0 %5943
    %vm5961 = vcmask 392448
    %5962 = vst.msk [vmem:[#allocation4] sm:$0xff] %vm5961, %v5914
    %5963 = vst.msk [vmem:[#allocation4 + $0x10] sm:$0xff] %vm5961, %v5916
    %5964 = vst.msk [vmem:[#allocation4 + $0x20] sm:$0xff] %vm5961, %v5918
    %5965 = vst.msk [vmem:[#allocation4 + $0x30] sm:$0xff] %vm5961, %v5920
    %5966 = vst.msk [vmem:[#allocation4 + $0x40] sm:$0xff] %vm5961, %v5922
    %5967 = vst.msk [vmem:[#allocation4 + $0x50] sm:$0xff] %vm5961, %v5924
    %5968 = vst.msk [vmem:[#allocation4 + $0x60] sm:$0xff] %vm5961, %v5926
    %5969 = vst.msk [vmem:[#allocation4 + $0x70] sm:$0xff] %vm5961, %v5928
    %5970 = vst.msk [vmem:[#allocation4 + $0x80] sm:$0xff] %vm5961, %v5930
    %5971 = vst.msk [vmem:[#allocation4 + $0x90] sm:$0xff] %vm5961, %v5932
    %5972 = vst.msk [vmem:[#allocation4 + $0xa0] sm:$0xff] %vm5961, %v5934
    %5973 = vst.msk [vmem:[#allocation4 + $0xb0] sm:$0xff] %vm5961, %v5936
    %5974 = vst.msk [vmem:[#allocation4 + $0xc0] sm:$0xff] %vm5961, %v5938
    %5975 = vst.msk [vmem:[#allocation4 + $0xd0] sm:$0xff] %vm5961, %v5940
    %5976 = vst.msk [vmem:[#allocation4 + $0xe0] sm:$0xff] %vm5961, %v5942
    %5977 = vst.msk [vmem:[#allocation4 + $0xf0] sm:$0xff] %vm5961, %v5944
    %5980 = vrot.lane.b32.xlu0 %v5664, 48
    %v5981 = vpop.permute.xlu0 %5980
    %5982 = vrot.lane.b32.xlu0 %v5666, 48
    %v5983 = vpop.permute.xlu0 %5982
    %5984 = vrot.lane.b32.xlu0 %v5668, 48
    %v5985 = vpop.permute.xlu0 %5984
    %5986 = vrot.lane.b32.xlu0 %v5670, 48
    %v5987 = vpop.permute.xlu0 %5986
    %5988 = vrot.lane.b32.xlu0 %v5672, 48
    %v5989 = vpop.permute.xlu0 %5988
    %5990 = vrot.lane.b32.xlu0 %v5674, 48
    %v5991 = vpop.permute.xlu0 %5990
    %5992 = vrot.lane.b32.xlu0 %v5676, 48
    %v5993 = vpop.permute.xlu0 %5992
    %5994 = vrot.lane.b32.xlu0 %v5678, 48
    %v5995 = vpop.permute.xlu0 %5994
    %5996 = vrot.lane.b32.xlu0 %v5684, 48
    %v5997 = vpop.permute.xlu0 %5996
    %5998 = vrot.lane.b32.xlu0 %v5686, 48
    %v5999 = vpop.permute.xlu0 %5998
    %6000 = vrot.lane.b32.xlu0 %v5688, 48
    %v6001 = vpop.permute.xlu0 %6000
    %6002 = vrot.lane.b32.xlu0 %v5690, 48
    %v6003 = vpop.permute.xlu0 %6002
    %6004 = vrot.lane.b32.xlu0 %v5692, 48
    %v6005 = vpop.permute.xlu0 %6004
    %6006 = vrot.lane.b32.xlu0 %v5694, 48
    %v6007 = vpop.permute.xlu0 %6006
    %6008 = vrot.lane.b32.xlu0 %v5696, 48
    %v6009 = vpop.permute.xlu0 %6008
    %6010 = vrot.lane.b32.xlu0 %v5698, 48
    %v6011 = vpop.permute.xlu0 %6010
    %vm6028 = vcmask 523648
    %6029 = vst.msk [vmem:[#allocation4] sm:$0xff] %vm6028, %v5981
    %6030 = vst.msk [vmem:[#allocation4 + $0x10] sm:$0xff] %vm6028, %v5983
    %6031 = vst.msk [vmem:[#allocation4 + $0x20] sm:$0xff] %vm6028, %v5985
    %6032 = vst.msk [vmem:[#allocation4 + $0x30] sm:$0xff] %vm6028, %v5987
    %6033 = vst.msk [vmem:[#allocation4 + $0x40] sm:$0xff] %vm6028, %v5989
    %6034 = vst.msk [vmem:[#allocation4 + $0x50] sm:$0xff] %vm6028, %v5991
    %6035 = vst.msk [vmem:[#allocation4 + $0x60] sm:$0xff] %vm6028, %v5993
    %6036 = vst.msk [vmem:[#allocation4 + $0x70] sm:$0xff] %vm6028, %v5995
    %6037 = vst.msk [vmem:[#allocation4 + $0x80] sm:$0xff] %vm6028, %v5997
    %6038 = vst.msk [vmem:[#allocation4 + $0x90] sm:$0xff] %vm6028, %v5999
    %6039 = vst.msk [vmem:[#allocation4 + $0xa0] sm:$0xff] %vm6028, %v6001
    %6040 = vst.msk [vmem:[#allocation4 + $0xb0] sm:$0xff] %vm6028, %v6003
    %6041 = vst.msk [vmem:[#allocation4 + $0xc0] sm:$0xff] %vm6028, %v6005
    %6042 = vst.msk [vmem:[#allocation4 + $0xd0] sm:$0xff] %vm6028, %v6007
    %6043 = vst.msk [vmem:[#allocation4 + $0xe0] sm:$0xff] %vm6028, %v6009
    %6044 = vst.msk [vmem:[#allocation4 + $0xf0] sm:$0xff] %vm6028, %v6011
    %v6047 = vrot.slane %v5678, 1
    %v6048 = vrot.slane %v5679, 1
    %v6049 = vsel %vm5750, %v6047, %v6048
    %v6050 = vrot.slane %v5698, 1
    %v6051 = vrot.slane %v5699, 1
    %v6052 = vsel %vm5750, %v6050, %v6051
    %6053 = vrot.lane.b32.xlu0 %v5756, 64
    %v6054 = vpop.permute.xlu0 %6053
    %6055 = vrot.lane.b32.xlu0 %v5759, 64
    %v6056 = vpop.permute.xlu0 %6055
    %6057 = vrot.lane.b32.xlu0 %v5762, 64
    %v6058 = vpop.permute.xlu0 %6057
    %6059 = vrot.lane.b32.xlu0 %v5765, 64
    %v6060 = vpop.permute.xlu0 %6059
    %6061 = vrot.lane.b32.xlu0 %v5768, 64
    %v6062 = vpop.permute.xlu0 %6061
    %6063 = vrot.lane.b32.xlu0 %v5771, 64
    %v6064 = vpop.permute.xlu0 %6063
    %6065 = vrot.lane.b32.xlu0 %v5774, 64
    %v6066 = vpop.permute.xlu0 %6065
    %6067 = vrot.lane.b32.xlu0 %v6049, 64
    %v6068 = vpop.permute.xlu0 %6067
    %6069 = vrot.lane.b32.xlu0 %v5780, 64
    %v6070 = vpop.permute.xlu0 %6069
    %6071 = vrot.lane.b32.xlu0 %v5783, 64
    %v6072 = vpop.permute.xlu0 %6071
    %6073 = vrot.lane.b32.xlu0 %v5786, 64
    %v6074 = vpop.permute.xlu0 %6073
    %6075 = vrot.lane.b32.xlu0 %v5789, 64
    %v6076 = vpop.permute.xlu0 %6075
    %6077 = vrot.lane.b32.xlu0 %v5792, 64
    %v6078 = vpop.permute.xlu0 %6077
    %6079 = vrot.lane.b32.xlu0 %v5795, 64
    %v6080 = vpop.permute.xlu0 %6079
    %6081 = vrot.lane.b32.xlu0 %v5798, 64
    %v6082 = vpop.permute.xlu0 %6081
    %6083 = vrot.lane.b32.xlu0 %v6052, 64
    %v6084 = vpop.permute.xlu0 %6083
    %vm6101 = vcmask 654848
    %6102 = vst.msk [vmem:[#allocation4] sm:$0xff] %vm6101, %v6054
    %6103 = vst.msk [vmem:[#allocation4 + $0x10] sm:$0xff] %vm6101, %v6056
    %6104 = vst.msk [vmem:[#allocation4 + $0x20] sm:$0xff] %vm6101, %v6058
    %6105 = vst.msk [vmem:[#allocation4 + $0x30] sm:$0xff] %vm6101, %v6060
    %6106 = vst.msk [vmem:[#allocation4 + $0x40] sm:$0xff] %vm6101, %v6062
    %6107 = vst.msk [vmem:[#allocation4 + $0x50] sm:$0xff] %vm6101, %v6064
    %6108 = vst.msk [vmem:[#allocation4 + $0x60] sm:$0xff] %vm6101, %v6066
    %6109 = vst.msk [vmem:[#allocation4 + $0x70] sm:$0xff] %vm6101, %v6068
    %6110 = vst.msk [vmem:[#allocation4 + $0x80] sm:$0xff] %vm6101, %v6070
    %6111 = vst.msk [vmem:[#allocation4 + $0x90] sm:$0xff] %vm6101, %v6072
    %6112 = vst.msk [vmem:[#allocation4 + $0xa0] sm:$0xff] %vm6101, %v6074
    %6113 = vst.msk [vmem:[#allocation4 + $0xb0] sm:$0xff] %vm6101, %v6076
    %6114 = vst.msk [vmem:[#allocation4 + $0xc0] sm:$0xff] %vm6101, %v6078
    %6115 = vst.msk [vmem:[#allocation4 + $0xd0] sm:$0xff] %vm6101, %v6080
    %6116 = vst.msk [vmem:[#allocation4 + $0xe0] sm:$0xff] %vm6101, %v6082
    %6117 = vst.msk [vmem:[#allocation4 + $0xf0] sm:$0xff] %vm6101, %v6084
    %v6118 = vrot.slane %v5678, 2
    %v6119 = vrot.slane %v5679, 2
    %v6120 = vsel %vm5864, %v6118, %v6119
    %v6121 = vrot.slane %v5698, 2
    %v6122 = vrot.slane %v5699, 2
    %v6123 = vsel %vm5864, %v6121, %v6122
    %6124 = vrot.lane.b32.xlu0 %v5870, 80
    %v6125 = vpop.permute.xlu0 %6124
    %6126 = vrot.lane.b32.xlu0 %v5873, 80
    %v6127 = vpop.permute.xlu0 %6126
    %6128 = vrot.lane.b32.xlu0 %v5876, 80
    %v6129 = vpop.permute.xlu0 %6128
    %6130 = vrot.lane.b32.xlu0 %v5879, 80
    %v6131 = vpop.permute.xlu0 %6130
    %6132 = vrot.lane.b32.xlu0 %v5882, 80
    %v6133 = vpop.permute.xlu0 %6132
    %6134 = vrot.lane.b32.xlu0 %v5885, 80
    %v6135 = vpop.permute.xlu0 %6134
    %6136 = vrot.lane.b32.xlu0 %v5888, 80
    %v6137 = vpop.permute.xlu0 %6136
    %6138 = vrot.lane.b32.xlu0 %v6120, 80
    %v6139 = vpop.permute.xlu0 %6138
    %6140 = vrot.lane.b32.xlu0 %v5894, 80
    %v6141 = vpop.permute.xlu0 %6140
    %6142 = vrot.lane.b32.xlu0 %v5897, 80
    %v6143 = vpop.permute.xlu0 %6142
    %6144 = vrot.lane.b32.xlu0 %v5900, 80
    %v6145 = vpop.permute.xlu0 %6144
    %6146 = vrot.lane.b32.xlu0 %v5903, 80
    %v6147 = vpop.permute.xlu0 %6146
    %6148 = vrot.lane.b32.xlu0 %v5906, 80
    %v6149 = vpop.permute.xlu0 %6148
    %6150 = vrot.lane.b32.xlu0 %v5909, 80
    %v6151 = vpop.permute.xlu0 %6150
    %6152 = vrot.lane.b32.xlu0 %v5912, 80
    %v6153 = vpop.permute.xlu0 %6152
    %6154 = vrot.lane.b32.xlu0 %v6123, 80
    %v6155 = vpop.permute.xlu0 %6154
    %vm6172 = vcmask 786048
    %6173 = vst.msk [vmem:[#allocation4] sm:$0xff] %vm6172, %v6125
    %6174 = vst.msk [vmem:[#allocation4 + $0x10] sm:$0xff] %vm6172, %v6127
    %6175 = vst.msk [vmem:[#allocation4 + $0x20] sm:$0xff] %vm6172, %v6129
    %6176 = vst.msk [vmem:[#allocation4 + $0x30] sm:$0xff] %vm6172, %v6131
    %6177 = vst.msk [vmem:[#allocation4 + $0x40] sm:$0xff] %vm6172, %v6133
    %6178 = vst.msk [vmem:[#allocation4 + $0x50] sm:$0xff] %vm6172, %v6135
    %6179 = vst.msk [vmem:[#allocation4 + $0x60] sm:$0xff] %vm6172, %v6137
    %6180 = vst.msk [vmem:[#allocation4 + $0x70] sm:$0xff] %vm6172, %v6139
    %6181 = vst.msk [vmem:[#allocation4 + $0x80] sm:$0xff] %vm6172, %v6141
    %6182 = vst.msk [vmem:[#allocation4 + $0x90] sm:$0xff] %vm6172, %v6143
    %6183 = vst.msk [vmem:[#allocation4 + $0xa0] sm:$0xff] %vm6172, %v6145
    %6184 = vst.msk [vmem:[#allocation4 + $0xb0] sm:$0xff] %vm6172, %v6147
    %6185 = vst.msk [vmem:[#allocation4 + $0xc0] sm:$0xff] %vm6172, %v6149
    %6186 = vst.msk [vmem:[#allocation4 + $0xd0] sm:$0xff] %vm6172, %v6151
    %6187 = vst.msk [vmem:[#allocation4 + $0xe0] sm:$0xff] %vm6172, %v6153
    %6188 = vst.msk [vmem:[#allocation4 + $0xf0] sm:$0xff] %vm6172, %v6155
    %6191 = vrot.lane.b32.xlu0 %v5666, 96
    %v6192 = vpop.permute.xlu0 %6191
    %6193 = vrot.lane.b32.xlu0 %v5668, 96
    %v6194 = vpop.permute.xlu0 %6193
    %6195 = vrot.lane.b32.xlu0 %v5670, 96
    %v6196 = vpop.permute.xlu0 %6195
    %6197 = vrot.lane.b32.xlu0 %v5672, 96
    %v6198 = vpop.permute.xlu0 %6197
    %6199 = vrot.lane.b32.xlu0 %v5674, 96
    %v6200 = vpop.permute.xlu0 %6199
    %6201 = vrot.lane.b32.xlu0 %v5676, 96
    %v6202 = vpop.permute.xlu0 %6201
    %6203 = vrot.lane.b32.xlu0 %v5678, 96
    %v6204 = vpop.permute.xlu0 %6203
    %6205 = vrot.lane.b32.xlu0 %v5680, 96
    %v6206 = vpop.permute.xlu0 %6205
    %6207 = vrot.lane.b32.xlu0 %v5686, 96
    %v6208 = vpop.permute.xlu0 %6207
    %6209 = vrot.lane.b32.xlu0 %v5688, 96
    %v6210 = vpop.permute.xlu0 %6209
    %6211 = vrot.lane.b32.xlu0 %v5690, 96
    %v6212 = vpop.permute.xlu0 %6211
    %6213 = vrot.lane.b32.xlu0 %v5692, 96
    %v6214 = vpop.permute.xlu0 %6213
    %6215 = vrot.lane.b32.xlu0 %v5694, 96
    %v6216 = vpop.permute.xlu0 %6215
    %6217 = vrot.lane.b32.xlu0 %v5696, 96
    %v6218 = vpop.permute.xlu0 %6217
    %6219 = vrot.lane.b32.xlu0 %v5698, 96
    %v6220 = vpop.permute.xlu0 %6219
    %6221 = vrot.lane.b32.xlu0 %v5700, 96
    %v6222 = vpop.permute.xlu0 %6221
    %vm6239 = vcmask 917248
    %6240 = vst.msk [vmem:[#allocation4] sm:$0xff] %vm6239, %v6192
    %6241 = vst.msk [vmem:[#allocation4 + $0x10] sm:$0xff] %vm6239, %v6194
    %6242 = vst.msk [vmem:[#allocation4 + $0x20] sm:$0xff] %vm6239, %v6196
    %6243 = vst.msk [vmem:[#allocation4 + $0x30] sm:$0xff] %vm6239, %v6198
    %6244 = vst.msk [vmem:[#allocation4 + $0x40] sm:$0xff] %vm6239, %v6200
    %6245 = vst.msk [vmem:[#allocation4 + $0x50] sm:$0xff] %vm6239, %v6202
    %6246 = vst.msk [vmem:[#allocation4 + $0x60] sm:$0xff] %vm6239, %v6204
    %6247 = vst.msk [vmem:[#allocation4 + $0x70] sm:$0xff] %vm6239, %v6206
    %6248 = vst.msk [vmem:[#allocation4 + $0x80] sm:$0xff] %vm6239, %v6208
    %6249 = vst.msk [vmem:[#allocation4 + $0x90] sm:$0xff] %vm6239, %v6210
    %6250 = vst.msk [vmem:[#allocation4 + $0xa0] sm:$0xff] %vm6239, %v6212
    %6251 = vst.msk [vmem:[#allocation4 + $0xb0] sm:$0xff] %vm6239, %v6214
    %6252 = vst.msk [vmem:[#allocation4 + $0xc0] sm:$0xff] %vm6239, %v6216
    %6253 = vst.msk [vmem:[#allocation4 + $0xd0] sm:$0xff] %vm6239, %v6218
    %6254 = vst.msk [vmem:[#allocation4 + $0xe0] sm:$0xff] %vm6239, %v6220
    %6255 = vst.msk [vmem:[#allocation4 + $0xf0] sm:$0xff] %vm6239, %v6222
    %v6258 = vrot.slane %v5680, 1
    %v6259 = vrot.slane %v5681, 1
    %v6260 = vsel %vm5750, %v6258, %v6259
    %v6261 = vrot.slane %v5700, 1
    %v6262 = vrot.slane %v5701, 1
    %v6263 = vsel %vm5750, %v6261, %v6262
    %6264 = vrot.lane.b32.xlu0 %v5759, 112
    %v6265 = vpop.permute.xlu0 %6264
    %6266 = vrot.lane.b32.xlu0 %v5762, 112
    %v6267 = vpop.permute.xlu0 %6266
    %6268 = vrot.lane.b32.xlu0 %v5765, 112
    %v6269 = vpop.permute.xlu0 %6268
    %6270 = vrot.lane.b32.xlu0 %v5768, 112
    %v6271 = vpop.permute.xlu0 %6270
    %6272 = vrot.lane.b32.xlu0 %v5771, 112
    %v6273 = vpop.permute.xlu0 %6272
    %6274 = vrot.lane.b32.xlu0 %v5774, 112
    %v6275 = vpop.permute.xlu0 %6274
    %6276 = vrot.lane.b32.xlu0 %v6049, 112
    %v6277 = vpop.permute.xlu0 %6276
    %6278 = vrot.lane.b32.xlu0 %v6260, 112
    %v6279 = vpop.permute.xlu0 %6278
    %6280 = vrot.lane.b32.xlu0 %v5783, 112
    %v6281 = vpop.permute.xlu0 %6280
    %6282 = vrot.lane.b32.xlu0 %v5786, 112
    %v6283 = vpop.permute.xlu0 %6282
    %6284 = vrot.lane.b32.xlu0 %v5789, 112
    %v6285 = vpop.permute.xlu0 %6284
    %6286 = vrot.lane.b32.xlu0 %v5792, 112
    %v6287 = vpop.permute.xlu0 %6286
    %6288 = vrot.lane.b32.xlu0 %v5795, 112
    %v6289 = vpop.permute.xlu0 %6288
    %6290 = vrot.lane.b32.xlu0 %v5798, 112
    %v6291 = vpop.permute.xlu0 %6290
    %6292 = vrot.lane.b32.xlu0 %v6052, 112
    %v6293 = vpop.permute.xlu0 %6292
    %6294 = vrot.lane.b32.xlu0 %v6263, 112
    %v6295 = vpop.permute.xlu0 %6294
    %vm6312 = vcmask 1048448
    %6313 = vst.msk [vmem:[#allocation4] sm:$0xff] %vm6312, %v6265
    %6314 = vst.msk [vmem:[#allocation4 + $0x10] sm:$0xff] %vm6312, %v6267
    %6315 = vst.msk [vmem:[#allocation4 + $0x20] sm:$0xff] %vm6312, %v6269
    %6316 = vst.msk [vmem:[#allocation4 + $0x30] sm:$0xff] %vm6312, %v6271
    %6317 = vst.msk [vmem:[#allocation4 + $0x40] sm:$0xff] %vm6312, %v6273
    %6318 = vst.msk [vmem:[#allocation4 + $0x50] sm:$0xff] %vm6312, %v6275
    %6319 = vst.msk [vmem:[#allocation4 + $0x60] sm:$0xff] %vm6312, %v6277
    %6320 = vst.msk [vmem:[#allocation4 + $0x70] sm:$0xff] %vm6312, %v6279
    %6321 = vst.msk [vmem:[#allocation4 + $0x80] sm:$0xff] %vm6312, %v6281
    %6322 = vst.msk [vmem:[#allocation4 + $0x90] sm:$0xff] %vm6312, %v6283
    %6323 = vst.msk [vmem:[#allocation4 + $0xa0] sm:$0xff] %vm6312, %v6285
    %6324 = vst.msk [vmem:[#allocation4 + $0xb0] sm:$0xff] %vm6312, %v6287
    %6325 = vst.msk [vmem:[#allocation4 + $0xc0] sm:$0xff] %vm6312, %v6289
    %6326 = vst.msk [vmem:[#allocation4 + $0xd0] sm:$0xff] %vm6312, %v6291
    %6327 = vst.msk [vmem:[#allocation4 + $0xe0] sm:$0xff] %vm6312, %v6293
    %6328 = vst.msk [vmem:[#allocation4 + $0xf0] sm:$0xff] %vm6312, %v6295
    %v6329 = vrot.slane %v5680, 2
    %v6330 = vrot.slane %v5681, 2
    %v6331 = vsel %vm5864, %v6329, %v6330
    %v6332 = vrot.slane %v5700, 2
    %v6333 = vrot.slane %v5701, 2
    %v6334 = vsel %vm5864, %v6332, %v6333
    %6351 = vst.msk [vmem:[#allocation4 + $0x8] sm:$0xff] %vm4947, %v5873
    %6352 = vst.msk [vmem:[#allocation4 + $0x18] sm:$0xff] %vm4947, %v5876
    %6353 = vst.msk [vmem:[#allocation4 + $0x28] sm:$0xff] %vm4947, %v5879
    %6354 = vst.msk [vmem:[#allocation4 + $0x38] sm:$0xff] %vm4947, %v5882
    %6355 = vst.msk [vmem:[#allocation4 + $0x48] sm:$0xff] %vm4947, %v5885
    %6356 = vst.msk [vmem:[#allocation4 + $0x58] sm:$0xff] %vm4947, %v5888
    %6357 = vst.msk [vmem:[#allocation4 + $0x68] sm:$0xff] %vm4947, %v6120
    %6358 = vst.msk [vmem:[#allocation4 + $0x78] sm:$0xff] %vm4947, %v6331
    %6359 = vst.msk [vmem:[#allocation4 + $0x88] sm:$0xff] %vm4947, %v5897
    %6360 = vst.msk [vmem:[#allocation4 + $0x98] sm:$0xff] %vm4947, %v5900
    %6361 = vst.msk [vmem:[#allocation4 + $0xa8] sm:$0xff] %vm4947, %v5903
    %6362 = vst.msk [vmem:[#allocation4 + $0xb8] sm:$0xff] %vm4947, %v5906
    %6363 = vst.msk [vmem:[#allocation4 + $0xc8] sm:$0xff] %vm4947, %v5909
    %6364 = vst.msk [vmem:[#allocation4 + $0xd8] sm:$0xff] %vm4947, %v5912
    %6365 = vst.msk [vmem:[#allocation4 + $0xe8] sm:$0xff] %vm4947, %v6123
    %6366 = vst.msk [vmem:[#allocation4 + $0xf8] sm:$0xff] %vm4947, %v6334
    %v6367 = vld [vmem:[#allocation4] sm:$0xff]
    %v6368 = vld [vmem:[#allocation4 + $0x8] sm:$0xff]
    %v6369 = vld [vmem:[#allocation4 + $0x10] sm:$0xff]
    %v6370 = vld [vmem:[#allocation4 + $0x18] sm:$0xff]
    %v6371 = vld [vmem:[#allocation4 + $0x20] sm:$0xff]
    %v6372 = vld [vmem:[#allocation4 + $0x28] sm:$0xff]
    %v6373 = vld [vmem:[#allocation4 + $0x30] sm:$0xff]
    %v6374 = vld [vmem:[#allocation4 + $0x38] sm:$0xff]
    %v6375 = vld [vmem:[#allocation4 + $0x40] sm:$0xff]
    %v6376 = vld [vmem:[#allocation4 + $0x48] sm:$0xff]
    %v6377 = vld [vmem:[#allocation4 + $0x50] sm:$0xff]
    %v6378 = vld [vmem:[#allocation4 + $0x58] sm:$0xff]
    %v6379 = vld [vmem:[#allocation4 + $0x60] sm:$0xff]
    %v6380 = vld [vmem:[#allocation4 + $0x68] sm:$0xff]
    %v6381 = vld [vmem:[#allocation4 + $0x70] sm:$0xff]
    %v6382 = vld [vmem:[#allocation4 + $0x78] sm:$0xff]
    %v6383 = vld [vmem:[#allocation4 + $0x80] sm:$0xff]
    %v6384 = vld [vmem:[#allocation4 + $0x88] sm:$0xff]
    %v6385 = vld [vmem:[#allocation4 + $0x90] sm:$0xff]
    %v6386 = vld [vmem:[#allocation4 + $0x98] sm:$0xff]
    %v6387 = vld [vmem:[#allocation4 + $0xa0] sm:$0xff]
    %v6388 = vld [vmem:[#allocation4 + $0xa8] sm:$0xff]
    %v6389 = vld [vmem:[#allocation4 + $0xb0] sm:$0xff]
    %v6390 = vld [vmem:[#allocation4 + $0xb8] sm:$0xff]
    %v6391 = vld [vmem:[#allocation4 + $0xc0] sm:$0xff]
    %v6392 = vld [vmem:[#allocation4 + $0xc8] sm:$0xff]
    %v6393 = vld [vmem:[#allocation4 + $0xd0] sm:$0xff]
    %v6394 = vld [vmem:[#allocation4 + $0xd8] sm:$0xff]
    %v6395 = vld [vmem:[#allocation4 + $0xe0] sm:$0xff]
    %v6396 = vld [vmem:[#allocation4 + $0xe8] sm:$0xff]
    %v6397 = vld [vmem:[#allocation4 + $0xf0] sm:$0xff]
    %v6398 = vld [vmem:[#allocation4 + $0xf8] sm:$0xff]
    %v6399 = vld [vmem:[%s3] sm:$0xff]
    %v6400 = vld [vmem:[%s3 + $0x8] sm:$0xff]
    %v6401 = vld [vmem:[%s3 + $0x10] sm:$0xff]
    %v6402 = vld [vmem:[%s3 + $0x18] sm:$0xff]
    %v6403 = vld [vmem:[%s3 + $0x20] sm:$0xff]
    %v6404 = vld [vmem:[%s3 + $0x28] sm:$0xff]
    %v6405 = vld [vmem:[%s3 + $0x30] sm:$0xff]
    %v6406 = vld [vmem:[%s3 + $0x38] sm:$0xff]
    %v6407 = vld [vmem:[%s3 + $0x40] sm:$0xff]
    %v6408 = vld [vmem:[%s3 + $0x48] sm:$0xff]
    %v6409 = vld [vmem:[%s3 + $0x50] sm:$0xff]
    %v6410 = vld [vmem:[%s3 + $0x58] sm:$0xff]
    %v6411 = vld [vmem:[%s3 + $0x60] sm:$0xff]
    %v6412 = vld [vmem:[%s3 + $0x68] sm:$0xff]
    %v6413 = vld [vmem:[%s3 + $0x70] sm:$0xff]
    %v6414 = vld [vmem:[%s3 + $0x78] sm:$0xff]
    %v6415 = vld [vmem:[%s3 + $0x80] sm:$0xff]
    %v6416 = vld [vmem:[%s3 + $0x88] sm:$0xff]
    %v6417 = vld [vmem:[%s4] sm:$0x1]
    %v6419 = vperm.slane %v6417, 0
    %v6422 = vsel %vm4947, %v6368, 0
    %v6425 = vsel %vm4947, %v6370, 0
    %v6428 = vsel %vm4947, %v6372, 0
    %v6431 = vsel %vm4947, %v6374, 0
    %v6434 = vsel %vm4947, %v6376, 0
    %v6437 = vsel %vm4947, %v6378, 0
    %v6440 = vsel %vm4947, %v6380, 0
    %v6443 = vsel %vm4947, %v6382, 0
    %v6446 = vsel %vm4947, %v6384, 0
    %v6449 = vsel %vm4947, %v6386, 0
    %v6452 = vsel %vm4947, %v6388, 0
    %v6455 = vsel %vm4947, %v6390, 0
    %v6458 = vsel %vm4947, %v6392, 0
    %v6461 = vsel %vm4947, %v6394, 0
    %v6464 = vsel %vm4947, %v6396, 0
    %v6467 = vsel %vm4947, %v6398, 0
    %6469 = vmatpush.msra.mxu0 %v6414
    %6470 = vmatpush.msra.mxu0 %v6413
    %6471 = vmatpush.msra.mxu0 %v6412
    %6472 = vmatpush.msra.mxu0 %v6411
    %6473 = vmatpush.msra.mxu0 %v6410
    %6474 = vmatpush.msra.mxu0 %v6409
    %6475 = vmatpush.msra.mxu0 %v6408
    %6476 = vmatpush.msra.mxu0 %v6407
    %6477 = vmatpush.msra.mxu0 %v6406
    %6478 = vmatpush.msra.mxu0 %v6405
    %6479 = vmatpush.msra.mxu0 %v6404
    %6480 = vmatpush.msra.mxu0 %v6403
    %6481 = vmatpush.msra.mxu0 %v6402
    %6482 = vmatpush.msra.mxu0 %v6401
    %6483 = vmatpush.msra.mxu0 %v6400
    %6484 = vmatpush.msra.mxu0 %v6399
    %6485 = vmatmul.f32.gmra.mxu0 %v6367
    %v6486 = vpop.f32.mrf.mxu0
    %v6487 = vadd.f32 %v6419, %v6486
    %6488 = vmatmul.f32.gmra.mxu0 %v6369
    %v6489 = vpop.f32.mrf.mxu0
    %v6490 = vadd.f32 %v6419, %v6489
    %6491 = vmatmul.f32.gmra.mxu0 %v6371
    %v6492 = vpop.f32.mrf.mxu0
    %v6493 = vadd.f32 %v6419, %v6492
    %6494 = vmatmul.f32.gmra.mxu0 %v6373
    %v6495 = vpop.f32.mrf.mxu0
    %v6496 = vadd.f32 %v6419, %v6495
    %6497 = vmatmul.f32.gmra.mxu0 %v6375
    %v6498 = vpop.f32.mrf.mxu0
    %v6499 = vadd.f32 %v6419, %v6498
    %6500 = vmatmul.f32.gmra.mxu0 %v6377
    %v6501 = vpop.f32.mrf.mxu0
    %v6502 = vadd.f32 %v6419, %v6501
    %6503 = vmatmul.f32.gmra.mxu0 %v6379
    %v6504 = vpop.f32.mrf.mxu0
    %v6505 = vadd.f32 %v6419, %v6504
    %6506 = vmatmul.f32.gmra.mxu0 %v6381
    %v6507 = vpop.f32.mrf.mxu0
    %v6508 = vadd.f32 %v6419, %v6507
    %6509 = vmatmul.f32.gmra.mxu0 %v6383
    %v6510 = vpop.f32.mrf.mxu0
    %v6511 = vadd.f32 %v6419, %v6510
    %6512 = vmatmul.f32.gmra.mxu0 %v6385
    %v6513 = vpop.f32.mrf.mxu0
    %v6514 = vadd.f32 %v6419, %v6513
    %6515 = vmatmul.f32.gmra.mxu0 %v6387
    %v6516 = vpop.f32.mrf.mxu0
    %v6517 = vadd.f32 %v6419, %v6516
    %6518 = vmatmul.f32.gmra.mxu0 %v6389
    %v6519 = vpop.f32.mrf.mxu0
    %v6520 = vadd.f32 %v6419, %v6519
    %6521 = vmatmul.f32.gmra.mxu0 %v6391
    %v6522 = vpop.f32.mrf.mxu0
    %v6523 = vadd.f32 %v6419, %v6522
    %6524 = vmatmul.f32.gmra.mxu0 %v6393
    %v6525 = vpop.f32.mrf.mxu0
    %v6526 = vadd.f32 %v6419, %v6525
    %6527 = vmatmul.f32.gmra.mxu0 %v6395
    %v6528 = vpop.f32.mrf.mxu0
    %v6529 = vadd.f32 %v6419, %v6528
    %6530 = vmatmul.f32.gmra.mxu0 %v6397
    %v6531 = vpop.f32.mrf.mxu0
    %v6532 = vadd.f32 %v6419, %v6531
    %6533 = vdwg.mxu0
    %6534 = vmatpush.msra.mxu0 0.0
    %6535 = vmatpush.msra.mxu0 0.0
    %6536 = vmatpush.msra.mxu0 0.0
    %6537 = vmatpush.msra.mxu0 0.0
    %6538 = vmatpush.msra.mxu0 0.0
    %6539 = vmatpush.msra.mxu0 0.0
    %6540 = vmatpush.msra.mxu0 0.0
    %6541 = vmatpush.msra.mxu0 0.0
    %6542 = vmatpush.msra.mxu0 0.0
    %6543 = vmatpush.msra.mxu0 0.0
    %6544 = vmatpush.msra.mxu0 0.0
    %6545 = vmatpush.msra.mxu0 0.0
    %6546 = vmatpush.msra.mxu0 0.0
    %6547 = vmatpush.msra.mxu0 0.0
    %6548 = vmatpush.msra.mxu0 %v6416
    %6549 = vmatpush.msra.mxu0 %v6415
    %6550 = vmatmul.f32.gmra.mxu0 %v6422
    %v6551 = vpop.f32.mrf.mxu0
    %v6552 = vadd.f32 %v6487, %v6551
    %6553 = vmatmul.f32.gmra.mxu0 %v6425
    %v6554 = vpop.f32.mrf.mxu0
    %v6555 = vadd.f32 %v6490, %v6554
    %6556 = vmatmul.f32.gmra.mxu0 %v6428
    %v6557 = vpop.f32.mrf.mxu0
    %v6558 = vadd.f32 %v6493, %v6557
    %6559 = vmatmul.f32.gmra.mxu0 %v6431
    %v6560 = vpop.f32.mrf.mxu0
    %v6561 = vadd.f32 %v6496, %v6560
    %6562 = vmatmul.f32.gmra.mxu0 %v6434
    %v6563 = vpop.f32.mrf.mxu0
    %v6564 = vadd.f32 %v6499, %v6563
    %6565 = vmatmul.f32.gmra.mxu0 %v6437
    %v6566 = vpop.f32.mrf.mxu0
    %v6567 = vadd.f32 %v6502, %v6566
    %6568 = vmatmul.f32.gmra.mxu0 %v6440
    %v6569 = vpop.f32.mrf.mxu0
    %v6570 = vadd.f32 %v6505, %v6569
    %6571 = vmatmul.f32.gmra.mxu0 %v6443
    %v6572 = vpop.f32.mrf.mxu0
    %v6573 = vadd.f32 %v6508, %v6572
    %6574 = vmatmul.f32.gmra.mxu0 %v6446
    %v6575 = vpop.f32.mrf.mxu0
    %v6576 = vadd.f32 %v6511, %v6575
    %6577 = vmatmul.f32.gmra.mxu0 %v6449
    %v6578 = vpop.f32.mrf.mxu0
    %v6579 = vadd.f32 %v6514, %v6578
    %6580 = vmatmul.f32.gmra.mxu0 %v6452
    %v6581 = vpop.f32.mrf.mxu0
    %v6582 = vadd.f32 %v6517, %v6581
    %6583 = vmatmul.f32.gmra.mxu0 %v6455
    %v6584 = vpop.f32.mrf.mxu0
    %v6585 = vadd.f32 %v6520, %v6584
    %6586 = vmatmul.f32.gmra.mxu0 %v6458
    %v6587 = vpop.f32.mrf.mxu0
    %v6588 = vadd.f32 %v6523, %v6587
    %6589 = vmatmul.f32.gmra.mxu0 %v6461
    %v6590 = vpop.f32.mrf.mxu0
    %v6591 = vadd.f32 %v6526, %v6590
    %6592 = vmatmul.f32.gmra.mxu0 %v6464
    %v6593 = vpop.f32.mrf.mxu0
    %v6594 = vadd.f32 %v6529, %v6593
    %6595 = vmatmul.f32.gmra.mxu0 %v6467
    %v6596 = vpop.f32.mrf.mxu0
    %v6597 = vadd.f32 %v6532, %v6596
    %6598 = vdwg.mxu0
    %v6599 = vmax.f32 %v6552, 0.0
    %v6600 = vmax.f32 %v6555, 0.0
    %v6601 = vmax.f32 %v6558, 0.0
    %v6602 = vmax.f32 %v6561, 0.0
    %v6603 = vmax.f32 %v6564, 0.0
    %v6604 = vmax.f32 %v6567, 0.0
    %v6605 = vmax.f32 %v6570, 0.0
    %v6606 = vmax.f32 %v6573, 0.0
    %v6607 = vmax.f32 %v6576, 0.0
    %v6608 = vmax.f32 %v6579, 0.0
    %v6609 = vmax.f32 %v6582, 0.0
    %v6610 = vmax.f32 %v6585, 0.0
    %v6611 = vmax.f32 %v6588, 0.0
    %v6612 = vmax.f32 %v6591, 0.0
    %v6613 = vmax.f32 %v6594, 0.0
    %v6614 = vmax.f32 %v6597, 0.0
    %v6631 = vrot.slane %v6599, 2
    %v6632 = vrot.slane %v6599, 4
    %v6633 = vrot.slane %v6599, 6
    %v6634 = vrot.slane %v6600, 2
    %v6635 = vrot.slane %v6600, 4
    %v6636 = vrot.slane %v6600, 6
    %v6637 = vrot.slane %v6601, 2
    %v6638 = vrot.slane %v6601, 4
    %v6639 = vrot.slane %v6601, 6
    %v6640 = vrot.slane %v6602, 2
    %v6641 = vrot.slane %v6602, 4
    %v6642 = vrot.slane %v6602, 6
    %v6643 = vrot.slane %v6603, 2
    %v6644 = vrot.slane %v6603, 4
    %v6645 = vrot.slane %v6603, 6
    %v6646 = vrot.slane %v6604, 2
    %v6647 = vrot.slane %v6604, 4
    %v6648 = vrot.slane %v6604, 6
    %v6649 = vrot.slane %v6605, 2
    %v6650 = vrot.slane %v6605, 4
    %v6651 = vrot.slane %v6605, 6
    %v6652 = vrot.slane %v6606, 2
    %v6653 = vrot.slane %v6606, 4
    %v6654 = vrot.slane %v6606, 6
    %v6655 = vrot.slane %v6607, 2
    %v6656 = vrot.slane %v6607, 4
    %v6657 = vrot.slane %v6607, 6
    %v6658 = vrot.slane %v6608, 2
    %v6659 = vrot.slane %v6608, 4
    %v6660 = vrot.slane %v6608, 6
    %v6661 = vrot.slane %v6609, 2
    %v6662 = vrot.slane %v6609, 4
    %v6663 = vrot.slane %v6609, 6
    %v6664 = vrot.slane %v6610, 2
    %v6665 = vrot.slane %v6610, 4
    %v6666 = vrot.slane %v6610, 6
    %v6667 = vrot.slane %v6611, 2
    %v6668 = vrot.slane %v6611, 4
    %v6669 = vrot.slane %v6611, 6
    %v6670 = vrot.slane %v6612, 2
    %v6671 = vrot.slane %v6612, 4
    %v6672 = vrot.slane %v6612, 6
    %v6673 = vrot.slane %v6613, 2
    %v6674 = vrot.slane %v6613, 4
    %v6675 = vrot.slane %v6613, 6
    %v6676 = vrot.slane %v6614, 2
    %v6677 = vrot.slane %v6614, 4
    %v6678 = vrot.slane %v6614, 6
    %vm6727 = vcmask 254976
    %v6728 = vsel %vm6727, %v6599, -inf
    %v6729 = vrot.slane %v6728, 4
    %v6730 = vmax.f32 %v6728, %v6729
    %v6731 = vrot.slane %v6730, 2
    %v6732 = vmax.f32 %v6730, %v6731
    %v6733 = vrot.slane %v6732, 1
    %v6734 = vmax.f32 %v6732, %v6733
    %v6735 = vsel %vm6727, %v6631, -inf
    %v6736 = vrot.slane %v6735, 4
    %v6737 = vmax.f32 %v6735, %v6736
    %v6738 = vrot.slane %v6737, 2
    %v6739 = vmax.f32 %v6737, %v6738
    %v6740 = vrot.slane %v6739, 1
    %v6741 = vmax.f32 %v6739, %v6740
    %v6742 = vsel %vm6727, %v6632, -inf
    %v6743 = vrot.slane %v6742, 4
    %v6744 = vmax.f32 %v6742, %v6743
    %v6745 = vrot.slane %v6744, 2
    %v6746 = vmax.f32 %v6744, %v6745
    %v6747 = vrot.slane %v6746, 1
    %v6748 = vmax.f32 %v6746, %v6747
    %v6749 = vsel %vm6727, %v6633, -inf
    %v6750 = vrot.slane %v6749, 4
    %v6751 = vmax.f32 %v6749, %v6750
    %v6752 = vrot.slane %v6751, 2
    %v6753 = vmax.f32 %v6751, %v6752
    %v6754 = vrot.slane %v6753, 1
    %v6755 = vmax.f32 %v6753, %v6754
    %v6756 = vsel %vm6727, %v6600, -inf
    %v6757 = vrot.slane %v6756, 4
    %v6758 = vmax.f32 %v6756, %v6757
    %v6759 = vrot.slane %v6758, 2
    %v6760 = vmax.f32 %v6758, %v6759
    %v6761 = vrot.slane %v6760, 1
    %v6762 = vmax.f32 %v6760, %v6761
    %v6763 = vsel %vm6727, %v6634, -inf
    %v6764 = vrot.slane %v6763, 4
    %v6765 = vmax.f32 %v6763, %v6764
    %v6766 = vrot.slane %v6765, 2
    %v6767 = vmax.f32 %v6765, %v6766
    %v6768 = vrot.slane %v6767, 1
    %v6769 = vmax.f32 %v6767, %v6768
    %v6770 = vsel %vm6727, %v6635, -inf
    %v6771 = vrot.slane %v6770, 4
    %v6772 = vmax.f32 %v6770, %v6771
    %v6773 = vrot.slane %v6772, 2
    %v6774 = vmax.f32 %v6772, %v6773
    %v6775 = vrot.slane %v6774, 1
    %v6776 = vmax.f32 %v6774, %v6775
    %v6777 = vsel %vm6727, %v6636, -inf
    %v6778 = vrot.slane %v6777, 4
    %v6779 = vmax.f32 %v6777, %v6778
    %v6780 = vrot.slane %v6779, 2
    %v6781 = vmax.f32 %v6779, %v6780
    %v6782 = vrot.slane %v6781, 1
    %v6783 = vmax.f32 %v6781, %v6782
    %v6784 = vsel %vm6727, %v6601, -inf
    %v6785 = vrot.slane %v6784, 4
    %v6786 = vmax.f32 %v6784, %v6785
    %v6787 = vrot.slane %v6786, 2
    %v6788 = vmax.f32 %v6786, %v6787
    %v6789 = vrot.slane %v6788, 1
    %v6790 = vmax.f32 %v6788, %v6789
    %v6791 = vsel %vm6727, %v6637, -inf
    %v6792 = vrot.slane %v6791, 4
    %v6793 = vmax.f32 %v6791, %v6792
    %v6794 = vrot.slane %v6793, 2
    %v6795 = vmax.f32 %v6793, %v6794
    %v6796 = vrot.slane %v6795, 1
    %v6797 = vmax.f32 %v6795, %v6796
    %v6798 = vsel %vm6727, %v6638, -inf
    %v6799 = vrot.slane %v6798, 4
    %v6800 = vmax.f32 %v6798, %v6799
    %v6801 = vrot.slane %v6800, 2
    %v6802 = vmax.f32 %v6800, %v6801
    %v6803 = vrot.slane %v6802, 1
    %v6804 = vmax.f32 %v6802, %v6803
    %v6805 = vsel %vm6727, %v6639, -inf
    %v6806 = vrot.slane %v6805, 4
    %v6807 = vmax.f32 %v6805, %v6806
    %v6808 = vrot.slane %v6807, 2
    %v6809 = vmax.f32 %v6807, %v6808
    %v6810 = vrot.slane %v6809, 1
    %v6811 = vmax.f32 %v6809, %v6810
    %v6812 = vsel %vm6727, %v6602, -inf
    %v6813 = vrot.slane %v6812, 4
    %v6814 = vmax.f32 %v6812, %v6813
    %v6815 = vrot.slane %v6814, 2
    %v6816 = vmax.f32 %v6814, %v6815
    %v6817 = vrot.slane %v6816, 1
    %v6818 = vmax.f32 %v6816, %v6817
    %v6819 = vsel %vm6727, %v6640, -inf
    %v6820 = vrot.slane %v6819, 4
    %v6821 = vmax.f32 %v6819, %v6820
    %v6822 = vrot.slane %v6821, 2
    %v6823 = vmax.f32 %v6821, %v6822
    %v6824 = vrot.slane %v6823, 1
    %v6825 = vmax.f32 %v6823, %v6824
    %v6826 = vsel %vm6727, %v6641, -inf
    %v6827 = vrot.slane %v6826, 4
    %v6828 = vmax.f32 %v6826, %v6827
    %v6829 = vrot.slane %v6828, 2
    %v6830 = vmax.f32 %v6828, %v6829
    %v6831 = vrot.slane %v6830, 1
    %v6832 = vmax.f32 %v6830, %v6831
    %v6833 = vsel %vm6727, %v6642, -inf
    %v6834 = vrot.slane %v6833, 4
    %v6835 = vmax.f32 %v6833, %v6834
    %v6836 = vrot.slane %v6835, 2
    %v6837 = vmax.f32 %v6835, %v6836
    %v6838 = vrot.slane %v6837, 1
    %v6839 = vmax.f32 %v6837, %v6838
    %v6840 = vsel %vm6727, %v6603, -inf
    %v6841 = vrot.slane %v6840, 4
    %v6842 = vmax.f32 %v6840, %v6841
    %v6843 = vrot.slane %v6842, 2
    %v6844 = vmax.f32 %v6842, %v6843
    %v6845 = vrot.slane %v6844, 1
    %v6846 = vmax.f32 %v6844, %v6845
    %v6847 = vsel %vm6727, %v6643, -inf
    %v6848 = vrot.slane %v6847, 4
    %v6849 = vmax.f32 %v6847, %v6848
    %v6850 = vrot.slane %v6849, 2
    %v6851 = vmax.f32 %v6849, %v6850
    %v6852 = vrot.slane %v6851, 1
    %v6853 = vmax.f32 %v6851, %v6852
    %v6854 = vsel %vm6727, %v6644, -inf
    %v6855 = vrot.slane %v6854, 4
    %v6856 = vmax.f32 %v6854, %v6855
    %v6857 = vrot.slane %v6856, 2
    %v6858 = vmax.f32 %v6856, %v6857
    %v6859 = vrot.slane %v6858, 1
    %v6860 = vmax.f32 %v6858, %v6859
    %v6861 = vsel %vm6727, %v6645, -inf
    %v6862 = vrot.slane %v6861, 4
    %v6863 = vmax.f32 %v6861, %v6862
    %v6864 = vrot.slane %v6863, 2
    %v6865 = vmax.f32 %v6863, %v6864
    %v6866 = vrot.slane %v6865, 1
    %v6867 = vmax.f32 %v6865, %v6866
    %v6868 = vsel %vm6727, %v6604, -inf
    %v6869 = vrot.slane %v6868, 4
    %v6870 = vmax.f32 %v6868, %v6869
    %v6871 = vrot.slane %v6870, 2
    %v6872 = vmax.f32 %v6870, %v6871
    %v6873 = vrot.slane %v6872, 1
    %v6874 = vmax.f32 %v6872, %v6873
    %v6875 = vsel %vm6727, %v6646, -inf
    %v6876 = vrot.slane %v6875, 4
    %v6877 = vmax.f32 %v6875, %v6876
    %v6878 = vrot.slane %v6877, 2
    %v6879 = vmax.f32 %v6877, %v6878
    %v6880 = vrot.slane %v6879, 1
    %v6881 = vmax.f32 %v6879, %v6880
    %v6882 = vsel %vm6727, %v6647, -inf
    %v6883 = vrot.slane %v6882, 4
    %v6884 = vmax.f32 %v6882, %v6883
    %v6885 = vrot.slane %v6884, 2
    %v6886 = vmax.f32 %v6884, %v6885
    %v6887 = vrot.slane %v6886, 1
    %v6888 = vmax.f32 %v6886, %v6887
    %v6889 = vsel %vm6727, %v6648, -inf
    %v6890 = vrot.slane %v6889, 4
    %v6891 = vmax.f32 %v6889, %v6890
    %v6892 = vrot.slane %v6891, 2
    %v6893 = vmax.f32 %v6891, %v6892
    %v6894 = vrot.slane %v6893, 1
    %v6895 = vmax.f32 %v6893, %v6894
    %v6896 = vsel %vm6727, %v6605, -inf
    %v6897 = vrot.slane %v6896, 4
    %v6898 = vmax.f32 %v6896, %v6897
    %v6899 = vrot.slane %v6898, 2
    %v6900 = vmax.f32 %v6898, %v6899
    %v6901 = vrot.slane %v6900, 1
    %v6902 = vmax.f32 %v6900, %v6901
    %v6903 = vsel %vm6727, %v6649, -inf
    %v6904 = vrot.slane %v6903, 4
    %v6905 = vmax.f32 %v6903, %v6904
    %v6906 = vrot.slane %v6905, 2
    %v6907 = vmax.f32 %v6905, %v6906
    %v6908 = vrot.slane %v6907, 1
    %v6909 = vmax.f32 %v6907, %v6908
    %v6910 = vsel %vm6727, %v6650, -inf
    %v6911 = vrot.slane %v6910, 4
    %v6912 = vmax.f32 %v6910, %v6911
    %v6913 = vrot.slane %v6912, 2
    %v6914 = vmax.f32 %v6912, %v6913
    %v6915 = vrot.slane %v6914, 1
    %v6916 = vmax.f32 %v6914, %v6915
    %v6917 = vsel %vm6727, %v6651, -inf
    %v6918 = vrot.slane %v6917, 4
    %v6919 = vmax.f32 %v6917, %v6918
    %v6920 = vrot.slane %v6919, 2
    %v6921 = vmax.f32 %v6919, %v6920
    %v6922 = vrot.slane %v6921, 1
    %v6923 = vmax.f32 %v6921, %v6922
    %v6924 = vsel %vm6727, %v6606, -inf
    %v6925 = vrot.slane %v6924, 4
    %v6926 = vmax.f32 %v6924, %v6925
    %v6927 = vrot.slane %v6926, 2
    %v6928 = vmax.f32 %v6926, %v6927
    %v6929 = vrot.slane %v6928, 1
    %v6930 = vmax.f32 %v6928, %v6929
    %v6931 = vsel %vm6727, %v6652, -inf
    %v6932 = vrot.slane %v6931, 4
    %v6933 = vmax.f32 %v6931, %v6932
    %v6934 = vrot.slane %v6933, 2
    %v6935 = vmax.f32 %v6933, %v6934
    %v6936 = vrot.slane %v6935, 1
    %v6937 = vmax.f32 %v6935, %v6936
    %v6938 = vsel %vm6727, %v6653, -inf
    %v6939 = vrot.slane %v6938, 4
    %v6940 = vmax.f32 %v6938, %v6939
    %v6941 = vrot.slane %v6940, 2
    %v6942 = vmax.f32 %v6940, %v6941
    %v6943 = vrot.slane %v6942, 1
    %v6944 = vmax.f32 %v6942, %v6943
    %v6945 = vsel %vm6727, %v6654, -inf
    %v6946 = vrot.slane %v6945, 4
    %v6947 = vmax.f32 %v6945, %v6946
    %v6948 = vrot.slane %v6947, 2
    %v6949 = vmax.f32 %v6947, %v6948
    %v6950 = vrot.slane %v6949, 1
    %v6951 = vmax.f32 %v6949, %v6950
    %v6952 = vsel %vm6727, %v6607, -inf
    %v6953 = vrot.slane %v6952, 4
    %v6954 = vmax.f32 %v6952, %v6953
    %v6955 = vrot.slane %v6954, 2
    %v6956 = vmax.f32 %v6954, %v6955
    %v6957 = vrot.slane %v6956, 1
    %v6958 = vmax.f32 %v6956, %v6957
    %v6959 = vsel %vm6727, %v6655, -inf
    %v6960 = vrot.slane %v6959, 4
    %v6961 = vmax.f32 %v6959, %v6960
    %v6962 = vrot.slane %v6961, 2
    %v6963 = vmax.f32 %v6961, %v6962
    %v6964 = vrot.slane %v6963, 1
    %v6965 = vmax.f32 %v6963, %v6964
    %v6966 = vsel %vm6727, %v6656, -inf
    %v6967 = vrot.slane %v6966, 4
    %v6968 = vmax.f32 %v6966, %v6967
    %v6969 = vrot.slane %v6968, 2
    %v6970 = vmax.f32 %v6968, %v6969
    %v6971 = vrot.slane %v6970, 1
    %v6972 = vmax.f32 %v6970, %v6971
    %v6973 = vsel %vm6727, %v6657, -inf
    %v6974 = vrot.slane %v6973, 4
    %v6975 = vmax.f32 %v6973, %v6974
    %v6976 = vrot.slane %v6975, 2
    %v6977 = vmax.f32 %v6975, %v6976
    %v6978 = vrot.slane %v6977, 1
    %v6979 = vmax.f32 %v6977, %v6978
    %v6980 = vsel %vm6727, %v6608, -inf
    %v6981 = vrot.slane %v6980, 4
    %v6982 = vmax.f32 %v6980, %v6981
    %v6983 = vrot.slane %v6982, 2
    %v6984 = vmax.f32 %v6982, %v6983
    %v6985 = vrot.slane %v6984, 1
    %v6986 = vmax.f32 %v6984, %v6985
    %v6987 = vsel %vm6727, %v6658, -inf
    %v6988 = vrot.slane %v6987, 4
    %v6989 = vmax.f32 %v6987, %v6988
    %v6990 = vrot.slane %v6989, 2
    %v6991 = vmax.f32 %v6989, %v6990
    %v6992 = vrot.slane %v6991, 1
    %v6993 = vmax.f32 %v6991, %v6992
    %v6994 = vsel %vm6727, %v6659, -inf
    %v6995 = vrot.slane %v6994, 4
    %v6996 = vmax.f32 %v6994, %v6995
    %v6997 = vrot.slane %v6996, 2
    %v6998 = vmax.f32 %v6996, %v6997
    %v6999 = vrot.slane %v6998, 1
    %v7000 = vmax.f32 %v6998, %v6999
    %v7001 = vsel %vm6727, %v6660, -inf
    %v7002 = vrot.slane %v7001, 4
    %v7003 = vmax.f32 %v7001, %v7002
    %v7004 = vrot.slane %v7003, 2
    %v7005 = vmax.f32 %v7003, %v7004
    %v7006 = vrot.slane %v7005, 1
    %v7007 = vmax.f32 %v7005, %v7006
    %v7008 = vsel %vm6727, %v6609, -inf
    %v7009 = vrot.slane %v7008, 4
    %v7010 = vmax.f32 %v7008, %v7009
    %v7011 = vrot.slane %v7010, 2
    %v7012 = vmax.f32 %v7010, %v7011
    %v7013 = vrot.slane %v7012, 1
    %v7014 = vmax.f32 %v7012, %v7013
    %v7015 = vsel %vm6727, %v6661, -inf
    %v7016 = vrot.slane %v7015, 4
    %v7017 = vmax.f32 %v7015, %v7016
    %v7018 = vrot.slane %v7017, 2
    %v7019 = vmax.f32 %v7017, %v7018
    %v7020 = vrot.slane %v7019, 1
    %v7021 = vmax.f32 %v7019, %v7020
    %v7022 = vsel %vm6727, %v6662, -inf
    %v7023 = vrot.slane %v7022, 4
    %v7024 = vmax.f32 %v7022, %v7023
    %v7025 = vrot.slane %v7024, 2
    %v7026 = vmax.f32 %v7024, %v7025
    %v7027 = vrot.slane %v7026, 1
    %v7028 = vmax.f32 %v7026, %v7027
    %v7029 = vsel %vm6727, %v6663, -inf
    %v7030 = vrot.slane %v7029, 4
    %v7031 = vmax.f32 %v7029, %v7030
    %v7032 = vrot.slane %v7031, 2
    %v7033 = vmax.f32 %v7031, %v7032
    %v7034 = vrot.slane %v7033, 1
    %v7035 = vmax.f32 %v7033, %v7034
    %v7036 = vsel %vm6727, %v6610, -inf
    %v7037 = vrot.slane %v7036, 4
    %v7038 = vmax.f32 %v7036, %v7037
    %v7039 = vrot.slane %v7038, 2
    %v7040 = vmax.f32 %v7038, %v7039
    %v7041 = vrot.slane %v7040, 1
    %v7042 = vmax.f32 %v7040, %v7041
    %v7043 = vsel %vm6727, %v6664, -inf
    %v7044 = vrot.slane %v7043, 4
    %v7045 = vmax.f32 %v7043, %v7044
    %v7046 = vrot.slane %v7045, 2
    %v7047 = vmax.f32 %v7045, %v7046
    %v7048 = vrot.slane %v7047, 1
    %v7049 = vmax.f32 %v7047, %v7048
    %v7050 = vsel %vm6727, %v6665, -inf
    %v7051 = vrot.slane %v7050, 4
    %v7052 = vmax.f32 %v7050, %v7051
    %v7053 = vrot.slane %v7052, 2
    %v7054 = vmax.f32 %v7052, %v7053
    %v7055 = vrot.slane %v7054, 1
    %v7056 = vmax.f32 %v7054, %v7055
    %v7057 = vsel %vm6727, %v6666, -inf
    %v7058 = vrot.slane %v7057, 4
    %v7059 = vmax.f32 %v7057, %v7058
    %v7060 = vrot.slane %v7059, 2
    %v7061 = vmax.f32 %v7059, %v7060
    %v7062 = vrot.slane %v7061, 1
    %v7063 = vmax.f32 %v7061, %v7062
    %v7064 = vsel %vm6727, %v6611, -inf
    %v7065 = vrot.slane %v7064, 4
    %v7066 = vmax.f32 %v7064, %v7065
    %v7067 = vrot.slane %v7066, 2
    %v7068 = vmax.f32 %v7066, %v7067
    %v7069 = vrot.slane %v7068, 1
    %v7070 = vmax.f32 %v7068, %v7069
    %v7071 = vsel %vm6727, %v6667, -inf
    %v7072 = vrot.slane %v7071, 4
    %v7073 = vmax.f32 %v7071, %v7072
    %v7074 = vrot.slane %v7073, 2
    %v7075 = vmax.f32 %v7073, %v7074
    %v7076 = vrot.slane %v7075, 1
    %v7077 = vmax.f32 %v7075, %v7076
    %v7078 = vsel %vm6727, %v6668, -inf
    %v7079 = vrot.slane %v7078, 4
    %v7080 = vmax.f32 %v7078, %v7079
    %v7081 = vrot.slane %v7080, 2
    %v7082 = vmax.f32 %v7080, %v7081
    %v7083 = vrot.slane %v7082, 1
    %v7084 = vmax.f32 %v7082, %v7083
    %v7085 = vsel %vm6727, %v6669, -inf
    %v7086 = vrot.slane %v7085, 4
    %v7087 = vmax.f32 %v7085, %v7086
    %v7088 = vrot.slane %v7087, 2
    %v7089 = vmax.f32 %v7087, %v7088
    %v7090 = vrot.slane %v7089, 1
    %v7091 = vmax.f32 %v7089, %v7090
    %v7092 = vsel %vm6727, %v6612, -inf
    %v7093 = vrot.slane %v7092, 4
    %v7094 = vmax.f32 %v7092, %v7093
    %v7095 = vrot.slane %v7094, 2
    %v7096 = vmax.f32 %v7094, %v7095
    %v7097 = vrot.slane %v7096, 1
    %v7098 = vmax.f32 %v7096, %v7097
    %v7099 = vsel %vm6727, %v6670, -inf
    %v7100 = vrot.slane %v7099, 4
    %v7101 = vmax.f32 %v7099, %v7100
    %v7102 = vrot.slane %v7101, 2
    %v7103 = vmax.f32 %v7101, %v7102
    %v7104 = vrot.slane %v7103, 1
    %v7105 = vmax.f32 %v7103, %v7104
    %v7106 = vsel %vm6727, %v6671, -inf
    %v7107 = vrot.slane %v7106, 4
    %v7108 = vmax.f32 %v7106, %v7107
    %v7109 = vrot.slane %v7108, 2
    %v7110 = vmax.f32 %v7108, %v7109
    %v7111 = vrot.slane %v7110, 1
    %v7112 = vmax.f32 %v7110, %v7111
    %v7113 = vsel %vm6727, %v6672, -inf
    %v7114 = vrot.slane %v7113, 4
    %v7115 = vmax.f32 %v7113, %v7114
    %v7116 = vrot.slane %v7115, 2
    %v7117 = vmax.f32 %v7115, %v7116
    %v7118 = vrot.slane %v7117, 1
    %v7119 = vmax.f32 %v7117, %v7118
    %v7120 = vsel %vm6727, %v6613, -inf
    %v7121 = vrot.slane %v7120, 4
    %v7122 = vmax.f32 %v7120, %v7121
    %v7123 = vrot.slane %v7122, 2
    %v7124 = vmax.f32 %v7122, %v7123
    %v7125 = vrot.slane %v7124, 1
    %v7126 = vmax.f32 %v7124, %v7125
    %v7127 = vsel %vm6727, %v6673, -inf
    %v7128 = vrot.slane %v7127, 4
    %v7129 = vmax.f32 %v7127, %v7128
    %v7130 = vrot.slane %v7129, 2
    %v7131 = vmax.f32 %v7129, %v7130
    %v7132 = vrot.slane %v7131, 1
    %v7133 = vmax.f32 %v7131, %v7132
    %v7134 = vsel %vm6727, %v6674, -inf
    %v7135 = vrot.slane %v7134, 4
    %v7136 = vmax.f32 %v7134, %v7135
    %v7137 = vrot.slane %v7136, 2
    %v7138 = vmax.f32 %v7136, %v7137
    %v7139 = vrot.slane %v7138, 1
    %v7140 = vmax.f32 %v7138, %v7139
    %v7141 = vsel %vm6727, %v6675, -inf
    %v7142 = vrot.slane %v7141, 4
    %v7143 = vmax.f32 %v7141, %v7142
    %v7144 = vrot.slane %v7143, 2
    %v7145 = vmax.f32 %v7143, %v7144
    %v7146 = vrot.slane %v7145, 1
    %v7147 = vmax.f32 %v7145, %v7146
    %v7148 = vsel %vm6727, %v6614, -inf
    %v7149 = vrot.slane %v7148, 4
    %v7150 = vmax.f32 %v7148, %v7149
    %v7151 = vrot.slane %v7150, 2
    %v7152 = vmax.f32 %v7150, %v7151
    %v7153 = vrot.slane %v7152, 1
    %v7154 = vmax.f32 %v7152, %v7153
    %v7155 = vsel %vm6727, %v6676, -inf
    %v7156 = vrot.slane %v7155, 4
    %v7157 = vmax.f32 %v7155, %v7156
    %v7158 = vrot.slane %v7157, 2
    %v7159 = vmax.f32 %v7157, %v7158
    %v7160 = vrot.slane %v7159, 1
    %v7161 = vmax.f32 %v7159, %v7160
    %v7162 = vsel %vm6727, %v6677, -inf
    %v7163 = vrot.slane %v7162, 4
    %v7164 = vmax.f32 %v7162, %v7163
    %v7165 = vrot.slane %v7164, 2
    %v7166 = vmax.f32 %v7164, %v7165
    %v7167 = vrot.slane %v7166, 1
    %v7168 = vmax.f32 %v7166, %v7167
    %v7169 = vsel %vm6727, %v6678, -inf
    %v7170 = vrot.slane %v7169, 4
    %v7171 = vmax.f32 %v7169, %v7170
    %v7172 = vrot.slane %v7171, 2
    %v7173 = vmax.f32 %v7171, %v7172
    %v7174 = vrot.slane %v7173, 1
    %v7175 = vmax.f32 %v7173, %v7174
    %vm7176 = vcmask 261120
    %v7177 = vsel %vm7176, %v6734, -inf
    %v7178 = vsel %vm7176, %v6762, -inf
    %v7179 = vmax.f32 %v7177, %v7178
    %v7180 = vsel %vm7176, %v6741, -inf
    %v7181 = vsel %vm7176, %v6769, -inf
    %v7182 = vmax.f32 %v7180, %v7181
    %v7183 = vsel %vm7176, %v6748, -inf
    %v7184 = vsel %vm7176, %v6776, -inf
    %v7185 = vmax.f32 %v7183, %v7184
    %v7186 = vsel %vm7176, %v6755, -inf
    %v7187 = vsel %vm7176, %v6783, -inf
    %v7188 = vmax.f32 %v7186, %v7187
    %v7189 = vsel %vm7176, %v6790, -inf
    %v7190 = vsel %vm7176, %v6818, -inf
    %v7191 = vmax.f32 %v7189, %v7190
    %v7192 = vsel %vm7176, %v6797, -inf
    %v7193 = vsel %vm7176, %v6825, -inf
    %v7194 = vmax.f32 %v7192, %v7193
    %v7195 = vsel %vm7176, %v6804, -inf
    %v7196 = vsel %vm7176, %v6832, -inf
    %v7197 = vmax.f32 %v7195, %v7196
    %v7198 = vsel %vm7176, %v6811, -inf
    %v7199 = vsel %vm7176, %v6839, -inf
    %v7200 = vmax.f32 %v7198, %v7199
    %v7201 = vsel %vm7176, %v6846, -inf
    %v7202 = vsel %vm7176, %v6874, -inf
    %v7203 = vmax.f32 %v7201, %v7202
    %v7204 = vsel %vm7176, %v6853, -inf
    %v7205 = vsel %vm7176, %v6881, -inf
    %v7206 = vmax.f32 %v7204, %v7205
    %v7207 = vsel %vm7176, %v6860, -inf
    %v7208 = vsel %vm7176, %v6888, -inf
    %v7209 = vmax.f32 %v7207, %v7208
    %v7210 = vsel %vm7176, %v6867, -inf
    %v7211 = vsel %vm7176, %v6895, -inf
    %v7212 = vmax.f32 %v7210, %v7211
    %v7213 = vsel %vm7176, %v6902, -inf
    %v7214 = vsel %vm7176, %v6930, -inf
    %v7215 = vmax.f32 %v7213, %v7214
    %v7216 = vsel %vm7176, %v6909, -inf
    %v7217 = vsel %vm7176, %v6937, -inf
    %v7218 = vmax.f32 %v7216, %v7217
    %v7219 = vsel %vm7176, %v6916, -inf
    %v7220 = vsel %vm7176, %v6944, -inf
    %v7221 = vmax.f32 %v7219, %v7220
    %v7222 = vsel %vm7176, %v6923, -inf
    %v7223 = vsel %vm7176, %v6951, -inf
    %v7224 = vmax.f32 %v7222, %v7223
    %v7225 = vsel %vm7176, %v6958, -inf
    %v7226 = vsel %vm7176, %v6986, -inf
    %v7227 = vmax.f32 %v7225, %v7226
    %v7228 = vsel %vm7176, %v6965, -inf
    %v7229 = vsel %vm7176, %v6993, -inf
    %v7230 = vmax.f32 %v7228, %v7229
    %v7231 = vsel %vm7176, %v6972, -inf
    %v7232 = vsel %vm7176, %v7000, -inf
    %v7233 = vmax.f32 %v7231, %v7232
    %v7234 = vsel %vm7176, %v6979, -inf
    %v7235 = vsel %vm7176, %v7007, -inf
    %v7236 = vmax.f32 %v7234, %v7235
    %v7237 = vsel %vm7176, %v7014, -inf
    %v7238 = vsel %vm7176, %v7042, -inf
    %v7239 = vmax.f32 %v7237, %v7238
    %v7240 = vsel %vm7176, %v7021, -inf
    %v7241 = vsel %vm7176, %v7049, -inf
    %v7242 = vmax.f32 %v7240, %v7241
    %v7243 = vsel %vm7176, %v7028, -inf
    %v7244 = vsel %vm7176, %v7056, -inf
    %v7245 = vmax.f32 %v7243, %v7244
    %v7246 = vsel %vm7176, %v7035, -inf
    %v7247 = vsel %vm7176, %v7063, -inf
    %v7248 = vmax.f32 %v7246, %v7247
    %v7249 = vsel %vm7176, %v7070, -inf
    %v7250 = vsel %vm7176, %v7098, -inf
    %v7251 = vmax.f32 %v7249, %v7250
    %v7252 = vsel %vm7176, %v7077, -inf
    %v7253 = vsel %vm7176, %v7105, -inf
    %v7254 = vmax.f32 %v7252, %v7253
    %v7255 = vsel %vm7176, %v7084, -inf
    %v7256 = vsel %vm7176, %v7112, -inf
    %v7257 = vmax.f32 %v7255, %v7256
    %v7258 = vsel %vm7176, %v7091, -inf
    %v7259 = vsel %vm7176, %v7119, -inf
    %v7260 = vmax.f32 %v7258, %v7259
    %v7261 = vsel %vm7176, %v7126, -inf
    %v7262 = vsel %vm7176, %v7154, -inf
    %v7263 = vmax.f32 %v7261, %v7262
    %v7264 = vsel %vm7176, %v7133, -inf
    %v7265 = vsel %vm7176, %v7161, -inf
    %v7266 = vmax.f32 %v7264, %v7265
    %v7267 = vsel %vm7176, %v7140, -inf
    %v7268 = vsel %vm7176, %v7168, -inf
    %v7269 = vmax.f32 %v7267, %v7268
    %v7270 = vsel %vm7176, %v7147, -inf
    %v7271 = vsel %vm7176, %v7175, -inf
    %v7272 = vmax.f32 %v7270, %v7271
    %vm7273 = vcmask 259072
    %7274 = vst.msk [vmem:[#allocation5] sm:$0x3f] %vm7273, 0.0
    %7275 = vst.msk [vmem:[#allocation5 + $0x30] sm:$0x3f] %vm7273, 0.0
    %s7276 = scalar_lea.vmem [#allocation5], 40
    %7277 = vst.msk [vmem:[%s7276] sm:$0x3f] %vm7273, 0.0
    %7278 = vst.msk [vmem:[%s7276 + $0x30] sm:$0x3f] %vm7273, 0.0
    %vm7279 = vcmask 253952
    %7280 = vst.msk [vmem:[#allocation5] sm:$0x1] %vm7279, 0.0
    %7281 = vst.msk [vmem:[#allocation5 + $0x8] sm:$0x1] %vm7279, 0.0
    %7282 = vst.msk [vmem:[#allocation5 + $0x10] sm:$0x1] %vm7279, 0.0
    %7283 = vst.msk [vmem:[#allocation5 + $0x18] sm:$0x1] %vm7279, 0.0
    %7284 = vst.msk [vmem:[#allocation5 + $0x20] sm:$0x1] %vm7279, 0.0
    %7285 = vst.msk [vmem:[#allocation5 + $0x28] sm:$0x1] %vm7279, 0.0
    %7286 = vst.msk [vmem:[#allocation5 + $0x30] sm:$0x1] %vm7279, 0.0
    %7287 = vst.msk [vmem:[#allocation5 + $0x38] sm:$0x1] %vm7279, 0.0
    %7288 = vst.msk [vmem:[#allocation5 + $0x40] sm:$0x1] %vm7279, 0.0
    %7289 = vst.msk [vmem:[#allocation5 + $0x48] sm:$0x1] %vm7279, 0.0
    %7290 = vst.msk [vmem:[#allocation5 + $0x50] sm:$0x1] %vm7279, 0.0
    %7291 = vst.msk [vmem:[#allocation5 + $0x58] sm:$0x1] %vm7279, 0.0
    %7292 = vst.msk [vmem:[#allocation5 + $0x5] sm:$0x1] %vm7279, 0.0
    %7293 = vst.msk [vmem:[#allocation5 + $0xd] sm:$0x1] %vm7279, 0.0
    %7294 = vst.msk [vmem:[#allocation5 + $0x15] sm:$0x1] %vm7279, 0.0
    %7295 = vst.msk [vmem:[#allocation5 + $0x1d] sm:$0x1] %vm7279, 0.0
    %7296 = vst.msk [vmem:[#allocation5 + $0x25] sm:$0x1] %vm7279, 0.0
    %7297 = vst.msk [vmem:[#allocation5 + $0x2d] sm:$0x1] %vm7279, 0.0
    %7298 = vst.msk [vmem:[#allocation5 + $0x35] sm:$0x1] %vm7279, 0.0
    %7299 = vst.msk [vmem:[#allocation5 + $0x3d] sm:$0x1] %vm7279, 0.0
    %7300 = vst.msk [vmem:[#allocation5 + $0x45] sm:$0x1] %vm7279, 0.0
    %7301 = vst.msk [vmem:[#allocation5 + $0x4d] sm:$0x1] %vm7279, 0.0
    %7302 = vst.msk [vmem:[#allocation5 + $0x55] sm:$0x1] %vm7279, 0.0
    %7303 = vst.msk [vmem:[#allocation5 + $0x5d] sm:$0x1] %vm7279, 0.0
    %v7336 = vsel %vm5510, %v7182, %v7179
    %v7337 = vsel %vm5512, %v7185, %v7336
    %v7338 = vsel %vm5514, %v7188, %v7337
    %v7339 = vsel %vm5510, %v7194, %v7191
    %v7340 = vsel %vm5512, %v7197, %v7339
    %v7341 = vsel %vm5514, %v7200, %v7340
    %v7342 = vsel %vm5510, %v7206, %v7203
    %v7343 = vsel %vm5512, %v7209, %v7342
    %v7344 = vsel %vm5514, %v7212, %v7343
    %v7345 = vsel %vm5510, %v7218, %v7215
    %v7346 = vsel %vm5512, %v7221, %v7345
    %v7347 = vsel %vm5514, %v7224, %v7346
    %v7348 = vsel %vm5510, %v7230, %v7227
    %v7349 = vsel %vm5512, %v7233, %v7348
    %v7350 = vsel %vm5514, %v7236, %v7349
    %v7351 = vsel %vm5510, %v7242, %v7239
    %v7352 = vsel %vm5512, %v7245, %v7351
    %v7353 = vsel %vm5514, %v7248, %v7352
    %v7354 = vsel %vm5510, %v7254, %v7251
    %v7355 = vsel %vm5512, %v7257, %v7354
    %v7356 = vsel %vm5514, %v7260, %v7355
    %v7357 = vsel %vm5510, %v7266, %v7263
    %v7358 = vsel %vm5512, %v7269, %v7357
    %v7359 = vsel %vm5514, %v7272, %v7358
    %s7368 = scalar_lea.vmem [#allocation5], 8
    %vm7369 = vcmask 257024
    %7370 = vst.msk [vmem:[%s7368 + $0x1] sm:$0xf] %vm7369, %v7338
    %7371 = vst.msk [vmem:[%s7368 + $0x9] sm:$0xf] %vm7369, %v7341
    %7372 = vst.msk [vmem:[%s7368 + $0x11] sm:$0xf] %vm7369, %v7344
    %7373 = vst.msk [vmem:[%s7368 + $0x19] sm:$0xf] %vm7369, %v7347
    %7374 = vst.msk [vmem:[%s7368 + $0x31] sm:$0xf] %vm7369, %v7350
    %7375 = vst.msk [vmem:[%s7368 + $0x39] sm:$0xf] %vm7369, %v7353
    %7376 = vst.msk [vmem:[%s7368 + $0x41] sm:$0xf] %vm7369, %v7356
    %7377 = vst.msk [vmem:[%s7368 + $0x49] sm:$0xf] %vm7369, %v7359
    %v7378 = vld [vmem:[#allocation5] sm:$0x3f]
    %v7379 = vld [vmem:[#allocation5 + $0x8] sm:$0x3f]
    %v7380 = vld [vmem:[#allocation5 + $0x10] sm:$0x3f]
    %v7381 = vld [vmem:[#allocation5 + $0x18] sm:$0x3f]
    %v7382 = vld [vmem:[#allocation5 + $0x20] sm:$0x3f]
    %v7383 = vld [vmem:[#allocation5 + $0x28] sm:$0x3f]
    %v7384 = vld [vmem:[#allocation5 + $0x30] sm:$0x3f]
    %v7385 = vld [vmem:[#allocation5 + $0x38] sm:$0x3f]
    %v7386 = vld [vmem:[#allocation5 + $0x40] sm:$0x3f]
    %v7387 = vld [vmem:[#allocation5 + $0x48] sm:$0x3f]
    %v7388 = vld [vmem:[#allocation5 + $0x50] sm:$0x3f]
    %v7389 = vld [vmem:[#allocation5 + $0x58] sm:$0x3f]
    %7398 = vst [vmem:[#allocation1] ss:$2 sm:$0xff] %v7378
    %s7399 = scalar_lea.vmem [#allocation1], 1
    %7400 = vst [vmem:[%s7399] ss:$2 sm:$0xff] %v7379
    %s7401 = scalar_lea.vmem [#allocation1], 16
    %7402 = vst [vmem:[%s7401] ss:$2 sm:$0xff] %v7380
    %s7403 = scalar_lea.vmem [#allocation1], 17
    %7404 = vst [vmem:[%s7403] ss:$2 sm:$0xff] %v7381
    %s7405 = scalar_lea.vmem [#allocation1], 32
    %7406 = vst [vmem:[%s7405] ss:$2 sm:$0xff] %v7384
    %s7407 = scalar_lea.vmem [#allocation1], 33
    %7408 = vst [vmem:[%s7407] ss:$2 sm:$0xff] %v7385
    %s7409 = scalar_lea.vmem [#allocation1], 48
    %7410 = vst [vmem:[%s7409] ss:$2 sm:$0xff] %v7386
    %s7411 = scalar_lea.vmem [#allocation1], 49
    %7412 = vst [vmem:[%s7411] ss:$2 sm:$0xff] %v7387
    %v7413 = vld.sshfl [vmem:[#allocation1] sm:$0xff pattern:$0x75316420]
    %v7414 = vld.sshfl [vmem:[#allocation1 + $0x10] sm:$0xff pattern:$0x75316420]
    %v7415 = vld.sshfl [vmem:[#allocation1 + $0x20] sm:$0xff pattern:$0x75316420]
    %v7416 = vld.sshfl [vmem:[#allocation1 + $0x30] sm:$0xff pattern:$0x75316420]
    %7421 = vst.msk [vmem:[#allocation6] sm:$0xff] %vm7176, %v7413
    %7422 = vst.msk [vmem:[#allocation6 + $0x18] sm:$0xff] %vm7176, %v7414
    %7423 = vst.msk [vmem:[#allocation6 + $0x30] sm:$0xff] %vm7176, %v7415
    %7424 = vst.msk [vmem:[#allocation6 + $0x48] sm:$0xff] %vm7176, %v7416
    %v7425 = vrot.slane %v7378, 4
    %v7426 = vrot.slane %v7379, 4
    %v7427 = vrot.slane %v7380, 4
    %v7428 = vrot.slane %v7381, 4
    %v7429 = vrot.slane %v7384, 4
    %v7430 = vrot.slane %v7385, 4
    %v7431 = vrot.slane %v7386, 4
    %v7432 = vrot.slane %v7387, 4
    %vm7433 = vcmask 1042432
    %vm7434 = vcmask 1046532
    %vm7435 = vmor %vm7433, %vm7434
    %v7436 = vrot.slane %v7378, 5
    %v7437 = vrot.slane %v7436, 4
    %v7438 = vrot.slane %v7425, 5
    %v7439 = vsel %vm7435, %v7437, %v7438
    %v7440 = vrot.slane %v7379, 5
    %v7441 = vrot.slane %v7440, 4
    %v7442 = vrot.slane %v7426, 5
    %v7443 = vsel %vm7435, %v7441, %v7442
    %v7444 = vrot.slane %v7380, 5
    %v7445 = vrot.slane %v7444, 4
    %v7446 = vrot.slane %v7427, 5
    %v7447 = vsel %vm7435, %v7445, %v7446
    %v7448 = vrot.slane %v7381, 5
    %v7449 = vrot.slane %v7448, 4
    %v7450 = vrot.slane %v7428, 5
    %v7451 = vsel %vm7435, %v7449, %v7450
    %v7452 = vrot.slane %v7384, 5
    %v7453 = vrot.slane %v7452, 4
    %v7454 = vrot.slane %v7429, 5
    %v7455 = vsel %vm7435, %v7453, %v7454
    %v7456 = vrot.slane %v7385, 5
    %v7457 = vrot.slane %v7456, 4
    %v7458 = vrot.slane %v7430, 5
    %v7459 = vsel %vm7435, %v7457, %v7458
    %v7460 = vrot.slane %v7386, 5
    %v7461 = vrot.slane %v7460, 4
    %v7462 = vrot.slane %v7431, 5
    %v7463 = vsel %vm7435, %v7461, %v7462
    %v7464 = vrot.slane %v7387, 5
    %v7465 = vrot.slane %v7464, 4
    %v7466 = vrot.slane %v7432, 5
    %v7467 = vsel %vm7435, %v7465, %v7466
    %7468 = vst [vmem:[#allocation1] ss:$2 sm:$0xff] %v7439
    %s7469 = scalar_lea.vmem [#allocation1], 1
    %7470 = vst [vmem:[%s7469] ss:$2 sm:$0xff] %v7443
    %s7471 = scalar_lea.vmem [#allocation1], 16
    %7472 = vst [vmem:[%s7471] ss:$2 sm:$0xff] %v7447
    %s7473 = scalar_lea.vmem [#allocation1], 17
    %7474 = vst [vmem:[%s7473] ss:$2 sm:$0xff] %v7451
    %s7475 = scalar_lea.vmem [#allocation1], 32
    %7476 = vst [vmem:[%s7475] ss:$2 sm:$0xff] %v7455
    %s7477 = scalar_lea.vmem [#allocation1], 33
    %7478 = vst [vmem:[%s7477] ss:$2 sm:$0xff] %v7459
    %s7479 = scalar_lea.vmem [#allocation1], 48
    %7480 = vst [vmem:[%s7479] ss:$2 sm:$0xff] %v7463
    %s7481 = scalar_lea.vmem [#allocation1], 49
    %7482 = vst [vmem:[%s7481] ss:$2 sm:$0xff] %v7467
    %v7483 = vld.sshfl [vmem:[#allocation1] sm:$0xff pattern:$0x75316420]
    %v7484 = vld.sshfl [vmem:[#allocation1 + $0x10] sm:$0xff pattern:$0x75316420]
    %v7485 = vld.sshfl [vmem:[#allocation1 + $0x20] sm:$0xff pattern:$0x75316420]
    %v7486 = vld.sshfl [vmem:[#allocation1 + $0x30] sm:$0xff pattern:$0x75316420]
    %7487 = vrot.lane.b32.xlu0 %v7483, 32
    %v7488 = vpop.permute.xlu0 %7487
    %7489 = vrot.lane.b32.xlu0 %v7484, 32
    %v7490 = vpop.permute.xlu0 %7489
    %7491 = vrot.lane.b32.xlu0 %v7485, 32
    %v7492 = vpop.permute.xlu0 %7491
    %7493 = vrot.lane.b32.xlu0 %v7486, 32
    %v7494 = vpop.permute.xlu0 %7493
    %vm7499 = vcmask 523520
    %7500 = vst.msk [vmem:[#allocation6] sm:$0xff] %vm7499, %v7488
    %7501 = vst.msk [vmem:[#allocation6 + $0x18] sm:$0xff] %vm7499, %v7490
    %7502 = vst.msk [vmem:[#allocation6 + $0x30] sm:$0xff] %vm7499, %v7492
    %7503 = vst.msk [vmem:[#allocation6 + $0x48] sm:$0xff] %vm7499, %v7494
    %vm7504 = vcmask 1041408
    %vm7505 = vcmask 1045508
    %vm7506 = vmor %vm7504, %vm7505
    %v7507 = vrot.slane %v7378, 6
    %v7508 = vrot.slane %v7507, 4
    %v7509 = vrot.slane %v7425, 6
    %v7510 = vsel %vm7506, %v7508, %v7509
    %v7511 = vrot.slane %v7379, 6
    %v7512 = vrot.slane %v7511, 4
    %v7513 = vrot.slane %v7426, 6
    %v7514 = vsel %vm7506, %v7512, %v7513
    %v7515 = vrot.slane %v7380, 6
    %v7516 = vrot.slane %v7515, 4
    %v7517 = vrot.slane %v7427, 6
    %v7518 = vsel %vm7506, %v7516, %v7517
    %v7519 = vrot.slane %v7381, 6
    %v7520 = vrot.slane %v7519, 4
    %v7521 = vrot.slane %v7428, 6
    %v7522 = vsel %vm7506, %v7520, %v7521
    %v7523 = vrot.slane %v7384, 6
    %v7524 = vrot.slane %v7523, 4
    %v7525 = vrot.slane %v7429, 6
    %v7526 = vsel %vm7506, %v7524, %v7525
    %v7527 = vrot.slane %v7385, 6
    %v7528 = vrot.slane %v7527, 4
    %v7529 = vrot.slane %v7430, 6
    %v7530 = vsel %vm7506, %v7528, %v7529
    %v7531 = vrot.slane %v7386, 6
    %v7532 = vrot.slane %v7531, 4
    %v7533 = vrot.slane %v7431, 6
    %v7534 = vsel %vm7506, %v7532, %v7533
    %v7535 = vrot.slane %v7387, 6
    %v7536 = vrot.slane %v7535, 4
    %v7537 = vrot.slane %v7432, 6
    %v7538 = vsel %vm7506, %v7536, %v7537
    %7539 = vst [vmem:[#allocation1] ss:$2 sm:$0xff] %v7510
    %s7540 = scalar_lea.vmem [#allocation1], 1
    %7541 = vst [vmem:[%s7540] ss:$2 sm:$0xff] %v7514
    %s7542 = scalar_lea.vmem [#allocation1], 16
    %7543 = vst [vmem:[%s7542] ss:$2 sm:$0xff] %v7518
    %s7544 = scalar_lea.vmem [#allocation1], 17
    %7545 = vst [vmem:[%s7544] ss:$2 sm:$0xff] %v7522
    %s7546 = scalar_lea.vmem [#allocation1], 32
    %7547 = vst [vmem:[%s7546] ss:$2 sm:$0xff] %v7526
    %s7548 = scalar_lea.vmem [#allocation1], 33
    %7549 = vst [vmem:[%s7548] ss:$2 sm:$0xff] %v7530
    %s7550 = scalar_lea.vmem [#allocation1], 48
    %7551 = vst [vmem:[%s7550] ss:$2 sm:$0xff] %v7534
    %s7552 = scalar_lea.vmem [#allocation1], 49
    %7553 = vst [vmem:[%s7552] ss:$2 sm:$0xff] %v7538
    %v7554 = vld.sshfl [vmem:[#allocation1] sm:$0xff pattern:$0x75316420]
    %v7555 = vld.sshfl [vmem:[#allocation1 + $0x10] sm:$0xff pattern:$0x75316420]
    %v7556 = vld.sshfl [vmem:[#allocation1 + $0x20] sm:$0xff pattern:$0x75316420]
    %v7557 = vld.sshfl [vmem:[#allocation1 + $0x30] sm:$0xff pattern:$0x75316420]
    %7558 = vrot.lane.b32.xlu0 %v7554, 64
    %v7559 = vpop.permute.xlu0 %7558
    %7560 = vrot.lane.b32.xlu0 %v7555, 64
    %v7561 = vpop.permute.xlu0 %7560
    %7562 = vrot.lane.b32.xlu0 %v7556, 64
    %v7563 = vpop.permute.xlu0 %7562
    %7564 = vrot.lane.b32.xlu0 %v7557, 64
    %v7565 = vpop.permute.xlu0 %7564
    %vm7570 = vcmask 785920
    %7571 = vst.msk [vmem:[#allocation6] sm:$0xff] %vm7570, %v7559
    %7572 = vst.msk [vmem:[#allocation6 + $0x18] sm:$0xff] %vm7570, %v7561
    %7573 = vst.msk [vmem:[#allocation6 + $0x30] sm:$0xff] %vm7570, %v7563
    %7574 = vst.msk [vmem:[#allocation6 + $0x48] sm:$0xff] %vm7570, %v7565
    %7577 = vst [vmem:[#allocation1] ss:$2 sm:$0xff] %v7379
    %s7578 = scalar_lea.vmem [#allocation1], 1
    %7579 = vst [vmem:[%s7578] ss:$2 sm:$0xff] %v7380
    %s7580 = scalar_lea.vmem [#allocation1], 16
    %7581 = vst [vmem:[%s7580] ss:$2 sm:$0xff] %v7381
    %s7582 = scalar_lea.vmem [#allocation1], 17
    %7583 = vst [vmem:[%s7582] ss:$2 sm:$0xff] %v7382
    %s7584 = scalar_lea.vmem [#allocation1], 32
    %7585 = vst [vmem:[%s7584] ss:$2 sm:$0xff] %v7385
    %s7586 = scalar_lea.vmem [#allocation1], 33
    %7587 = vst [vmem:[%s7586] ss:$2 sm:$0xff] %v7386
    %s7588 = scalar_lea.vmem [#allocation1], 48
    %7589 = vst [vmem:[%s7588] ss:$2 sm:$0xff] %v7387
    %s7590 = scalar_lea.vmem [#allocation1], 49
    %7591 = vst [vmem:[%s7590] ss:$2 sm:$0xff] %v7388
    %v7592 = vld.sshfl [vmem:[#allocation1] sm:$0xff pattern:$0x75316420]
    %v7593 = vld.sshfl [vmem:[#allocation1 + $0x10] sm:$0xff pattern:$0x75316420]
    %v7594 = vld.sshfl [vmem:[#allocation1 + $0x20] sm:$0xff pattern:$0x75316420]
    %v7595 = vld.sshfl [vmem:[#allocation1 + $0x30] sm:$0xff pattern:$0x75316420]
    %7596 = vrot.lane.b32.xlu0 %v7592, 96
    %v7597 = vpop.permute.xlu0 %7596
    %7598 = vrot.lane.b32.xlu0 %v7593, 96
    %v7599 = vpop.permute.xlu0 %7598
    %7600 = vrot.lane.b32.xlu0 %v7594, 96
    %v7601 = vpop.permute.xlu0 %7600
    %7602 = vrot.lane.b32.xlu0 %v7595, 96
    %v7603 = vpop.permute.xlu0 %7602
    %vm7608 = vcmask 1048320
    %7609 = vst.msk [vmem:[#allocation6] sm:$0xff] %vm7608, %v7597
    %7610 = vst.msk [vmem:[#allocation6 + $0x18] sm:$0xff] %vm7608, %v7599
    %7611 = vst.msk [vmem:[#allocation6 + $0x30] sm:$0xff] %vm7608, %v7601
    %7612 = vst.msk [vmem:[#allocation6 + $0x48] sm:$0xff] %vm7608, %v7603
    %v7613 = vrot.slane %v7382, 4
    %v7614 = vrot.slane %v7388, 4
    %v7615 = vrot.slane %v7382, 5
    %v7616 = vrot.slane %v7615, 4
    %v7617 = vrot.slane %v7613, 5
    %v7618 = vsel %vm7435, %v7616, %v7617
    %v7619 = vrot.slane %v7388, 5
    %v7620 = vrot.slane %v7619, 4
    %v7621 = vrot.slane %v7614, 5
    %v7622 = vsel %vm7435, %v7620, %v7621
    %7623 = vst [vmem:[#allocation1] ss:$2 sm:$0xff] %v7443
    %s7624 = scalar_lea.vmem [#allocation1], 1
    %7625 = vst [vmem:[%s7624] ss:$2 sm:$0xff] %v7447
    %s7626 = scalar_lea.vmem [#allocation1], 16
    %7627 = vst [vmem:[%s7626] ss:$2 sm:$0xff] %v7451
    %s7628 = scalar_lea.vmem [#allocation1], 17
    %7629 = vst [vmem:[%s7628] ss:$2 sm:$0xff] %v7618
    %s7630 = scalar_lea.vmem [#allocation1], 32
    %7631 = vst [vmem:[%s7630] ss:$2 sm:$0xff] %v7459
    %s7632 = scalar_lea.vmem [#allocation1], 33
    %7633 = vst [vmem:[%s7632] ss:$2 sm:$0xff] %v7463
    %s7634 = scalar_lea.vmem [#allocation1], 48
    %7635 = vst [vmem:[%s7634] ss:$2 sm:$0xff] %v7467
    %s7636 = scalar_lea.vmem [#allocation1], 49
    %7637 = vst [vmem:[%s7636] ss:$2 sm:$0xff] %v7622
    %v7638 = vld.sshfl [vmem:[#allocation1] sm:$0xff pattern:$0x75316420]
    %v7639 = vld.sshfl [vmem:[#allocation1 + $0x10] sm:$0xff pattern:$0x75316420]
    %v7640 = vld.sshfl [vmem:[#allocation1 + $0x20] sm:$0xff pattern:$0x75316420]
    %v7641 = vld.sshfl [vmem:[#allocation1 + $0x30] sm:$0xff pattern:$0x75316420]
    %7646 = vst.msk [vmem:[#allocation6 + $0x8] sm:$0xff] %vm7176, %v7638
    %7647 = vst.msk [vmem:[#allocation6 + $0x20] sm:$0xff] %vm7176, %v7639
    %7648 = vst.msk [vmem:[#allocation6 + $0x38] sm:$0xff] %vm7176, %v7640
    %7649 = vst.msk [vmem:[#allocation6 + $0x50] sm:$0xff] %vm7176, %v7641
    %v7650 = vrot.slane %v7382, 6
    %v7651 = vrot.slane %v7650, 4
    %v7652 = vrot.slane %v7613, 6
    %v7653 = vsel %vm7506, %v7651, %v7652
    %v7654 = vrot.slane %v7388, 6
    %v7655 = vrot.slane %v7654, 4
    %v7656 = vrot.slane %v7614, 6
    %v7657 = vsel %vm7506, %v7655, %v7656
    %7658 = vst [vmem:[#allocation1] ss:$2 sm:$0xff] %v7514
    %s7659 = scalar_lea.vmem [#allocation1], 1
    %7660 = vst [vmem:[%s7659] ss:$2 sm:$0xff] %v7518
    %s7661 = scalar_lea.vmem [#allocation1], 16
    %7662 = vst [vmem:[%s7661] ss:$2 sm:$0xff] %v7522
    %s7663 = scalar_lea.vmem [#allocation1], 17
    %7664 = vst [vmem:[%s7663] ss:$2 sm:$0xff] %v7653
    %s7665 = scalar_lea.vmem [#allocation1], 32
    %7666 = vst [vmem:[%s7665] ss:$2 sm:$0xff] %v7530
    %s7667 = scalar_lea.vmem [#allocation1], 33
    %7668 = vst [vmem:[%s7667] ss:$2 sm:$0xff] %v7534
    %s7669 = scalar_lea.vmem [#allocation1], 48
    %7670 = vst [vmem:[%s7669] ss:$2 sm:$0xff] %v7538
    %s7671 = scalar_lea.vmem [#allocation1], 49
    %7672 = vst [vmem:[%s7671] ss:$2 sm:$0xff] %v7657
    %v7673 = vld.sshfl [vmem:[#allocation1] sm:$0xff pattern:$0x75316420]
    %v7674 = vld.sshfl [vmem:[#allocation1 + $0x10] sm:$0xff pattern:$0x75316420]
    %v7675 = vld.sshfl [vmem:[#allocation1 + $0x20] sm:$0xff pattern:$0x75316420]
    %v7676 = vld.sshfl [vmem:[#allocation1 + $0x30] sm:$0xff pattern:$0x75316420]
    %7677 = vrot.lane.b32.xlu0 %v7673, 32
    %v7678 = vpop.permute.xlu0 %7677
    %7679 = vrot.lane.b32.xlu0 %v7674, 32
    %v7680 = vpop.permute.xlu0 %7679
    %7681 = vrot.lane.b32.xlu0 %v7675, 32
    %v7682 = vpop.permute.xlu0 %7681
    %7683 = vrot.lane.b32.xlu0 %v7676, 32
    %v7684 = vpop.permute.xlu0 %7683
    %7689 = vst.msk [vmem:[#allocation6 + $0x8] sm:$0xff] %vm7499, %v7678
    %7690 = vst.msk [vmem:[#allocation6 + $0x20] sm:$0xff] %vm7499, %v7680
    %7691 = vst.msk [vmem:[#allocation6 + $0x38] sm:$0xff] %vm7499, %v7682
    %7692 = vst.msk [vmem:[#allocation6 + $0x50] sm:$0xff] %vm7499, %v7684
    %7695 = vst [vmem:[#allocation1] ss:$2 sm:$0xff] %v7380
    %s7696 = scalar_lea.vmem [#allocation1], 1
    %7697 = vst [vmem:[%s7696] ss:$2 sm:$0xff] %v7381
    %s7698 = scalar_lea.vmem [#allocation1], 16
    %7699 = vst [vmem:[%s7698] ss:$2 sm:$0xff] %v7382
    %s7700 = scalar_lea.vmem [#allocation1], 17
    %7701 = vst [vmem:[%s7700] ss:$2 sm:$0xff] %v7383
    %s7702 = scalar_lea.vmem [#allocation1], 32
    %7703 = vst [vmem:[%s7702] ss:$2 sm:$0xff] %v7386
    %s7704 = scalar_lea.vmem [#allocation1], 33
    %7705 = vst [vmem:[%s7704] ss:$2 sm:$0xff] %v7387
    %s7706 = scalar_lea.vmem [#allocation1], 48
    %7707 = vst [vmem:[%s7706] ss:$2 sm:$0xff] %v7388
    %s7708 = scalar_lea.vmem [#allocation1], 49
    %7709 = vst [vmem:[%s7708] ss:$2 sm:$0xff] %v7389
    %v7710 = vld.sshfl [vmem:[#allocation1] sm:$0xff pattern:$0x75316420]
    %v7711 = vld.sshfl [vmem:[#allocation1 + $0x10] sm:$0xff pattern:$0x75316420]
    %v7712 = vld.sshfl [vmem:[#allocation1 + $0x20] sm:$0xff pattern:$0x75316420]
    %v7713 = vld.sshfl [vmem:[#allocation1 + $0x30] sm:$0xff pattern:$0x75316420]
    %7714 = vrot.lane.b32.xlu0 %v7710, 64
    %v7715 = vpop.permute.xlu0 %7714
    %7716 = vrot.lane.b32.xlu0 %v7711, 64
    %v7717 = vpop.permute.xlu0 %7716
    %7718 = vrot.lane.b32.xlu0 %v7712, 64
    %v7719 = vpop.permute.xlu0 %7718
    %7720 = vrot.lane.b32.xlu0 %v7713, 64
    %v7721 = vpop.permute.xlu0 %7720
    %7726 = vst.msk [vmem:[#allocation6 + $0x8] sm:$0xff] %vm7570, %v7715
    %7727 = vst.msk [vmem:[#allocation6 + $0x20] sm:$0xff] %vm7570, %v7717
    %7728 = vst.msk [vmem:[#allocation6 + $0x38] sm:$0xff] %vm7570, %v7719
    %7729 = vst.msk [vmem:[#allocation6 + $0x50] sm:$0xff] %vm7570, %v7721
    %v7730 = vrot.slane %v7383, 4
    %v7731 = vrot.slane %v7389, 4
    %v7732 = vrot.slane %v7383, 5
    %v7733 = vrot.slane %v7732, 4
    %v7734 = vrot.slane %v7730, 5
    %v7735 = vsel %vm7435, %v7733, %v7734
    %v7736 = vrot.slane %v7389, 5
    %v7737 = vrot.slane %v7736, 4
    %v7738 = vrot.slane %v7731, 5
    %v7739 = vsel %vm7435, %v7737, %v7738
    %7740 = vst [vmem:[#allocation1] ss:$2 sm:$0xff] %v7447
    %s7741 = scalar_lea.vmem [#allocation1], 1
    %7742 = vst [vmem:[%s7741] ss:$2 sm:$0xff] %v7451
    %s7743 = scalar_lea.vmem [#allocation1], 16
    %7744 = vst [vmem:[%s7743] ss:$2 sm:$0xff] %v7618
    %s7745 = scalar_lea.vmem [#allocation1], 17
    %7746 = vst [vmem:[%s7745] ss:$2 sm:$0xff] %v7735
    %s7747 = scalar_lea.vmem [#allocation1], 32
    %7748 = vst [vmem:[%s7747] ss:$2 sm:$0xff] %v7463
    %s7749 = scalar_lea.vmem [#allocation1], 33
    %7750 = vst [vmem:[%s7749] ss:$2 sm:$0xff] %v7467
    %s7751 = scalar_lea.vmem [#allocation1], 48
    %7752 = vst [vmem:[%s7751] ss:$2 sm:$0xff] %v7622
    %s7753 = scalar_lea.vmem [#allocation1], 49
    %7754 = vst [vmem:[%s7753] ss:$2 sm:$0xff] %v7739
    %v7755 = vld.sshfl [vmem:[#allocation1] sm:$0xff pattern:$0x75316420]
    %v7756 = vld.sshfl [vmem:[#allocation1 + $0x10] sm:$0xff pattern:$0x75316420]
    %v7757 = vld.sshfl [vmem:[#allocation1 + $0x20] sm:$0xff pattern:$0x75316420]
    %v7758 = vld.sshfl [vmem:[#allocation1 + $0x30] sm:$0xff pattern:$0x75316420]
    %7759 = vrot.lane.b32.xlu0 %v7755, 96
    %v7760 = vpop.permute.xlu0 %7759
    %7761 = vrot.lane.b32.xlu0 %v7756, 96
    %v7762 = vpop.permute.xlu0 %7761
    %7763 = vrot.lane.b32.xlu0 %v7757, 96
    %v7764 = vpop.permute.xlu0 %7763
    %7765 = vrot.lane.b32.xlu0 %v7758, 96
    %v7766 = vpop.permute.xlu0 %7765
    %7771 = vst.msk [vmem:[#allocation6 + $0x8] sm:$0xff] %vm7608, %v7760
    %7772 = vst.msk [vmem:[#allocation6 + $0x20] sm:$0xff] %vm7608, %v7762
    %7773 = vst.msk [vmem:[#allocation6 + $0x38] sm:$0xff] %vm7608, %v7764
    %7774 = vst.msk [vmem:[#allocation6 + $0x50] sm:$0xff] %vm7608, %v7766
    %v7775 = vrot.slane %v7383, 6
    %v7776 = vrot.slane %v7775, 4
    %v7777 = vrot.slane %v7730, 6
    %v7778 = vsel %vm7506, %v7776, %v7777
    %v7779 = vrot.slane %v7389, 6
    %v7780 = vrot.slane %v7779, 4
    %v7781 = vrot.slane %v7731, 6
    %v7782 = vsel %vm7506, %v7780, %v7781
    %7783 = vst [vmem:[#allocation1] ss:$2 sm:$0xff] %v7518
    %s7784 = scalar_lea.vmem [#allocation1], 1
    %7785 = vst [vmem:[%s7784] ss:$2 sm:$0xff] %v7522
    %s7786 = scalar_lea.vmem [#allocation1], 16
    %7787 = vst [vmem:[%s7786] ss:$2 sm:$0xff] %v7653
    %s7788 = scalar_lea.vmem [#allocation1], 17
    %7789 = vst [vmem:[%s7788] ss:$2 sm:$0xff] %v7778
    %s7790 = scalar_lea.vmem [#allocation1], 32
    %7791 = vst [vmem:[%s7790] ss:$2 sm:$0xff] %v7534
    %s7792 = scalar_lea.vmem [#allocation1], 33
    %7793 = vst [vmem:[%s7792] ss:$2 sm:$0xff] %v7538
    %s7794 = scalar_lea.vmem [#allocation1], 48
    %7795 = vst [vmem:[%s7794] ss:$2 sm:$0xff] %v7657
    %s7796 = scalar_lea.vmem [#allocation1], 49
    %7797 = vst [vmem:[%s7796] ss:$2 sm:$0xff] %v7782
    %v7798 = vld.sshfl [vmem:[#allocation1] sm:$0xff pattern:$0x75316420]
    %v7799 = vld.sshfl [vmem:[#allocation1 + $0x10] sm:$0xff pattern:$0x75316420]
    %v7800 = vld.sshfl [vmem:[#allocation1 + $0x20] sm:$0xff pattern:$0x75316420]
    %v7801 = vld.sshfl [vmem:[#allocation1 + $0x30] sm:$0xff pattern:$0x75316420]
    %7806 = vst.msk [vmem:[#allocation6 + $0x10] sm:$0xff] %vm7176, %v7798
    %7807 = vst.msk [vmem:[#allocation6 + $0x28] sm:$0xff] %vm7176, %v7799
    %7808 = vst.msk [vmem:[#allocation6 + $0x40] sm:$0xff] %vm7176, %v7800
    %7809 = vst.msk [vmem:[#allocation6 + $0x58] sm:$0xff] %vm7176, %v7801
    %v7810 = vld [vmem:[#allocation6] sm:$0xff]
    %v7811 = vld [vmem:[#allocation6 + $0x8] sm:$0xff]
    %v7812 = vld [vmem:[#allocation6 + $0x10] sm:$0xff]
    %v7813 = vld [vmem:[#allocation6 + $0x18] sm:$0xff]
    %v7814 = vld [vmem:[#allocation6 + $0x20] sm:$0xff]
    %v7815 = vld [vmem:[#allocation6 + $0x28] sm:$0xff]
    %v7816 = vld [vmem:[#allocation6 + $0x30] sm:$0xff]
    %v7817 = vld [vmem:[#allocation6 + $0x38] sm:$0xff]
    %v7818 = vld [vmem:[#allocation6 + $0x40] sm:$0xff]
    %v7819 = vld [vmem:[#allocation6 + $0x48] sm:$0xff]
    %v7820 = vld [vmem:[#allocation6 + $0x50] sm:$0xff]
    %v7821 = vld [vmem:[#allocation6 + $0x58] sm:$0xff]
    %v7822 = vld [vmem:[%s5] sm:$0xff]
    %v7823 = vld [vmem:[%s5 + $0x8] sm:$0xff]
    %v7824 = vld [vmem:[%s5 + $0x10] sm:$0xff]
    %v7825 = vld [vmem:[%s5 + $0x18] sm:$0xff]
    %v7826 = vld [vmem:[%s5 + $0x20] sm:$0xff]
    %v7827 = vld [vmem:[%s5 + $0x28] sm:$0xff]
    %v7828 = vld [vmem:[%s5 + $0x30] sm:$0xff]
    %v7829 = vld [vmem:[%s5 + $0x38] sm:$0xff]
    %v7830 = vld [vmem:[%s5 + $0x40] sm:$0xff]
    %v7831 = vld [vmem:[%s5 + $0x48] sm:$0xff]
    %v7832 = vld [vmem:[%s5 + $0x50] sm:$0xff]
    %v7833 = vld [vmem:[%s5 + $0x58] sm:$0xff]
    %v7834 = vld [vmem:[%s5 + $0x60] sm:$0xff]
    %v7835 = vld [vmem:[%s5 + $0x68] sm:$0xff]
    %v7836 = vld [vmem:[%s5 + $0x70] sm:$0xff]
    %v7837 = vld [vmem:[%s5 + $0x78] sm:$0xff]
    %v7838 = vld [vmem:[%s5 + $0x80] sm:$0xff]
    %v7839 = vld [vmem:[%s5 + $0x88] sm:$0xff]
    %v7840 = vld [vmem:[%s5 + $0x90] sm:$0xff]
    %v7841 = vld [vmem:[%s5 + $0x98] sm:$0xff]
    %v7842 = vld [vmem:[%s5 + $0xa0] sm:$0xff]
    %v7843 = vld [vmem:[%s5 + $0xa8] sm:$0xff]
    %v7844 = vld [vmem:[%s5 + $0xb0] sm:$0xff]
    %v7845 = vld [vmem:[%s5 + $0xb8] sm:$0xff]
    %v7846 = vld [vmem:[%s5 + $0xc0] sm:$0xff]
    %v7847 = vld [vmem:[%s5 + $0xc8] sm:$0xff]
    %v7848 = vld [vmem:[%s5 + $0xd0] sm:$0xff]
    %v7849 = vld [vmem:[%s5 + $0xd8] sm:$0xff]
    %v7850 = vld [vmem:[%s5 + $0xe0] sm:$0xff]
    %v7851 = vld [vmem:[%s5 + $0xe8] sm:$0xff]
    %v7852 = vld [vmem:[%s5 + $0xf0] sm:$0xff]
    %v7853 = vld [vmem:[%s5 + $0xf8] sm:$0xff]
    %v7854 = vld [vmem:[%s5 + $0x100] sm:$0xff]
    %v7855 = vld [vmem:[%s5 + $0x108] sm:$0xff]
    %v7856 = vld [vmem:[%s5 + $0x110] sm:$0xff]
    %v7857 = vld [vmem:[%s5 + $0x118] sm:$0xff]
    %v7858 = vld [vmem:[%s6] sm:$0x1]
    %v7860 = vperm.slane %v7858, 0
    %v7863 = vsel %vm7176, %v7812, 0
    %v7866 = vsel %vm7176, %v7815, 0
    %v7869 = vsel %vm7176, %v7818, 0
    %v7872 = vsel %vm7176, %v7821, 0
    %7874 = vmatpush.msra.mxu0 %v7837
    %7875 = vmatpush.msra.mxu0 %v7836
    %7876 = vmatpush.msra.mxu0 %v7835
    %7877 = vmatpush.msra.mxu0 %v7834
    %7878 = vmatpush.msra.mxu0 %v7833
    %7879 = vmatpush.msra.mxu0 %v7832
    %7880 = vmatpush.msra.mxu0 %v7831
    %7881 = vmatpush.msra.mxu0 %v7830
    %7882 = vmatpush.msra.mxu0 %v7829
    %7883 = vmatpush.msra.mxu0 %v7828
    %7884 = vmatpush.msra.mxu0 %v7827
    %7885 = vmatpush.msra.mxu0 %v7826
    %7886 = vmatpush.msra.mxu0 %v7825
    %7887 = vmatpush.msra.mxu0 %v7824
    %7888 = vmatpush.msra.mxu0 %v7823
    %7889 = vmatpush.msra.mxu0 %v7822
    %7890 = vmatmul.f32.gmra.mxu0 %v7810
    %v7891 = vpop.f32.mrf.mxu0
    %v7892 = vadd.f32 %v7860, %v7891
    %7893 = vmatmul.f32.gmra.mxu0 %v7813
    %v7894 = vpop.f32.mrf.mxu0
    %v7895 = vadd.f32 %v7860, %v7894
    %7896 = vmatmul.f32.gmra.mxu0 %v7816
    %v7897 = vpop.f32.mrf.mxu0
    %v7898 = vadd.f32 %v7860, %v7897
    %7899 = vmatmul.f32.gmra.mxu0 %v7819
    %v7900 = vpop.f32.mrf.mxu0
    %v7901 = vadd.f32 %v7860, %v7900
    %7902 = vdwg.mxu0
    %7903 = vmatpush.msra.mxu0 %v7853
    %7904 = vmatpush.msra.mxu0 %v7852
    %7905 = vmatpush.msra.mxu0 %v7851
    %7906 = vmatpush.msra.mxu0 %v7850
    %7907 = vmatpush.msra.mxu0 %v7849
    %7908 = vmatpush.msra.mxu0 %v7848
    %7909 = vmatpush.msra.mxu0 %v7847
    %7910 = vmatpush.msra.mxu0 %v7846
    %7911 = vmatpush.msra.mxu0 %v7845
    %7912 = vmatpush.msra.mxu0 %v7844
    %7913 = vmatpush.msra.mxu0 %v7843
    %7914 = vmatpush.msra.mxu0 %v7842
    %7915 = vmatpush.msra.mxu0 %v7841
    %7916 = vmatpush.msra.mxu0 %v7840
    %7917 = vmatpush.msra.mxu0 %v7839
    %7918 = vmatpush.msra.mxu0 %v7838
    %7919 = vmatmul.f32.gmra.mxu0 %v7811
    %v7920 = vpop.f32.mrf.mxu0
    %v7921 = vadd.f32 %v7892, %v7920
    %7922 = vmatmul.f32.gmra.mxu0 %v7814
    %v7923 = vpop.f32.mrf.mxu0
    %v7924 = vadd.f32 %v7895, %v7923
    %7925 = vmatmul.f32.gmra.mxu0 %v7817
    %v7926 = vpop.f32.mrf.mxu0
    %v7927 = vadd.f32 %v7898, %v7926
    %7928 = vmatmul.f32.gmra.mxu0 %v7820
    %v7929 = vpop.f32.mrf.mxu0
    %v7930 = vadd.f32 %v7901, %v7929
    %7931 = vdwg.mxu0
    %7932 = vmatpush.msra.mxu0 0.0
    %7933 = vmatpush.msra.mxu0 0.0
    %7934 = vmatpush.msra.mxu0 0.0
    %7935 = vmatpush.msra.mxu0 0.0
    %7936 = vmatpush.msra.mxu0 0.0
    %7937 = vmatpush.msra.mxu0 0.0
    %7938 = vmatpush.msra.mxu0 0.0
    %7939 = vmatpush.msra.mxu0 0.0
    %7940 = vmatpush.msra.mxu0 0.0
    %7941 = vmatpush.msra.mxu0 0.0
    %7942 = vmatpush.msra.mxu0 0.0
    %7943 = vmatpush.msra.mxu0 0.0
    %7944 = vmatpush.msra.mxu0 %v7857
    %7945 = vmatpush.msra.mxu0 %v7856
    %7946 = vmatpush.msra.mxu0 %v7855
    %7947 = vmatpush.msra.mxu0 %v7854
    %7948 = vmatmul.f32.gmra.mxu0 %v7863
    %v7949 = vpop.f32.mrf.mxu0
    %v7950 = vadd.f32 %v7921, %v7949
    %7951 = vmatmul.f32.gmra.mxu0 %v7866
    %v7952 = vpop.f32.mrf.mxu0
    %v7953 = vadd.f32 %v7924, %v7952
    %7954 = vmatmul.f32.gmra.mxu0 %v7869
    %v7955 = vpop.f32.mrf.mxu0
    %v7956 = vadd.f32 %v7927, %v7955
    %7957 = vmatmul.f32.gmra.mxu0 %v7872
    %v7958 = vpop.f32.mrf.mxu0
    %v7959 = vadd.f32 %v7930, %v7958
    %7960 = vdwg.mxu0
    %v7961 = vmax.f32 %v7950, 0.0
    %v7962 = vmax.f32 %v7953, 0.0
    %v7963 = vmax.f32 %v7956, 0.0
    %v7964 = vmax.f32 %v7959, 0.0
    %7965 = vst [vmem:[#allocation7] sm:$0xff] %v7961
    %7966 = vst [vmem:[#allocation7 + $0x8] sm:$0xff] %v7962
    %7967 = vst [vmem:[#allocation7 + $0x10] sm:$0xff] %v7963
    %7968 = vst [vmem:[#allocation7 + $0x18] sm:$0xff] %v7964
    // Predicated region
    $region30: #{simple_feature_net.1} parent=1 // pred_check
      _
    $region31: #{simple_feature_net.1} parent=1 // pred_check_branch
      %7970 = sbr.rel (0) target = $region33
    $region32: #{simple_feature_net.1} parent=1 // pred_region
      %7972 = vsyncadd [#allocation8], 0
      %s7973 = sshll.u32 [#allocation7], 4
      %s7974 = int_to_ptr.vmem [resolvable:$true] %s7973
      %s7975 = sshll.u32 %s7, 4
      %s7976 = int_to_ptr.hbm [resolvable:$true] %s7975
      %7981 = dma.vmem_to_hbm [thread:$0]  %s7974, 512, %s7976, [#allocation8], 128, 128, 8
    $region33: #{simple_feature_net.1} parent=1 // pred_fallthru
      _
    // Predicated region
    $region34: #{simple_feature_net.1} parent=1 // pred_check
      _
    $region35: #{simple_feature_net.1} parent=1 // pred_check_branch
      %7983 = sbr.rel (0) target = $region37
    $region36: #{simple_feature_net.1} parent=1 // pred_region
      %7985 = dma.done [#allocation8], 512
    $region37: #{simple_feature_net.1} parent=1 // pred_fallthru
      _
    %7986 = vsyncpa [#allocation8], 1

</llo_original>
